<compile_context>
chip_gen: v5e
topology: v5e:2x2
jax: 0.10.0
libtpu: 0.0.40
codegen_flags: <defaults>
</compile_context>

<pallas_src>
import functools

import jax
import jax.numpy as jnp
from jax.experimental import pallas as pl
from jax.experimental.pallas import tpu as pltpu

EPS = 1e-5
C_MID = 64                       # fixed by the module: Conv2d(64*2, 64, ...)
MXU_DTYPE = jnp.bfloat16         # conv matmul operand dtype (f32 accumulation)


def _round_up(v, m):
    return ((v + m - 1) // m) * m


def relationnet_kernel(
    x_ref,        # (X_ROWS, 3*C_in)     bf16  row-flattened input, kw-taps packed along K
    mask1_ref,    # (M1C, 1)             f32   1.0 on valid conv1 output rows
    mask2_ref,    # (M2, 1)              f32   1.0 on valid conv2 output rows
    w1_ref,       # (3, 3*C_in, 64)      bf16  conv1 weights, kh-indexed / kw-packed K
    b1_ref, g1_ref, be1_ref,             # (1, 64) f32
    w2_ref,       # (9, 64, 64)          bf16  conv2 tap weights
    b2_ref, g2_ref, be2_ref,             # (1, 64) f32
    fc1w_ref,     # (PH2*PW2*64, hidden) f32   fc1 weight, pooled-position-major rows
    fc1b_ref,     # (1, hidden)          f32
    fc2w_ref,     # (hidden, 1)          f32
    fc2b_ref,     # (1, 1)               f32
    out_ref,      # (N, 1)               f32
    c1_ref,       # (C1_ROWS, 64)        f32 scratch: conv1 -> bn1 -> relu
    hm_ref,       # (M1, 64)             f32 scratch: horizontal pool maxima (reused)
    c2_ref,       # (C2_ROWS, 64)        f32 scratch: conv2 -> bn2 -> relu
    p1_ref,       # (P1_ROWS, 64)        f32 scratch: pool1 output
    *, n, oh1, ow1, ph1, pw1, oh2, ow2, ph2, pw2,
    pitch1, span1, pitch2, span2, chunk, m1, m1c, m2,
):
    c_mid = w1_ref.shape[2]

    # ---- layer1 Conv2d(C_in -> 64, k=3): kw taps pre-packed along K -> 3 matmuls/chunk.
    #      128-row chunks keep the f32 accumulator in vregs (no spill round-trips); the
    #      masked one-pass BN statistics are fused into the same pass.
    sum1 = jnp.zeros((c_mid,), jnp.float32)
    sq1 = jnp.zeros((c_mid,), jnp.float32)
    for c0 in range(0, m1c, chunk):
        acc = jnp.zeros((chunk, c_mid), jnp.float32)
        for kh in range(3):
            off = c0 + kh * pitch1                          # multiple of 8 -> aligned reads
            acc = acc + jnp.dot(x_ref[off:off + chunk, :], w1_ref[kh],
                                preferred_element_type=jnp.float32)
        acc = acc + b1_ref[...]                             # conv bias, added once
        msk = mask1_ref[c0:c0 + chunk, :]
        am = jnp.where(msk > 0.0, acc, 0.0)                 # select: pad rows cannot poison stats
        sum1 = sum1 + jnp.sum(am, axis=0)
        sq1 = sq1 + jnp.sum(am * am, axis=0)
        c1_ref[c0:c0 + chunk, :] = acc

    # ---- BatchNorm2d(64) training-mode batch stats (biased var, eps=1e-5) + ReLU ----
    inv1 = 1.0 / float(n * oh1 * ow1)
    mu1 = sum1 * inv1
    var1 = sq1 * inv1 - mu1 * mu1
    scale1 = g1_ref[0, :] * jax.lax.rsqrt(var1 + EPS)
    shift1 = be1_ref[0, :] - mu1 * scale1
    c1_ref[...] = jnp.maximum(c1_ref[...] * scale1 + shift1, 0.0)

    # ---- MaxPool2d(2) #1: one full-slab horizontal max, then strided 2x row selections ----
    hm_ref[...] = jnp.maximum(c1_ref[0:m1, :], c1_ref[1:m1 + 1, :])
    for b in range(n):
        for i in range(ph1):
            src = b * span1 + 2 * i * pitch1
            top = hm_ref[pl.ds(src, pw1, stride=2), :]
            bot = hm_ref[pl.ds(src + pitch1, pw1, stride=2), :]
            p1_ref[pl.ds(b * span2 + i * pitch2, pw1), :] = jnp.maximum(top, bot)

    # ---- layer2 Conv2d(64 -> 64, k=3): 9 taps, the whole (M2, 64) accumulator stays in vregs
    acc2 = jnp.zeros((m2, c_mid), jnp.float32)
    for kh in range(3):
        for kw in range(3):
            off = kh * pitch2 + kw
            lhs = p1_ref[off:off + m2, :].astype(MXU_DTYPE)   # tiny slab; cast is cheap
            acc2 = acc2 + jnp.dot(lhs, w2_ref[kh * 3 + kw],
                                  preferred_element_type=jnp.float32)
    acc2 = acc2 + b2_ref[...]

    a2m = jnp.where(mask2_ref[...] > 0.0, acc2, 0.0)
    inv2 = 1.0 / float(n * oh2 * ow2)
    mu2 = jnp.sum(a2m, axis=0) * inv2
    var2 = jnp.sum(a2m * a2m, axis=0) * inv2 - mu2 * mu2
    scale2 = g2_ref[0, :] * jax.lax.rsqrt(var2 + EPS)
    shift2 = be2_ref[0, :] - mu2 * scale2
    c2_ref[0:m2, :] = jnp.maximum(acc2 * scale2 + shift2, 0.0)

    # ---- MaxPool2d(2) #2 fused with flatten + fc1: 4 pooled taps -> one (n, 4*64) operand ----
    hm_ref[0:m2, :] = jnp.maximum(c2_ref[0:m2, :], c2_ref[1:m2 + 1, :])
    blocks = []
    for i in range(ph2):
        for j in range(pw2):
            src = 2 * i * pitch2 + 2 * j
            top = hm_ref[pl.ds(src, n, stride=span2), :]      # one row per sample
            bot = hm_ref[pl.ds(src + pitch2, n, stride=span2), :]
            blocks.append(jnp.maximum(top, bot))
    pooled = jnp.concatenate(blocks, axis=1)                  # (n, PH2*PW2*64)

    # ---- fc1 + ReLU -> fc2 -> sigmoid ----
    hvec = jnp.maximum(
        jnp.dot(pooled, fc1w_ref[...], preferred_element_type=jnp.float32) + fc1b_ref[...],
        0.0)
    logit = jnp.dot(hvec, fc2w_ref[...],
                    preferred_element_type=jnp.float32) + fc2b_ref[...]
    out_ref[...] = 1.0 / (1.0 + jnp.exp(-logit))


def relation_network_forward(x_nchw, params):
    """Wrapper: PyTorch-convention inputs/params -> Pallas kernel call."""
    x = jnp.transpose(x_nchw, (0, 2, 3, 1)).astype(jnp.float32)      # NCHW -> NHWC
    N, H, W, C_in = x.shape
    H1, W1 = H - 2, W - 2
    HP1, WP1 = H1 // 2, W1 // 2
    H2, W2 = HP1 - 2, WP1 - 2
    HP2, WP2 = H2 // 2, W2 // 2
    hidden = params["fc1_w"].shape[0]

    # Row-flattened geometry: row(n, h, w) = n*span + h*pitch + w, pitch padded to 8 sublanes.
    P1 = _round_up(W, 8)
    S1 = H * P1
    M1 = _round_up((N - 1) * S1 + (H1 - 1) * P1 + W1, 8)             # conv1 output rows
    CHUNK = 128 if M1 > 128 else M1                                  # conv1 accumulator rows/chunk
    M1C = _round_up(M1, CHUNK)
    X_ROWS = _round_up(max(M1C + 2 * P1, N * S1), 8)                 # kh-tap overreach margin
    C1_ROWS = max(M1C, M1 + 8)

    P2 = _round_up(WP1, 8)
    S2 = HP1 * P2
    M2 = _round_up((N - 1) * S2 + (H2 - 1) * P2 + W2, 8)             # conv2 output rows
    P1_ROWS = _round_up(max(M2 + 2 * P2 + 2, N * S2), 8)
    C2_ROWS = M2 + 8

    # Input: pad W to the pitch, flatten, zero-pad the tail, then pack the 3 kw taps along
    # channels and cast to bf16 (halves DMA; conv1 LHS reads become aligned chunk slices).
    x_flat = jnp.pad(x, ((0, 0), (0, 0), (0, P1 - W), (0, 0))).reshape(N * S1, C_in)
    x_flat = jnp.pad(x_flat, ((0, X_ROWS + 2 - N * S1), (0, 0)))
    x_packed = jnp.concatenate([x_flat[kw:kw + X_ROWS] for kw in range(3)],
                               axis=1).astype(MXU_DTYPE)

    # 0/1 masks over valid conv-output rows (only used for the BN batch statistics).
    r1 = jnp.arange(M1C)
    mask1 = (((r1 // S1) < N) & (((r1 % S1) // P1) < H1)
             & ((r1 % P1) < W1)).astype(jnp.float32)[:, None]
    r2 = jnp.arange(M2)
    mask2 = (((r2 // S2) < N) & (((r2 % S2) // P2) < H2)
             & ((r2 % P2) < W2)).astype(jnp.float32)[:, None]

    # conv1 weights: OIHW -> (kh, kw*I + i, O), matching the kw-packed activations.
    w1 = jnp.transpose(params["w1"], (2, 3, 1, 0)).reshape(3, 3 * C_in, C_MID).astype(MXU_DTYPE)
    # conv2 weights: OIHW -> (tap, I, O).
    w2 = jnp.transpose(params["w2"], (2, 3, 1, 0)).reshape(9, C_MID, C_MID).astype(MXU_DTYPE)

    # fc1 weight: PyTorch flatten order is (c, i, j); the kernel builds the pooled vector in
    # (i, j)-major / channel-minor order, so reorder rows to (i*WP2 + j)*64 + c.
    fc1w = params["fc1_w"].reshape(hidden, C_MID, HP2, WP2)
    fc1w = jnp.transpose(fc1w, (2, 3, 1, 0)).reshape(HP2 * WP2 * C_MID, hidden)

    kernel = functools.partial(
        relationnet_kernel,
        n=N, oh1=H1, ow1=W1, ph1=HP1, pw1=WP1, oh2=H2, ow2=W2, ph2=HP2, pw2=WP2,
        pitch1=P1, span1=S1, pitch2=P2, span2=S2,
        chunk=CHUNK, m1=M1, m1c=M1C, m2=M2)

    vmem = pl.BlockSpec(memory_space=pltpu.MemorySpace.VMEM)
    out = pl.pallas_call(
        kernel,
        out_shape=jax.ShapeDtypeStruct((N, 1), jnp.float32),
        in_specs=[vmem] * 15,
        out_specs=vmem,
        scratch_shapes=[
            pltpu.VMEM((C1_ROWS, C_MID), jnp.float32),   # conv1 / bn1 / relu1
            pltpu.VMEM((M1, C_MID), jnp.float32),        # pool horizontal maxima (reused)
            pltpu.VMEM((C2_ROWS, C_MID), jnp.float32),   # conv2 / bn2 / relu2
            pltpu.VMEM((P1_ROWS, C_MID), jnp.float32),   # pool1 output
        ],
    )(
        x_packed, mask1, mask2,
        w1, params["b1"].reshape(1, C_MID), params["g1"].reshape(1, C_MID),
        params["be1"].reshape(1, C_MID),
        w2, params["b2"].reshape(1, C_MID), params["g2"].reshape(1, C_MID),
        params["be2"].reshape(1, C_MID),
        fc1w, params["fc1_b"].reshape(1, hidden),
        params["fc2_w"].reshape(hidden, 1), params["fc2_b"].reshape(1, 1),
    )
    return out


if __name__ == "__main__":
    # Shapes consistent with the module: 14x14 input -> 12 -> 6 -> 4 -> 2, so the
    # flattened feature size is 64*2*2 = 256 = input_size*4 with input_size=64.
    N, C_IN, H, W = 2, 128, 14, 14
    input_size, hidden_size = 64, 8

    key = jax.random.PRNGKey(0)
    ks = jax.random.split(key, 9)
    params = {
        "w1": jax.random.normal(ks[0], (64, C_IN, 3, 3), jnp.float32) * 0.05,
        "b1": jax.random.normal(ks[1], (64,), jnp.float32) * 0.05,
        "g1": jnp.ones((64,), jnp.float32),
        "be1": jnp.zeros((64,), jnp.float32),
        "w2": jax.random.normal(ks[2], (64, 64, 3, 3), jnp.float32) * 0.05,
        "b2": jax.random.normal(ks[3], (64,), jnp.float32) * 0.05,
        "g2": jnp.ones((64,), jnp.float32),
        "be2": jnp.zeros((64,), jnp.float32),
        "fc1_w": jax.random.normal(ks[4], (hidden_size, input_size * 4), jnp.float32) * 0.05,
        "fc1_b": jax.random.normal(ks[5], (hidden_size,), jnp.float32) * 0.05,
        "fc2_w": jax.random.normal(ks[6], (1, hidden_size), jnp.float32) * 0.05,
        "fc2_b": jax.random.normal(ks[7], (1,), jnp.float32) * 0.05,
    }
    x = jax.random.normal(ks[8], (N, C_IN, H, W), jnp.float32)        # NCHW, as in PyTorch

    out = relation_network_forward(x, params)
    jax.block_until_ready(out)
    assert out.shape == (N, 1)
    print("KERNEL_OK")
</pallas_src>

<mosaic_0001>
module attributes {stable_mosaic.version = 11 : i64} {
  func.func @relationnet_kernel(%arg0: memref<544x384xbf16, #tpu.memory_space<vmem>>, %arg1: memref<512x1xf32, #tpu.memory_space<vmem>>, %arg2: memref<80x1xf32, #tpu.memory_space<vmem>>, %arg3: memref<3x384x64xbf16, #tpu.memory_space<vmem>>, %arg4: memref<1x64xf32, #tpu.memory_space<vmem>>, %arg5: memref<1x64xf32, #tpu.memory_space<vmem>>, %arg6: memref<1x64xf32, #tpu.memory_space<vmem>>, %arg7: memref<9x64x64xbf16, #tpu.memory_space<vmem>>, %arg8: memref<1x64xf32, #tpu.memory_space<vmem>>, %arg9: memref<1x64xf32, #tpu.memory_space<vmem>>, %arg10: memref<1x64xf32, #tpu.memory_space<vmem>>, %arg11: memref<256x8xf32, #tpu.memory_space<vmem>>, %arg12: memref<1x8xf32, #tpu.memory_space<vmem>>, %arg13: memref<8x1xf32, #tpu.memory_space<vmem>>, %arg14: memref<1x1xf32, #tpu.memory_space<vmem>>, %arg15: memref<2x1xf32, #tpu.memory_space<vmem>>, %arg16: memref<512x64xf32, #tpu.memory_space<vmem>>, %arg17: memref<416x64xf32, #tpu.memory_space<vmem>>, %arg18: memref<88x64xf32, #tpu.memory_space<vmem>>, %arg19: memref<104x64xf32, #tpu.memory_space<vmem>>) attributes {dimension_semantics = [], scalar_prefetch = 0 : i64, scratch_operands = 4 : i64, tpu.core_type = #tpu.core_type<tc>} {
    %cst = arith.constant 0.000000e+00 : f32
    %0 = vector.broadcast %cst : f32 to vector<64xf32>
    %cst_0 = arith.constant 0.000000e+00 : f32
    %1 = vector.broadcast %cst_0 : f32 to vector<64xf32>
    %cst_1 = arith.constant 0.000000e+00 : f32
    %2 = vector.broadcast %cst_1 : f32 to vector<128x64xf32>
    %c0 = arith.constant 0 : index
    %c0_2 = arith.constant 0 : index
    %3 = vector.load %arg0[%c0, %c0_2] : memref<544x384xbf16, #tpu.memory_space<vmem>>, vector<128x384xbf16>
    %c0_3 = arith.constant 0 : index
    %c0_4 = arith.constant 0 : index
    %c0_5 = arith.constant 0 : index
    %4 = vector.load %arg3[%c0_3, %c0_4, %c0_5] : memref<3x384x64xbf16, #tpu.memory_space<vmem>>, vector<1x384x64xbf16>
    %5 = vector.shape_cast %4 : vector<1x384x64xbf16> to vector<384x64xbf16>
    %cst_6 = arith.constant dense<0.000000e+00> : vector<128x64xf32>
    %6 = tpu.matmul %3, %5, %cst_6 {dimension_numbers = #tpu.dot_dimension_numbers<[1], [0], [0], [1], [0, 0, 1, 1], [], []>} : vector<128x384xbf16>, vector<384x64xbf16>, vector<128x64xf32> -> vector<128x64xf32>
    %7 = arith.addf %2, %6 : vector<128x64xf32>
    %c16 = arith.constant 16 : index
    %c0_7 = arith.constant 0 : index
    %8 = vector.load %arg0[%c16, %c0_7] : memref<544x384xbf16, #tpu.memory_space<vmem>>, vector<128x384xbf16>
    %c1 = arith.constant 1 : index
    %c0_8 = arith.constant 0 : index
    %c0_9 = arith.constant 0 : index
    %9 = vector.load %arg3[%c1, %c0_8, %c0_9] : memref<3x384x64xbf16, #tpu.memory_space<vmem>>, vector<1x384x64xbf16>
    %10 = vector.shape_cast %9 : vector<1x384x64xbf16> to vector<384x64xbf16>
    %cst_10 = arith.constant dense<0.000000e+00> : vector<128x64xf32>
    %11 = tpu.matmul %8, %10, %cst_10 {dimension_numbers = #tpu.dot_dimension_numbers<[1], [0], [0], [1], [0, 0, 1, 1], [], []>} : vector<128x384xbf16>, vector<384x64xbf16>, vector<128x64xf32> -> vector<128x64xf32>
    %12 = arith.addf %7, %11 : vector<128x64xf32>
    %c32 = arith.constant 32 : index
    %c0_11 = arith.constant 0 : index
    %13 = vector.load %arg0[%c32, %c0_11] : memref<544x384xbf16, #tpu.memory_space<vmem>>, vector<128x384xbf16>
    %c2 = arith.constant 2 : index
    %c0_12 = arith.constant 0 : index
    %c0_13 = arith.constant 0 : index
    %14 = vector.load %arg3[%c2, %c0_12, %c0_13] : memref<3x384x64xbf16, #tpu.memory_space<vmem>>, vector<1x384x64xbf16>
    %15 = vector.shape_cast %14 : vector<1x384x64xbf16> to vector<384x64xbf16>
    %cst_14 = arith.constant dense<0.000000e+00> : vector<128x64xf32>
    %16 = tpu.matmul %13, %15, %cst_14 {dimension_numbers = #tpu.dot_dimension_numbers<[1], [0], [0], [1], [0, 0, 1, 1], [], []>} : vector<128x384xbf16>, vector<384x64xbf16>, vector<128x64xf32> -> vector<128x64xf32>
    %17 = arith.addf %12, %16 : vector<128x64xf32>
    %c0_15 = arith.constant 0 : index
    %c0_16 = arith.constant 0 : index
    %18 = vector.load %arg4[%c0_15, %c0_16] : memref<1x64xf32, #tpu.memory_space<vmem>>, vector<1x64xf32>
    %19 = vector.broadcast %18 : vector<1x64xf32> to vector<128x64xf32>
    %20 = arith.addf %17, %19 : vector<128x64xf32>
    %c0_17 = arith.constant 0 : index
    %c0_18 = arith.constant 0 : index
    %21 = vector.load %arg1[%c0_17, %c0_18] : memref<512x1xf32, #tpu.memory_space<vmem>>, vector<128x1xf32>
    %cst_19 = arith.constant 0.000000e+00 : f32
    %22 = vector.broadcast %cst_19 : f32 to vector<128x1xf32>
    %23 = arith.cmpf ogt, %21, %22 : vector<128x1xf32>
    %cst_20 = arith.constant 0.000000e+00 : f32
    %24 = vector.shape_cast %23 : vector<128x1xi1> to vector<128x1xi1>
    %25 = vector.broadcast %24 : vector<128x1xi1> to vector<128x64xi1>
    %26 = vector.broadcast %cst_20 : f32 to vector<128x64xf32>
    %27 = arith.select %25, %20, %26 : vector<128x64xi1>, vector<128x64xf32>
    %cst_21 = arith.constant dense<0.000000e+00> : vector<64xf32>
    %28 = vector.multi_reduction <add>, %27, %cst_21 [0] : vector<128x64xf32> to vector<64xf32>
    %29 = arith.addf %0, %28 : vector<64xf32>
    %30 = arith.mulf %27, %27 : vector<128x64xf32>
    %cst_22 = arith.constant dense<0.000000e+00> : vector<64xf32>
    %31 = vector.multi_reduction <add>, %30, %cst_22 [0] : vector<128x64xf32> to vector<64xf32>
    %32 = arith.addf %1, %31 : vector<64xf32>
    %c0_23 = arith.constant 0 : index
    %c0_24 = arith.constant 0 : index
    %33 = vector.load %arg16[%c0_23, %c0_24] : memref<512x64xf32, #tpu.memory_space<vmem>>, vector<128x64xf32>
    tpu.vector_store %arg16[%c0_23, %c0_24], %20 {strides = array<i32>} : memref<512x64xf32, #tpu.memory_space<vmem>>, vector<128x64xf32>,
    %cst_25 = arith.constant 0.000000e+00 : f32
    %34 = vector.broadcast %cst_25 : f32 to vector<128x64xf32>
    %c128 = arith.constant 128 : index
    %c0_26 = arith.constant 0 : index
    %35 = vector.load %arg0[%c128, %c0_26] : memref<544x384xbf16, #tpu.memory_space<vmem>>, vector<128x384xbf16>
    %c0_27 = arith.constant 0 : index
    %c0_28 = arith.constant 0 : index
    %c0_29 = arith.constant 0 : index
    %36 = vector.load %arg3[%c0_27, %c0_28, %c0_29] : memref<3x384x64xbf16, #tpu.memory_space<vmem>>, vector<1x384x64xbf16>
    %37 = vector.shape_cast %36 : vector<1x384x64xbf16> to vector<384x64xbf16>
    %cst_30 = arith.constant dense<0.000000e+00> : vector<128x64xf32>
    %38 = tpu.matmul %35, %37, %cst_30 {dimension_numbers = #tpu.dot_dimension_numbers<[1], [0], [0], [1], [0, 0, 1, 1], [], []>} : vector<128x384xbf16>, vector<384x64xbf16>, vector<128x64xf32> -> vector<128x64xf32>
    %39 = arith.addf %34, %38 : vector<128x64xf32>
    %c144 = arith.constant 144 : index
    %c0_31 = arith.constant 0 : index
    %40 = vector.load %arg0[%c144, %c0_31] : memref<544x384xbf16, #tpu.memory_space<vmem>>, vector<128x384xbf16>
    %c1_32 = arith.constant 1 : index
    %c0_33 = arith.constant 0 : index
    %c0_34 = arith.constant 0 : index
    %41 = vector.load %arg3[%c1_32, %c0_33, %c0_34] : memref<3x384x64xbf16, #tpu.memory_space<vmem>>, vector<1x384x64xbf16>
    %42 = vector.shape_cast %41 : vector<1x384x64xbf16> to vector<384x64xbf16>
    %cst_35 = arith.constant dense<0.000000e+00> : vector<128x64xf32>
    %43 = tpu.matmul %40, %42, %cst_35 {dimension_numbers = #tpu.dot_dimension_numbers<[1], [0], [0], [1], [0, 0, 1, 1], [], []>} : vector<128x384xbf16>, vector<384x64xbf16>, vector<128x64xf32> -> vector<128x64xf32>
    %44 = arith.addf %39, %43 : vector<128x64xf32>
    %c160 = arith.constant 160 : index
    %c0_36 = arith.constant 0 : index
    %45 = vector.load %arg0[%c160, %c0_36] : memref<544x384xbf16, #tpu.memory_space<vmem>>, vector<128x384xbf16>
    %c2_37 = arith.constant 2 : index
    %c0_38 = arith.constant 0 : index
    %c0_39 = arith.constant 0 : index
    %46 = vector.load %arg3[%c2_37, %c0_38, %c0_39] : memref<3x384x64xbf16, #tpu.memory_space<vmem>>, vector<1x384x64xbf16>
    %47 = vector.shape_cast %46 : vector<1x384x64xbf16> to vector<384x64xbf16>
    %cst_40 = arith.constant dense<0.000000e+00> : vector<128x64xf32>
    %48 = tpu.matmul %45, %47, %cst_40 {dimension_numbers = #tpu.dot_dimension_numbers<[1], [0], [0], [1], [0, 0, 1, 1], [], []>} : vector<128x384xbf16>, vector<384x64xbf16>, vector<128x64xf32> -> vector<128x64xf32>
    %49 = arith.addf %44, %48 : vector<128x64xf32>
    %c0_41 = arith.constant 0 : index
    %c0_42 = arith.constant 0 : index
    %50 = vector.load %arg4[%c0_41, %c0_42] : memref<1x64xf32, #tpu.memory_space<vmem>>, vector<1x64xf32>
    %51 = vector.broadcast %50 : vector<1x64xf32> to vector<128x64xf32>
    %52 = arith.addf %49, %51 : vector<128x64xf32>
    %c128_43 = arith.constant 128 : index
    %c0_44 = arith.constant 0 : index
    %53 = vector.load %arg1[%c128_43, %c0_44] : memref<512x1xf32, #tpu.memory_space<vmem>>, vector<128x1xf32>
    %cst_45 = arith.constant 0.000000e+00 : f32
    %54 = vector.broadcast %cst_45 : f32 to vector<128x1xf32>
    %55 = arith.cmpf ogt, %53, %54 : vector<128x1xf32>
    %cst_46 = arith.constant 0.000000e+00 : f32
    %56 = vector.shape_cast %55 : vector<128x1xi1> to vector<128x1xi1>
    %57 = vector.broadcast %56 : vector<128x1xi1> to vector<128x64xi1>
    %58 = vector.broadcast %cst_46 : f32 to vector<128x64xf32>
    %59 = arith.select %57, %52, %58 : vector<128x64xi1>, vector<128x64xf32>
    %cst_47 = arith.constant dense<0.000000e+00> : vector<64xf32>
    %60 = vector.multi_reduction <add>, %59, %cst_47 [0] : vector<128x64xf32> to vector<64xf32>
    %61 = arith.addf %29, %60 : vector<64xf32>
    %62 = arith.mulf %59, %59 : vector<128x64xf32>
    %cst_48 = arith.constant dense<0.000000e+00> : vector<64xf32>
    %63 = vector.multi_reduction <add>, %62, %cst_48 [0] : vector<128x64xf32> to vector<64xf32>
    %64 = arith.addf %32, %63 : vector<64xf32>
    %c128_49 = arith.constant 128 : index
    %c0_50 = arith.constant 0 : index
    %65 = vector.load %arg16[%c128_49, %c0_50] : memref<512x64xf32, #tpu.memory_space<vmem>>, vector<128x64xf32>
    tpu.vector_store %arg16[%c128_49, %c0_50], %52 {strides = array<i32>} : memref<512x64xf32, #tpu.memory_space<vmem>>, vector<128x64xf32>,
    %cst_51 = arith.constant 0.000000e+00 : f32
    %66 = vector.broadcast %cst_51 : f32 to vector<128x64xf32>
    %c256 = arith.constant 256 : index
    %c0_52 = arith.constant 0 : index
    %67 = vector.load %arg0[%c256, %c0_52] : memref<544x384xbf16, #tpu.memory_space<vmem>>, vector<128x384xbf16>
    %c0_53 = arith.constant 0 : index
    %c0_54 = arith.constant 0 : index
    %c0_55 = arith.constant 0 : index
    %68 = vector.load %arg3[%c0_53, %c0_54, %c0_55] : memref<3x384x64xbf16, #tpu.memory_space<vmem>>, vector<1x384x64xbf16>
    %69 = vector.shape_cast %68 : vector<1x384x64xbf16> to vector<384x64xbf16>
    %cst_56 = arith.constant dense<0.000000e+00> : vector<128x64xf32>
    %70 = tpu.matmul %67, %69, %cst_56 {dimension_numbers = #tpu.dot_dimension_numbers<[1], [0], [0], [1], [0, 0, 1, 1], [], []>} : vector<128x384xbf16>, vector<384x64xbf16>, vector<128x64xf32> -> vector<128x64xf32>
    %71 = arith.addf %66, %70 : vector<128x64xf32>
    %c272 = arith.constant 272 : index
    %c0_57 = arith.constant 0 : index
    %72 = vector.load %arg0[%c272, %c0_57] : memref<544x384xbf16, #tpu.memory_space<vmem>>, vector<128x384xbf16>
    %c1_58 = arith.constant 1 : index
    %c0_59 = arith.constant 0 : index
    %c0_60 = arith.constant 0 : index
    %73 = vector.load %arg3[%c1_58, %c0_59, %c0_60] : memref<3x384x64xbf16, #tpu.memory_space<vmem>>, vector<1x384x64xbf16>
    %74 = vector.shape_cast %73 : vector<1x384x64xbf16> to vector<384x64xbf16>
    %cst_61 = arith.constant dense<0.000000e+00> : vector<128x64xf32>
    %75 = tpu.matmul %72, %74, %cst_61 {dimension_numbers = #tpu.dot_dimension_numbers<[1], [0], [0], [1], [0, 0, 1, 1], [], []>} : vector<128x384xbf16>, vector<384x64xbf16>, vector<128x64xf32> -> vector<128x64xf32>
    %76 = arith.addf %71, %75 : vector<128x64xf32>
    %c288 = arith.constant 288 : index
    %c0_62 = arith.constant 0 : index
    %77 = vector.load %arg0[%c288, %c0_62] : memref<544x384xbf16, #tpu.memory_space<vmem>>, vector<128x384xbf16>
    %c2_63 = arith.constant 2 : index
    %c0_64 = arith.constant 0 : index
    %c0_65 = arith.constant 0 : index
    %78 = vector.load %arg3[%c2_63, %c0_64, %c0_65] : memref<3x384x64xbf16, #tpu.memory_space<vmem>>, vector<1x384x64xbf16>
    %79 = vector.shape_cast %78 : vector<1x384x64xbf16> to vector<384x64xbf16>
    %cst_66 = arith.constant dense<0.000000e+00> : vector<128x64xf32>
    %80 = tpu.matmul %77, %79, %cst_66 {dimension_numbers = #tpu.dot_dimension_numbers<[1], [0], [0], [1], [0, 0, 1, 1], [], []>} : vector<128x384xbf16>, vector<384x64xbf16>, vector<128x64xf32> -> vector<128x64xf32>
    %81 = arith.addf %76, %80 : vector<128x64xf32>
    %c0_67 = arith.constant 0 : index
    %c0_68 = arith.constant 0 : index
    %82 = vector.load %arg4[%c0_67, %c0_68] : memref<1x64xf32, #tpu.memory_space<vmem>>, vector<1x64xf32>
    %83 = vector.broadcast %82 : vector<1x64xf32> to vector<128x64xf32>
    %84 = arith.addf %81, %83 : vector<128x64xf32>
    %c256_69 = arith.constant 256 : index
    %c0_70 = arith.constant 0 : index
    %85 = vector.load %arg1[%c256_69, %c0_70] : memref<512x1xf32, #tpu.memory_space<vmem>>, vector<128x1xf32>
    %cst_71 = arith.constant 0.000000e+00 : f32
    %86 = vector.broadcast %cst_71 : f32 to vector<128x1xf32>
    %87 = arith.cmpf ogt, %85, %86 : vector<128x1xf32>
    %cst_72 = arith.constant 0.000000e+00 : f32
    %88 = vector.shape_cast %87 : vector<128x1xi1> to vector<128x1xi1>
    %89 = vector.broadcast %88 : vector<128x1xi1> to vector<128x64xi1>
    %90 = vector.broadcast %cst_72 : f32 to vector<128x64xf32>
    %91 = arith.select %89, %84, %90 : vector<128x64xi1>, vector<128x64xf32>
    %cst_73 = arith.constant dense<0.000000e+00> : vector<64xf32>
    %92 = vector.multi_reduction <add>, %91, %cst_73 [0] : vector<128x64xf32> to vector<64xf32>
    %93 = arith.addf %61, %92 : vector<64xf32>
    %94 = arith.mulf %91, %91 : vector<128x64xf32>
    %cst_74 = arith.constant dense<0.000000e+00> : vector<64xf32>
    %95 = vector.multi_reduction <add>, %94, %cst_74 [0] : vector<128x64xf32> to vector<64xf32>
    %96 = arith.addf %64, %95 : vector<64xf32>
    %c256_75 = arith.constant 256 : index
    %c0_76 = arith.constant 0 : index
    %97 = vector.load %arg16[%c256_75, %c0_76] : memref<512x64xf32, #tpu.memory_space<vmem>>, vector<128x64xf32>
    tpu.vector_store %arg16[%c256_75, %c0_76], %84 {strides = array<i32>} : memref<512x64xf32, #tpu.memory_space<vmem>>, vector<128x64xf32>,
    %cst_77 = arith.constant 0.000000e+00 : f32
    %98 = vector.broadcast %cst_77 : f32 to vector<128x64xf32>
    %c384 = arith.constant 384 : index
    %c0_78 = arith.constant 0 : index
    %99 = vector.load %arg0[%c384, %c0_78] : memref<544x384xbf16, #tpu.memory_space<vmem>>, vector<128x384xbf16>
    %c0_79 = arith.constant 0 : index
    %c0_80 = arith.constant 0 : index
    %c0_81 = arith.constant 0 : index
    %100 = vector.load %arg3[%c0_79, %c0_80, %c0_81] : memref<3x384x64xbf16, #tpu.memory_space<vmem>>, vector<1x384x64xbf16>
    %101 = vector.shape_cast %100 : vector<1x384x64xbf16> to vector<384x64xbf16>
    %cst_82 = arith.constant dense<0.000000e+00> : vector<128x64xf32>
    %102 = tpu.matmul %99, %101, %cst_82 {dimension_numbers = #tpu.dot_dimension_numbers<[1], [0], [0], [1], [0, 0, 1, 1], [], []>} : vector<128x384xbf16>, vector<384x64xbf16>, vector<128x64xf32> -> vector<128x64xf32>
    %103 = arith.addf %98, %102 : vector<128x64xf32>
    %c400 = arith.constant 400 : index
    %c0_83 = arith.constant 0 : index
    %104 = vector.load %arg0[%c400, %c0_83] : memref<544x384xbf16, #tpu.memory_space<vmem>>, vector<128x384xbf16>
    %c1_84 = arith.constant 1 : index
    %c0_85 = arith.constant 0 : index
    %c0_86 = arith.constant 0 : index
    %105 = vector.load %arg3[%c1_84, %c0_85, %c0_86] : memref<3x384x64xbf16, #tpu.memory_space<vmem>>, vector<1x384x64xbf16>
    %106 = vector.shape_cast %105 : vector<1x384x64xbf16> to vector<384x64xbf16>
    %cst_87 = arith.constant dense<0.000000e+00> : vector<128x64xf32>
    %107 = tpu.matmul %104, %106, %cst_87 {dimension_numbers = #tpu.dot_dimension_numbers<[1], [0], [0], [1], [0, 0, 1, 1], [], []>} : vector<128x384xbf16>, vector<384x64xbf16>, vector<128x64xf32> -> vector<128x64xf32>
    %108 = arith.addf %103, %107 : vector<128x64xf32>
    %c416 = arith.constant 416 : index
    %c0_88 = arith.constant 0 : index
    %109 = vector.load %arg0[%c416, %c0_88] : memref<544x384xbf16, #tpu.memory_space<vmem>>, vector<128x384xbf16>
    %c2_89 = arith.constant 2 : index
    %c0_90 = arith.constant 0 : index
    %c0_91 = arith.constant 0 : index
    %110 = vector.load %arg3[%c2_89, %c0_90, %c0_91] : memref<3x384x64xbf16, #tpu.memory_space<vmem>>, vector<1x384x64xbf16>
    %111 = vector.shape_cast %110 : vector<1x384x64xbf16> to vector<384x64xbf16>
    %cst_92 = arith.constant dense<0.000000e+00> : vector<128x64xf32>
    %112 = tpu.matmul %109, %111, %cst_92 {dimension_numbers = #tpu.dot_dimension_numbers<[1], [0], [0], [1], [0, 0, 1, 1], [], []>} : vector<128x384xbf16>, vector<384x64xbf16>, vector<128x64xf32> -> vector<128x64xf32>
    %113 = arith.addf %108, %112 : vector<128x64xf32>
    %c0_93 = arith.constant 0 : index
    %c0_94 = arith.constant 0 : index
    %114 = vector.load %arg4[%c0_93, %c0_94] : memref<1x64xf32, #tpu.memory_space<vmem>>, vector<1x64xf32>
    %115 = vector.broadcast %114 : vector<1x64xf32> to vector<128x64xf32>
    %116 = arith.addf %113, %115 : vector<128x64xf32>
    %c384_95 = arith.constant 384 : index
    %c0_96 = arith.constant 0 : index
    %117 = vector.load %arg1[%c384_95, %c0_96] : memref<512x1xf32, #tpu.memory_space<vmem>>, vector<128x1xf32>
    %cst_97 = arith.constant 0.000000e+00 : f32
    %118 = vector.broadcast %cst_97 : f32 to vector<128x1xf32>
    %119 = arith.cmpf ogt, %117, %118 : vector<128x1xf32>
    %cst_98 = arith.constant 0.000000e+00 : f32
    %120 = vector.shape_cast %119 : vector<128x1xi1> to vector<128x1xi1>
    %121 = vector.broadcast %120 : vector<128x1xi1> to vector<128x64xi1>
    %122 = vector.broadcast %cst_98 : f32 to vector<128x64xf32>
    %123 = arith.select %121, %116, %122 : vector<128x64xi1>, vector<128x64xf32>
    %cst_99 = arith.constant dense<0.000000e+00> : vector<64xf32>
    %124 = vector.multi_reduction <add>, %123, %cst_99 [0] : vector<128x64xf32> to vector<64xf32>
    %125 = arith.addf %93, %124 : vector<64xf32>
    %126 = arith.mulf %123, %123 : vector<128x64xf32>
    %cst_100 = arith.constant dense<0.000000e+00> : vector<64xf32>
    %127 = vector.multi_reduction <add>, %126, %cst_100 [0] : vector<128x64xf32> to vector<64xf32>
    %128 = arith.addf %96, %127 : vector<64xf32>
    %c384_101 = arith.constant 384 : index
    %c0_102 = arith.constant 0 : index
    %129 = vector.load %arg16[%c384_101, %c0_102] : memref<512x64xf32, #tpu.memory_space<vmem>>, vector<128x64xf32>
    tpu.vector_store %arg16[%c384_101, %c0_102], %116 {strides = array<i32>} : memref<512x64xf32, #tpu.memory_space<vmem>>, vector<128x64xf32>,
    %cst_103 = arith.constant 0.00347222225 : f32
    %130 = vector.broadcast %cst_103 : f32 to vector<64xf32>
    %131 = arith.mulf %125, %130 : vector<64xf32>
    %cst_104 = arith.constant 0.00347222225 : f32
    %132 = vector.broadcast %cst_104 : f32 to vector<64xf32>
    %133 = arith.mulf %128, %132 : vector<64xf32>
    %134 = arith.mulf %131, %131 : vector<64xf32>
    %135 = arith.subf %133, %134 : vector<64xf32>
    %c0_105 = arith.constant 0 : index
    %c0_106 = arith.constant 0 : index
    %136 = vector.load %arg5[%c0_105, %c0_106] : memref<1x64xf32, #tpu.memory_space<vmem>>, vector<1x64xf32>
    %137 = vector.shape_cast %136 : vector<1x64xf32> to vector<64xf32>
    %cst_107 = arith.constant 9.99999974E-6 : f32
    %138 = vector.broadcast %cst_107 : f32 to vector<64xf32>
    %139 = arith.addf %135, %138 : vector<64xf32>
    %140 = math.rsqrt %139 : vector<64xf32>
    %141 = arith.mulf %137, %140 : vector<64xf32>
    %c0_108 = arith.constant 0 : index
    %c0_109 = arith.constant 0 : index
    %142 = vector.load %arg6[%c0_108, %c0_109] : memref<1x64xf32, #tpu.memory_space<vmem>>, vector<1x64xf32>
    %143 = vector.shape_cast %142 : vector<1x64xf32> to vector<64xf32>
    %144 = arith.mulf %131, %141 : vector<64xf32>
    %145 = arith.subf %143, %144 : vector<64xf32>
    %c0_110 = arith.constant 0 : index
    %c0_111 = arith.constant 0 : index
    %146 = vector.load %arg16[%c0_110, %c0_111] : memref<512x64xf32, #tpu.memory_space<vmem>>, vector<512x64xf32>
    %147 = vector.shape_cast %141 : vector<64xf32> to vector<1x64xf32>
    %148 = vector.broadcast %147 : vector<1x64xf32> to vector<512x64xf32>
    %149 = arith.mulf %146, %148 : vector<512x64xf32>
    %150 = vector.shape_cast %145 : vector<64xf32> to vector<1x64xf32>
    %151 = vector.broadcast %150 : vector<1x64xf32> to vector<512x64xf32>
    %152 = arith.addf %149, %151 : vector<512x64xf32>
    %cst_112 = arith.constant 0.000000e+00 : f32
    %153 = vector.broadcast %cst_112 : f32 to vector<512x64xf32>
    %154 = arith.maximumf %152, %153 : vector<512x64xf32>
    %c0_113 = arith.constant 0 : index
    %c0_114 = arith.constant 0 : index
    %155 = vector.load %arg16[%c0_113, %c0_114] : memref<512x64xf32, #tpu.memory_space<vmem>>, vector<512x64xf32>
    tpu.vector_store %arg16[%c0_113, %c0_114], %154 {strides = array<i32>} : memref<512x64xf32, #tpu.memory_space<vmem>>, vector<512x64xf32>,
    %c0_115 = arith.constant 0 : index
    %c0_116 = arith.constant 0 : index
    %156 = vector.load %arg16[%c0_115, %c0_116] : memref<512x64xf32, #tpu.memory_space<vmem>>, vector<416x64xf32>
    %c1_117 = arith.constant 1 : index
    %c0_118 = arith.constant 0 : index
    %157 = vector.load %arg16[%c1_117, %c0_118] : memref<512x64xf32, #tpu.memory_space<vmem>>, vector<416x64xf32>
    %158 = arith.maximumf %156, %157 : vector<416x64xf32>
    %c0_119 = arith.constant 0 : index
    %c0_120 = arith.constant 0 : index
    %159 = vector.load %arg17[%c0_119, %c0_120] : memref<416x64xf32, #tpu.memory_space<vmem>>, vector<416x64xf32>
    tpu.vector_store %arg17[%c0_119, %c0_120], %158 {strides = array<i32>} : memref<416x64xf32, #tpu.memory_space<vmem>>, vector<416x64xf32>,
    %c0_121 = arith.constant 0 : index
    %c0_122 = arith.constant 0 : index
    %160 = tpu.strided_load %arg17[%c0_121, %c0_122] {strides = array<i32: 2, 1>} : memref<416x64xf32, #tpu.memory_space<vmem>>, vector<6x64xf32>
    %c16_123 = arith.constant 16 : index
    %c0_124 = arith.constant 0 : index
    %161 = tpu.strided_load %arg17[%c16_123, %c0_124] {strides = array<i32: 2, 1>} : memref<416x64xf32, #tpu.memory_space<vmem>>, vector<6x64xf32>
    %162 = arith.maximumf %160, %161 : vector<6x64xf32>
    %c0_125 = arith.constant 0 : index
    %c0_126 = arith.constant 0 : index
    %163 = vector.load %arg19[%c0_125, %c0_126] : memref<104x64xf32, #tpu.memory_space<vmem>>, vector<6x64xf32>
    tpu.vector_store %arg19[%c0_125, %c0_126], %162 {strides = array<i32>} : memref<104x64xf32, #tpu.memory_space<vmem>>, vector<6x64xf32>,
    %c32_127 = arith.constant 32 : index
    %c0_128 = arith.constant 0 : index
    %164 = tpu.strided_load %arg17[%c32_127, %c0_128] {strides = array<i32: 2, 1>} : memref<416x64xf32, #tpu.memory_space<vmem>>, vector<6x64xf32>
    %c48 = arith.constant 48 : index
    %c0_129 = arith.constant 0 : index
    %165 = tpu.strided_load %arg17[%c48, %c0_129] {strides = array<i32: 2, 1>} : memref<416x64xf32, #tpu.memory_space<vmem>>, vector<6x64xf32>
    %166 = arith.maximumf %164, %165 : vector<6x64xf32>
    %c8 = arith.constant 8 : index
    %c0_130 = arith.constant 0 : index
    %167 = vector.load %arg19[%c8, %c0_130] : memref<104x64xf32, #tpu.memory_space<vmem>>, vector<6x64xf32>
    tpu.vector_store %arg19[%c8, %c0_130], %166 {strides = array<i32>} : memref<104x64xf32, #tpu.memory_space<vmem>>, vector<6x64xf32>,
    %c64 = arith.constant 64 : index
    %c0_131 = arith.constant 0 : index
    %168 = tpu.strided_load %arg17[%c64, %c0_131] {strides = array<i32: 2, 1>} : memref<416x64xf32, #tpu.memory_space<vmem>>, vector<6x64xf32>
    %c80 = arith.constant 80 : index
    %c0_132 = arith.constant 0 : index
    %169 = tpu.strided_load %arg17[%c80, %c0_132] {strides = array<i32: 2, 1>} : memref<416x64xf32, #tpu.memory_space<vmem>>, vector<6x64xf32>
    %170 = arith.maximumf %168, %169 : vector<6x64xf32>
    %c16_133 = arith.constant 16 : index
    %c0_134 = arith.constant 0 : index
    %171 = vector.load %arg19[%c16_133, %c0_134] : memref<104x64xf32, #tpu.memory_space<vmem>>, vector<6x64xf32>
    tpu.vector_store %arg19[%c16_133, %c0_134], %170 {strides = array<i32>} : memref<104x64xf32, #tpu.memory_space<vmem>>, vector<6x64xf32>,
    %c96 = arith.constant 96 : index
    %c0_135 = arith.constant 0 : index
    %172 = tpu.strided_load %arg17[%c96, %c0_135] {strides = array<i32: 2, 1>} : memref<416x64xf32, #tpu.memory_space<vmem>>, vector<6x64xf32>
    %c112 = arith.constant 112 : index
    %c0_136 = arith.constant 0 : index
    %173 = tpu.strided_load %arg17[%c112, %c0_136] {strides = array<i32: 2, 1>} : memref<416x64xf32, #tpu.memory_space<vmem>>, vector<6x64xf32>
    %174 = arith.maximumf %172, %173 : vector<6x64xf32>
    %c24 = arith.constant 24 : index
    %c0_137 = arith.constant 0 : index
    %175 = vector.load %arg19[%c24, %c0_137] : memref<104x64xf32, #tpu.memory_space<vmem>>, vector<6x64xf32>
    tpu.vector_store %arg19[%c24, %c0_137], %174 {strides = array<i32>} : memref<104x64xf32, #tpu.memory_space<vmem>>, vector<6x64xf32>,
    %c128_138 = arith.constant 128 : index
    %c0_139 = arith.constant 0 : index
    %176 = tpu.strided_load %arg17[%c128_138, %c0_139] {strides = array<i32: 2, 1>} : memref<416x64xf32, #tpu.memory_space<vmem>>, vector<6x64xf32>
    %c144_140 = arith.constant 144 : index
    %c0_141 = arith.constant 0 : index
    %177 = tpu.strided_load %arg17[%c144_140, %c0_141] {strides = array<i32: 2, 1>} : memref<416x64xf32, #tpu.memory_space<vmem>>, vector<6x64xf32>
    %178 = arith.maximumf %176, %177 : vector<6x64xf32>
    %c32_142 = arith.constant 32 : index
    %c0_143 = arith.constant 0 : index
    %179 = vector.load %arg19[%c32_142, %c0_143] : memref<104x64xf32, #tpu.memory_space<vmem>>, vector<6x64xf32>
    tpu.vector_store %arg19[%c32_142, %c0_143], %178 {strides = array<i32>} : memref<104x64xf32, #tpu.memory_space<vmem>>, vector<6x64xf32>,
    %c160_144 = arith.constant 160 : index
    %c0_145 = arith.constant 0 : index
    %180 = tpu.strided_load %arg17[%c160_144, %c0_145] {strides = array<i32: 2, 1>} : memref<416x64xf32, #tpu.memory_space<vmem>>, vector<6x64xf32>
    %c176 = arith.constant 176 : index
    %c0_146 = arith.constant 0 : index
    %181 = tpu.strided_load %arg17[%c176, %c0_146] {strides = array<i32: 2, 1>} : memref<416x64xf32, #tpu.memory_space<vmem>>, vector<6x64xf32>
    %182 = arith.maximumf %180, %181 : vector<6x64xf32>
    %c40 = arith.constant 40 : index
    %c0_147 = arith.constant 0 : index
    %183 = vector.load %arg19[%c40, %c0_147] : memref<104x64xf32, #tpu.memory_space<vmem>>, vector<6x64xf32>
    tpu.vector_store %arg19[%c40, %c0_147], %182 {strides = array<i32>} : memref<104x64xf32, #tpu.memory_space<vmem>>, vector<6x64xf32>,
    %c224 = arith.constant 224 : index
    %c0_148 = arith.constant 0 : index
    %184 = tpu.strided_load %arg17[%c224, %c0_148] {strides = array<i32: 2, 1>} : memref<416x64xf32, #tpu.memory_space<vmem>>, vector<6x64xf32>
    %c240 = arith.constant 240 : index
    %c0_149 = arith.constant 0 : index
    %185 = tpu.strided_load %arg17[%c240, %c0_149] {strides = array<i32: 2, 1>} : memref<416x64xf32, #tpu.memory_space<vmem>>, vector<6x64xf32>
    %186 = arith.maximumf %184, %185 : vector<6x64xf32>
    %c48_150 = arith.constant 48 : index
    %c0_151 = arith.constant 0 : index
    %187 = vector.load %arg19[%c48_150, %c0_151] : memref<104x64xf32, #tpu.memory_space<vmem>>, vector<6x64xf32>
    tpu.vector_store %arg19[%c48_150, %c0_151], %186 {strides = array<i32>} : memref<104x64xf32, #tpu.memory_space<vmem>>, vector<6x64xf32>,
    %c256_152 = arith.constant 256 : index
    %c0_153 = arith.constant 0 : index
    %188 = tpu.strided_load %arg17[%c256_152, %c0_153] {strides = array<i32: 2, 1>} : memref<416x64xf32, #tpu.memory_space<vmem>>, vector<6x64xf32>
    %c272_154 = arith.constant 272 : index
    %c0_155 = arith.constant 0 : index
    %189 = tpu.strided_load %arg17[%c272_154, %c0_155] {strides = array<i32: 2, 1>} : memref<416x64xf32, #tpu.memory_space<vmem>>, vector<6x64xf32>
    %190 = arith.maximumf %188, %189 : vector<6x64xf32>
    %c56 = arith.constant 56 : index
    %c0_156 = arith.constant 0 : index
    %191 = vector.load %arg19[%c56, %c0_156] : memref<104x64xf32, #tpu.memory_space<vmem>>, vector<6x64xf32>
    tpu.vector_store %arg19[%c56, %c0_156], %190 {strides = array<i32>} : memref<104x64xf32, #tpu.memory_space<vmem>>, vector<6x64xf32>,
    %c288_157 = arith.constant 288 : index
    %c0_158 = arith.constant 0 : index
    %192 = tpu.strided_load %arg17[%c288_157, %c0_158] {strides = array<i32: 2, 1>} : memref<416x64xf32, #tpu.memory_space<vmem>>, vector<6x64xf32>
    %c304 = arith.constant 304 : index
    %c0_159 = arith.constant 0 : index
    %193 = tpu.strided_load %arg17[%c304, %c0_159] {strides = array<i32: 2, 1>} : memref<416x64xf32, #tpu.memory_space<vmem>>, vector<6x64xf32>
    %194 = arith.maximumf %192, %193 : vector<6x64xf32>
    %c64_160 = arith.constant 64 : index
    %c0_161 = arith.constant 0 : index
    %195 = vector.load %arg19[%c64_160, %c0_161] : memref<104x64xf32, #tpu.memory_space<vmem>>, vector<6x64xf32>
    tpu.vector_store %arg19[%c64_160, %c0_161], %194 {strides = array<i32>} : memref<104x64xf32, #tpu.memory_space<vmem>>, vector<6x64xf32>,
    %c320 = arith.constant 320 : index
    %c0_162 = arith.constant 0 : index
    %196 = tpu.strided_load %arg17[%c320, %c0_162] {strides = array<i32: 2, 1>} : memref<416x64xf32, #tpu.memory_space<vmem>>, vector<6x64xf32>
    %c336 = arith.constant 336 : index
    %c0_163 = arith.constant 0 : index
    %197 = tpu.strided_load %arg17[%c336, %c0_163] {strides = array<i32: 2, 1>} : memref<416x64xf32, #tpu.memory_space<vmem>>, vector<6x64xf32>
    %198 = arith.maximumf %196, %197 : vector<6x64xf32>
    %c72 = arith.constant 72 : index
    %c0_164 = arith.constant 0 : index
    %199 = vector.load %arg19[%c72, %c0_164] : memref<104x64xf32, #tpu.memory_space<vmem>>, vector<6x64xf32>
    tpu.vector_store %arg19[%c72, %c0_164], %198 {strides = array<i32>} : memref<104x64xf32, #tpu.memory_space<vmem>>, vector<6x64xf32>,
    %c352 = arith.constant 352 : index
    %c0_165 = arith.constant 0 : index
    %200 = tpu.strided_load %arg17[%c352, %c0_165] {strides = array<i32: 2, 1>} : memref<416x64xf32, #tpu.memory_space<vmem>>, vector<6x64xf32>
    %c368 = arith.constant 368 : index
    %c0_166 = arith.constant 0 : index
    %201 = tpu.strided_load %arg17[%c368, %c0_166] {strides = array<i32: 2, 1>} : memref<416x64xf32, #tpu.memory_space<vmem>>, vector<6x64xf32>
    %202 = arith.maximumf %200, %201 : vector<6x64xf32>
    %c80_167 = arith.constant 80 : index
    %c0_168 = arith.constant 0 : index
    %203 = vector.load %arg19[%c80_167, %c0_168] : memref<104x64xf32, #tpu.memory_space<vmem>>, vector<6x64xf32>
    tpu.vector_store %arg19[%c80_167, %c0_168], %202 {strides = array<i32>} : memref<104x64xf32, #tpu.memory_space<vmem>>, vector<6x64xf32>,
    %c384_169 = arith.constant 384 : index
    %c0_170 = arith.constant 0 : index
    %204 = tpu.strided_load %arg17[%c384_169, %c0_170] {strides = array<i32: 2, 1>} : memref<416x64xf32, #tpu.memory_space<vmem>>, vector<6x64xf32>
    %c400_171 = arith.constant 400 : index
    %c0_172 = arith.constant 0 : index
    %205 = tpu.strided_load %arg17[%c400_171, %c0_172] {strides = array<i32: 2, 1>} : memref<416x64xf32, #tpu.memory_space<vmem>>, vector<6x64xf32>
    %206 = arith.maximumf %204, %205 : vector<6x64xf32>
    %c88 = arith.constant 88 : index
    %c0_173 = arith.constant 0 : index
    %207 = vector.load %arg19[%c88, %c0_173] : memref<104x64xf32, #tpu.memory_space<vmem>>, vector<6x64xf32>
    tpu.vector_store %arg19[%c88, %c0_173], %206 {strides = array<i32>} : memref<104x64xf32, #tpu.memory_space<vmem>>, vector<6x64xf32>,
    %cst_174 = arith.constant 0.000000e+00 : f32
    %208 = vector.broadcast %cst_174 : f32 to vector<80x64xf32>
    %c0_175 = arith.constant 0 : index
    %c0_176 = arith.constant 0 : index
    %209 = vector.load %arg19[%c0_175, %c0_176] : memref<104x64xf32, #tpu.memory_space<vmem>>, vector<80x64xf32>
    %210 = arith.truncf %209 : vector<80x64xf32> to vector<80x64xbf16>
    %c0_177 = arith.constant 0 : index
    %c0_178 = arith.constant 0 : index
    %c0_179 = arith.constant 0 : index
    %211 = vector.load %arg7[%c0_177, %c0_178, %c0_179] : memref<9x64x64xbf16, #tpu.memory_space<vmem>>, vector<1x64x64xbf16>
    %212 = vector.shape_cast %211 : vector<1x64x64xbf16> to vector<64x64xbf16>
    %cst_180 = arith.constant dense<0.000000e+00> : vector<80x64xf32>
    %213 = tpu.matmul %210, %212, %cst_180 {dimension_numbers = #tpu.dot_dimension_numbers<[1], [0], [0], [1], [0, 0, 1, 1], [], []>} : vector<80x64xbf16>, vector<64x64xbf16>, vector<80x64xf32> -> vector<80x64xf32>
    %214 = arith.addf %208, %213 : vector<80x64xf32>
    %c1_181 = arith.constant 1 : index
    %c0_182 = arith.constant 0 : index
    %215 = vector.load %arg19[%c1_181, %c0_182] : memref<104x64xf32, #tpu.memory_space<vmem>>, vector<80x64xf32>
    %216 = arith.truncf %215 : vector<80x64xf32> to vector<80x64xbf16>
    %c1_183 = arith.constant 1 : index
    %c0_184 = arith.constant 0 : index
    %c0_185 = arith.constant 0 : index
    %217 = vector.load %arg7[%c1_183, %c0_184, %c0_185] : memref<9x64x64xbf16, #tpu.memory_space<vmem>>, vector<1x64x64xbf16>
    %218 = vector.shape_cast %217 : vector<1x64x64xbf16> to vector<64x64xbf16>
    %cst_186 = arith.constant dense<0.000000e+00> : vector<80x64xf32>
    %219 = tpu.matmul %216, %218, %cst_186 {dimension_numbers = #tpu.dot_dimension_numbers<[1], [0], [0], [1], [0, 0, 1, 1], [], []>} : vector<80x64xbf16>, vector<64x64xbf16>, vector<80x64xf32> -> vector<80x64xf32>
    %220 = arith.addf %214, %219 : vector<80x64xf32>
    %c2_187 = arith.constant 2 : index
    %c0_188 = arith.constant 0 : index
    %221 = vector.load %arg19[%c2_187, %c0_188] : memref<104x64xf32, #tpu.memory_space<vmem>>, vector<80x64xf32>
    %222 = arith.truncf %221 : vector<80x64xf32> to vector<80x64xbf16>
    %c2_189 = arith.constant 2 : index
    %c0_190 = arith.constant 0 : index
    %c0_191 = arith.constant 0 : index
    %223 = vector.load %arg7[%c2_189, %c0_190, %c0_191] : memref<9x64x64xbf16, #tpu.memory_space<vmem>>, vector<1x64x64xbf16>
    %224 = vector.shape_cast %223 : vector<1x64x64xbf16> to vector<64x64xbf16>
    %cst_192 = arith.constant dense<0.000000e+00> : vector<80x64xf32>
    %225 = tpu.matmul %222, %224, %cst_192 {dimension_numbers = #tpu.dot_dimension_numbers<[1], [0], [0], [1], [0, 0, 1, 1], [], []>} : vector<80x64xbf16>, vector<64x64xbf16>, vector<80x64xf32> -> vector<80x64xf32>
    %226 = arith.addf %220, %225 : vector<80x64xf32>
    %c8_193 = arith.constant 8 : index
    %c0_194 = arith.constant 0 : index
    %227 = vector.load %arg19[%c8_193, %c0_194] : memref<104x64xf32, #tpu.memory_space<vmem>>, vector<80x64xf32>
    %228 = arith.truncf %227 : vector<80x64xf32> to vector<80x64xbf16>
    %c3 = arith.constant 3 : index
    %c0_195 = arith.constant 0 : index
    %c0_196 = arith.constant 0 : index
    %229 = vector.load %arg7[%c3, %c0_195, %c0_196] : memref<9x64x64xbf16, #tpu.memory_space<vmem>>, vector<1x64x64xbf16>
    %230 = vector.shape_cast %229 : vector<1x64x64xbf16> to vector<64x64xbf16>
    %cst_197 = arith.constant dense<0.000000e+00> : vector<80x64xf32>
    %231 = tpu.matmul %228, %230, %cst_197 {dimension_numbers = #tpu.dot_dimension_numbers<[1], [0], [0], [1], [0, 0, 1, 1], [], []>} : vector<80x64xbf16>, vector<64x64xbf16>, vector<80x64xf32> -> vector<80x64xf32>
    %232 = arith.addf %226, %231 : vector<80x64xf32>
    %c9 = arith.constant 9 : index
    %c0_198 = arith.constant 0 : index
    %233 = vector.load %arg19[%c9, %c0_198] : memref<104x64xf32, #tpu.memory_space<vmem>>, vector<80x64xf32>
    %234 = arith.truncf %233 : vector<80x64xf32> to vector<80x64xbf16>
    %c4 = arith.constant 4 : index
    %c0_199 = arith.constant 0 : index
    %c0_200 = arith.constant 0 : index
    %235 = vector.load %arg7[%c4, %c0_199, %c0_200] : memref<9x64x64xbf16, #tpu.memory_space<vmem>>, vector<1x64x64xbf16>
    %236 = vector.shape_cast %235 : vector<1x64x64xbf16> to vector<64x64xbf16>
    %cst_201 = arith.constant dense<0.000000e+00> : vector<80x64xf32>
    %237 = tpu.matmul %234, %236, %cst_201 {dimension_numbers = #tpu.dot_dimension_numbers<[1], [0], [0], [1], [0, 0, 1, 1], [], []>} : vector<80x64xbf16>, vector<64x64xbf16>, vector<80x64xf32> -> vector<80x64xf32>
    %238 = arith.addf %232, %237 : vector<80x64xf32>
    %c10 = arith.constant 10 : index
    %c0_202 = arith.constant 0 : index
    %239 = vector.load %arg19[%c10, %c0_202] : memref<104x64xf32, #tpu.memory_space<vmem>>, vector<80x64xf32>
    %240 = arith.truncf %239 : vector<80x64xf32> to vector<80x64xbf16>
    %c5 = arith.constant 5 : index
    %c0_203 = arith.constant 0 : index
    %c0_204 = arith.constant 0 : index
    %241 = vector.load %arg7[%c5, %c0_203, %c0_204] : memref<9x64x64xbf16, #tpu.memory_space<vmem>>, vector<1x64x64xbf16>
    %242 = vector.shape_cast %241 : vector<1x64x64xbf16> to vector<64x64xbf16>
    %cst_205 = arith.constant dense<0.000000e+00> : vector<80x64xf32>
    %243 = tpu.matmul %240, %242, %cst_205 {dimension_numbers = #tpu.dot_dimension_numbers<[1], [0], [0], [1], [0, 0, 1, 1], [], []>} : vector<80x64xbf16>, vector<64x64xbf16>, vector<80x64xf32> -> vector<80x64xf32>
    %244 = arith.addf %238, %243 : vector<80x64xf32>
    %c16_206 = arith.constant 16 : index
    %c0_207 = arith.constant 0 : index
    %245 = vector.load %arg19[%c16_206, %c0_207] : memref<104x64xf32, #tpu.memory_space<vmem>>, vector<80x64xf32>
    %246 = arith.truncf %245 : vector<80x64xf32> to vector<80x64xbf16>
    %c6 = arith.constant 6 : index
    %c0_208 = arith.constant 0 : index
    %c0_209 = arith.constant 0 : index
    %247 = vector.load %arg7[%c6, %c0_208, %c0_209] : memref<9x64x64xbf16, #tpu.memory_space<vmem>>, vector<1x64x64xbf16>
    %248 = vector.shape_cast %247 : vector<1x64x64xbf16> to vector<64x64xbf16>
    %cst_210 = arith.constant dense<0.000000e+00> : vector<80x64xf32>
    %249 = tpu.matmul %246, %248, %cst_210 {dimension_numbers = #tpu.dot_dimension_numbers<[1], [0], [0], [1], [0, 0, 1, 1], [], []>} : vector<80x64xbf16>, vector<64x64xbf16>, vector<80x64xf32> -> vector<80x64xf32>
    %250 = arith.addf %244, %249 : vector<80x64xf32>
    %c17 = arith.constant 17 : index
    %c0_211 = arith.constant 0 : index
    %251 = vector.load %arg19[%c17, %c0_211] : memref<104x64xf32, #tpu.memory_space<vmem>>, vector<80x64xf32>
    %252 = arith.truncf %251 : vector<80x64xf32> to vector<80x64xbf16>
    %c7 = arith.constant 7 : index
    %c0_212 = arith.constant 0 : index
    %c0_213 = arith.constant 0 : index
    %253 = vector.load %arg7[%c7, %c0_212, %c0_213] : memref<9x64x64xbf16, #tpu.memory_space<vmem>>, vector<1x64x64xbf16>
    %254 = vector.shape_cast %253 : vector<1x64x64xbf16> to vector<64x64xbf16>
    %cst_214 = arith.constant dense<0.000000e+00> : vector<80x64xf32>
    %255 = tpu.matmul %252, %254, %cst_214 {dimension_numbers = #tpu.dot_dimension_numbers<[1], [0], [0], [1], [0, 0, 1, 1], [], []>} : vector<80x64xbf16>, vector<64x64xbf16>, vector<80x64xf32> -> vector<80x64xf32>
    %256 = arith.addf %250, %255 : vector<80x64xf32>
    %c18 = arith.constant 18 : index
    %c0_215 = arith.constant 0 : index
    %257 = vector.load %arg19[%c18, %c0_215] : memref<104x64xf32, #tpu.memory_space<vmem>>, vector<80x64xf32>
    %258 = arith.truncf %257 : vector<80x64xf32> to vector<80x64xbf16>
    %c8_216 = arith.constant 8 : index
    %c0_217 = arith.constant 0 : index
    %c0_218 = arith.constant 0 : index
    %259 = vector.load %arg7[%c8_216, %c0_217, %c0_218] : memref<9x64x64xbf16, #tpu.memory_space<vmem>>, vector<1x64x64xbf16>
    %260 = vector.shape_cast %259 : vector<1x64x64xbf16> to vector<64x64xbf16>
    %cst_219 = arith.constant dense<0.000000e+00> : vector<80x64xf32>
    %261 = tpu.matmul %258, %260, %cst_219 {dimension_numbers = #tpu.dot_dimension_numbers<[1], [0], [0], [1], [0, 0, 1, 1], [], []>} : vector<80x64xbf16>, vector<64x64xbf16>, vector<80x64xf32> -> vector<80x64xf32>
    %262 = arith.addf %256, %261 : vector<80x64xf32>
    %c0_220 = arith.constant 0 : index
    %c0_221 = arith.constant 0 : index
    %263 = vector.load %arg8[%c0_220, %c0_221] : memref<1x64xf32, #tpu.memory_space<vmem>>, vector<1x64xf32>
    %264 = vector.broadcast %263 : vector<1x64xf32> to vector<80x64xf32>
    %265 = arith.addf %262, %264 : vector<80x64xf32>
    %c0_222 = arith.constant 0 : index
    %c0_223 = arith.constant 0 : index
    %266 = vector.load %arg2[%c0_222, %c0_223] : memref<80x1xf32, #tpu.memory_space<vmem>>, vector<80x1xf32>
    %cst_224 = arith.constant 0.000000e+00 : f32
    %267 = vector.broadcast %cst_224 : f32 to vector<80x1xf32>
    %268 = arith.cmpf ogt, %266, %267 : vector<80x1xf32>
    %cst_225 = arith.constant 0.000000e+00 : f32
    %269 = vector.shape_cast %268 : vector<80x1xi1> to vector<80x1xi1>
    %270 = vector.broadcast %269 : vector<80x1xi1> to vector<80x64xi1>
    %271 = vector.broadcast %cst_225 : f32 to vector<80x64xf32>
    %272 = arith.select %270, %265, %271 : vector<80x64xi1>, vector<80x64xf32>
    %cst_226 = arith.constant dense<0.000000e+00> : vector<64xf32>
    %273 = vector.multi_reduction <add>, %272, %cst_226 [0] : vector<80x64xf32> to vector<64xf32>
    %cst_227 = arith.constant 3.125000e-02 : f32
    %274 = vector.broadcast %cst_227 : f32 to vector<64xf32>
    %275 = arith.mulf %273, %274 : vector<64xf32>
    %276 = arith.mulf %272, %272 : vector<80x64xf32>
    %cst_228 = arith.constant dense<0.000000e+00> : vector<64xf32>
    %277 = vector.multi_reduction <add>, %276, %cst_228 [0] : vector<80x64xf32> to vector<64xf32>
    %cst_229 = arith.constant 3.125000e-02 : f32
    %278 = vector.broadcast %cst_229 : f32 to vector<64xf32>
    %279 = arith.mulf %277, %278 : vector<64xf32>
    %280 = arith.mulf %275, %275 : vector<64xf32>
    %281 = arith.subf %279, %280 : vector<64xf32>
    %c0_230 = arith.constant 0 : index
    %c0_231 = arith.constant 0 : index
    %282 = vector.load %arg9[%c0_230, %c0_231] : memref<1x64xf32, #tpu.memory_space<vmem>>, vector<1x64xf32>
    %283 = vector.shape_cast %282 : vector<1x64xf32> to vector<64xf32>
    %cst_232 = arith.constant 9.99999974E-6 : f32
    %284 = vector.broadcast %cst_232 : f32 to vector<64xf32>
    %285 = arith.addf %281, %284 : vector<64xf32>
    %286 = math.rsqrt %285 : vector<64xf32>
    %287 = arith.mulf %283, %286 : vector<64xf32>
    %c0_233 = arith.constant 0 : index
    %c0_234 = arith.constant 0 : index
    %288 = vector.load %arg10[%c0_233, %c0_234] : memref<1x64xf32, #tpu.memory_space<vmem>>, vector<1x64xf32>
    %289 = vector.shape_cast %288 : vector<1x64xf32> to vector<64xf32>
    %290 = arith.mulf %275, %287 : vector<64xf32>
    %291 = arith.subf %289, %290 : vector<64xf32>
    %292 = vector.shape_cast %287 : vector<64xf32> to vector<1x64xf32>
    %293 = vector.broadcast %292 : vector<1x64xf32> to vector<80x64xf32>
    %294 = arith.mulf %265, %293 : vector<80x64xf32>
    %295 = vector.shape_cast %291 : vector<64xf32> to vector<1x64xf32>
    %296 = vector.broadcast %295 : vector<1x64xf32> to vector<80x64xf32>
    %297 = arith.addf %294, %296 : vector<80x64xf32>
    %cst_235 = arith.constant 0.000000e+00 : f32
    %298 = vector.broadcast %cst_235 : f32 to vector<80x64xf32>
    %299 = arith.maximumf %297, %298 : vector<80x64xf32>
    %c0_236 = arith.constant 0 : index
    %c0_237 = arith.constant 0 : index
    %300 = vector.load %arg18[%c0_236, %c0_237] : memref<88x64xf32, #tpu.memory_space<vmem>>, vector<80x64xf32>
    tpu.vector_store %arg18[%c0_236, %c0_237], %299 {strides = array<i32>} : memref<88x64xf32, #tpu.memory_space<vmem>>, vector<80x64xf32>,
    %c0_238 = arith.constant 0 : index
    %c0_239 = arith.constant 0 : index
    %301 = vector.load %arg18[%c0_238, %c0_239] : memref<88x64xf32, #tpu.memory_space<vmem>>, vector<80x64xf32>
    %c1_240 = arith.constant 1 : index
    %c0_241 = arith.constant 0 : index
    %302 = vector.load %arg18[%c1_240, %c0_241] : memref<88x64xf32, #tpu.memory_space<vmem>>, vector<80x64xf32>
    %303 = arith.maximumf %301, %302 : vector<80x64xf32>
    %c0_242 = arith.constant 0 : index
    %c0_243 = arith.constant 0 : index
    %304 = vector.load %arg17[%c0_242, %c0_243] : memref<416x64xf32, #tpu.memory_space<vmem>>, vector<80x64xf32>
    tpu.vector_store %arg17[%c0_242, %c0_243], %303 {strides = array<i32>} : memref<416x64xf32, #tpu.memory_space<vmem>>, vector<80x64xf32>,
    %c0_244 = arith.constant 0 : index
    %c0_245 = arith.constant 0 : index
    %305 = tpu.strided_load %arg17[%c0_244, %c0_245] {strides = array<i32: 48, 1>} : memref<416x64xf32, #tpu.memory_space<vmem>>, vector<2x64xf32>
    %c8_246 = arith.constant 8 : index
    %c0_247 = arith.constant 0 : index
    %306 = tpu.strided_load %arg17[%c8_246, %c0_247] {strides = array<i32: 48, 1>} : memref<416x64xf32, #tpu.memory_space<vmem>>, vector<2x64xf32>
    %307 = arith.maximumf %305, %306 : vector<2x64xf32>
    %c2_248 = arith.constant 2 : index
    %c0_249 = arith.constant 0 : index
    %308 = tpu.strided_load %arg17[%c2_248, %c0_249] {strides = array<i32: 48, 1>} : memref<416x64xf32, #tpu.memory_space<vmem>>, vector<2x64xf32>
    %c10_250 = arith.constant 10 : index
    %c0_251 = arith.constant 0 : index
    %309 = tpu.strided_load %arg17[%c10_250, %c0_251] {strides = array<i32: 48, 1>} : memref<416x64xf32, #tpu.memory_space<vmem>>, vector<2x64xf32>
    %310 = arith.maximumf %308, %309 : vector<2x64xf32>
    %c16_252 = arith.constant 16 : index
    %c0_253 = arith.constant 0 : index
    %311 = tpu.strided_load %arg17[%c16_252, %c0_253] {strides = array<i32: 48, 1>} : memref<416x64xf32, #tpu.memory_space<vmem>>, vector<2x64xf32>
    %c24_254 = arith.constant 24 : index
    %c0_255 = arith.constant 0 : index
    %312 = tpu.strided_load %arg17[%c24_254, %c0_255] {strides = array<i32: 48, 1>} : memref<416x64xf32, #tpu.memory_space<vmem>>, vector<2x64xf32>
    %313 = arith.maximumf %311, %312 : vector<2x64xf32>
    %c18_256 = arith.constant 18 : index
    %c0_257 = arith.constant 0 : index
    %314 = tpu.strided_load %arg17[%c18_256, %c0_257] {strides = array<i32: 48, 1>} : memref<416x64xf32, #tpu.memory_space<vmem>>, vector<2x64xf32>
    %c26 = arith.constant 26 : index
    %c0_258 = arith.constant 0 : index
    %315 = tpu.strided_load %arg17[%c26, %c0_258] {strides = array<i32: 48, 1>} : memref<416x64xf32, #tpu.memory_space<vmem>>, vector<2x64xf32>
    %316 = arith.maximumf %314, %315 : vector<2x64xf32>
    %317 = tpu.concatenate %307, %310, %313, %316 in 1 : vector<2x64xf32>, vector<2x64xf32>, vector<2x64xf32>, vector<2x64xf32> -> vector<2x256xf32>
    %c0_259 = arith.constant 0 : index
    %c0_260 = arith.constant 0 : index
    %318 = vector.load %arg11[%c0_259, %c0_260] : memref<256x8xf32, #tpu.memory_space<vmem>>, vector<256x8xf32>
    %cst_261 = arith.constant dense<0.000000e+00> : vector<2x8xf32>
    %319 = tpu.matmul %317, %318, %cst_261 {dimension_numbers = #tpu.dot_dimension_numbers<[1], [0], [0], [1], [0, 0, 1, 1], [], []>} : vector<2x256xf32>, vector<256x8xf32>, vector<2x8xf32> -> vector<2x8xf32>
    %c0_262 = arith.constant 0 : index
    %c0_263 = arith.constant 0 : index
    %320 = vector.load %arg12[%c0_262, %c0_263] : memref<1x8xf32, #tpu.memory_space<vmem>>, vector<1x8xf32>
    %321 = vector.broadcast %320 : vector<1x8xf32> to vector<2x8xf32>
    %322 = arith.addf %319, %321 : vector<2x8xf32>
    %cst_264 = arith.constant 0.000000e+00 : f32
    %323 = vector.broadcast %cst_264 : f32 to vector<2x8xf32>
    %324 = arith.maximumf %322, %323 : vector<2x8xf32>
    %c0_265 = arith.constant 0 : index
    %c0_266 = arith.constant 0 : index
    %325 = vector.load %arg13[%c0_265, %c0_266] : memref<8x1xf32, #tpu.memory_space<vmem>>, vector<8x1xf32>
    %cst_267 = arith.constant dense<0.000000e+00> : vector<2x1xf32>
    %326 = tpu.matmul %324, %325, %cst_267 {dimension_numbers = #tpu.dot_dimension_numbers<[1], [0], [0], [1], [0, 0, 1, 1], [], []>} : vector<2x8xf32>, vector<8x1xf32>, vector<2x1xf32> -> vector<2x1xf32>
    %c0_268 = arith.constant 0 : index
    %c0_269 = arith.constant 0 : index
    %327 = vector.load %arg14[%c0_268, %c0_269] : memref<1x1xf32, #tpu.memory_space<vmem>>, vector<1x1xf32>
    %328 = vector.broadcast %327 : vector<1x1xf32> to vector<2x1xf32>
    %329 = arith.addf %326, %328 : vector<2x1xf32>
    %cst_270 = arith.constant 0.000000e+00 : f32
    %330 = vector.broadcast %cst_270 : f32 to vector<2x1xf32>
    %331 = arith.subf %330, %329 : vector<2x1xf32>
    %332 = math.exp %331 : vector<2x1xf32>
    %cst_271 = arith.constant 1.000000e+00 : f32
    %333 = vector.broadcast %cst_271 : f32 to vector<2x1xf32>
    %334 = arith.addf %333, %332 : vector<2x1xf32>
    %cst_272 = arith.constant 1.000000e+00 : f32
    %335 = vector.broadcast %cst_272 : f32 to vector<2x1xf32>
    %336 = arith.divf %335, %334 : vector<2x1xf32>
    %c0_273 = arith.constant 0 : index
    %c0_274 = arith.constant 0 : index
    %337 = vector.load %arg15[%c0_273, %c0_274] : memref<2x1xf32, #tpu.memory_space<vmem>>, vector<2x1xf32>
    tpu.vector_store %arg15[%c0_273, %c0_274], %336 {strides = array<i32>} : memref<2x1xf32, #tpu.memory_space<vmem>>, vector<2x1xf32>,
    return
  }
}

</mosaic_0001>

<llo_original>
// kernel: tpu_custom_call.1
$region0: #{tpu_custom_call.1}
  #allocation0 [shape = 'u32[]', space=smem, size = 0x4, offset = 0x4, fixed_abs, tag = 'smem constant byte address 0x4 - core index']
  #allocation1 [shape = 'u32[72,128]{1,0:T(1,128)}', space=vmem, size = 0x9000, scoped, tag = 'internal scratch']
  #allocation2 [shape = 'f32[512,64]{1,0:T(8,128)}', space=vmem, size = 0x40000, scoped, tag = 'scratch operand']
  #allocation3 [shape = 'f32[416,64]{1,0:T(8,128)}', space=vmem, size = 0x34000, scoped, tag = 'scratch operand']
  #allocation4 [shape = 'f32[88,64]{1,0:T(8,128)}', space=vmem, size = 0xb000, scoped, tag = 'scratch operand']
  #allocation5 [shape = 'f32[104,64]{1,0:T(8,128)}', space=vmem, size = 0xd000, scoped, tag = 'scratch operand']
  #allocation6 [shape = 'f32[1,1]{1,0:T(1,128)S(1)}', space=vmem, size = 0x200, scoped, tag = 'scoped memory for tpu_custom_call.1']
  %s0 = inlined_call_operand.vmem [shape: bf16[544,384], index: 0, kind: input, shape index: {}]
  %s1 = inlined_call_operand.vmem [shape: f32[512,1], index: 1, kind: input, shape index: {}]
  %s2 = inlined_call_operand.vmem [shape: f32[80,1], index: 2, kind: input, shape index: {}]
  %s3 = inlined_call_operand.vmem [shape: bf16[3,384,64], index: 3, kind: input, shape index: {}]
  %s4 = inlined_call_operand.vmem [shape: f32[1,64], index: 4, kind: input, shape index: {}]
  %s5 = inlined_call_operand.vmem [shape: f32[1,64], index: 5, kind: input, shape index: {}]
  %s6 = inlined_call_operand.vmem [shape: f32[1,64], index: 6, kind: input, shape index: {}]
  %s7 = inlined_call_operand.vmem [shape: bf16[9,64,64], index: 7, kind: input, shape index: {}]
  %s8 = inlined_call_operand.vmem [shape: f32[1,64], index: 8, kind: input, shape index: {}]
  %s9 = inlined_call_operand.vmem [shape: f32[1,64], index: 9, kind: input, shape index: {}]
  %s10 = inlined_call_operand.vmem [shape: f32[1,64], index: 10, kind: input, shape index: {}]
  %s11 = inlined_call_operand.vmem [shape: f32[256,8], index: 11, kind: input, shape index: {}]
  %s12 = inlined_call_operand.vmem [shape: f32[1,8], index: 12, kind: input, shape index: {}]
  %s13 = inlined_call_operand.vmem [shape: f32[8,1], index: 13, kind: input, shape index: {}]
  %s14 = inlined_call_operand.<no memory space> [shape: f32[1,1], index: 14, kind: input, shape index: {}]
  %s15 = inlined_call_operand.vmem [shape: f32[2,1], index: 15, kind: output, shape index: {}]
  %s16 = sld [smem:[#allocation0]]
  $region70: #{tpu_custom_call.1} parent=0
    _
  %s18 = ssub.s32 1, %s16
  %s19 = scalar_select 0, %s18, %s16
  %v20 = vstv %s14
  %21 = vst [vmem:[#allocation6] sm:$0x1] %v20
  // Predicated region
  $region2: #{tpu_custom_call.1} parent=0 // pred_check
    _
  $region3: #{tpu_custom_call.1} parent=0 // pred_check_branch
    %23 = sbr.rel (0) target = $region5
  $region4: #{tpu_custom_call.1} parent=0 // pred_region
    _
  $region5: #{tpu_custom_call.1} parent=0 // pred_fallthru
    _
  // Predicated region
  $region6: #{tpu_custom_call.1} parent=0 // pred_check
    _
  $region7: #{tpu_custom_call.1} parent=0 // pred_check_branch
    %25 = sbr.rel (0) target = $region9
  $region8: #{tpu_custom_call.1} parent=0 // pred_region
    _
  $region9: #{tpu_custom_call.1} parent=0 // pred_fallthru
    _
  // Predicated region
  $region10: #{tpu_custom_call.1} parent=0 // pred_check
    _
  $region11: #{tpu_custom_call.1} parent=0 // pred_check_branch
    %27 = sbr.rel (0) target = $region13
  $region12: #{tpu_custom_call.1} parent=0 // pred_region
    _
  $region13: #{tpu_custom_call.1} parent=0 // pred_fallthru
    _
  // Predicated region
  $region14: #{tpu_custom_call.1} parent=0 // pred_check
    _
  $region15: #{tpu_custom_call.1} parent=0 // pred_check_branch
    %29 = sbr.rel (0) target = $region17
  $region16: #{tpu_custom_call.1} parent=0 // pred_region
    _
  $region17: #{tpu_custom_call.1} parent=0 // pred_fallthru
    _
  // Predicated region
  $region18: #{tpu_custom_call.1} parent=0 // pred_check
    _
  $region19: #{tpu_custom_call.1} parent=0 // pred_check_branch
    %31 = sbr.rel (0) target = $region21
  $region20: #{tpu_custom_call.1} parent=0 // pred_region
    _
  $region21: #{tpu_custom_call.1} parent=0 // pred_fallthru
    _
  // Predicated region
  $region22: #{tpu_custom_call.1} parent=0 // pred_check
    _
  $region23: #{tpu_custom_call.1} parent=0 // pred_check_branch
    %33 = sbr.rel (0) target = $region25
  $region24: #{tpu_custom_call.1} parent=0 // pred_region
    _
  $region25: #{tpu_custom_call.1} parent=0 // pred_fallthru
    _
  // Predicated region
  $region26: #{tpu_custom_call.1} parent=0 // pred_check
    _
  $region27: #{tpu_custom_call.1} parent=0 // pred_check_branch
    %35 = sbr.rel (0) target = $region29
  $region28: #{tpu_custom_call.1} parent=0 // pred_region
    _
  $region29: #{tpu_custom_call.1} parent=0 // pred_fallthru
    _
  // Predicated region
  $region30: #{tpu_custom_call.1} parent=0 // pred_check
    _
  $region31: #{tpu_custom_call.1} parent=0 // pred_check_branch
    %37 = sbr.rel (0) target = $region33
  $region32: #{tpu_custom_call.1} parent=0 // pred_region
    _
  $region33: #{tpu_custom_call.1} parent=0 // pred_fallthru
    _
  // Predicated region
  $region34: #{tpu_custom_call.1} parent=0 // pred_check
    _
  $region35: #{tpu_custom_call.1} parent=0 // pred_check_branch
    %39 = sbr.rel (0) target = $region37
  $region36: #{tpu_custom_call.1} parent=0 // pred_region
    _
  $region37: #{tpu_custom_call.1} parent=0 // pred_fallthru
    _
  // Predicated region
  $region38: #{tpu_custom_call.1} parent=0 // pred_check
    _
  $region39: #{tpu_custom_call.1} parent=0 // pred_check_branch
    %41 = sbr.rel (0) target = $region41
  $region40: #{tpu_custom_call.1} parent=0 // pred_region
    _
  $region41: #{tpu_custom_call.1} parent=0 // pred_fallthru
    _
  // Predicated region
  $region42: #{tpu_custom_call.1} parent=0 // pred_check
    _
  $region43: #{tpu_custom_call.1} parent=0 // pred_check_branch
    %43 = sbr.rel (0) target = $region45
  $region44: #{tpu_custom_call.1} parent=0 // pred_region
    _
  $region45: #{tpu_custom_call.1} parent=0 // pred_fallthru
    _
  // Predicated region
  $region46: #{tpu_custom_call.1} parent=0 // pred_check
    _
  $region47: #{tpu_custom_call.1} parent=0 // pred_check_branch
    %45 = sbr.rel (0) target = $region49
  $region48: #{tpu_custom_call.1} parent=0 // pred_region
    _
  $region49: #{tpu_custom_call.1} parent=0 // pred_fallthru
    _
  // Predicated region
  $region50: #{tpu_custom_call.1} parent=0 // pred_check
    _
  $region51: #{tpu_custom_call.1} parent=0 // pred_check_branch
    %47 = sbr.rel (0) target = $region53
  $region52: #{tpu_custom_call.1} parent=0 // pred_region
    _
  $region53: #{tpu_custom_call.1} parent=0 // pred_fallthru
    _
  // Predicated region
  $region54: #{tpu_custom_call.1} parent=0 // pred_check
    _
  $region55: #{tpu_custom_call.1} parent=0 // pred_check_branch
    %49 = sbr.rel (0) target = $region57
  $region56: #{tpu_custom_call.1} parent=0 // pred_region
    _
  $region57: #{tpu_custom_call.1} parent=0 // pred_fallthru
    _
  // Predicated region
  $region58: #{tpu_custom_call.1} parent=0 // pred_check
    _
  $region59: #{tpu_custom_call.1} parent=0 // pred_check_branch
    %51 = sbr.rel (0) target = $region61
  $region60: #{tpu_custom_call.1} parent=0 // pred_region
    _
  $region61: #{tpu_custom_call.1} parent=0 // pred_fallthru
    _
  %v53 = vld [vmem:[%s0] sm:$0xff]
  %v54 = vld [vmem:[%s0 + $0x8] sm:$0xf]
  %v55 = vld [vmem:[%s0 + $0xc] sm:$0xff]
  %v56 = vld [vmem:[%s0 + $0x14] sm:$0xf]
  %v57 = vld [vmem:[%s0 + $0x18] sm:$0xff]
  %v58 = vld [vmem:[%s0 + $0x20] sm:$0xf]
  %v59 = vld [vmem:[%s0 + $0x24] sm:$0xff]
  %v60 = vld [vmem:[%s0 + $0x2c] sm:$0xf]
  %v61 = vld [vmem:[%s0 + $0x30] sm:$0xff]
  %v62 = vld [vmem:[%s0 + $0x38] sm:$0xf]
  %v63 = vld [vmem:[%s0 + $0x3c] sm:$0xff]
  %v64 = vld [vmem:[%s0 + $0x44] sm:$0xf]
  %v65 = vld [vmem:[%s0 + $0x48] sm:$0xff]
  %v66 = vld [vmem:[%s0 + $0x50] sm:$0xf]
  %v67 = vld [vmem:[%s0 + $0x54] sm:$0xff]
  %v68 = vld [vmem:[%s0 + $0x5c] sm:$0xf]
  %v69 = vld [vmem:[%s0 + $0x60] sm:$0xff]
  %v70 = vld [vmem:[%s0 + $0x68] sm:$0xf]
  %v71 = vld [vmem:[%s0 + $0x6c] sm:$0xff]
  %v72 = vld [vmem:[%s0 + $0x74] sm:$0xf]
  %v73 = vld [vmem:[%s0 + $0x78] sm:$0xff]
  %v74 = vld [vmem:[%s0 + $0x80] sm:$0xf]
  %v75 = vld [vmem:[%s0 + $0x84] sm:$0xff]
  %v76 = vld [vmem:[%s0 + $0x8c] sm:$0xf]
  %v77 = vld [vmem:[%s0 + $0x90] sm:$0xff]
  %v78 = vld [vmem:[%s0 + $0x98] sm:$0xf]
  %v79 = vld [vmem:[%s0 + $0x9c] sm:$0xff]
  %v80 = vld [vmem:[%s0 + $0xa4] sm:$0xf]
  %v81 = vld [vmem:[%s0 + $0xa8] sm:$0xff]
  %v82 = vld [vmem:[%s0 + $0xb0] sm:$0xf]
  %v83 = vld [vmem:[%s0 + $0xb4] sm:$0xff]
  %v84 = vld [vmem:[%s0 + $0xbc] sm:$0xf]
  %v85 = vld [vmem:[%s3] sm:$0xf]
  %v86 = vld [vmem:[%s3 + $0x4] sm:$0xf]
  %v87 = vld [vmem:[%s3 + $0x8] sm:$0xf]
  %v88 = vld [vmem:[%s3 + $0xc] sm:$0xf]
  %v89 = vld [vmem:[%s3 + $0x10] sm:$0xf]
  %v90 = vld [vmem:[%s3 + $0x14] sm:$0xf]
  %v91 = vld [vmem:[%s3 + $0x18] sm:$0xf]
  %v92 = vld [vmem:[%s3 + $0x1c] sm:$0xf]
  %v93 = vld [vmem:[%s3 + $0x20] sm:$0xf]
  %v94 = vld [vmem:[%s3 + $0x24] sm:$0xf]
  %v95 = vld [vmem:[%s3 + $0x28] sm:$0xf]
  %v96 = vld [vmem:[%s3 + $0x2c] sm:$0xf]
  %v97 = vld [vmem:[%s3 + $0x30] sm:$0xf]
  %v98 = vld [vmem:[%s3 + $0x34] sm:$0xf]
  %v99 = vld [vmem:[%s3 + $0x38] sm:$0xf]
  %v100 = vld [vmem:[%s3 + $0x3c] sm:$0xf]
  %v101 = vld [vmem:[%s3 + $0x40] sm:$0xf]
  %v102 = vld [vmem:[%s3 + $0x44] sm:$0xf]
  %v103 = vld [vmem:[%s3 + $0x48] sm:$0xf]
  %v104 = vld [vmem:[%s3 + $0x4c] sm:$0xf]
  %v105 = vld [vmem:[%s3 + $0x50] sm:$0xf]
  %v106 = vld [vmem:[%s3 + $0x54] sm:$0xf]
  %v107 = vld [vmem:[%s3 + $0x58] sm:$0xf]
  %v108 = vld [vmem:[%s3 + $0x5c] sm:$0xf]
  %v109 = vld [vmem:[%s3 + $0x60] sm:$0xf]
  %v110 = vld [vmem:[%s3 + $0x64] sm:$0xf]
  %v111 = vld [vmem:[%s3 + $0x68] sm:$0xf]
  %v112 = vld [vmem:[%s3 + $0x6c] sm:$0xf]
  %v113 = vld [vmem:[%s3 + $0x70] sm:$0xf]
  %v114 = vld [vmem:[%s3 + $0x74] sm:$0xf]
  %v115 = vld [vmem:[%s3 + $0x78] sm:$0xf]
  %v116 = vld [vmem:[%s3 + $0x7c] sm:$0xf]
  %v117 = vld [vmem:[%s3 + $0x80] sm:$0xf]
  %v118 = vld [vmem:[%s3 + $0x84] sm:$0xf]
  %v119 = vld [vmem:[%s3 + $0x88] sm:$0xf]
  %v120 = vld [vmem:[%s3 + $0x8c] sm:$0xf]
  %v121 = vld [vmem:[%s3 + $0x90] sm:$0xf]
  %v122 = vld [vmem:[%s3 + $0x94] sm:$0xf]
  %v123 = vld [vmem:[%s3 + $0x98] sm:$0xf]
  %v124 = vld [vmem:[%s3 + $0x9c] sm:$0xf]
  %v125 = vld [vmem:[%s3 + $0xa0] sm:$0xf]
  %v126 = vld [vmem:[%s3 + $0xa4] sm:$0xf]
  %v127 = vld [vmem:[%s3 + $0xa8] sm:$0xf]
  %v128 = vld [vmem:[%s3 + $0xac] sm:$0xf]
  %v129 = vld [vmem:[%s3 + $0xb0] sm:$0xf]
  %v130 = vld [vmem:[%s3 + $0xb4] sm:$0xf]
  %v131 = vld [vmem:[%s3 + $0xb8] sm:$0xf]
  %v132 = vld [vmem:[%s3 + $0xbc] sm:$0xf]
  %v133 = vld [vmem:[%s0 + $0xc0] sm:$0xff]
  %v134 = vld [vmem:[%s0 + $0xc8] sm:$0xf]
  %v135 = vld [vmem:[%s0 + $0xcc] sm:$0xff]
  %v136 = vld [vmem:[%s0 + $0xd4] sm:$0xf]
  %s137 = scalar_lea.vmem %s3, 192
  %v138 = vld [vmem:[%s137] sm:$0xf]
  %v139 = vld [vmem:[%s137 + $0x4] sm:$0xf]
  %v140 = vld [vmem:[%s137 + $0x8] sm:$0xf]
  %v141 = vld [vmem:[%s137 + $0xc] sm:$0xf]
  %v142 = vld [vmem:[%s137 + $0x10] sm:$0xf]
  %v143 = vld [vmem:[%s137 + $0x14] sm:$0xf]
  %v144 = vld [vmem:[%s137 + $0x18] sm:$0xf]
  %v145 = vld [vmem:[%s137 + $0x1c] sm:$0xf]
  %v146 = vld [vmem:[%s137 + $0x20] sm:$0xf]
  %v147 = vld [vmem:[%s137 + $0x24] sm:$0xf]
  %v148 = vld [vmem:[%s137 + $0x28] sm:$0xf]
  %v149 = vld [vmem:[%s137 + $0x2c] sm:$0xf]
  %v150 = vld [vmem:[%s137 + $0x30] sm:$0xf]
  %v151 = vld [vmem:[%s137 + $0x34] sm:$0xf]
  %v152 = vld [vmem:[%s137 + $0x38] sm:$0xf]
  %v153 = vld [vmem:[%s137 + $0x3c] sm:$0xf]
  %v154 = vld [vmem:[%s137 + $0x40] sm:$0xf]
  %v155 = vld [vmem:[%s137 + $0x44] sm:$0xf]
  %v156 = vld [vmem:[%s137 + $0x48] sm:$0xf]
  %v157 = vld [vmem:[%s137 + $0x4c] sm:$0xf]
  %v158 = vld [vmem:[%s137 + $0x50] sm:$0xf]
  %v159 = vld [vmem:[%s137 + $0x54] sm:$0xf]
  %v160 = vld [vmem:[%s137 + $0x58] sm:$0xf]
  %v161 = vld [vmem:[%s137 + $0x5c] sm:$0xf]
  %v162 = vld [vmem:[%s137 + $0x60] sm:$0xf]
  %v163 = vld [vmem:[%s137 + $0x64] sm:$0xf]
  %v164 = vld [vmem:[%s137 + $0x68] sm:$0xf]
  %v165 = vld [vmem:[%s137 + $0x6c] sm:$0xf]
  %v166 = vld [vmem:[%s137 + $0x70] sm:$0xf]
  %v167 = vld [vmem:[%s137 + $0x74] sm:$0xf]
  %v168 = vld [vmem:[%s137 + $0x78] sm:$0xf]
  %v169 = vld [vmem:[%s137 + $0x7c] sm:$0xf]
  %v170 = vld [vmem:[%s137 + $0x80] sm:$0xf]
  %v171 = vld [vmem:[%s137 + $0x84] sm:$0xf]
  %v172 = vld [vmem:[%s137 + $0x88] sm:$0xf]
  %v173 = vld [vmem:[%s137 + $0x8c] sm:$0xf]
  %v174 = vld [vmem:[%s137 + $0x90] sm:$0xf]
  %v175 = vld [vmem:[%s137 + $0x94] sm:$0xf]
  %v176 = vld [vmem:[%s137 + $0x98] sm:$0xf]
  %v177 = vld [vmem:[%s137 + $0x9c] sm:$0xf]
  %v178 = vld [vmem:[%s137 + $0xa0] sm:$0xf]
  %v179 = vld [vmem:[%s137 + $0xa4] sm:$0xf]
  %v180 = vld [vmem:[%s137 + $0xa8] sm:$0xf]
  %v181 = vld [vmem:[%s137 + $0xac] sm:$0xf]
  %v182 = vld [vmem:[%s137 + $0xb0] sm:$0xf]
  %v183 = vld [vmem:[%s137 + $0xb4] sm:$0xf]
  %v184 = vld [vmem:[%s137 + $0xb8] sm:$0xf]
  %v185 = vld [vmem:[%s137 + $0xbc] sm:$0xf]
  %v218 = vunpack.c.l.b16 %v57
  %v219 = vunpack.c.h.b16 %v57
  %v220 = vunpack.c.l.b16 %v58
  %v221 = vunpack.c.l.b16 %v59
  %v222 = vunpack.c.h.b16 %v59
  %v223 = vunpack.c.l.b16 %v60
  %v224 = vunpack.c.l.b16 %v61
  %v225 = vunpack.c.h.b16 %v61
  %v226 = vunpack.c.l.b16 %v62
  %v227 = vunpack.c.l.b16 %v63
  %v228 = vunpack.c.h.b16 %v63
  %v229 = vunpack.c.l.b16 %v64
  %v230 = vunpack.c.l.b16 %v65
  %v231 = vunpack.c.h.b16 %v65
  %v232 = vunpack.c.l.b16 %v66
  %v233 = vunpack.c.l.b16 %v67
  %v234 = vunpack.c.h.b16 %v67
  %v235 = vunpack.c.l.b16 %v68
  %v236 = vunpack.c.l.b16 %v69
  %v237 = vunpack.c.h.b16 %v69
  %v238 = vunpack.c.l.b16 %v70
  %v239 = vunpack.c.l.b16 %v71
  %v240 = vunpack.c.h.b16 %v71
  %v241 = vunpack.c.l.b16 %v72
  %v242 = vunpack.c.l.b16 %v73
  %v243 = vunpack.c.h.b16 %v73
  %v244 = vunpack.c.l.b16 %v74
  %v245 = vunpack.c.l.b16 %v75
  %v246 = vunpack.c.h.b16 %v75
  %v247 = vunpack.c.l.b16 %v76
  %v248 = vunpack.c.l.b16 %v77
  %v249 = vunpack.c.h.b16 %v77
  %v250 = vunpack.c.l.b16 %v78
  %v251 = vunpack.c.l.b16 %v79
  %v252 = vunpack.c.h.b16 %v79
  %v253 = vunpack.c.l.b16 %v80
  %v254 = vunpack.c.l.b16 %v81
  %v255 = vunpack.c.h.b16 %v81
  %v256 = vunpack.c.l.b16 %v82
  %v257 = vunpack.c.l.b16 %v83
  %v258 = vunpack.c.h.b16 %v83
  %v259 = vunpack.c.l.b16 %v84
  %v260 = vunpack.c.l.b16 %v133
  %v261 = vunpack.c.h.b16 %v133
  %v262 = vunpack.c.l.b16 %v134
  %v263 = vunpack.c.l.b16 %v135
  %v264 = vunpack.c.h.b16 %v135
  %v265 = vunpack.c.l.b16 %v136
  %v266 = vpack.c.b16 %v221, %v218
  %v267 = vpack.c.b16 %v222, %v219
  %v268 = vpack.c.b16 %v223, %v220
  %v269 = vpack.c.b16 %v227, %v224
  %v270 = vpack.c.b16 %v228, %v225
  %v271 = vpack.c.b16 %v229, %v226
  %v272 = vpack.c.b16 %v233, %v230
  %v273 = vpack.c.b16 %v234, %v231
  %v274 = vpack.c.b16 %v235, %v232
  %v275 = vpack.c.b16 %v239, %v236
  %v276 = vpack.c.b16 %v240, %v237
  %v277 = vpack.c.b16 %v241, %v238
  %v278 = vpack.c.b16 %v245, %v242
  %v279 = vpack.c.b16 %v246, %v243
  %v280 = vpack.c.b16 %v247, %v244
  %v281 = vpack.c.b16 %v251, %v248
  %v282 = vpack.c.b16 %v252, %v249
  %v283 = vpack.c.b16 %v253, %v250
  %v284 = vpack.c.b16 %v257, %v254
  %v285 = vpack.c.b16 %v258, %v255
  %v286 = vpack.c.b16 %v259, %v256
  %v287 = vpack.c.b16 %v263, %v260
  %v288 = vpack.c.b16 %v264, %v261
  %v289 = vpack.c.b16 %v265, %v262
  %v362 = vunpack.c.l.b16 %v138
  %v363 = vunpack.c.l.b16 %v139
  %v364 = vunpack.c.l.b16 %v140
  %v365 = vunpack.c.l.b16 %v141
  %v366 = vunpack.c.l.b16 %v142
  %v367 = vunpack.c.l.b16 %v143
  %v368 = vunpack.c.l.b16 %v144
  %v369 = vunpack.c.l.b16 %v145
  %v370 = vunpack.c.l.b16 %v146
  %v371 = vunpack.c.l.b16 %v147
  %v372 = vunpack.c.l.b16 %v148
  %v373 = vunpack.c.l.b16 %v149
  %v374 = vunpack.c.l.b16 %v150
  %v375 = vunpack.c.l.b16 %v151
  %v376 = vunpack.c.l.b16 %v152
  %v377 = vunpack.c.l.b16 %v153
  %v378 = vunpack.c.l.b16 %v154
  %v379 = vunpack.c.l.b16 %v155
  %v380 = vunpack.c.l.b16 %v156
  %v381 = vunpack.c.l.b16 %v157
  %v382 = vunpack.c.l.b16 %v158
  %v383 = vunpack.c.l.b16 %v159
  %v384 = vunpack.c.l.b16 %v160
  %v385 = vunpack.c.l.b16 %v161
  %v386 = vunpack.c.l.b16 %v162
  %v387 = vunpack.c.l.b16 %v163
  %v388 = vunpack.c.l.b16 %v164
  %v389 = vunpack.c.l.b16 %v165
  %v390 = vunpack.c.l.b16 %v166
  %v391 = vunpack.c.l.b16 %v167
  %v392 = vunpack.c.l.b16 %v168
  %v393 = vunpack.c.l.b16 %v169
  %v394 = vunpack.c.l.b16 %v170
  %v395 = vunpack.c.l.b16 %v171
  %v396 = vunpack.c.l.b16 %v172
  %v397 = vunpack.c.l.b16 %v173
  %v398 = vunpack.c.l.b16 %v174
  %v399 = vunpack.c.l.b16 %v175
  %v400 = vunpack.c.l.b16 %v176
  %v401 = vunpack.c.l.b16 %v177
  %v402 = vunpack.c.l.b16 %v178
  %v403 = vunpack.c.l.b16 %v179
  %v404 = vunpack.c.l.b16 %v180
  %v405 = vunpack.c.l.b16 %v181
  %v406 = vunpack.c.l.b16 %v182
  %v407 = vunpack.c.l.b16 %v183
  %v408 = vunpack.c.l.b16 %v184
  %v409 = vunpack.c.l.b16 %v185
  %v410 = vpack.c.b16 %v363, %v362
  %v411 = vpack.c.b16 %v365, %v364
  %v412 = vpack.c.b16 %v367, %v366
  %v413 = vpack.c.b16 %v369, %v368
  %v414 = vpack.c.b16 %v371, %v370
  %v415 = vpack.c.b16 %v373, %v372
  %v416 = vpack.c.b16 %v375, %v374
  %v417 = vpack.c.b16 %v377, %v376
  %v418 = vpack.c.b16 %v379, %v378
  %v419 = vpack.c.b16 %v381, %v380
  %v420 = vpack.c.b16 %v383, %v382
  %v421 = vpack.c.b16 %v385, %v384
  %v422 = vpack.c.b16 %v387, %v386
  %v423 = vpack.c.b16 %v389, %v388
  %v424 = vpack.c.b16 %v391, %v390
  %v425 = vpack.c.b16 %v393, %v392
  %v426 = vpack.c.b16 %v395, %v394
  %v427 = vpack.c.b16 %v397, %v396
  %v428 = vpack.c.b16 %v399, %v398
  %v429 = vpack.c.b16 %v401, %v400
  %v430 = vpack.c.b16 %v403, %v402
  %v431 = vpack.c.b16 %v405, %v404
  %v432 = vpack.c.b16 %v407, %v406
  %v433 = vpack.c.b16 %v409, %v408
  %458 = vmatpush.bf16.msra.mxu0 %v417
  %459 = vmatpush.bf16.msra.mxu0 %v416
  %460 = vmatpush.bf16.msra.mxu0 %v415
  %461 = vmatpush.bf16.msra.mxu0 %v414
  %462 = vmatpush.bf16.msra.mxu0 %v413
  %463 = vmatpush.bf16.msra.mxu0 %v412
  %464 = vmatpush.bf16.msra.mxu0 %v411
  %465 = vmatpush.bf16.msra.mxu0 %v410
  %466 = vmatmul.bf16.gmra.mxu0 %v266
  %v467 = vpop.f32.mrf.mxu0
  %v468 = vadd.f32 0.0, %v467
  %v469 = vpop.f32.mrf.mxu0
  %v470 = vadd.f32 0.0, %v469
  %471 = vmatmul.bf16.gmra.mxu0 %v269
  %v472 = vpop.f32.mrf.mxu0
  %v473 = vadd.f32 0.0, %v472
  %v474 = vpop.f32.mrf.mxu0
  %v475 = vadd.f32 0.0, %v474
  %476 = vmatmul.bf16.gmra.mxu0 %v272
  %v477 = vpop.f32.mrf.mxu0
  %v478 = vadd.f32 0.0, %v477
  %v479 = vpop.f32.mrf.mxu0
  %v480 = vadd.f32 0.0, %v479
  %481 = vmatmul.bf16.gmra.mxu0 %v275
  %v482 = vpop.f32.mrf.mxu0
  %v483 = vadd.f32 0.0, %v482
  %v484 = vpop.f32.mrf.mxu0
  %v485 = vadd.f32 0.0, %v484
  %486 = vmatmul.bf16.gmra.mxu0 %v278
  %v487 = vpop.f32.mrf.mxu0
  %v488 = vadd.f32 0.0, %v487
  %v489 = vpop.f32.mrf.mxu0
  %v490 = vadd.f32 0.0, %v489
  %491 = vmatmul.bf16.gmra.mxu0 %v281
  %v492 = vpop.f32.mrf.mxu0
  %v493 = vadd.f32 0.0, %v492
  %v494 = vpop.f32.mrf.mxu0
  %v495 = vadd.f32 0.0, %v494
  %496 = vmatmul.bf16.gmra.mxu0 %v284
  %v497 = vpop.f32.mrf.mxu0
  %v498 = vadd.f32 0.0, %v497
  %v499 = vpop.f32.mrf.mxu0
  %v500 = vadd.f32 0.0, %v499
  %501 = vmatmul.bf16.gmra.mxu0 %v287
  %v502 = vpop.f32.mrf.mxu0
  %v503 = vadd.f32 0.0, %v502
  %v504 = vpop.f32.mrf.mxu0
  %v505 = vadd.f32 0.0, %v504
  %506 = vdwg.mxu0
  %507 = vmatpush.bf16.msra.mxu0 %v425
  %508 = vmatpush.bf16.msra.mxu0 %v424
  %509 = vmatpush.bf16.msra.mxu0 %v423
  %510 = vmatpush.bf16.msra.mxu0 %v422
  %511 = vmatpush.bf16.msra.mxu0 %v421
  %512 = vmatpush.bf16.msra.mxu0 %v420
  %513 = vmatpush.bf16.msra.mxu0 %v419
  %514 = vmatpush.bf16.msra.mxu0 %v418
  %515 = vmatmul.bf16.gmra.mxu0 %v267
  %v516 = vpop.f32.mrf.mxu0
  %v517 = vadd.f32 %v468, %v516
  %v518 = vpop.f32.mrf.mxu0
  %v519 = vadd.f32 %v470, %v518
  %520 = vmatmul.bf16.gmra.mxu0 %v270
  %v521 = vpop.f32.mrf.mxu0
  %v522 = vadd.f32 %v473, %v521
  %v523 = vpop.f32.mrf.mxu0
  %v524 = vadd.f32 %v475, %v523
  %525 = vmatmul.bf16.gmra.mxu0 %v273
  %v526 = vpop.f32.mrf.mxu0
  %v527 = vadd.f32 %v478, %v526
  %v528 = vpop.f32.mrf.mxu0
  %v529 = vadd.f32 %v480, %v528
  %530 = vmatmul.bf16.gmra.mxu0 %v276
  %v531 = vpop.f32.mrf.mxu0
  %v532 = vadd.f32 %v483, %v531
  %v533 = vpop.f32.mrf.mxu0
  %v534 = vadd.f32 %v485, %v533
  %535 = vmatmul.bf16.gmra.mxu0 %v279
  %v536 = vpop.f32.mrf.mxu0
  %v537 = vadd.f32 %v488, %v536
  %v538 = vpop.f32.mrf.mxu0
  %v539 = vadd.f32 %v490, %v538
  %540 = vmatmul.bf16.gmra.mxu0 %v282
  %v541 = vpop.f32.mrf.mxu0
  %v542 = vadd.f32 %v493, %v541
  %v543 = vpop.f32.mrf.mxu0
  %v544 = vadd.f32 %v495, %v543
  %545 = vmatmul.bf16.gmra.mxu0 %v285
  %v546 = vpop.f32.mrf.mxu0
  %v547 = vadd.f32 %v498, %v546
  %v548 = vpop.f32.mrf.mxu0
  %v549 = vadd.f32 %v500, %v548
  %550 = vmatmul.bf16.gmra.mxu0 %v288
  %v551 = vpop.f32.mrf.mxu0
  %v552 = vadd.f32 %v503, %v551
  %v553 = vpop.f32.mrf.mxu0
  %v554 = vadd.f32 %v505, %v553
  %555 = vdwg.mxu0
  %556 = vmatpush.bf16.msra.mxu0 %v433
  %557 = vmatpush.bf16.msra.mxu0 %v432
  %558 = vmatpush.bf16.msra.mxu0 %v431
  %559 = vmatpush.bf16.msra.mxu0 %v430
  %560 = vmatpush.bf16.msra.mxu0 %v429
  %561 = vmatpush.bf16.msra.mxu0 %v428
  %562 = vmatpush.bf16.msra.mxu0 %v427
  %563 = vmatpush.bf16.msra.mxu0 %v426
  %564 = vmatmul.bf16.gmra.mxu0 %v268
  %v565 = vpop.f32.mrf.mxu0
  %v566 = vadd.f32 %v517, %v565
  %v567 = vpop.f32.mrf.mxu0
  %v568 = vadd.f32 %v519, %v567
  %569 = vmatmul.bf16.gmra.mxu0 %v271
  %v570 = vpop.f32.mrf.mxu0
  %v571 = vadd.f32 %v522, %v570
  %v572 = vpop.f32.mrf.mxu0
  %v573 = vadd.f32 %v524, %v572
  %574 = vmatmul.bf16.gmra.mxu0 %v274
  %v575 = vpop.f32.mrf.mxu0
  %v576 = vadd.f32 %v527, %v575
  %v577 = vpop.f32.mrf.mxu0
  %v578 = vadd.f32 %v529, %v577
  %579 = vmatmul.bf16.gmra.mxu0 %v277
  %v580 = vpop.f32.mrf.mxu0
  %v581 = vadd.f32 %v532, %v580
  %v582 = vpop.f32.mrf.mxu0
  %v583 = vadd.f32 %v534, %v582
  %584 = vmatmul.bf16.gmra.mxu0 %v280
  %v585 = vpop.f32.mrf.mxu0
  %v586 = vadd.f32 %v537, %v585
  %v587 = vpop.f32.mrf.mxu0
  %v588 = vadd.f32 %v539, %v587
  %589 = vmatmul.bf16.gmra.mxu0 %v283
  %v590 = vpop.f32.mrf.mxu0
  %v591 = vadd.f32 %v542, %v590
  %v592 = vpop.f32.mrf.mxu0
  %v593 = vadd.f32 %v544, %v592
  %594 = vmatmul.bf16.gmra.mxu0 %v286
  %v595 = vpop.f32.mrf.mxu0
  %v596 = vadd.f32 %v547, %v595
  %v597 = vpop.f32.mrf.mxu0
  %v598 = vadd.f32 %v549, %v597
  %599 = vmatmul.bf16.gmra.mxu0 %v289
  %v600 = vpop.f32.mrf.mxu0
  %v601 = vadd.f32 %v552, %v600
  %v602 = vpop.f32.mrf.mxu0
  %v603 = vadd.f32 %v554, %v602
  %604 = vdwg.mxu0
  %v609 = vunpack.c.l.b16 %v53
  %v610 = vunpack.c.h.b16 %v53
  %v611 = vunpack.c.l.b16 %v54
  %v612 = vunpack.c.l.b16 %v55
  %v613 = vunpack.c.h.b16 %v55
  %v614 = vunpack.c.l.b16 %v56
  %v615 = vpack.c.b16 %v612, %v609
  %v616 = vpack.c.b16 %v613, %v610
  %v617 = vpack.c.b16 %v614, %v611
  %v669 = vunpack.c.l.b16 %v85
  %v670 = vunpack.c.l.b16 %v86
  %v671 = vunpack.c.l.b16 %v87
  %v672 = vunpack.c.l.b16 %v88
  %v673 = vunpack.c.l.b16 %v89
  %v674 = vunpack.c.l.b16 %v90
  %v675 = vunpack.c.l.b16 %v91
  %v676 = vunpack.c.l.b16 %v92
  %v677 = vunpack.c.l.b16 %v93
  %v678 = vunpack.c.l.b16 %v94
  %v679 = vunpack.c.l.b16 %v95
  %v680 = vunpack.c.l.b16 %v96
  %v681 = vunpack.c.l.b16 %v97
  %v682 = vunpack.c.l.b16 %v98
  %v683 = vunpack.c.l.b16 %v99
  %v684 = vunpack.c.l.b16 %v100
  %v685 = vunpack.c.l.b16 %v101
  %v686 = vunpack.c.l.b16 %v102
  %v687 = vunpack.c.l.b16 %v103
  %v688 = vunpack.c.l.b16 %v104
  %v689 = vunpack.c.l.b16 %v105
  %v690 = vunpack.c.l.b16 %v106
  %v691 = vunpack.c.l.b16 %v107
  %v692 = vunpack.c.l.b16 %v108
  %v693 = vunpack.c.l.b16 %v109
  %v694 = vunpack.c.l.b16 %v110
  %v695 = vunpack.c.l.b16 %v111
  %v696 = vunpack.c.l.b16 %v112
  %v697 = vunpack.c.l.b16 %v113
  %v698 = vunpack.c.l.b16 %v114
  %v699 = vunpack.c.l.b16 %v115
  %v700 = vunpack.c.l.b16 %v116
  %v701 = vunpack.c.l.b16 %v117
  %v702 = vunpack.c.l.b16 %v118
  %v703 = vunpack.c.l.b16 %v119
  %v704 = vunpack.c.l.b16 %v120
  %v705 = vunpack.c.l.b16 %v121
  %v706 = vunpack.c.l.b16 %v122
  %v707 = vunpack.c.l.b16 %v123
  %v708 = vunpack.c.l.b16 %v124
  %v709 = vunpack.c.l.b16 %v125
  %v710 = vunpack.c.l.b16 %v126
  %v711 = vunpack.c.l.b16 %v127
  %v712 = vunpack.c.l.b16 %v128
  %v713 = vunpack.c.l.b16 %v129
  %v714 = vunpack.c.l.b16 %v130
  %v715 = vunpack.c.l.b16 %v131
  %v716 = vunpack.c.l.b16 %v132
  %v717 = vpack.c.b16 %v670, %v669
  %v718 = vpack.c.b16 %v672, %v671
  %v719 = vpack.c.b16 %v674, %v673
  %v720 = vpack.c.b16 %v676, %v675
  %v721 = vpack.c.b16 %v678, %v677
  %v722 = vpack.c.b16 %v680, %v679
  %v723 = vpack.c.b16 %v682, %v681
  %v724 = vpack.c.b16 %v684, %v683
  %v725 = vpack.c.b16 %v686, %v685
  %v726 = vpack.c.b16 %v688, %v687
  %v727 = vpack.c.b16 %v690, %v689
  %v728 = vpack.c.b16 %v692, %v691
  %v729 = vpack.c.b16 %v694, %v693
  %v730 = vpack.c.b16 %v696, %v695
  %v731 = vpack.c.b16 %v698, %v697
  %v732 = vpack.c.b16 %v700, %v699
  %v733 = vpack.c.b16 %v702, %v701
  %v734 = vpack.c.b16 %v704, %v703
  %v735 = vpack.c.b16 %v706, %v705
  %v736 = vpack.c.b16 %v708, %v707
  %v737 = vpack.c.b16 %v710, %v709
  %v738 = vpack.c.b16 %v712, %v711
  %v739 = vpack.c.b16 %v714, %v713
  %v740 = vpack.c.b16 %v716, %v715
  %765 = vmatpush.bf16.msra.mxu0 %v724
  %766 = vmatpush.bf16.msra.mxu0 %v723
  %767 = vmatpush.bf16.msra.mxu0 %v722
  %768 = vmatpush.bf16.msra.mxu0 %v721
  %769 = vmatpush.bf16.msra.mxu0 %v720
  %770 = vmatpush.bf16.msra.mxu0 %v719
  %771 = vmatpush.bf16.msra.mxu0 %v718
  %772 = vmatpush.bf16.msra.mxu0 %v717
  %773 = vmatmul.bf16.gmra.mxu0 %v615
  %v774 = vpop.f32.mrf.mxu0
  %v775 = vadd.f32 %v566, %v774
  %v776 = vpop.f32.mrf.mxu0
  %v777 = vadd.f32 %v568, %v776
  %778 = vmatmul.bf16.gmra.mxu0 %v266
  %v779 = vpop.f32.mrf.mxu0
  %v780 = vadd.f32 %v571, %v779
  %v781 = vpop.f32.mrf.mxu0
  %v782 = vadd.f32 %v573, %v781
  %783 = vmatmul.bf16.gmra.mxu0 %v269
  %v784 = vpop.f32.mrf.mxu0
  %v785 = vadd.f32 %v576, %v784
  %v786 = vpop.f32.mrf.mxu0
  %v787 = vadd.f32 %v578, %v786
  %788 = vmatmul.bf16.gmra.mxu0 %v272
  %v789 = vpop.f32.mrf.mxu0
  %v790 = vadd.f32 %v581, %v789
  %v791 = vpop.f32.mrf.mxu0
  %v792 = vadd.f32 %v583, %v791
  %793 = vmatmul.bf16.gmra.mxu0 %v275
  %v794 = vpop.f32.mrf.mxu0
  %v795 = vadd.f32 %v586, %v794
  %v796 = vpop.f32.mrf.mxu0
  %v797 = vadd.f32 %v588, %v796
  %798 = vmatmul.bf16.gmra.mxu0 %v278
  %v799 = vpop.f32.mrf.mxu0
  %v800 = vadd.f32 %v591, %v799
  %v801 = vpop.f32.mrf.mxu0
  %v802 = vadd.f32 %v593, %v801
  %803 = vmatmul.bf16.gmra.mxu0 %v281
  %v804 = vpop.f32.mrf.mxu0
  %v805 = vadd.f32 %v596, %v804
  %v806 = vpop.f32.mrf.mxu0
  %v807 = vadd.f32 %v598, %v806
  %808 = vmatmul.bf16.gmra.mxu0 %v284
  %v809 = vpop.f32.mrf.mxu0
  %v810 = vadd.f32 %v601, %v809
  %v811 = vpop.f32.mrf.mxu0
  %v812 = vadd.f32 %v603, %v811
  %813 = vdwg.mxu0
  %814 = vmatpush.bf16.msra.mxu0 %v732
  %815 = vmatpush.bf16.msra.mxu0 %v731
  %816 = vmatpush.bf16.msra.mxu0 %v730
  %817 = vmatpush.bf16.msra.mxu0 %v729
  %818 = vmatpush.bf16.msra.mxu0 %v728
  %819 = vmatpush.bf16.msra.mxu0 %v727
  %820 = vmatpush.bf16.msra.mxu0 %v726
  %821 = vmatpush.bf16.msra.mxu0 %v725
  %822 = vmatmul.bf16.gmra.mxu0 %v616
  %v823 = vpop.f32.mrf.mxu0
  %v824 = vadd.f32 %v775, %v823
  %v825 = vpop.f32.mrf.mxu0
  %v826 = vadd.f32 %v777, %v825
  %827 = vmatmul.bf16.gmra.mxu0 %v267
  %v828 = vpop.f32.mrf.mxu0
  %v829 = vadd.f32 %v780, %v828
  %v830 = vpop.f32.mrf.mxu0
  %v831 = vadd.f32 %v782, %v830
  %832 = vmatmul.bf16.gmra.mxu0 %v270
  %v833 = vpop.f32.mrf.mxu0
  %v834 = vadd.f32 %v785, %v833
  %v835 = vpop.f32.mrf.mxu0
  %v836 = vadd.f32 %v787, %v835
  %837 = vmatmul.bf16.gmra.mxu0 %v273
  %v838 = vpop.f32.mrf.mxu0
  %v839 = vadd.f32 %v790, %v838
  %v840 = vpop.f32.mrf.mxu0
  %v841 = vadd.f32 %v792, %v840
  %842 = vmatmul.bf16.gmra.mxu0 %v276
  %v843 = vpop.f32.mrf.mxu0
  %v844 = vadd.f32 %v795, %v843
  %v845 = vpop.f32.mrf.mxu0
  %v846 = vadd.f32 %v797, %v845
  %847 = vmatmul.bf16.gmra.mxu0 %v279
  %v848 = vpop.f32.mrf.mxu0
  %v849 = vadd.f32 %v800, %v848
  %v850 = vpop.f32.mrf.mxu0
  %v851 = vadd.f32 %v802, %v850
  %852 = vmatmul.bf16.gmra.mxu0 %v282
  %v853 = vpop.f32.mrf.mxu0
  %v854 = vadd.f32 %v805, %v853
  %v855 = vpop.f32.mrf.mxu0
  %v856 = vadd.f32 %v807, %v855
  %857 = vmatmul.bf16.gmra.mxu0 %v285
  %v858 = vpop.f32.mrf.mxu0
  %v859 = vadd.f32 %v810, %v858
  %v860 = vpop.f32.mrf.mxu0
  %v861 = vadd.f32 %v812, %v860
  %862 = vdwg.mxu0
  %863 = vmatpush.bf16.msra.mxu0 %v740
  %864 = vmatpush.bf16.msra.mxu0 %v739
  %865 = vmatpush.bf16.msra.mxu0 %v738
  %866 = vmatpush.bf16.msra.mxu0 %v737
  %867 = vmatpush.bf16.msra.mxu0 %v736
  %868 = vmatpush.bf16.msra.mxu0 %v735
  %869 = vmatpush.bf16.msra.mxu0 %v734
  %870 = vmatpush.bf16.msra.mxu0 %v733
  %871 = vmatmul.bf16.gmra.mxu0 %v617
  %v872 = vpop.f32.mrf.mxu0
  %v873 = vadd.f32 %v824, %v872
  %v874 = vpop.f32.mrf.mxu0
  %v875 = vadd.f32 %v826, %v874
  %876 = vmatmul.bf16.gmra.mxu0 %v268
  %v877 = vpop.f32.mrf.mxu0
  %v878 = vadd.f32 %v829, %v877
  %v879 = vpop.f32.mrf.mxu0
  %v880 = vadd.f32 %v831, %v879
  %881 = vmatmul.bf16.gmra.mxu0 %v271
  %v882 = vpop.f32.mrf.mxu0
  %v883 = vadd.f32 %v834, %v882
  %v884 = vpop.f32.mrf.mxu0
  %v885 = vadd.f32 %v836, %v884
  %886 = vmatmul.bf16.gmra.mxu0 %v274
  %v887 = vpop.f32.mrf.mxu0
  %v888 = vadd.f32 %v839, %v887
  %v889 = vpop.f32.mrf.mxu0
  %v890 = vadd.f32 %v841, %v889
  %891 = vmatmul.bf16.gmra.mxu0 %v277
  %v892 = vpop.f32.mrf.mxu0
  %v893 = vadd.f32 %v844, %v892
  %v894 = vpop.f32.mrf.mxu0
  %v895 = vadd.f32 %v846, %v894
  %896 = vmatmul.bf16.gmra.mxu0 %v280
  %v897 = vpop.f32.mrf.mxu0
  %v898 = vadd.f32 %v849, %v897
  %v899 = vpop.f32.mrf.mxu0
  %v900 = vadd.f32 %v851, %v899
  %901 = vmatmul.bf16.gmra.mxu0 %v283
  %v902 = vpop.f32.mrf.mxu0
  %v903 = vadd.f32 %v854, %v902
  %v904 = vpop.f32.mrf.mxu0
  %v905 = vadd.f32 %v856, %v904
  %906 = vmatmul.bf16.gmra.mxu0 %v286
  %v907 = vpop.f32.mrf.mxu0
  %v908 = vadd.f32 %v859, %v907
  %v909 = vpop.f32.mrf.mxu0
  %v910 = vadd.f32 %v861, %v909
  %911 = vdwg.mxu0
  %v912 = vld [vmem:[%s0 + $0x30] sm:$0xff]
  %v913 = vld [vmem:[%s0 + $0x38] sm:$0xf]
  %v914 = vld [vmem:[%s0 + $0x3c] sm:$0xff]
  %v915 = vld [vmem:[%s0 + $0x44] sm:$0xf]
  %v916 = vld [vmem:[%s0 + $0x48] sm:$0xff]
  %v917 = vld [vmem:[%s0 + $0x50] sm:$0xf]
  %v918 = vld [vmem:[%s0 + $0x54] sm:$0xff]
  %v919 = vld [vmem:[%s0 + $0x5c] sm:$0xf]
  %v920 = vld [vmem:[%s0 + $0x60] sm:$0xff]
  %v921 = vld [vmem:[%s0 + $0x68] sm:$0xf]
  %v922 = vld [vmem:[%s0 + $0x6c] sm:$0xff]
  %v923 = vld [vmem:[%s0 + $0x74] sm:$0xf]
  %v924 = vld [vmem:[%s0 + $0x78] sm:$0xff]
  %v925 = vld [vmem:[%s0 + $0x80] sm:$0xf]
  %v926 = vld [vmem:[%s0 + $0x84] sm:$0xff]
  %v927 = vld [vmem:[%s0 + $0x8c] sm:$0xf]
  %v928 = vld [vmem:[%s0 + $0x90] sm:$0xff]
  %v929 = vld [vmem:[%s0 + $0x98] sm:$0xf]
  %v930 = vld [vmem:[%s0 + $0x9c] sm:$0xff]
  %v931 = vld [vmem:[%s0 + $0xa4] sm:$0xf]
  %v932 = vld [vmem:[%s0 + $0xa8] sm:$0xff]
  %v933 = vld [vmem:[%s0 + $0xb0] sm:$0xf]
  %v934 = vld [vmem:[%s0 + $0xb4] sm:$0xff]
  %v935 = vld [vmem:[%s0 + $0xbc] sm:$0xf]
  %v936 = vld [vmem:[%s0 + $0xc0] sm:$0xff]
  %v937 = vld [vmem:[%s0 + $0xc8] sm:$0xf]
  %v938 = vld [vmem:[%s0 + $0xcc] sm:$0xff]
  %v939 = vld [vmem:[%s0 + $0xd4] sm:$0xf]
  %v940 = vld [vmem:[%s0 + $0xd8] sm:$0xff]
  %v941 = vld [vmem:[%s0 + $0xe0] sm:$0xf]
  %v942 = vld [vmem:[%s0 + $0xe4] sm:$0xff]
  %v943 = vld [vmem:[%s0 + $0xec] sm:$0xf]
  %s944 = scalar_lea.vmem %s3, 384
  %v945 = vld [vmem:[%s944] sm:$0xf]
  %v946 = vld [vmem:[%s944 + $0x4] sm:$0xf]
  %v947 = vld [vmem:[%s944 + $0x8] sm:$0xf]
  %v948 = vld [vmem:[%s944 + $0xc] sm:$0xf]
  %v949 = vld [vmem:[%s944 + $0x10] sm:$0xf]
  %v950 = vld [vmem:[%s944 + $0x14] sm:$0xf]
  %v951 = vld [vmem:[%s944 + $0x18] sm:$0xf]
  %v952 = vld [vmem:[%s944 + $0x1c] sm:$0xf]
  %v953 = vld [vmem:[%s944 + $0x20] sm:$0xf]
  %v954 = vld [vmem:[%s944 + $0x24] sm:$0xf]
  %v955 = vld [vmem:[%s944 + $0x28] sm:$0xf]
  %v956 = vld [vmem:[%s944 + $0x2c] sm:$0xf]
  %v957 = vld [vmem:[%s944 + $0x30] sm:$0xf]
  %v958 = vld [vmem:[%s944 + $0x34] sm:$0xf]
  %v959 = vld [vmem:[%s944 + $0x38] sm:$0xf]
  %v960 = vld [vmem:[%s944 + $0x3c] sm:$0xf]
  %v961 = vld [vmem:[%s944 + $0x40] sm:$0xf]
  %v962 = vld [vmem:[%s944 + $0x44] sm:$0xf]
  %v963 = vld [vmem:[%s944 + $0x48] sm:$0xf]
  %v964 = vld [vmem:[%s944 + $0x4c] sm:$0xf]
  %v965 = vld [vmem:[%s944 + $0x50] sm:$0xf]
  %v966 = vld [vmem:[%s944 + $0x54] sm:$0xf]
  %v967 = vld [vmem:[%s944 + $0x58] sm:$0xf]
  %v968 = vld [vmem:[%s944 + $0x5c] sm:$0xf]
  %v969 = vld [vmem:[%s944 + $0x60] sm:$0xf]
  %v970 = vld [vmem:[%s944 + $0x64] sm:$0xf]
  %v971 = vld [vmem:[%s944 + $0x68] sm:$0xf]
  %v972 = vld [vmem:[%s944 + $0x6c] sm:$0xf]
  %v973 = vld [vmem:[%s944 + $0x70] sm:$0xf]
  %v974 = vld [vmem:[%s944 + $0x74] sm:$0xf]
  %v975 = vld [vmem:[%s944 + $0x78] sm:$0xf]
  %v976 = vld [vmem:[%s944 + $0x7c] sm:$0xf]
  %v977 = vld [vmem:[%s944 + $0x80] sm:$0xf]
  %v978 = vld [vmem:[%s944 + $0x84] sm:$0xf]
  %v979 = vld [vmem:[%s944 + $0x88] sm:$0xf]
  %v980 = vld [vmem:[%s944 + $0x8c] sm:$0xf]
  %v981 = vld [vmem:[%s944 + $0x90] sm:$0xf]
  %v982 = vld [vmem:[%s944 + $0x94] sm:$0xf]
  %v983 = vld [vmem:[%s944 + $0x98] sm:$0xf]
  %v984 = vld [vmem:[%s944 + $0x9c] sm:$0xf]
  %v985 = vld [vmem:[%s944 + $0xa0] sm:$0xf]
  %v986 = vld [vmem:[%s944 + $0xa4] sm:$0xf]
  %v987 = vld [vmem:[%s944 + $0xa8] sm:$0xf]
  %v988 = vld [vmem:[%s944 + $0xac] sm:$0xf]
  %v989 = vld [vmem:[%s944 + $0xb0] sm:$0xf]
  %v990 = vld [vmem:[%s944 + $0xb4] sm:$0xf]
  %v991 = vld [vmem:[%s944 + $0xb8] sm:$0xf]
  %v992 = vld [vmem:[%s944 + $0xbc] sm:$0xf]
  %v1025 = vunpack.c.l.b16 %v912
  %v1026 = vunpack.c.h.b16 %v912
  %v1027 = vunpack.c.l.b16 %v913
  %v1028 = vunpack.c.l.b16 %v914
  %v1029 = vunpack.c.h.b16 %v914
  %v1030 = vunpack.c.l.b16 %v915
  %v1031 = vunpack.c.l.b16 %v916
  %v1032 = vunpack.c.h.b16 %v916
  %v1033 = vunpack.c.l.b16 %v917
  %v1034 = vunpack.c.l.b16 %v918
  %v1035 = vunpack.c.h.b16 %v918
  %v1036 = vunpack.c.l.b16 %v919
  %v1037 = vunpack.c.l.b16 %v920
  %v1038 = vunpack.c.h.b16 %v920
  %v1039 = vunpack.c.l.b16 %v921
  %v1040 = vunpack.c.l.b16 %v922
  %v1041 = vunpack.c.h.b16 %v922
  %v1042 = vunpack.c.l.b16 %v923
  %v1043 = vunpack.c.l.b16 %v924
  %v1044 = vunpack.c.h.b16 %v924
  %v1045 = vunpack.c.l.b16 %v925
  %v1046 = vunpack.c.l.b16 %v926
  %v1047 = vunpack.c.h.b16 %v926
  %v1048 = vunpack.c.l.b16 %v927
  %v1049 = vunpack.c.l.b16 %v928
  %v1050 = vunpack.c.h.b16 %v928
  %v1051 = vunpack.c.l.b16 %v929
  %v1052 = vunpack.c.l.b16 %v930
  %v1053 = vunpack.c.h.b16 %v930
  %v1054 = vunpack.c.l.b16 %v931
  %v1055 = vunpack.c.l.b16 %v932
  %v1056 = vunpack.c.h.b16 %v932
  %v1057 = vunpack.c.l.b16 %v933
  %v1058 = vunpack.c.l.b16 %v934
  %v1059 = vunpack.c.h.b16 %v934
  %v1060 = vunpack.c.l.b16 %v935
  %v1061 = vunpack.c.l.b16 %v936
  %v1062 = vunpack.c.h.b16 %v936
  %v1063 = vunpack.c.l.b16 %v937
  %v1064 = vunpack.c.l.b16 %v938
  %v1065 = vunpack.c.h.b16 %v938
  %v1066 = vunpack.c.l.b16 %v939
  %v1067 = vunpack.c.l.b16 %v940
  %v1068 = vunpack.c.h.b16 %v940
  %v1069 = vunpack.c.l.b16 %v941
  %v1070 = vunpack.c.l.b16 %v942
  %v1071 = vunpack.c.h.b16 %v942
  %v1072 = vunpack.c.l.b16 %v943
  %v1073 = vpack.c.b16 %v1028, %v1025
  %v1074 = vpack.c.b16 %v1029, %v1026
  %v1075 = vpack.c.b16 %v1030, %v1027
  %v1076 = vpack.c.b16 %v1034, %v1031
  %v1077 = vpack.c.b16 %v1035, %v1032
  %v1078 = vpack.c.b16 %v1036, %v1033
  %v1079 = vpack.c.b16 %v1040, %v1037
  %v1080 = vpack.c.b16 %v1041, %v1038
  %v1081 = vpack.c.b16 %v1042, %v1039
  %v1082 = vpack.c.b16 %v1046, %v1043
  %v1083 = vpack.c.b16 %v1047, %v1044
  %v1084 = vpack.c.b16 %v1048, %v1045
  %v1085 = vpack.c.b16 %v1052, %v1049
  %v1086 = vpack.c.b16 %v1053, %v1050
  %v1087 = vpack.c.b16 %v1054, %v1051
  %v1088 = vpack.c.b16 %v1058, %v1055
  %v1089 = vpack.c.b16 %v1059, %v1056
  %v1090 = vpack.c.b16 %v1060, %v1057
  %v1091 = vpack.c.b16 %v1064, %v1061
  %v1092 = vpack.c.b16 %v1065, %v1062
  %v1093 = vpack.c.b16 %v1066, %v1063
  %v1094 = vpack.c.b16 %v1070, %v1067
  %v1095 = vpack.c.b16 %v1071, %v1068
  %v1096 = vpack.c.b16 %v1072, %v1069
  %v1169 = vunpack.c.l.b16 %v945
  %v1170 = vunpack.c.l.b16 %v946
  %v1171 = vunpack.c.l.b16 %v947
  %v1172 = vunpack.c.l.b16 %v948
  %v1173 = vunpack.c.l.b16 %v949
  %v1174 = vunpack.c.l.b16 %v950
  %v1175 = vunpack.c.l.b16 %v951
  %v1176 = vunpack.c.l.b16 %v952
  %v1177 = vunpack.c.l.b16 %v953
  %v1178 = vunpack.c.l.b16 %v954
  %v1179 = vunpack.c.l.b16 %v955
  %v1180 = vunpack.c.l.b16 %v956
  %v1181 = vunpack.c.l.b16 %v957
  %v1182 = vunpack.c.l.b16 %v958
  %v1183 = vunpack.c.l.b16 %v959
  %v1184 = vunpack.c.l.b16 %v960
  %v1185 = vunpack.c.l.b16 %v961
  %v1186 = vunpack.c.l.b16 %v962
  %v1187 = vunpack.c.l.b16 %v963
  %v1188 = vunpack.c.l.b16 %v964
  %v1189 = vunpack.c.l.b16 %v965
  %v1190 = vunpack.c.l.b16 %v966
  %v1191 = vunpack.c.l.b16 %v967
  %v1192 = vunpack.c.l.b16 %v968
  %v1193 = vunpack.c.l.b16 %v969
  %v1194 = vunpack.c.l.b16 %v970
  %v1195 = vunpack.c.l.b16 %v971
  %v1196 = vunpack.c.l.b16 %v972
  %v1197 = vunpack.c.l.b16 %v973
  %v1198 = vunpack.c.l.b16 %v974
  %v1199 = vunpack.c.l.b16 %v975
  %v1200 = vunpack.c.l.b16 %v976
  %v1201 = vunpack.c.l.b16 %v977
  %v1202 = vunpack.c.l.b16 %v978
  %v1203 = vunpack.c.l.b16 %v979
  %v1204 = vunpack.c.l.b16 %v980
  %v1205 = vunpack.c.l.b16 %v981
  %v1206 = vunpack.c.l.b16 %v982
  %v1207 = vunpack.c.l.b16 %v983
  %v1208 = vunpack.c.l.b16 %v984
  %v1209 = vunpack.c.l.b16 %v985
  %v1210 = vunpack.c.l.b16 %v986
  %v1211 = vunpack.c.l.b16 %v987
  %v1212 = vunpack.c.l.b16 %v988
  %v1213 = vunpack.c.l.b16 %v989
  %v1214 = vunpack.c.l.b16 %v990
  %v1215 = vunpack.c.l.b16 %v991
  %v1216 = vunpack.c.l.b16 %v992
  %v1217 = vpack.c.b16 %v1170, %v1169
  %v1218 = vpack.c.b16 %v1172, %v1171
  %v1219 = vpack.c.b16 %v1174, %v1173
  %v1220 = vpack.c.b16 %v1176, %v1175
  %v1221 = vpack.c.b16 %v1178, %v1177
  %v1222 = vpack.c.b16 %v1180, %v1179
  %v1223 = vpack.c.b16 %v1182, %v1181
  %v1224 = vpack.c.b16 %v1184, %v1183
  %v1225 = vpack.c.b16 %v1186, %v1185
  %v1226 = vpack.c.b16 %v1188, %v1187
  %v1227 = vpack.c.b16 %v1190, %v1189
  %v1228 = vpack.c.b16 %v1192, %v1191
  %v1229 = vpack.c.b16 %v1194, %v1193
  %v1230 = vpack.c.b16 %v1196, %v1195
  %v1231 = vpack.c.b16 %v1198, %v1197
  %v1232 = vpack.c.b16 %v1200, %v1199
  %v1233 = vpack.c.b16 %v1202, %v1201
  %v1234 = vpack.c.b16 %v1204, %v1203
  %v1235 = vpack.c.b16 %v1206, %v1205
  %v1236 = vpack.c.b16 %v1208, %v1207
  %v1237 = vpack.c.b16 %v1210, %v1209
  %v1238 = vpack.c.b16 %v1212, %v1211
  %v1239 = vpack.c.b16 %v1214, %v1213
  %v1240 = vpack.c.b16 %v1216, %v1215
  %1265 = vmatpush.bf16.msra.mxu0 %v1224
  %1266 = vmatpush.bf16.msra.mxu0 %v1223
  %1267 = vmatpush.bf16.msra.mxu0 %v1222
  %1268 = vmatpush.bf16.msra.mxu0 %v1221
  %1269 = vmatpush.bf16.msra.mxu0 %v1220
  %1270 = vmatpush.bf16.msra.mxu0 %v1219
  %1271 = vmatpush.bf16.msra.mxu0 %v1218
  %1272 = vmatpush.bf16.msra.mxu0 %v1217
  %1273 = vmatmul.bf16.gmra.mxu0 %v1073
  %v1274 = vpop.f32.mrf.mxu0
  %v1275 = vadd.f32 0.0, %v1274
  %v1276 = vpop.f32.mrf.mxu0
  %v1277 = vadd.f32 0.0, %v1276
  %1278 = vmatmul.bf16.gmra.mxu0 %v1076
  %v1279 = vpop.f32.mrf.mxu0
  %v1280 = vadd.f32 0.0, %v1279
  %v1281 = vpop.f32.mrf.mxu0
  %v1282 = vadd.f32 0.0, %v1281
  %1283 = vmatmul.bf16.gmra.mxu0 %v1079
  %v1284 = vpop.f32.mrf.mxu0
  %v1285 = vadd.f32 0.0, %v1284
  %v1286 = vpop.f32.mrf.mxu0
  %v1287 = vadd.f32 0.0, %v1286
  %1288 = vmatmul.bf16.gmra.mxu0 %v1082
  %v1289 = vpop.f32.mrf.mxu0
  %v1290 = vadd.f32 0.0, %v1289
  %v1291 = vpop.f32.mrf.mxu0
  %v1292 = vadd.f32 0.0, %v1291
  %1293 = vmatmul.bf16.gmra.mxu0 %v1085
  %v1294 = vpop.f32.mrf.mxu0
  %v1295 = vadd.f32 0.0, %v1294
  %v1296 = vpop.f32.mrf.mxu0
  %v1297 = vadd.f32 0.0, %v1296
  %1298 = vmatmul.bf16.gmra.mxu0 %v1088
  %v1299 = vpop.f32.mrf.mxu0
  %v1300 = vadd.f32 0.0, %v1299
  %v1301 = vpop.f32.mrf.mxu0
  %v1302 = vadd.f32 0.0, %v1301
  %1303 = vmatmul.bf16.gmra.mxu0 %v1091
  %v1304 = vpop.f32.mrf.mxu0
  %v1305 = vadd.f32 0.0, %v1304
  %v1306 = vpop.f32.mrf.mxu0
  %v1307 = vadd.f32 0.0, %v1306
  %1308 = vmatmul.bf16.gmra.mxu0 %v1094
  %v1309 = vpop.f32.mrf.mxu0
  %v1310 = vadd.f32 0.0, %v1309
  %v1311 = vpop.f32.mrf.mxu0
  %v1312 = vadd.f32 0.0, %v1311
  %1313 = vdwg.mxu0
  %1314 = vmatpush.bf16.msra.mxu0 %v1232
  %1315 = vmatpush.bf16.msra.mxu0 %v1231
  %1316 = vmatpush.bf16.msra.mxu0 %v1230
  %1317 = vmatpush.bf16.msra.mxu0 %v1229
  %1318 = vmatpush.bf16.msra.mxu0 %v1228
  %1319 = vmatpush.bf16.msra.mxu0 %v1227
  %1320 = vmatpush.bf16.msra.mxu0 %v1226
  %1321 = vmatpush.bf16.msra.mxu0 %v1225
  %1322 = vmatmul.bf16.gmra.mxu0 %v1074
  %v1323 = vpop.f32.mrf.mxu0
  %v1324 = vadd.f32 %v1275, %v1323
  %v1325 = vpop.f32.mrf.mxu0
  %v1326 = vadd.f32 %v1277, %v1325
  %1327 = vmatmul.bf16.gmra.mxu0 %v1077
  %v1328 = vpop.f32.mrf.mxu0
  %v1329 = vadd.f32 %v1280, %v1328
  %v1330 = vpop.f32.mrf.mxu0
  %v1331 = vadd.f32 %v1282, %v1330
  %1332 = vmatmul.bf16.gmra.mxu0 %v1080
  %v1333 = vpop.f32.mrf.mxu0
  %v1334 = vadd.f32 %v1285, %v1333
  %v1335 = vpop.f32.mrf.mxu0
  %v1336 = vadd.f32 %v1287, %v1335
  %1337 = vmatmul.bf16.gmra.mxu0 %v1083
  %v1338 = vpop.f32.mrf.mxu0
  %v1339 = vadd.f32 %v1290, %v1338
  %v1340 = vpop.f32.mrf.mxu0
  %v1341 = vadd.f32 %v1292, %v1340
  %1342 = vmatmul.bf16.gmra.mxu0 %v1086
  %v1343 = vpop.f32.mrf.mxu0
  %v1344 = vadd.f32 %v1295, %v1343
  %v1345 = vpop.f32.mrf.mxu0
  %v1346 = vadd.f32 %v1297, %v1345
  %1347 = vmatmul.bf16.gmra.mxu0 %v1089
  %v1348 = vpop.f32.mrf.mxu0
  %v1349 = vadd.f32 %v1300, %v1348
  %v1350 = vpop.f32.mrf.mxu0
  %v1351 = vadd.f32 %v1302, %v1350
  %1352 = vmatmul.bf16.gmra.mxu0 %v1092
  %v1353 = vpop.f32.mrf.mxu0
  %v1354 = vadd.f32 %v1305, %v1353
  %v1355 = vpop.f32.mrf.mxu0
  %v1356 = vadd.f32 %v1307, %v1355
  %1357 = vmatmul.bf16.gmra.mxu0 %v1095
  %v1358 = vpop.f32.mrf.mxu0
  %v1359 = vadd.f32 %v1310, %v1358
  %v1360 = vpop.f32.mrf.mxu0
  %v1361 = vadd.f32 %v1312, %v1360
  %1362 = vdwg.mxu0
  %1363 = vmatpush.bf16.msra.mxu0 %v1240
  %1364 = vmatpush.bf16.msra.mxu0 %v1239
  %1365 = vmatpush.bf16.msra.mxu0 %v1238
  %1366 = vmatpush.bf16.msra.mxu0 %v1237
  %1367 = vmatpush.bf16.msra.mxu0 %v1236
  %1368 = vmatpush.bf16.msra.mxu0 %v1235
  %1369 = vmatpush.bf16.msra.mxu0 %v1234
  %1370 = vmatpush.bf16.msra.mxu0 %v1233
  %1371 = vmatmul.bf16.gmra.mxu0 %v1075
  %v1372 = vpop.f32.mrf.mxu0
  %v1373 = vadd.f32 %v1324, %v1372
  %v1374 = vpop.f32.mrf.mxu0
  %v1375 = vadd.f32 %v1326, %v1374
  %1376 = vmatmul.bf16.gmra.mxu0 %v1078
  %v1377 = vpop.f32.mrf.mxu0
  %v1378 = vadd.f32 %v1329, %v1377
  %v1379 = vpop.f32.mrf.mxu0
  %v1380 = vadd.f32 %v1331, %v1379
  %1381 = vmatmul.bf16.gmra.mxu0 %v1081
  %v1382 = vpop.f32.mrf.mxu0
  %v1383 = vadd.f32 %v1334, %v1382
  %v1384 = vpop.f32.mrf.mxu0
  %v1385 = vadd.f32 %v1336, %v1384
  %1386 = vmatmul.bf16.gmra.mxu0 %v1084
  %v1387 = vpop.f32.mrf.mxu0
  %v1388 = vadd.f32 %v1339, %v1387
  %v1389 = vpop.f32.mrf.mxu0
  %v1390 = vadd.f32 %v1341, %v1389
  %1391 = vmatmul.bf16.gmra.mxu0 %v1087
  %v1392 = vpop.f32.mrf.mxu0
  %v1393 = vadd.f32 %v1344, %v1392
  %v1394 = vpop.f32.mrf.mxu0
  %v1395 = vadd.f32 %v1346, %v1394
  %1396 = vmatmul.bf16.gmra.mxu0 %v1090
  %v1397 = vpop.f32.mrf.mxu0
  %v1398 = vadd.f32 %v1349, %v1397
  %v1399 = vpop.f32.mrf.mxu0
  %v1400 = vadd.f32 %v1351, %v1399
  %1401 = vmatmul.bf16.gmra.mxu0 %v1093
  %v1402 = vpop.f32.mrf.mxu0
  %v1403 = vadd.f32 %v1354, %v1402
  %v1404 = vpop.f32.mrf.mxu0
  %v1405 = vadd.f32 %v1356, %v1404
  %1406 = vmatmul.bf16.gmra.mxu0 %v1096
  %v1407 = vpop.f32.mrf.mxu0
  %v1408 = vadd.f32 %v1359, %v1407
  %v1409 = vpop.f32.mrf.mxu0
  %v1410 = vadd.f32 %v1361, %v1409
  %1411 = vdwg.mxu0
  %v1412 = vadd.f32 %v873, %v1373
  %v1413 = vadd.f32 %v875, %v1375
  %v1414 = vadd.f32 %v878, %v1378
  %v1415 = vadd.f32 %v880, %v1380
  %v1416 = vadd.f32 %v883, %v1383
  %v1417 = vadd.f32 %v885, %v1385
  %v1418 = vadd.f32 %v888, %v1388
  %v1419 = vadd.f32 %v890, %v1390
  %v1420 = vadd.f32 %v893, %v1393
  %v1421 = vadd.f32 %v895, %v1395
  %v1422 = vadd.f32 %v898, %v1398
  %v1423 = vadd.f32 %v900, %v1400
  %v1424 = vadd.f32 %v903, %v1403
  %v1425 = vadd.f32 %v905, %v1405
  %v1426 = vadd.f32 %v908, %v1408
  %v1427 = vadd.f32 %v910, %v1410
  %v1428 = vld [vmem:[%s4] sm:$0x1]
  %v1430 = vperm.slane %v1428, 0
  %v1432 = vadd.f32 %v1412, %v1430
  %v1433 = vadd.f32 %v1413, %v1430
  %v1434 = vadd.f32 %v1414, %v1430
  %v1435 = vadd.f32 %v1415, %v1430
  %v1436 = vadd.f32 %v1416, %v1430
  %v1437 = vadd.f32 %v1417, %v1430
  %v1438 = vadd.f32 %v1418, %v1430
  %v1439 = vadd.f32 %v1419, %v1430
  %v1440 = vadd.f32 %v1420, %v1430
  %v1441 = vadd.f32 %v1421, %v1430
  %v1442 = vadd.f32 %v1422, %v1430
  %v1443 = vadd.f32 %v1423, %v1430
  %v1444 = vadd.f32 %v1424, %v1430
  %v1445 = vadd.f32 %v1425, %v1430
  %v1446 = vadd.f32 %v1426, %v1430
  %v1447 = vadd.f32 %v1427, %v1430
  %v1448 = vld [vmem:[%s1] sm:$0xff]
  %v1449 = vld [vmem:[%s1 + $0x8] sm:$0xff]
  %v1450 = vld [vmem:[%s1 + $0x10] sm:$0xff]
  %v1451 = vld [vmem:[%s1 + $0x18] sm:$0xff]
  %v1452 = vld [vmem:[%s1 + $0x20] sm:$0xff]
  %v1453 = vld [vmem:[%s1 + $0x28] sm:$0xff]
  %v1454 = vld [vmem:[%s1 + $0x30] sm:$0xff]
  %v1455 = vld [vmem:[%s1 + $0x38] sm:$0xff]
  %v1456 = vld [vmem:[%s1 + $0x40] sm:$0xff]
  %v1457 = vld [vmem:[%s1 + $0x48] sm:$0xff]
  %v1458 = vld [vmem:[%s1 + $0x50] sm:$0xff]
  %v1459 = vld [vmem:[%s1 + $0x58] sm:$0xff]
  %v1460 = vld [vmem:[%s1 + $0x60] sm:$0xff]
  %v1461 = vld [vmem:[%s1 + $0x68] sm:$0xff]
  %v1462 = vld [vmem:[%s1 + $0x70] sm:$0xff]
  %v1463 = vld [vmem:[%s1 + $0x78] sm:$0xff]
  %vm1464 = vcmp.gt.f32.partialorder %v1448, 0.0
  %vm1465 = vcmp.gt.f32.partialorder %v1449, 0.0
  %vm1466 = vcmp.gt.f32.partialorder %v1450, 0.0
  %vm1467 = vcmp.gt.f32.partialorder %v1451, 0.0
  %vm1468 = vcmp.gt.f32.partialorder %v1452, 0.0
  %vm1469 = vcmp.gt.f32.partialorder %v1453, 0.0
  %vm1470 = vcmp.gt.f32.partialorder %v1454, 0.0
  %vm1471 = vcmp.gt.f32.partialorder %v1455, 0.0
  %vm1472 = vcmp.gt.f32.partialorder %v1456, 0.0
  %vm1473 = vcmp.gt.f32.partialorder %v1457, 0.0
  %vm1474 = vcmp.gt.f32.partialorder %v1458, 0.0
  %vm1475 = vcmp.gt.f32.partialorder %v1459, 0.0
  %vm1476 = vcmp.gt.f32.partialorder %v1460, 0.0
  %vm1477 = vcmp.gt.f32.partialorder %v1461, 0.0
  %vm1478 = vcmp.gt.f32.partialorder %v1462, 0.0
  %vm1479 = vcmp.gt.f32.partialorder %v1463, 0.0
  %v1480 = vsel %vm1464, 1, 0
  %v1481 = vsel %vm1465, 1, 0
  %v1482 = vsel %vm1466, 1, 0
  %v1483 = vsel %vm1467, 1, 0
  %v1484 = vsel %vm1468, 1, 0
  %v1485 = vsel %vm1469, 1, 0
  %v1486 = vsel %vm1470, 1, 0
  %v1487 = vsel %vm1471, 1, 0
  %v1488 = vsel %vm1472, 1, 0
  %v1489 = vsel %vm1473, 1, 0
  %v1490 = vsel %vm1474, 1, 0
  %v1491 = vsel %vm1475, 1, 0
  %v1492 = vsel %vm1476, 1, 0
  %v1493 = vsel %vm1477, 1, 0
  %v1494 = vsel %vm1478, 1, 0
  %v1495 = vsel %vm1479, 1, 0
  %1496 = vset.pattern.permute.xlu0 0
  %1497 = vperm.xlu0 %1496, %v1480
  %v1498 = vpop.permute.xlu0 %1497
  %1499 = vset.pattern.permute.xlu0 0
  %1500 = vperm.xlu0 %1499, %v1481
  %v1501 = vpop.permute.xlu0 %1500
  %1502 = vset.pattern.permute.xlu0 0
  %1503 = vperm.xlu0 %1502, %v1482
  %v1504 = vpop.permute.xlu0 %1503
  %1505 = vset.pattern.permute.xlu0 0
  %1506 = vperm.xlu0 %1505, %v1483
  %v1507 = vpop.permute.xlu0 %1506
  %1508 = vset.pattern.permute.xlu0 0
  %1509 = vperm.xlu0 %1508, %v1484
  %v1510 = vpop.permute.xlu0 %1509
  %1511 = vset.pattern.permute.xlu0 0
  %1512 = vperm.xlu0 %1511, %v1485
  %v1513 = vpop.permute.xlu0 %1512
  %1514 = vset.pattern.permute.xlu0 0
  %1515 = vperm.xlu0 %1514, %v1486
  %v1516 = vpop.permute.xlu0 %1515
  %1517 = vset.pattern.permute.xlu0 0
  %1518 = vperm.xlu0 %1517, %v1487
  %v1519 = vpop.permute.xlu0 %1518
  %1520 = vset.pattern.permute.xlu0 0
  %1521 = vperm.xlu0 %1520, %v1488
  %v1522 = vpop.permute.xlu0 %1521
  %1523 = vset.pattern.permute.xlu0 0
  %1524 = vperm.xlu0 %1523, %v1489
  %v1525 = vpop.permute.xlu0 %1524
  %1526 = vset.pattern.permute.xlu0 0
  %1527 = vperm.xlu0 %1526, %v1490
  %v1528 = vpop.permute.xlu0 %1527
  %1529 = vset.pattern.permute.xlu0 0
  %1530 = vperm.xlu0 %1529, %v1491
  %v1531 = vpop.permute.xlu0 %1530
  %1532 = vset.pattern.permute.xlu0 0
  %1533 = vperm.xlu0 %1532, %v1492
  %v1534 = vpop.permute.xlu0 %1533
  %1535 = vset.pattern.permute.xlu0 0
  %1536 = vperm.xlu0 %1535, %v1493
  %v1537 = vpop.permute.xlu0 %1536
  %1538 = vset.pattern.permute.xlu0 0
  %1539 = vperm.xlu0 %1538, %v1494
  %v1540 = vpop.permute.xlu0 %1539
  %1541 = vset.pattern.permute.xlu0 0
  %1542 = vperm.xlu0 %1541, %v1495
  %v1543 = vpop.permute.xlu0 %1542
  %vm1544 = vcmp.eq.s32.totalorder %v1498, 1
  %vm1545 = vcmp.eq.s32.totalorder %v1501, 1
  %vm1546 = vcmp.eq.s32.totalorder %v1504, 1
  %vm1547 = vcmp.eq.s32.totalorder %v1507, 1
  %vm1548 = vcmp.eq.s32.totalorder %v1510, 1
  %vm1549 = vcmp.eq.s32.totalorder %v1513, 1
  %vm1550 = vcmp.eq.s32.totalorder %v1516, 1
  %vm1551 = vcmp.eq.s32.totalorder %v1519, 1
  %vm1552 = vcmp.eq.s32.totalorder %v1522, 1
  %vm1553 = vcmp.eq.s32.totalorder %v1525, 1
  %vm1554 = vcmp.eq.s32.totalorder %v1528, 1
  %vm1555 = vcmp.eq.s32.totalorder %v1531, 1
  %vm1556 = vcmp.eq.s32.totalorder %v1534, 1
  %vm1557 = vcmp.eq.s32.totalorder %v1537, 1
  %vm1558 = vcmp.eq.s32.totalorder %v1540, 1
  %vm1559 = vcmp.eq.s32.totalorder %v1543, 1
  %v1560 = vsel %vm1544, %v1432, 0.0
  %v1561 = vsel %vm1545, %v1433, 0.0
  %v1562 = vsel %vm1546, %v1434, 0.0
  %v1563 = vsel %vm1547, %v1435, 0.0
  %v1564 = vsel %vm1548, %v1436, 0.0
  %v1565 = vsel %vm1549, %v1437, 0.0
  %v1566 = vsel %vm1550, %v1438, 0.0
  %v1567 = vsel %vm1551, %v1439, 0.0
  %v1568 = vsel %vm1552, %v1440, 0.0
  %v1569 = vsel %vm1553, %v1441, 0.0
  %v1570 = vsel %vm1554, %v1442, 0.0
  %v1571 = vsel %vm1555, %v1443, 0.0
  %v1572 = vsel %vm1556, %v1444, 0.0
  %v1573 = vsel %vm1557, %v1445, 0.0
  %v1574 = vsel %vm1558, %v1446, 0.0
  %v1575 = vsel %vm1559, %v1447, 0.0
  %vm1576 = vcmask 523264
  %v1577 = vsel %vm1576, %v1560, 0.0
  %v1578 = vsel %vm1576, %v1561, 0.0
  %v1579 = vadd.f32 %v1577, %v1578
  %v1580 = vsel %vm1576, %v1562, 0.0
  %v1581 = vadd.f32 %v1579, %v1580
  %v1582 = vsel %vm1576, %v1563, 0.0
  %v1583 = vadd.f32 %v1581, %v1582
  %v1584 = vsel %vm1576, %v1564, 0.0
  %v1585 = vadd.f32 %v1583, %v1584
  %v1586 = vsel %vm1576, %v1565, 0.0
  %v1587 = vadd.f32 %v1585, %v1586
  %v1588 = vsel %vm1576, %v1566, 0.0
  %v1589 = vadd.f32 %v1587, %v1588
  %v1590 = vsel %vm1576, %v1567, 0.0
  %v1591 = vadd.f32 %v1589, %v1590
  %v1592 = vsel %vm1576, %v1568, 0.0
  %v1593 = vadd.f32 %v1591, %v1592
  %v1594 = vsel %vm1576, %v1569, 0.0
  %v1595 = vadd.f32 %v1593, %v1594
  %v1596 = vsel %vm1576, %v1570, 0.0
  %v1597 = vadd.f32 %v1595, %v1596
  %v1598 = vsel %vm1576, %v1571, 0.0
  %v1599 = vadd.f32 %v1597, %v1598
  %v1600 = vsel %vm1576, %v1572, 0.0
  %v1601 = vadd.f32 %v1599, %v1600
  %v1602 = vsel %vm1576, %v1573, 0.0
  %v1603 = vadd.f32 %v1601, %v1602
  %v1604 = vsel %vm1576, %v1574, 0.0
  %v1605 = vadd.f32 %v1603, %v1604
  %v1606 = vsel %vm1576, %v1575, 0.0
  %v1607 = vadd.f32 %v1605, %v1606
  %v1608 = vrot.slane %v1607, 4
  %v1609 = vadd.f32 %v1607, %v1608
  %v1610 = vrot.slane %v1609, 2
  %v1611 = vadd.f32 %v1609, %v1610
  %v1612 = vrot.slane %v1611, 1
  %v1613 = vadd.f32 %v1611, %v1612
  %v1614 = vadd.f32 %v1613, 0.0
  %v1615 = vmul.f32 %v1560, %v1560
  %v1616 = vmul.f32 %v1561, %v1561
  %v1617 = vmul.f32 %v1562, %v1562
  %v1618 = vmul.f32 %v1563, %v1563
  %v1619 = vmul.f32 %v1564, %v1564
  %v1620 = vmul.f32 %v1565, %v1565
  %v1621 = vmul.f32 %v1566, %v1566
  %v1622 = vmul.f32 %v1567, %v1567
  %v1623 = vmul.f32 %v1568, %v1568
  %v1624 = vmul.f32 %v1569, %v1569
  %v1625 = vmul.f32 %v1570, %v1570
  %v1626 = vmul.f32 %v1571, %v1571
  %v1627 = vmul.f32 %v1572, %v1572
  %v1628 = vmul.f32 %v1573, %v1573
  %v1629 = vmul.f32 %v1574, %v1574
  %v1630 = vmul.f32 %v1575, %v1575
  %v1631 = vsel %vm1576, %v1615, 0.0
  %v1632 = vsel %vm1576, %v1616, 0.0
  %v1633 = vadd.f32 %v1631, %v1632
  %v1634 = vsel %vm1576, %v1617, 0.0
  %v1635 = vadd.f32 %v1633, %v1634
  %v1636 = vsel %vm1576, %v1618, 0.0
  %v1637 = vadd.f32 %v1635, %v1636
  %v1638 = vsel %vm1576, %v1619, 0.0
  %v1639 = vadd.f32 %v1637, %v1638
  %v1640 = vsel %vm1576, %v1620, 0.0
  %v1641 = vadd.f32 %v1639, %v1640
  %v1642 = vsel %vm1576, %v1621, 0.0
  %v1643 = vadd.f32 %v1641, %v1642
  %v1644 = vsel %vm1576, %v1622, 0.0
  %v1645 = vadd.f32 %v1643, %v1644
  %v1646 = vsel %vm1576, %v1623, 0.0
  %v1647 = vadd.f32 %v1645, %v1646
  %v1648 = vsel %vm1576, %v1624, 0.0
  %v1649 = vadd.f32 %v1647, %v1648
  %v1650 = vsel %vm1576, %v1625, 0.0
  %v1651 = vadd.f32 %v1649, %v1650
  %v1652 = vsel %vm1576, %v1626, 0.0
  %v1653 = vadd.f32 %v1651, %v1652
  %v1654 = vsel %vm1576, %v1627, 0.0
  %v1655 = vadd.f32 %v1653, %v1654
  %v1656 = vsel %vm1576, %v1628, 0.0
  %v1657 = vadd.f32 %v1655, %v1656
  %v1658 = vsel %vm1576, %v1629, 0.0
  %v1659 = vadd.f32 %v1657, %v1658
  %v1660 = vsel %vm1576, %v1630, 0.0
  %v1661 = vadd.f32 %v1659, %v1660
  %v1662 = vrot.slane %v1661, 4
  %v1663 = vadd.f32 %v1661, %v1662
  %v1664 = vrot.slane %v1663, 2
  %v1665 = vadd.f32 %v1663, %v1664
  %v1666 = vrot.slane %v1665, 1
  %v1667 = vadd.f32 %v1665, %v1666
  %v1668 = vadd.f32 %v1667, 0.0
  %1669 = vst.msk [vmem:[#allocation2] sm:$0xff] %vm1576, %v1432
  %1670 = vst.msk [vmem:[#allocation2 + $0x8] sm:$0xff] %vm1576, %v1433
  %1671 = vst.msk [vmem:[#allocation2 + $0x10] sm:$0xff] %vm1576, %v1434
  %1672 = vst.msk [vmem:[#allocation2 + $0x18] sm:$0xff] %vm1576, %v1435
  %1673 = vst.msk [vmem:[#allocation2 + $0x20] sm:$0xff] %vm1576, %v1436
  %1674 = vst.msk [vmem:[#allocation2 + $0x28] sm:$0xff] %vm1576, %v1437
  %1675 = vst.msk [vmem:[#allocation2 + $0x30] sm:$0xff] %vm1576, %v1438
  %1676 = vst.msk [vmem:[#allocation2 + $0x38] sm:$0xff] %vm1576, %v1439
  %1677 = vst.msk [vmem:[#allocation2 + $0x40] sm:$0xff] %vm1576, %v1440
  %1678 = vst.msk [vmem:[#allocation2 + $0x48] sm:$0xff] %vm1576, %v1441
  %1679 = vst.msk [vmem:[#allocation2 + $0x50] sm:$0xff] %vm1576, %v1442
  %1680 = vst.msk [vmem:[#allocation2 + $0x58] sm:$0xff] %vm1576, %v1443
  %1681 = vst.msk [vmem:[#allocation2 + $0x60] sm:$0xff] %vm1576, %v1444
  %1682 = vst.msk [vmem:[#allocation2 + $0x68] sm:$0xff] %vm1576, %v1445
  %1683 = vst.msk [vmem:[#allocation2 + $0x70] sm:$0xff] %vm1576, %v1446
  %1684 = vst.msk [vmem:[#allocation2 + $0x78] sm:$0xff] %vm1576, %v1447
  %v1685 = vld [vmem:[%s0 + $0xc0] sm:$0xff]
  %v1686 = vld [vmem:[%s0 + $0xc8] sm:$0xf]
  %v1687 = vld [vmem:[%s0 + $0xcc] sm:$0xff]
  %v1688 = vld [vmem:[%s0 + $0xd4] sm:$0xf]
  %v1689 = vld [vmem:[%s0 + $0xd8] sm:$0xff]
  %v1690 = vld [vmem:[%s0 + $0xe0] sm:$0xf]
  %v1691 = vld [vmem:[%s0 + $0xe4] sm:$0xff]
  %v1692 = vld [vmem:[%s0 + $0xec] sm:$0xf]
  %v1693 = vld [vmem:[%s0 + $0xf0] sm:$0xff]
  %v1694 = vld [vmem:[%s0 + $0xf8] sm:$0xf]
  %v1695 = vld [vmem:[%s0 + $0xfc] sm:$0xff]
  %v1696 = vld [vmem:[%s0 + $0x104] sm:$0xf]
  %v1697 = vld [vmem:[%s0 + $0x108] sm:$0xff]
  %v1698 = vld [vmem:[%s0 + $0x110] sm:$0xf]
  %v1699 = vld [vmem:[%s0 + $0x114] sm:$0xff]
  %v1700 = vld [vmem:[%s0 + $0x11c] sm:$0xf]
  %v1701 = vld [vmem:[%s0 + $0x120] sm:$0xff]
  %v1702 = vld [vmem:[%s0 + $0x128] sm:$0xf]
  %v1703 = vld [vmem:[%s0 + $0x12c] sm:$0xff]
  %v1704 = vld [vmem:[%s0 + $0x134] sm:$0xf]
  %v1705 = vld [vmem:[%s0 + $0x138] sm:$0xff]
  %v1706 = vld [vmem:[%s0 + $0x140] sm:$0xf]
  %v1707 = vld [vmem:[%s0 + $0x144] sm:$0xff]
  %v1708 = vld [vmem:[%s0 + $0x14c] sm:$0xf]
  %v1709 = vld [vmem:[%s0 + $0x150] sm:$0xff]
  %v1710 = vld [vmem:[%s0 + $0x158] sm:$0xf]
  %v1711 = vld [vmem:[%s0 + $0x15c] sm:$0xff]
  %v1712 = vld [vmem:[%s0 + $0x164] sm:$0xf]
  %v1713 = vld [vmem:[%s0 + $0x168] sm:$0xff]
  %v1714 = vld [vmem:[%s0 + $0x170] sm:$0xf]
  %v1715 = vld [vmem:[%s0 + $0x174] sm:$0xff]
  %v1716 = vld [vmem:[%s0 + $0x17c] sm:$0xf]
  %v1717 = vld [vmem:[%s3] sm:$0xf]
  %v1718 = vld [vmem:[%s3 + $0x4] sm:$0xf]
  %v1719 = vld [vmem:[%s3 + $0x8] sm:$0xf]
  %v1720 = vld [vmem:[%s3 + $0xc] sm:$0xf]
  %v1721 = vld [vmem:[%s3 + $0x10] sm:$0xf]
  %v1722 = vld [vmem:[%s3 + $0x14] sm:$0xf]
  %v1723 = vld [vmem:[%s3 + $0x18] sm:$0xf]
  %v1724 = vld [vmem:[%s3 + $0x1c] sm:$0xf]
  %v1725 = vld [vmem:[%s3 + $0x20] sm:$0xf]
  %v1726 = vld [vmem:[%s3 + $0x24] sm:$0xf]
  %v1727 = vld [vmem:[%s3 + $0x28] sm:$0xf]
  %v1728 = vld [vmem:[%s3 + $0x2c] sm:$0xf]
  %v1729 = vld [vmem:[%s3 + $0x30] sm:$0xf]
  %v1730 = vld [vmem:[%s3 + $0x34] sm:$0xf]
  %v1731 = vld [vmem:[%s3 + $0x38] sm:$0xf]
  %v1732 = vld [vmem:[%s3 + $0x3c] sm:$0xf]
  %v1733 = vld [vmem:[%s3 + $0x40] sm:$0xf]
  %v1734 = vld [vmem:[%s3 + $0x44] sm:$0xf]
  %v1735 = vld [vmem:[%s3 + $0x48] sm:$0xf]
  %v1736 = vld [vmem:[%s3 + $0x4c] sm:$0xf]
  %v1737 = vld [vmem:[%s3 + $0x50] sm:$0xf]
  %v1738 = vld [vmem:[%s3 + $0x54] sm:$0xf]
  %v1739 = vld [vmem:[%s3 + $0x58] sm:$0xf]
  %v1740 = vld [vmem:[%s3 + $0x5c] sm:$0xf]
  %v1741 = vld [vmem:[%s3 + $0x60] sm:$0xf]
  %v1742 = vld [vmem:[%s3 + $0x64] sm:$0xf]
  %v1743 = vld [vmem:[%s3 + $0x68] sm:$0xf]
  %v1744 = vld [vmem:[%s3 + $0x6c] sm:$0xf]
  %v1745 = vld [vmem:[%s3 + $0x70] sm:$0xf]
  %v1746 = vld [vmem:[%s3 + $0x74] sm:$0xf]
  %v1747 = vld [vmem:[%s3 + $0x78] sm:$0xf]
  %v1748 = vld [vmem:[%s3 + $0x7c] sm:$0xf]
  %v1749 = vld [vmem:[%s3 + $0x80] sm:$0xf]
  %v1750 = vld [vmem:[%s3 + $0x84] sm:$0xf]
  %v1751 = vld [vmem:[%s3 + $0x88] sm:$0xf]
  %v1752 = vld [vmem:[%s3 + $0x8c] sm:$0xf]
  %v1753 = vld [vmem:[%s3 + $0x90] sm:$0xf]
  %v1754 = vld [vmem:[%s3 + $0x94] sm:$0xf]
  %v1755 = vld [vmem:[%s3 + $0x98] sm:$0xf]
  %v1756 = vld [vmem:[%s3 + $0x9c] sm:$0xf]
  %v1757 = vld [vmem:[%s3 + $0xa0] sm:$0xf]
  %v1758 = vld [vmem:[%s3 + $0xa4] sm:$0xf]
  %v1759 = vld [vmem:[%s3 + $0xa8] sm:$0xf]
  %v1760 = vld [vmem:[%s3 + $0xac] sm:$0xf]
  %v1761 = vld [vmem:[%s3 + $0xb0] sm:$0xf]
  %v1762 = vld [vmem:[%s3 + $0xb4] sm:$0xf]
  %v1763 = vld [vmem:[%s3 + $0xb8] sm:$0xf]
  %v1764 = vld [vmem:[%s3 + $0xbc] sm:$0xf]
  %v1765 = vld [vmem:[%s0 + $0x180] sm:$0xff]
  %v1766 = vld [vmem:[%s0 + $0x188] sm:$0xf]
  %v1767 = vld [vmem:[%s0 + $0x18c] sm:$0xff]
  %v1768 = vld [vmem:[%s0 + $0x194] sm:$0xf]
  %v1769 = vld [vmem:[%s137] sm:$0xf]
  %v1770 = vld [vmem:[%s137 + $0x4] sm:$0xf]
  %v1771 = vld [vmem:[%s137 + $0x8] sm:$0xf]
  %v1772 = vld [vmem:[%s137 + $0xc] sm:$0xf]
  %v1773 = vld [vmem:[%s137 + $0x10] sm:$0xf]
  %v1774 = vld [vmem:[%s137 + $0x14] sm:$0xf]
  %v1775 = vld [vmem:[%s137 + $0x18] sm:$0xf]
  %v1776 = vld [vmem:[%s137 + $0x1c] sm:$0xf]
  %v1777 = vld [vmem:[%s137 + $0x20] sm:$0xf]
  %v1778 = vld [vmem:[%s137 + $0x24] sm:$0xf]
  %v1779 = vld [vmem:[%s137 + $0x28] sm:$0xf]
  %v1780 = vld [vmem:[%s137 + $0x2c] sm:$0xf]
  %v1781 = vld [vmem:[%s137 + $0x30] sm:$0xf]
  %v1782 = vld [vmem:[%s137 + $0x34] sm:$0xf]
  %v1783 = vld [vmem:[%s137 + $0x38] sm:$0xf]
  %v1784 = vld [vmem:[%s137 + $0x3c] sm:$0xf]
  %v1785 = vld [vmem:[%s137 + $0x40] sm:$0xf]
  %v1786 = vld [vmem:[%s137 + $0x44] sm:$0xf]
  %v1787 = vld [vmem:[%s137 + $0x48] sm:$0xf]
  %v1788 = vld [vmem:[%s137 + $0x4c] sm:$0xf]
  %v1789 = vld [vmem:[%s137 + $0x50] sm:$0xf]
  %v1790 = vld [vmem:[%s137 + $0x54] sm:$0xf]
  %v1791 = vld [vmem:[%s137 + $0x58] sm:$0xf]
  %v1792 = vld [vmem:[%s137 + $0x5c] sm:$0xf]
  %v1793 = vld [vmem:[%s137 + $0x60] sm:$0xf]
  %v1794 = vld [vmem:[%s137 + $0x64] sm:$0xf]
  %v1795 = vld [vmem:[%s137 + $0x68] sm:$0xf]
  %v1796 = vld [vmem:[%s137 + $0x6c] sm:$0xf]
  %v1797 = vld [vmem:[%s137 + $0x70] sm:$0xf]
  %v1798 = vld [vmem:[%s137 + $0x74] sm:$0xf]
  %v1799 = vld [vmem:[%s137 + $0x78] sm:$0xf]
  %v1800 = vld [vmem:[%s137 + $0x7c] sm:$0xf]
  %v1801 = vld [vmem:[%s137 + $0x80] sm:$0xf]
  %v1802 = vld [vmem:[%s137 + $0x84] sm:$0xf]
  %v1803 = vld [vmem:[%s137 + $0x88] sm:$0xf]
  %v1804 = vld [vmem:[%s137 + $0x8c] sm:$0xf]
  %v1805 = vld [vmem:[%s137 + $0x90] sm:$0xf]
  %v1806 = vld [vmem:[%s137 + $0x94] sm:$0xf]
  %v1807 = vld [vmem:[%s137 + $0x98] sm:$0xf]
  %v1808 = vld [vmem:[%s137 + $0x9c] sm:$0xf]
  %v1809 = vld [vmem:[%s137 + $0xa0] sm:$0xf]
  %v1810 = vld [vmem:[%s137 + $0xa4] sm:$0xf]
  %v1811 = vld [vmem:[%s137 + $0xa8] sm:$0xf]
  %v1812 = vld [vmem:[%s137 + $0xac] sm:$0xf]
  %v1813 = vld [vmem:[%s137 + $0xb0] sm:$0xf]
  %v1814 = vld [vmem:[%s137 + $0xb4] sm:$0xf]
  %v1815 = vld [vmem:[%s137 + $0xb8] sm:$0xf]
  %v1816 = vld [vmem:[%s137 + $0xbc] sm:$0xf]
  %v1849 = vunpack.c.l.b16 %v1689
  %v1850 = vunpack.c.h.b16 %v1689
  %v1851 = vunpack.c.l.b16 %v1690
  %v1852 = vunpack.c.l.b16 %v1691
  %v1853 = vunpack.c.h.b16 %v1691
  %v1854 = vunpack.c.l.b16 %v1692
  %v1855 = vunpack.c.l.b16 %v1693
  %v1856 = vunpack.c.h.b16 %v1693
  %v1857 = vunpack.c.l.b16 %v1694
  %v1858 = vunpack.c.l.b16 %v1695
  %v1859 = vunpack.c.h.b16 %v1695
  %v1860 = vunpack.c.l.b16 %v1696
  %v1861 = vunpack.c.l.b16 %v1697
  %v1862 = vunpack.c.h.b16 %v1697
  %v1863 = vunpack.c.l.b16 %v1698
  %v1864 = vunpack.c.l.b16 %v1699
  %v1865 = vunpack.c.h.b16 %v1699
  %v1866 = vunpack.c.l.b16 %v1700
  %v1867 = vunpack.c.l.b16 %v1701
  %v1868 = vunpack.c.h.b16 %v1701
  %v1869 = vunpack.c.l.b16 %v1702
  %v1870 = vunpack.c.l.b16 %v1703
  %v1871 = vunpack.c.h.b16 %v1703
  %v1872 = vunpack.c.l.b16 %v1704
  %v1873 = vunpack.c.l.b16 %v1705
  %v1874 = vunpack.c.h.b16 %v1705
  %v1875 = vunpack.c.l.b16 %v1706
  %v1876 = vunpack.c.l.b16 %v1707
  %v1877 = vunpack.c.h.b16 %v1707
  %v1878 = vunpack.c.l.b16 %v1708
  %v1879 = vunpack.c.l.b16 %v1709
  %v1880 = vunpack.c.h.b16 %v1709
  %v1881 = vunpack.c.l.b16 %v1710
  %v1882 = vunpack.c.l.b16 %v1711
  %v1883 = vunpack.c.h.b16 %v1711
  %v1884 = vunpack.c.l.b16 %v1712
  %v1885 = vunpack.c.l.b16 %v1713
  %v1886 = vunpack.c.h.b16 %v1713
  %v1887 = vunpack.c.l.b16 %v1714
  %v1888 = vunpack.c.l.b16 %v1715
  %v1889 = vunpack.c.h.b16 %v1715
  %v1890 = vunpack.c.l.b16 %v1716
  %v1891 = vunpack.c.l.b16 %v1765
  %v1892 = vunpack.c.h.b16 %v1765
  %v1893 = vunpack.c.l.b16 %v1766
  %v1894 = vunpack.c.l.b16 %v1767
  %v1895 = vunpack.c.h.b16 %v1767
  %v1896 = vunpack.c.l.b16 %v1768
  %v1897 = vpack.c.b16 %v1852, %v1849
  %v1898 = vpack.c.b16 %v1853, %v1850
  %v1899 = vpack.c.b16 %v1854, %v1851
  %v1900 = vpack.c.b16 %v1858, %v1855
  %v1901 = vpack.c.b16 %v1859, %v1856
  %v1902 = vpack.c.b16 %v1860, %v1857
  %v1903 = vpack.c.b16 %v1864, %v1861
  %v1904 = vpack.c.b16 %v1865, %v1862
  %v1905 = vpack.c.b16 %v1866, %v1863
  %v1906 = vpack.c.b16 %v1870, %v1867
  %v1907 = vpack.c.b16 %v1871, %v1868
  %v1908 = vpack.c.b16 %v1872, %v1869
  %v1909 = vpack.c.b16 %v1876, %v1873
  %v1910 = vpack.c.b16 %v1877, %v1874
  %v1911 = vpack.c.b16 %v1878, %v1875
  %v1912 = vpack.c.b16 %v1882, %v1879
  %v1913 = vpack.c.b16 %v1883, %v1880
  %v1914 = vpack.c.b16 %v1884, %v1881
  %v1915 = vpack.c.b16 %v1888, %v1885
  %v1916 = vpack.c.b16 %v1889, %v1886
  %v1917 = vpack.c.b16 %v1890, %v1887
  %v1918 = vpack.c.b16 %v1894, %v1891
  %v1919 = vpack.c.b16 %v1895, %v1892
  %v1920 = vpack.c.b16 %v1896, %v1893
  %v1993 = vunpack.c.l.b16 %v1769
  %v1994 = vunpack.c.l.b16 %v1770
  %v1995 = vunpack.c.l.b16 %v1771
  %v1996 = vunpack.c.l.b16 %v1772
  %v1997 = vunpack.c.l.b16 %v1773
  %v1998 = vunpack.c.l.b16 %v1774
  %v1999 = vunpack.c.l.b16 %v1775
  %v2000 = vunpack.c.l.b16 %v1776
  %v2001 = vunpack.c.l.b16 %v1777
  %v2002 = vunpack.c.l.b16 %v1778
  %v2003 = vunpack.c.l.b16 %v1779
  %v2004 = vunpack.c.l.b16 %v1780
  %v2005 = vunpack.c.l.b16 %v1781
  %v2006 = vunpack.c.l.b16 %v1782
  %v2007 = vunpack.c.l.b16 %v1783
  %v2008 = vunpack.c.l.b16 %v1784
  %v2009 = vunpack.c.l.b16 %v1785
  %v2010 = vunpack.c.l.b16 %v1786
  %v2011 = vunpack.c.l.b16 %v1787
  %v2012 = vunpack.c.l.b16 %v1788
  %v2013 = vunpack.c.l.b16 %v1789
  %v2014 = vunpack.c.l.b16 %v1790
  %v2015 = vunpack.c.l.b16 %v1791
  %v2016 = vunpack.c.l.b16 %v1792
  %v2017 = vunpack.c.l.b16 %v1793
  %v2018 = vunpack.c.l.b16 %v1794
  %v2019 = vunpack.c.l.b16 %v1795
  %v2020 = vunpack.c.l.b16 %v1796
  %v2021 = vunpack.c.l.b16 %v1797
  %v2022 = vunpack.c.l.b16 %v1798
  %v2023 = vunpack.c.l.b16 %v1799
  %v2024 = vunpack.c.l.b16 %v1800
  %v2025 = vunpack.c.l.b16 %v1801
  %v2026 = vunpack.c.l.b16 %v1802
  %v2027 = vunpack.c.l.b16 %v1803
  %v2028 = vunpack.c.l.b16 %v1804
  %v2029 = vunpack.c.l.b16 %v1805
  %v2030 = vunpack.c.l.b16 %v1806
  %v2031 = vunpack.c.l.b16 %v1807
  %v2032 = vunpack.c.l.b16 %v1808
  %v2033 = vunpack.c.l.b16 %v1809
  %v2034 = vunpack.c.l.b16 %v1810
  %v2035 = vunpack.c.l.b16 %v1811
  %v2036 = vunpack.c.l.b16 %v1812
  %v2037 = vunpack.c.l.b16 %v1813
  %v2038 = vunpack.c.l.b16 %v1814
  %v2039 = vunpack.c.l.b16 %v1815
  %v2040 = vunpack.c.l.b16 %v1816
  %v2041 = vpack.c.b16 %v1994, %v1993
  %v2042 = vpack.c.b16 %v1996, %v1995
  %v2043 = vpack.c.b16 %v1998, %v1997
  %v2044 = vpack.c.b16 %v2000, %v1999
  %v2045 = vpack.c.b16 %v2002, %v2001
  %v2046 = vpack.c.b16 %v2004, %v2003
  %v2047 = vpack.c.b16 %v2006, %v2005
  %v2048 = vpack.c.b16 %v2008, %v2007
  %v2049 = vpack.c.b16 %v2010, %v2009
  %v2050 = vpack.c.b16 %v2012, %v2011
  %v2051 = vpack.c.b16 %v2014, %v2013
  %v2052 = vpack.c.b16 %v2016, %v2015
  %v2053 = vpack.c.b16 %v2018, %v2017
  %v2054 = vpack.c.b16 %v2020, %v2019
  %v2055 = vpack.c.b16 %v2022, %v2021
  %v2056 = vpack.c.b16 %v2024, %v2023
  %v2057 = vpack.c.b16 %v2026, %v2025
  %v2058 = vpack.c.b16 %v2028, %v2027
  %v2059 = vpack.c.b16 %v2030, %v2029
  %v2060 = vpack.c.b16 %v2032, %v2031
  %v2061 = vpack.c.b16 %v2034, %v2033
  %v2062 = vpack.c.b16 %v2036, %v2035
  %v2063 = vpack.c.b16 %v2038, %v2037
  %v2064 = vpack.c.b16 %v2040, %v2039
  %2089 = vmatpush.bf16.msra.mxu0 %v2048
  %2090 = vmatpush.bf16.msra.mxu0 %v2047
  %2091 = vmatpush.bf16.msra.mxu0 %v2046
  %2092 = vmatpush.bf16.msra.mxu0 %v2045
  %2093 = vmatpush.bf16.msra.mxu0 %v2044
  %2094 = vmatpush.bf16.msra.mxu0 %v2043
  %2095 = vmatpush.bf16.msra.mxu0 %v2042
  %2096 = vmatpush.bf16.msra.mxu0 %v2041
  %2097 = vmatmul.bf16.gmra.mxu0 %v1897
  %v2098 = vpop.f32.mrf.mxu0
  %v2099 = vadd.f32 0.0, %v2098
  %v2100 = vpop.f32.mrf.mxu0
  %v2101 = vadd.f32 0.0, %v2100
  %2102 = vmatmul.bf16.gmra.mxu0 %v1900
  %v2103 = vpop.f32.mrf.mxu0
  %v2104 = vadd.f32 0.0, %v2103
  %v2105 = vpop.f32.mrf.mxu0
  %v2106 = vadd.f32 0.0, %v2105
  %2107 = vmatmul.bf16.gmra.mxu0 %v1903
  %v2108 = vpop.f32.mrf.mxu0
  %v2109 = vadd.f32 0.0, %v2108
  %v2110 = vpop.f32.mrf.mxu0
  %v2111 = vadd.f32 0.0, %v2110
  %2112 = vmatmul.bf16.gmra.mxu0 %v1906
  %v2113 = vpop.f32.mrf.mxu0
  %v2114 = vadd.f32 0.0, %v2113
  %v2115 = vpop.f32.mrf.mxu0
  %v2116 = vadd.f32 0.0, %v2115
  %2117 = vmatmul.bf16.gmra.mxu0 %v1909
  %v2118 = vpop.f32.mrf.mxu0
  %v2119 = vadd.f32 0.0, %v2118
  %v2120 = vpop.f32.mrf.mxu0
  %v2121 = vadd.f32 0.0, %v2120
  %2122 = vmatmul.bf16.gmra.mxu0 %v1912
  %v2123 = vpop.f32.mrf.mxu0
  %v2124 = vadd.f32 0.0, %v2123
  %v2125 = vpop.f32.mrf.mxu0
  %v2126 = vadd.f32 0.0, %v2125
  %2127 = vmatmul.bf16.gmra.mxu0 %v1915
  %v2128 = vpop.f32.mrf.mxu0
  %v2129 = vadd.f32 0.0, %v2128
  %v2130 = vpop.f32.mrf.mxu0
  %v2131 = vadd.f32 0.0, %v2130
  %2132 = vmatmul.bf16.gmra.mxu0 %v1918
  %v2133 = vpop.f32.mrf.mxu0
  %v2134 = vadd.f32 0.0, %v2133
  %v2135 = vpop.f32.mrf.mxu0
  %v2136 = vadd.f32 0.0, %v2135
  %2137 = vdwg.mxu0
  %2138 = vmatpush.bf16.msra.mxu0 %v2056
  %2139 = vmatpush.bf16.msra.mxu0 %v2055
  %2140 = vmatpush.bf16.msra.mxu0 %v2054
  %2141 = vmatpush.bf16.msra.mxu0 %v2053
  %2142 = vmatpush.bf16.msra.mxu0 %v2052
  %2143 = vmatpush.bf16.msra.mxu0 %v2051
  %2144 = vmatpush.bf16.msra.mxu0 %v2050
  %2145 = vmatpush.bf16.msra.mxu0 %v2049
  %2146 = vmatmul.bf16.gmra.mxu0 %v1898
  %v2147 = vpop.f32.mrf.mxu0
  %v2148 = vadd.f32 %v2099, %v2147
  %v2149 = vpop.f32.mrf.mxu0
  %v2150 = vadd.f32 %v2101, %v2149
  %2151 = vmatmul.bf16.gmra.mxu0 %v1901
  %v2152 = vpop.f32.mrf.mxu0
  %v2153 = vadd.f32 %v2104, %v2152
  %v2154 = vpop.f32.mrf.mxu0
  %v2155 = vadd.f32 %v2106, %v2154
  %2156 = vmatmul.bf16.gmra.mxu0 %v1904
  %v2157 = vpop.f32.mrf.mxu0
  %v2158 = vadd.f32 %v2109, %v2157
  %v2159 = vpop.f32.mrf.mxu0
  %v2160 = vadd.f32 %v2111, %v2159
  %2161 = vmatmul.bf16.gmra.mxu0 %v1907
  %v2162 = vpop.f32.mrf.mxu0
  %v2163 = vadd.f32 %v2114, %v2162
  %v2164 = vpop.f32.mrf.mxu0
  %v2165 = vadd.f32 %v2116, %v2164
  %2166 = vmatmul.bf16.gmra.mxu0 %v1910
  %v2167 = vpop.f32.mrf.mxu0
  %v2168 = vadd.f32 %v2119, %v2167
  %v2169 = vpop.f32.mrf.mxu0
  %v2170 = vadd.f32 %v2121, %v2169
  %2171 = vmatmul.bf16.gmra.mxu0 %v1913
  %v2172 = vpop.f32.mrf.mxu0
  %v2173 = vadd.f32 %v2124, %v2172
  %v2174 = vpop.f32.mrf.mxu0
  %v2175 = vadd.f32 %v2126, %v2174
  %2176 = vmatmul.bf16.gmra.mxu0 %v1916
  %v2177 = vpop.f32.mrf.mxu0
  %v2178 = vadd.f32 %v2129, %v2177
  %v2179 = vpop.f32.mrf.mxu0
  %v2180 = vadd.f32 %v2131, %v2179
  %2181 = vmatmul.bf16.gmra.mxu0 %v1919
  %v2182 = vpop.f32.mrf.mxu0
  %v2183 = vadd.f32 %v2134, %v2182
  %v2184 = vpop.f32.mrf.mxu0
  %v2185 = vadd.f32 %v2136, %v2184
  %2186 = vdwg.mxu0
  %2187 = vmatpush.bf16.msra.mxu0 %v2064
  %2188 = vmatpush.bf16.msra.mxu0 %v2063
  %2189 = vmatpush.bf16.msra.mxu0 %v2062
  %2190 = vmatpush.bf16.msra.mxu0 %v2061
  %2191 = vmatpush.bf16.msra.mxu0 %v2060
  %2192 = vmatpush.bf16.msra.mxu0 %v2059
  %2193 = vmatpush.bf16.msra.mxu0 %v2058
  %2194 = vmatpush.bf16.msra.mxu0 %v2057
  %2195 = vmatmul.bf16.gmra.mxu0 %v1899
  %v2196 = vpop.f32.mrf.mxu0
  %v2197 = vadd.f32 %v2148, %v2196
  %v2198 = vpop.f32.mrf.mxu0
  %v2199 = vadd.f32 %v2150, %v2198
  %2200 = vmatmul.bf16.gmra.mxu0 %v1902
  %v2201 = vpop.f32.mrf.mxu0
  %v2202 = vadd.f32 %v2153, %v2201
  %v2203 = vpop.f32.mrf.mxu0
  %v2204 = vadd.f32 %v2155, %v2203
  %2205 = vmatmul.bf16.gmra.mxu0 %v1905
  %v2206 = vpop.f32.mrf.mxu0
  %v2207 = vadd.f32 %v2158, %v2206
  %v2208 = vpop.f32.mrf.mxu0
  %v2209 = vadd.f32 %v2160, %v2208
  %2210 = vmatmul.bf16.gmra.mxu0 %v1908
  %v2211 = vpop.f32.mrf.mxu0
  %v2212 = vadd.f32 %v2163, %v2211
  %v2213 = vpop.f32.mrf.mxu0
  %v2214 = vadd.f32 %v2165, %v2213
  %2215 = vmatmul.bf16.gmra.mxu0 %v1911
  %v2216 = vpop.f32.mrf.mxu0
  %v2217 = vadd.f32 %v2168, %v2216
  %v2218 = vpop.f32.mrf.mxu0
  %v2219 = vadd.f32 %v2170, %v2218
  %2220 = vmatmul.bf16.gmra.mxu0 %v1914
  %v2221 = vpop.f32.mrf.mxu0
  %v2222 = vadd.f32 %v2173, %v2221
  %v2223 = vpop.f32.mrf.mxu0
  %v2224 = vadd.f32 %v2175, %v2223
  %2225 = vmatmul.bf16.gmra.mxu0 %v1917
  %v2226 = vpop.f32.mrf.mxu0
  %v2227 = vadd.f32 %v2178, %v2226
  %v2228 = vpop.f32.mrf.mxu0
  %v2229 = vadd.f32 %v2180, %v2228
  %2230 = vmatmul.bf16.gmra.mxu0 %v1920
  %v2231 = vpop.f32.mrf.mxu0
  %v2232 = vadd.f32 %v2183, %v2231
  %v2233 = vpop.f32.mrf.mxu0
  %v2234 = vadd.f32 %v2185, %v2233
  %2235 = vdwg.mxu0
  %v2240 = vunpack.c.l.b16 %v1685
  %v2241 = vunpack.c.h.b16 %v1685
  %v2242 = vunpack.c.l.b16 %v1686
  %v2243 = vunpack.c.l.b16 %v1687
  %v2244 = vunpack.c.h.b16 %v1687
  %v2245 = vunpack.c.l.b16 %v1688
  %v2246 = vpack.c.b16 %v2243, %v2240
  %v2247 = vpack.c.b16 %v2244, %v2241
  %v2248 = vpack.c.b16 %v2245, %v2242
  %v2300 = vunpack.c.l.b16 %v1717
  %v2301 = vunpack.c.l.b16 %v1718
  %v2302 = vunpack.c.l.b16 %v1719
  %v2303 = vunpack.c.l.b16 %v1720
  %v2304 = vunpack.c.l.b16 %v1721
  %v2305 = vunpack.c.l.b16 %v1722
  %v2306 = vunpack.c.l.b16 %v1723
  %v2307 = vunpack.c.l.b16 %v1724
  %v2308 = vunpack.c.l.b16 %v1725
  %v2309 = vunpack.c.l.b16 %v1726
  %v2310 = vunpack.c.l.b16 %v1727
  %v2311 = vunpack.c.l.b16 %v1728
  %v2312 = vunpack.c.l.b16 %v1729
  %v2313 = vunpack.c.l.b16 %v1730
  %v2314 = vunpack.c.l.b16 %v1731
  %v2315 = vunpack.c.l.b16 %v1732
  %v2316 = vunpack.c.l.b16 %v1733
  %v2317 = vunpack.c.l.b16 %v1734
  %v2318 = vunpack.c.l.b16 %v1735
  %v2319 = vunpack.c.l.b16 %v1736
  %v2320 = vunpack.c.l.b16 %v1737
  %v2321 = vunpack.c.l.b16 %v1738
  %v2322 = vunpack.c.l.b16 %v1739
  %v2323 = vunpack.c.l.b16 %v1740
  %v2324 = vunpack.c.l.b16 %v1741
  %v2325 = vunpack.c.l.b16 %v1742
  %v2326 = vunpack.c.l.b16 %v1743
  %v2327 = vunpack.c.l.b16 %v1744
  %v2328 = vunpack.c.l.b16 %v1745
  %v2329 = vunpack.c.l.b16 %v1746
  %v2330 = vunpack.c.l.b16 %v1747
  %v2331 = vunpack.c.l.b16 %v1748
  %v2332 = vunpack.c.l.b16 %v1749
  %v2333 = vunpack.c.l.b16 %v1750
  %v2334 = vunpack.c.l.b16 %v1751
  %v2335 = vunpack.c.l.b16 %v1752
  %v2336 = vunpack.c.l.b16 %v1753
  %v2337 = vunpack.c.l.b16 %v1754
  %v2338 = vunpack.c.l.b16 %v1755
  %v2339 = vunpack.c.l.b16 %v1756
  %v2340 = vunpack.c.l.b16 %v1757
  %v2341 = vunpack.c.l.b16 %v1758
  %v2342 = vunpack.c.l.b16 %v1759
  %v2343 = vunpack.c.l.b16 %v1760
  %v2344 = vunpack.c.l.b16 %v1761
  %v2345 = vunpack.c.l.b16 %v1762
  %v2346 = vunpack.c.l.b16 %v1763
  %v2347 = vunpack.c.l.b16 %v1764
  %v2348 = vpack.c.b16 %v2301, %v2300
  %v2349 = vpack.c.b16 %v2303, %v2302
  %v2350 = vpack.c.b16 %v2305, %v2304
  %v2351 = vpack.c.b16 %v2307, %v2306
  %v2352 = vpack.c.b16 %v2309, %v2308
  %v2353 = vpack.c.b16 %v2311, %v2310
  %v2354 = vpack.c.b16 %v2313, %v2312
  %v2355 = vpack.c.b16 %v2315, %v2314
  %v2356 = vpack.c.b16 %v2317, %v2316
  %v2357 = vpack.c.b16 %v2319, %v2318
  %v2358 = vpack.c.b16 %v2321, %v2320
  %v2359 = vpack.c.b16 %v2323, %v2322
  %v2360 = vpack.c.b16 %v2325, %v2324
  %v2361 = vpack.c.b16 %v2327, %v2326
  %v2362 = vpack.c.b16 %v2329, %v2328
  %v2363 = vpack.c.b16 %v2331, %v2330
  %v2364 = vpack.c.b16 %v2333, %v2332
  %v2365 = vpack.c.b16 %v2335, %v2334
  %v2366 = vpack.c.b16 %v2337, %v2336
  %v2367 = vpack.c.b16 %v2339, %v2338
  %v2368 = vpack.c.b16 %v2341, %v2340
  %v2369 = vpack.c.b16 %v2343, %v2342
  %v2370 = vpack.c.b16 %v2345, %v2344
  %v2371 = vpack.c.b16 %v2347, %v2346
  %2396 = vmatpush.bf16.msra.mxu0 %v2355
  %2397 = vmatpush.bf16.msra.mxu0 %v2354
  %2398 = vmatpush.bf16.msra.mxu0 %v2353
  %2399 = vmatpush.bf16.msra.mxu0 %v2352
  %2400 = vmatpush.bf16.msra.mxu0 %v2351
  %2401 = vmatpush.bf16.msra.mxu0 %v2350
  %2402 = vmatpush.bf16.msra.mxu0 %v2349
  %2403 = vmatpush.bf16.msra.mxu0 %v2348
  %2404 = vmatmul.bf16.gmra.mxu0 %v2246
  %v2405 = vpop.f32.mrf.mxu0
  %v2406 = vadd.f32 %v2197, %v2405
  %v2407 = vpop.f32.mrf.mxu0
  %v2408 = vadd.f32 %v2199, %v2407
  %2409 = vmatmul.bf16.gmra.mxu0 %v1897
  %v2410 = vpop.f32.mrf.mxu0
  %v2411 = vadd.f32 %v2202, %v2410
  %v2412 = vpop.f32.mrf.mxu0
  %v2413 = vadd.f32 %v2204, %v2412
  %2414 = vmatmul.bf16.gmra.mxu0 %v1900
  %v2415 = vpop.f32.mrf.mxu0
  %v2416 = vadd.f32 %v2207, %v2415
  %v2417 = vpop.f32.mrf.mxu0
  %v2418 = vadd.f32 %v2209, %v2417
  %2419 = vmatmul.bf16.gmra.mxu0 %v1903
  %v2420 = vpop.f32.mrf.mxu0
  %v2421 = vadd.f32 %v2212, %v2420
  %v2422 = vpop.f32.mrf.mxu0
  %v2423 = vadd.f32 %v2214, %v2422
  %2424 = vmatmul.bf16.gmra.mxu0 %v1906
  %v2425 = vpop.f32.mrf.mxu0
  %v2426 = vadd.f32 %v2217, %v2425
  %v2427 = vpop.f32.mrf.mxu0
  %v2428 = vadd.f32 %v2219, %v2427
  %2429 = vmatmul.bf16.gmra.mxu0 %v1909
  %v2430 = vpop.f32.mrf.mxu0
  %v2431 = vadd.f32 %v2222, %v2430
  %v2432 = vpop.f32.mrf.mxu0
  %v2433 = vadd.f32 %v2224, %v2432
  %2434 = vmatmul.bf16.gmra.mxu0 %v1912
  %v2435 = vpop.f32.mrf.mxu0
  %v2436 = vadd.f32 %v2227, %v2435
  %v2437 = vpop.f32.mrf.mxu0
  %v2438 = vadd.f32 %v2229, %v2437
  %2439 = vmatmul.bf16.gmra.mxu0 %v1915
  %v2440 = vpop.f32.mrf.mxu0
  %v2441 = vadd.f32 %v2232, %v2440
  %v2442 = vpop.f32.mrf.mxu0
  %v2443 = vadd.f32 %v2234, %v2442
  %2444 = vdwg.mxu0
  %2445 = vmatpush.bf16.msra.mxu0 %v2363
  %2446 = vmatpush.bf16.msra.mxu0 %v2362
  %2447 = vmatpush.bf16.msra.mxu0 %v2361
  %2448 = vmatpush.bf16.msra.mxu0 %v2360
  %2449 = vmatpush.bf16.msra.mxu0 %v2359
  %2450 = vmatpush.bf16.msra.mxu0 %v2358
  %2451 = vmatpush.bf16.msra.mxu0 %v2357
  %2452 = vmatpush.bf16.msra.mxu0 %v2356
  %2453 = vmatmul.bf16.gmra.mxu0 %v2247
  %v2454 = vpop.f32.mrf.mxu0
  %v2455 = vadd.f32 %v2406, %v2454
  %v2456 = vpop.f32.mrf.mxu0
  %v2457 = vadd.f32 %v2408, %v2456
  %2458 = vmatmul.bf16.gmra.mxu0 %v1898
  %v2459 = vpop.f32.mrf.mxu0
  %v2460 = vadd.f32 %v2411, %v2459
  %v2461 = vpop.f32.mrf.mxu0
  %v2462 = vadd.f32 %v2413, %v2461
  %2463 = vmatmul.bf16.gmra.mxu0 %v1901
  %v2464 = vpop.f32.mrf.mxu0
  %v2465 = vadd.f32 %v2416, %v2464
  %v2466 = vpop.f32.mrf.mxu0
  %v2467 = vadd.f32 %v2418, %v2466
  %2468 = vmatmul.bf16.gmra.mxu0 %v1904
  %v2469 = vpop.f32.mrf.mxu0
  %v2470 = vadd.f32 %v2421, %v2469
  %v2471 = vpop.f32.mrf.mxu0
  %v2472 = vadd.f32 %v2423, %v2471
  %2473 = vmatmul.bf16.gmra.mxu0 %v1907
  %v2474 = vpop.f32.mrf.mxu0
  %v2475 = vadd.f32 %v2426, %v2474
  %v2476 = vpop.f32.mrf.mxu0
  %v2477 = vadd.f32 %v2428, %v2476
  %2478 = vmatmul.bf16.gmra.mxu0 %v1910
  %v2479 = vpop.f32.mrf.mxu0
  %v2480 = vadd.f32 %v2431, %v2479
  %v2481 = vpop.f32.mrf.mxu0
  %v2482 = vadd.f32 %v2433, %v2481
  %2483 = vmatmul.bf16.gmra.mxu0 %v1913
  %v2484 = vpop.f32.mrf.mxu0
  %v2485 = vadd.f32 %v2436, %v2484
  %v2486 = vpop.f32.mrf.mxu0
  %v2487 = vadd.f32 %v2438, %v2486
  %2488 = vmatmul.bf16.gmra.mxu0 %v1916
  %v2489 = vpop.f32.mrf.mxu0
  %v2490 = vadd.f32 %v2441, %v2489
  %v2491 = vpop.f32.mrf.mxu0
  %v2492 = vadd.f32 %v2443, %v2491
  %2493 = vdwg.mxu0
  %2494 = vmatpush.bf16.msra.mxu0 %v2371
  %2495 = vmatpush.bf16.msra.mxu0 %v2370
  %2496 = vmatpush.bf16.msra.mxu0 %v2369
  %2497 = vmatpush.bf16.msra.mxu0 %v2368
  %2498 = vmatpush.bf16.msra.mxu0 %v2367
  %2499 = vmatpush.bf16.msra.mxu0 %v2366
  %2500 = vmatpush.bf16.msra.mxu0 %v2365
  %2501 = vmatpush.bf16.msra.mxu0 %v2364
  %2502 = vmatmul.bf16.gmra.mxu0 %v2248
  %v2503 = vpop.f32.mrf.mxu0
  %v2504 = vadd.f32 %v2455, %v2503
  %v2505 = vpop.f32.mrf.mxu0
  %v2506 = vadd.f32 %v2457, %v2505
  %2507 = vmatmul.bf16.gmra.mxu0 %v1899
  %v2508 = vpop.f32.mrf.mxu0
  %v2509 = vadd.f32 %v2460, %v2508
  %v2510 = vpop.f32.mrf.mxu0
  %v2511 = vadd.f32 %v2462, %v2510
  %2512 = vmatmul.bf16.gmra.mxu0 %v1902
  %v2513 = vpop.f32.mrf.mxu0
  %v2514 = vadd.f32 %v2465, %v2513
  %v2515 = vpop.f32.mrf.mxu0
  %v2516 = vadd.f32 %v2467, %v2515
  %2517 = vmatmul.bf16.gmra.mxu0 %v1905
  %v2518 = vpop.f32.mrf.mxu0
  %v2519 = vadd.f32 %v2470, %v2518
  %v2520 = vpop.f32.mrf.mxu0
  %v2521 = vadd.f32 %v2472, %v2520
  %2522 = vmatmul.bf16.gmra.mxu0 %v1908
  %v2523 = vpop.f32.mrf.mxu0
  %v2524 = vadd.f32 %v2475, %v2523
  %v2525 = vpop.f32.mrf.mxu0
  %v2526 = vadd.f32 %v2477, %v2525
  %2527 = vmatmul.bf16.gmra.mxu0 %v1911
  %v2528 = vpop.f32.mrf.mxu0
  %v2529 = vadd.f32 %v2480, %v2528
  %v2530 = vpop.f32.mrf.mxu0
  %v2531 = vadd.f32 %v2482, %v2530
  %2532 = vmatmul.bf16.gmra.mxu0 %v1914
  %v2533 = vpop.f32.mrf.mxu0
  %v2534 = vadd.f32 %v2485, %v2533
  %v2535 = vpop.f32.mrf.mxu0
  %v2536 = vadd.f32 %v2487, %v2535
  %2537 = vmatmul.bf16.gmra.mxu0 %v1917
  %v2538 = vpop.f32.mrf.mxu0
  %v2539 = vadd.f32 %v2490, %v2538
  %v2540 = vpop.f32.mrf.mxu0
  %v2541 = vadd.f32 %v2492, %v2540
  %2542 = vdwg.mxu0
  %v2543 = vld [vmem:[%s0 + $0xf0] sm:$0xff]
  %v2544 = vld [vmem:[%s0 + $0xf8] sm:$0xf]
  %v2545 = vld [vmem:[%s0 + $0xfc] sm:$0xff]
  %v2546 = vld [vmem:[%s0 + $0x104] sm:$0xf]
  %v2547 = vld [vmem:[%s0 + $0x108] sm:$0xff]
  %v2548 = vld [vmem:[%s0 + $0x110] sm:$0xf]
  %v2549 = vld [vmem:[%s0 + $0x114] sm:$0xff]
  %v2550 = vld [vmem:[%s0 + $0x11c] sm:$0xf]
  %v2551 = vld [vmem:[%s0 + $0x120] sm:$0xff]
  %v2552 = vld [vmem:[%s0 + $0x128] sm:$0xf]
  %v2553 = vld [vmem:[%s0 + $0x12c] sm:$0xff]
  %v2554 = vld [vmem:[%s0 + $0x134] sm:$0xf]
  %v2555 = vld [vmem:[%s0 + $0x138] sm:$0xff]
  %v2556 = vld [vmem:[%s0 + $0x140] sm:$0xf]
  %v2557 = vld [vmem:[%s0 + $0x144] sm:$0xff]
  %v2558 = vld [vmem:[%s0 + $0x14c] sm:$0xf]
  %v2559 = vld [vmem:[%s0 + $0x150] sm:$0xff]
  %v2560 = vld [vmem:[%s0 + $0x158] sm:$0xf]
  %v2561 = vld [vmem:[%s0 + $0x15c] sm:$0xff]
  %v2562 = vld [vmem:[%s0 + $0x164] sm:$0xf]
  %v2563 = vld [vmem:[%s0 + $0x168] sm:$0xff]
  %v2564 = vld [vmem:[%s0 + $0x170] sm:$0xf]
  %v2565 = vld [vmem:[%s0 + $0x174] sm:$0xff]
  %v2566 = vld [vmem:[%s0 + $0x17c] sm:$0xf]
  %v2567 = vld [vmem:[%s0 + $0x180] sm:$0xff]
  %v2568 = vld [vmem:[%s0 + $0x188] sm:$0xf]
  %v2569 = vld [vmem:[%s0 + $0x18c] sm:$0xff]
  %v2570 = vld [vmem:[%s0 + $0x194] sm:$0xf]
  %v2571 = vld [vmem:[%s0 + $0x198] sm:$0xff]
  %v2572 = vld [vmem:[%s0 + $0x1a0] sm:$0xf]
  %v2573 = vld [vmem:[%s0 + $0x1a4] sm:$0xff]
  %v2574 = vld [vmem:[%s0 + $0x1ac] sm:$0xf]
  %v2575 = vld [vmem:[%s944] sm:$0xf]
  %v2576 = vld [vmem:[%s944 + $0x4] sm:$0xf]
  %v2577 = vld [vmem:[%s944 + $0x8] sm:$0xf]
  %v2578 = vld [vmem:[%s944 + $0xc] sm:$0xf]
  %v2579 = vld [vmem:[%s944 + $0x10] sm:$0xf]
  %v2580 = vld [vmem:[%s944 + $0x14] sm:$0xf]
  %v2581 = vld [vmem:[%s944 + $0x18] sm:$0xf]
  %v2582 = vld [vmem:[%s944 + $0x1c] sm:$0xf]
  %v2583 = vld [vmem:[%s944 + $0x20] sm:$0xf]
  %v2584 = vld [vmem:[%s944 + $0x24] sm:$0xf]
  %v2585 = vld [vmem:[%s944 + $0x28] sm:$0xf]
  %v2586 = vld [vmem:[%s944 + $0x2c] sm:$0xf]
  %v2587 = vld [vmem:[%s944 + $0x30] sm:$0xf]
  %v2588 = vld [vmem:[%s944 + $0x34] sm:$0xf]
  %v2589 = vld [vmem:[%s944 + $0x38] sm:$0xf]
  %v2590 = vld [vmem:[%s944 + $0x3c] sm:$0xf]
  %v2591 = vld [vmem:[%s944 + $0x40] sm:$0xf]
  %v2592 = vld [vmem:[%s944 + $0x44] sm:$0xf]
  %v2593 = vld [vmem:[%s944 + $0x48] sm:$0xf]
  %v2594 = vld [vmem:[%s944 + $0x4c] sm:$0xf]
  %v2595 = vld [vmem:[%s944 + $0x50] sm:$0xf]
  %v2596 = vld [vmem:[%s944 + $0x54] sm:$0xf]
  %v2597 = vld [vmem:[%s944 + $0x58] sm:$0xf]
  %v2598 = vld [vmem:[%s944 + $0x5c] sm:$0xf]
  %v2599 = vld [vmem:[%s944 + $0x60] sm:$0xf]
  %v2600 = vld [vmem:[%s944 + $0x64] sm:$0xf]
  %v2601 = vld [vmem:[%s944 + $0x68] sm:$0xf]
  %v2602 = vld [vmem:[%s944 + $0x6c] sm:$0xf]
  %v2603 = vld [vmem:[%s944 + $0x70] sm:$0xf]
  %v2604 = vld [vmem:[%s944 + $0x74] sm:$0xf]
  %v2605 = vld [vmem:[%s944 + $0x78] sm:$0xf]
  %v2606 = vld [vmem:[%s944 + $0x7c] sm:$0xf]
  %v2607 = vld [vmem:[%s944 + $0x80] sm:$0xf]
  %v2608 = vld [vmem:[%s944 + $0x84] sm:$0xf]
  %v2609 = vld [vmem:[%s944 + $0x88] sm:$0xf]
  %v2610 = vld [vmem:[%s944 + $0x8c] sm:$0xf]
  %v2611 = vld [vmem:[%s944 + $0x90] sm:$0xf]
  %v2612 = vld [vmem:[%s944 + $0x94] sm:$0xf]
  %v2613 = vld [vmem:[%s944 + $0x98] sm:$0xf]
  %v2614 = vld [vmem:[%s944 + $0x9c] sm:$0xf]
  %v2615 = vld [vmem:[%s944 + $0xa0] sm:$0xf]
  %v2616 = vld [vmem:[%s944 + $0xa4] sm:$0xf]
  %v2617 = vld [vmem:[%s944 + $0xa8] sm:$0xf]
  %v2618 = vld [vmem:[%s944 + $0xac] sm:$0xf]
  %v2619 = vld [vmem:[%s944 + $0xb0] sm:$0xf]
  %v2620 = vld [vmem:[%s944 + $0xb4] sm:$0xf]
  %v2621 = vld [vmem:[%s944 + $0xb8] sm:$0xf]
  %v2622 = vld [vmem:[%s944 + $0xbc] sm:$0xf]
  %v2655 = vunpack.c.l.b16 %v2543
  %v2656 = vunpack.c.h.b16 %v2543
  %v2657 = vunpack.c.l.b16 %v2544
  %v2658 = vunpack.c.l.b16 %v2545
  %v2659 = vunpack.c.h.b16 %v2545
  %v2660 = vunpack.c.l.b16 %v2546
  %v2661 = vunpack.c.l.b16 %v2547
  %v2662 = vunpack.c.h.b16 %v2547
  %v2663 = vunpack.c.l.b16 %v2548
  %v2664 = vunpack.c.l.b16 %v2549
  %v2665 = vunpack.c.h.b16 %v2549
  %v2666 = vunpack.c.l.b16 %v2550
  %v2667 = vunpack.c.l.b16 %v2551
  %v2668 = vunpack.c.h.b16 %v2551
  %v2669 = vunpack.c.l.b16 %v2552
  %v2670 = vunpack.c.l.b16 %v2553
  %v2671 = vunpack.c.h.b16 %v2553
  %v2672 = vunpack.c.l.b16 %v2554
  %v2673 = vunpack.c.l.b16 %v2555
  %v2674 = vunpack.c.h.b16 %v2555
  %v2675 = vunpack.c.l.b16 %v2556
  %v2676 = vunpack.c.l.b16 %v2557
  %v2677 = vunpack.c.h.b16 %v2557
  %v2678 = vunpack.c.l.b16 %v2558
  %v2679 = vunpack.c.l.b16 %v2559
  %v2680 = vunpack.c.h.b16 %v2559
  %v2681 = vunpack.c.l.b16 %v2560
  %v2682 = vunpack.c.l.b16 %v2561
  %v2683 = vunpack.c.h.b16 %v2561
  %v2684 = vunpack.c.l.b16 %v2562
  %v2685 = vunpack.c.l.b16 %v2563
  %v2686 = vunpack.c.h.b16 %v2563
  %v2687 = vunpack.c.l.b16 %v2564
  %v2688 = vunpack.c.l.b16 %v2565
  %v2689 = vunpack.c.h.b16 %v2565
  %v2690 = vunpack.c.l.b16 %v2566
  %v2691 = vunpack.c.l.b16 %v2567
  %v2692 = vunpack.c.h.b16 %v2567
  %v2693 = vunpack.c.l.b16 %v2568
  %v2694 = vunpack.c.l.b16 %v2569
  %v2695 = vunpack.c.h.b16 %v2569
  %v2696 = vunpack.c.l.b16 %v2570
  %v2697 = vunpack.c.l.b16 %v2571
  %v2698 = vunpack.c.h.b16 %v2571
  %v2699 = vunpack.c.l.b16 %v2572
  %v2700 = vunpack.c.l.b16 %v2573
  %v2701 = vunpack.c.h.b16 %v2573
  %v2702 = vunpack.c.l.b16 %v2574
  %v2703 = vpack.c.b16 %v2658, %v2655
  %v2704 = vpack.c.b16 %v2659, %v2656
  %v2705 = vpack.c.b16 %v2660, %v2657
  %v2706 = vpack.c.b16 %v2664, %v2661
  %v2707 = vpack.c.b16 %v2665, %v2662
  %v2708 = vpack.c.b16 %v2666, %v2663
  %v2709 = vpack.c.b16 %v2670, %v2667
  %v2710 = vpack.c.b16 %v2671, %v2668
  %v2711 = vpack.c.b16 %v2672, %v2669
  %v2712 = vpack.c.b16 %v2676, %v2673
  %v2713 = vpack.c.b16 %v2677, %v2674
  %v2714 = vpack.c.b16 %v2678, %v2675
  %v2715 = vpack.c.b16 %v2682, %v2679
  %v2716 = vpack.c.b16 %v2683, %v2680
  %v2717 = vpack.c.b16 %v2684, %v2681
  %v2718 = vpack.c.b16 %v2688, %v2685
  %v2719 = vpack.c.b16 %v2689, %v2686
  %v2720 = vpack.c.b16 %v2690, %v2687
  %v2721 = vpack.c.b16 %v2694, %v2691
  %v2722 = vpack.c.b16 %v2695, %v2692
  %v2723 = vpack.c.b16 %v2696, %v2693
  %v2724 = vpack.c.b16 %v2700, %v2697
  %v2725 = vpack.c.b16 %v2701, %v2698
  %v2726 = vpack.c.b16 %v2702, %v2699
  %v2799 = vunpack.c.l.b16 %v2575
  %v2800 = vunpack.c.l.b16 %v2576
  %v2801 = vunpack.c.l.b16 %v2577
  %v2802 = vunpack.c.l.b16 %v2578
  %v2803 = vunpack.c.l.b16 %v2579
  %v2804 = vunpack.c.l.b16 %v2580
  %v2805 = vunpack.c.l.b16 %v2581
  %v2806 = vunpack.c.l.b16 %v2582
  %v2807 = vunpack.c.l.b16 %v2583
  %v2808 = vunpack.c.l.b16 %v2584
  %v2809 = vunpack.c.l.b16 %v2585
  %v2810 = vunpack.c.l.b16 %v2586
  %v2811 = vunpack.c.l.b16 %v2587
  %v2812 = vunpack.c.l.b16 %v2588
  %v2813 = vunpack.c.l.b16 %v2589
  %v2814 = vunpack.c.l.b16 %v2590
  %v2815 = vunpack.c.l.b16 %v2591
  %v2816 = vunpack.c.l.b16 %v2592
  %v2817 = vunpack.c.l.b16 %v2593
  %v2818 = vunpack.c.l.b16 %v2594
  %v2819 = vunpack.c.l.b16 %v2595
  %v2820 = vunpack.c.l.b16 %v2596
  %v2821 = vunpack.c.l.b16 %v2597
  %v2822 = vunpack.c.l.b16 %v2598
  %v2823 = vunpack.c.l.b16 %v2599
  %v2824 = vunpack.c.l.b16 %v2600
  %v2825 = vunpack.c.l.b16 %v2601
  %v2826 = vunpack.c.l.b16 %v2602
  %v2827 = vunpack.c.l.b16 %v2603
  %v2828 = vunpack.c.l.b16 %v2604
  %v2829 = vunpack.c.l.b16 %v2605
  %v2830 = vunpack.c.l.b16 %v2606
  %v2831 = vunpack.c.l.b16 %v2607
  %v2832 = vunpack.c.l.b16 %v2608
  %v2833 = vunpack.c.l.b16 %v2609
  %v2834 = vunpack.c.l.b16 %v2610
  %v2835 = vunpack.c.l.b16 %v2611
  %v2836 = vunpack.c.l.b16 %v2612
  %v2837 = vunpack.c.l.b16 %v2613
  %v2838 = vunpack.c.l.b16 %v2614
  %v2839 = vunpack.c.l.b16 %v2615
  %v2840 = vunpack.c.l.b16 %v2616
  %v2841 = vunpack.c.l.b16 %v2617
  %v2842 = vunpack.c.l.b16 %v2618
  %v2843 = vunpack.c.l.b16 %v2619
  %v2844 = vunpack.c.l.b16 %v2620
  %v2845 = vunpack.c.l.b16 %v2621
  %v2846 = vunpack.c.l.b16 %v2622
  %v2847 = vpack.c.b16 %v2800, %v2799
  %v2848 = vpack.c.b16 %v2802, %v2801
  %v2849 = vpack.c.b16 %v2804, %v2803
  %v2850 = vpack.c.b16 %v2806, %v2805
  %v2851 = vpack.c.b16 %v2808, %v2807
  %v2852 = vpack.c.b16 %v2810, %v2809
  %v2853 = vpack.c.b16 %v2812, %v2811
  %v2854 = vpack.c.b16 %v2814, %v2813
  %v2855 = vpack.c.b16 %v2816, %v2815
  %v2856 = vpack.c.b16 %v2818, %v2817
  %v2857 = vpack.c.b16 %v2820, %v2819
  %v2858 = vpack.c.b16 %v2822, %v2821
  %v2859 = vpack.c.b16 %v2824, %v2823
  %v2860 = vpack.c.b16 %v2826, %v2825
  %v2861 = vpack.c.b16 %v2828, %v2827
  %v2862 = vpack.c.b16 %v2830, %v2829
  %v2863 = vpack.c.b16 %v2832, %v2831
  %v2864 = vpack.c.b16 %v2834, %v2833
  %v2865 = vpack.c.b16 %v2836, %v2835
  %v2866 = vpack.c.b16 %v2838, %v2837
  %v2867 = vpack.c.b16 %v2840, %v2839
  %v2868 = vpack.c.b16 %v2842, %v2841
  %v2869 = vpack.c.b16 %v2844, %v2843
  %v2870 = vpack.c.b16 %v2846, %v2845
  %2895 = vmatpush.bf16.msra.mxu0 %v2854
  %2896 = vmatpush.bf16.msra.mxu0 %v2853
  %2897 = vmatpush.bf16.msra.mxu0 %v2852
  %2898 = vmatpush.bf16.msra.mxu0 %v2851
  %2899 = vmatpush.bf16.msra.mxu0 %v2850
  %2900 = vmatpush.bf16.msra.mxu0 %v2849
  %2901 = vmatpush.bf16.msra.mxu0 %v2848
  %2902 = vmatpush.bf16.msra.mxu0 %v2847
  %2903 = vmatmul.bf16.gmra.mxu0 %v2703
  %v2904 = vpop.f32.mrf.mxu0
  %v2905 = vadd.f32 0.0, %v2904
  %v2906 = vpop.f32.mrf.mxu0
  %v2907 = vadd.f32 0.0, %v2906
  %2908 = vmatmul.bf16.gmra.mxu0 %v2706
  %v2909 = vpop.f32.mrf.mxu0
  %v2910 = vadd.f32 0.0, %v2909
  %v2911 = vpop.f32.mrf.mxu0
  %v2912 = vadd.f32 0.0, %v2911
  %2913 = vmatmul.bf16.gmra.mxu0 %v2709
  %v2914 = vpop.f32.mrf.mxu0
  %v2915 = vadd.f32 0.0, %v2914
  %v2916 = vpop.f32.mrf.mxu0
  %v2917 = vadd.f32 0.0, %v2916
  %2918 = vmatmul.bf16.gmra.mxu0 %v2712
  %v2919 = vpop.f32.mrf.mxu0
  %v2920 = vadd.f32 0.0, %v2919
  %v2921 = vpop.f32.mrf.mxu0
  %v2922 = vadd.f32 0.0, %v2921
  %2923 = vmatmul.bf16.gmra.mxu0 %v2715
  %v2924 = vpop.f32.mrf.mxu0
  %v2925 = vadd.f32 0.0, %v2924
  %v2926 = vpop.f32.mrf.mxu0
  %v2927 = vadd.f32 0.0, %v2926
  %2928 = vmatmul.bf16.gmra.mxu0 %v2718
  %v2929 = vpop.f32.mrf.mxu0
  %v2930 = vadd.f32 0.0, %v2929
  %v2931 = vpop.f32.mrf.mxu0
  %v2932 = vadd.f32 0.0, %v2931
  %2933 = vmatmul.bf16.gmra.mxu0 %v2721
  %v2934 = vpop.f32.mrf.mxu0
  %v2935 = vadd.f32 0.0, %v2934
  %v2936 = vpop.f32.mrf.mxu0
  %v2937 = vadd.f32 0.0, %v2936
  %2938 = vmatmul.bf16.gmra.mxu0 %v2724
  %v2939 = vpop.f32.mrf.mxu0
  %v2940 = vadd.f32 0.0, %v2939
  %v2941 = vpop.f32.mrf.mxu0
  %v2942 = vadd.f32 0.0, %v2941
  %2943 = vdwg.mxu0
  %2944 = vmatpush.bf16.msra.mxu0 %v2862
  %2945 = vmatpush.bf16.msra.mxu0 %v2861
  %2946 = vmatpush.bf16.msra.mxu0 %v2860
  %2947 = vmatpush.bf16.msra.mxu0 %v2859
  %2948 = vmatpush.bf16.msra.mxu0 %v2858
  %2949 = vmatpush.bf16.msra.mxu0 %v2857
  %2950 = vmatpush.bf16.msra.mxu0 %v2856
  %2951 = vmatpush.bf16.msra.mxu0 %v2855
  %2952 = vmatmul.bf16.gmra.mxu0 %v2704
  %v2953 = vpop.f32.mrf.mxu0
  %v2954 = vadd.f32 %v2905, %v2953
  %v2955 = vpop.f32.mrf.mxu0
  %v2956 = vadd.f32 %v2907, %v2955
  %2957 = vmatmul.bf16.gmra.mxu0 %v2707
  %v2958 = vpop.f32.mrf.mxu0
  %v2959 = vadd.f32 %v2910, %v2958
  %v2960 = vpop.f32.mrf.mxu0
  %v2961 = vadd.f32 %v2912, %v2960
  %2962 = vmatmul.bf16.gmra.mxu0 %v2710
  %v2963 = vpop.f32.mrf.mxu0
  %v2964 = vadd.f32 %v2915, %v2963
  %v2965 = vpop.f32.mrf.mxu0
  %v2966 = vadd.f32 %v2917, %v2965
  %2967 = vmatmul.bf16.gmra.mxu0 %v2713
  %v2968 = vpop.f32.mrf.mxu0
  %v2969 = vadd.f32 %v2920, %v2968
  %v2970 = vpop.f32.mrf.mxu0
  %v2971 = vadd.f32 %v2922, %v2970
  %2972 = vmatmul.bf16.gmra.mxu0 %v2716
  %v2973 = vpop.f32.mrf.mxu0
  %v2974 = vadd.f32 %v2925, %v2973
  %v2975 = vpop.f32.mrf.mxu0
  %v2976 = vadd.f32 %v2927, %v2975
  %2977 = vmatmul.bf16.gmra.mxu0 %v2719
  %v2978 = vpop.f32.mrf.mxu0
  %v2979 = vadd.f32 %v2930, %v2978
  %v2980 = vpop.f32.mrf.mxu0
  %v2981 = vadd.f32 %v2932, %v2980
  %2982 = vmatmul.bf16.gmra.mxu0 %v2722
  %v2983 = vpop.f32.mrf.mxu0
  %v2984 = vadd.f32 %v2935, %v2983
  %v2985 = vpop.f32.mrf.mxu0
  %v2986 = vadd.f32 %v2937, %v2985
  %2987 = vmatmul.bf16.gmra.mxu0 %v2725
  %v2988 = vpop.f32.mrf.mxu0
  %v2989 = vadd.f32 %v2940, %v2988
  %v2990 = vpop.f32.mrf.mxu0
  %v2991 = vadd.f32 %v2942, %v2990
  %2992 = vdwg.mxu0
  %2993 = vmatpush.bf16.msra.mxu0 %v2870
  %2994 = vmatpush.bf16.msra.mxu0 %v2869
  %2995 = vmatpush.bf16.msra.mxu0 %v2868
  %2996 = vmatpush.bf16.msra.mxu0 %v2867
  %2997 = vmatpush.bf16.msra.mxu0 %v2866
  %2998 = vmatpush.bf16.msra.mxu0 %v2865
  %2999 = vmatpush.bf16.msra.mxu0 %v2864
  %3000 = vmatpush.bf16.msra.mxu0 %v2863
  %3001 = vmatmul.bf16.gmra.mxu0 %v2705
  %v3002 = vpop.f32.mrf.mxu0
  %v3003 = vadd.f32 %v2954, %v3002
  %v3004 = vpop.f32.mrf.mxu0
  %v3005 = vadd.f32 %v2956, %v3004
  %3006 = vmatmul.bf16.gmra.mxu0 %v2708
  %v3007 = vpop.f32.mrf.mxu0
  %v3008 = vadd.f32 %v2959, %v3007
  %v3009 = vpop.f32.mrf.mxu0
  %v3010 = vadd.f32 %v2961, %v3009
  %3011 = vmatmul.bf16.gmra.mxu0 %v2711
  %v3012 = vpop.f32.mrf.mxu0
  %v3013 = vadd.f32 %v2964, %v3012
  %v3014 = vpop.f32.mrf.mxu0
  %v3015 = vadd.f32 %v2966, %v3014
  %3016 = vmatmul.bf16.gmra.mxu0 %v2714
  %v3017 = vpop.f32.mrf.mxu0
  %v3018 = vadd.f32 %v2969, %v3017
  %v3019 = vpop.f32.mrf.mxu0
  %v3020 = vadd.f32 %v2971, %v3019
  %3021 = vmatmul.bf16.gmra.mxu0 %v2717
  %v3022 = vpop.f32.mrf.mxu0
  %v3023 = vadd.f32 %v2974, %v3022
  %v3024 = vpop.f32.mrf.mxu0
  %v3025 = vadd.f32 %v2976, %v3024
  %3026 = vmatmul.bf16.gmra.mxu0 %v2720
  %v3027 = vpop.f32.mrf.mxu0
  %v3028 = vadd.f32 %v2979, %v3027
  %v3029 = vpop.f32.mrf.mxu0
  %v3030 = vadd.f32 %v2981, %v3029
  %3031 = vmatmul.bf16.gmra.mxu0 %v2723
  %v3032 = vpop.f32.mrf.mxu0
  %v3033 = vadd.f32 %v2984, %v3032
  %v3034 = vpop.f32.mrf.mxu0
  %v3035 = vadd.f32 %v2986, %v3034
  %3036 = vmatmul.bf16.gmra.mxu0 %v2726
  %v3037 = vpop.f32.mrf.mxu0
  %v3038 = vadd.f32 %v2989, %v3037
  %v3039 = vpop.f32.mrf.mxu0
  %v3040 = vadd.f32 %v2991, %v3039
  %3041 = vdwg.mxu0
  %v3042 = vadd.f32 %v2504, %v3003
  %v3043 = vadd.f32 %v2506, %v3005
  %v3044 = vadd.f32 %v2509, %v3008
  %v3045 = vadd.f32 %v2511, %v3010
  %v3046 = vadd.f32 %v2514, %v3013
  %v3047 = vadd.f32 %v2516, %v3015
  %v3048 = vadd.f32 %v2519, %v3018
  %v3049 = vadd.f32 %v2521, %v3020
  %v3050 = vadd.f32 %v2524, %v3023
  %v3051 = vadd.f32 %v2526, %v3025
  %v3052 = vadd.f32 %v2529, %v3028
  %v3053 = vadd.f32 %v2531, %v3030
  %v3054 = vadd.f32 %v2534, %v3033
  %v3055 = vadd.f32 %v2536, %v3035
  %v3056 = vadd.f32 %v2539, %v3038
  %v3057 = vadd.f32 %v2541, %v3040
  %v3058 = vld [vmem:[%s4] sm:$0x1]
  %v3060 = vperm.slane %v3058, 0
  %v3062 = vadd.f32 %v3042, %v3060
  %v3063 = vadd.f32 %v3043, %v3060
  %v3064 = vadd.f32 %v3044, %v3060
  %v3065 = vadd.f32 %v3045, %v3060
  %v3066 = vadd.f32 %v3046, %v3060
  %v3067 = vadd.f32 %v3047, %v3060
  %v3068 = vadd.f32 %v3048, %v3060
  %v3069 = vadd.f32 %v3049, %v3060
  %v3070 = vadd.f32 %v3050, %v3060
  %v3071 = vadd.f32 %v3051, %v3060
  %v3072 = vadd.f32 %v3052, %v3060
  %v3073 = vadd.f32 %v3053, %v3060
  %v3074 = vadd.f32 %v3054, %v3060
  %v3075 = vadd.f32 %v3055, %v3060
  %v3076 = vadd.f32 %v3056, %v3060
  %v3077 = vadd.f32 %v3057, %v3060
  %v3078 = vld [vmem:[%s1 + $0x80] sm:$0xff]
  %v3079 = vld [vmem:[%s1 + $0x88] sm:$0xff]
  %v3080 = vld [vmem:[%s1 + $0x90] sm:$0xff]
  %v3081 = vld [vmem:[%s1 + $0x98] sm:$0xff]
  %v3082 = vld [vmem:[%s1 + $0xa0] sm:$0xff]
  %v3083 = vld [vmem:[%s1 + $0xa8] sm:$0xff]
  %v3084 = vld [vmem:[%s1 + $0xb0] sm:$0xff]
  %v3085 = vld [vmem:[%s1 + $0xb8] sm:$0xff]
  %v3086 = vld [vmem:[%s1 + $0xc0] sm:$0xff]
  %v3087 = vld [vmem:[%s1 + $0xc8] sm:$0xff]
  %v3088 = vld [vmem:[%s1 + $0xd0] sm:$0xff]
  %v3089 = vld [vmem:[%s1 + $0xd8] sm:$0xff]
  %v3090 = vld [vmem:[%s1 + $0xe0] sm:$0xff]
  %v3091 = vld [vmem:[%s1 + $0xe8] sm:$0xff]
  %v3092 = vld [vmem:[%s1 + $0xf0] sm:$0xff]
  %v3093 = vld [vmem:[%s1 + $0xf8] sm:$0xff]
  %vm3094 = vcmp.gt.f32.partialorder %v3078, 0.0
  %vm3095 = vcmp.gt.f32.partialorder %v3079, 0.0
  %vm3096 = vcmp.gt.f32.partialorder %v3080, 0.0
  %vm3097 = vcmp.gt.f32.partialorder %v3081, 0.0
  %vm3098 = vcmp.gt.f32.partialorder %v3082, 0.0
  %vm3099 = vcmp.gt.f32.partialorder %v3083, 0.0
  %vm3100 = vcmp.gt.f32.partialorder %v3084, 0.0
  %vm3101 = vcmp.gt.f32.partialorder %v3085, 0.0
  %vm3102 = vcmp.gt.f32.partialorder %v3086, 0.0
  %vm3103 = vcmp.gt.f32.partialorder %v3087, 0.0
  %vm3104 = vcmp.gt.f32.partialorder %v3088, 0.0
  %vm3105 = vcmp.gt.f32.partialorder %v3089, 0.0
  %vm3106 = vcmp.gt.f32.partialorder %v3090, 0.0
  %vm3107 = vcmp.gt.f32.partialorder %v3091, 0.0
  %vm3108 = vcmp.gt.f32.partialorder %v3092, 0.0
  %vm3109 = vcmp.gt.f32.partialorder %v3093, 0.0
  %v3110 = vsel %vm3094, 1, 0
  %v3111 = vsel %vm3095, 1, 0
  %v3112 = vsel %vm3096, 1, 0
  %v3113 = vsel %vm3097, 1, 0
  %v3114 = vsel %vm3098, 1, 0
  %v3115 = vsel %vm3099, 1, 0
  %v3116 = vsel %vm3100, 1, 0
  %v3117 = vsel %vm3101, 1, 0
  %v3118 = vsel %vm3102, 1, 0
  %v3119 = vsel %vm3103, 1, 0
  %v3120 = vsel %vm3104, 1, 0
  %v3121 = vsel %vm3105, 1, 0
  %v3122 = vsel %vm3106, 1, 0
  %v3123 = vsel %vm3107, 1, 0
  %v3124 = vsel %vm3108, 1, 0
  %v3125 = vsel %vm3109, 1, 0
  %3126 = vset.pattern.permute.xlu0 0
  %3127 = vperm.xlu0 %3126, %v3110
  %v3128 = vpop.permute.xlu0 %3127
  %3129 = vset.pattern.permute.xlu0 0
  %3130 = vperm.xlu0 %3129, %v3111
  %v3131 = vpop.permute.xlu0 %3130
  %3132 = vset.pattern.permute.xlu0 0
  %3133 = vperm.xlu0 %3132, %v3112
  %v3134 = vpop.permute.xlu0 %3133
  %3135 = vset.pattern.permute.xlu0 0
  %3136 = vperm.xlu0 %3135, %v3113
  %v3137 = vpop.permute.xlu0 %3136
  %3138 = vset.pattern.permute.xlu0 0
  %3139 = vperm.xlu0 %3138, %v3114
  %v3140 = vpop.permute.xlu0 %3139
  %3141 = vset.pattern.permute.xlu0 0
  %3142 = vperm.xlu0 %3141, %v3115
  %v3143 = vpop.permute.xlu0 %3142
  %3144 = vset.pattern.permute.xlu0 0
  %3145 = vperm.xlu0 %3144, %v3116
  %v3146 = vpop.permute.xlu0 %3145
  %3147 = vset.pattern.permute.xlu0 0
  %3148 = vperm.xlu0 %3147, %v3117
  %v3149 = vpop.permute.xlu0 %3148
  %3150 = vset.pattern.permute.xlu0 0
  %3151 = vperm.xlu0 %3150, %v3118
  %v3152 = vpop.permute.xlu0 %3151
  %3153 = vset.pattern.permute.xlu0 0
  %3154 = vperm.xlu0 %3153, %v3119
  %v3155 = vpop.permute.xlu0 %3154
  %3156 = vset.pattern.permute.xlu0 0
  %3157 = vperm.xlu0 %3156, %v3120
  %v3158 = vpop.permute.xlu0 %3157
  %3159 = vset.pattern.permute.xlu0 0
  %3160 = vperm.xlu0 %3159, %v3121
  %v3161 = vpop.permute.xlu0 %3160
  %3162 = vset.pattern.permute.xlu0 0
  %3163 = vperm.xlu0 %3162, %v3122
  %v3164 = vpop.permute.xlu0 %3163
  %3165 = vset.pattern.permute.xlu0 0
  %3166 = vperm.xlu0 %3165, %v3123
  %v3167 = vpop.permute.xlu0 %3166
  %3168 = vset.pattern.permute.xlu0 0
  %3169 = vperm.xlu0 %3168, %v3124
  %v3170 = vpop.permute.xlu0 %3169
  %3171 = vset.pattern.permute.xlu0 0
  %3172 = vperm.xlu0 %3171, %v3125
  %v3173 = vpop.permute.xlu0 %3172
  %vm3174 = vcmp.eq.s32.totalorder %v3128, 1
  %vm3175 = vcmp.eq.s32.totalorder %v3131, 1
  %vm3176 = vcmp.eq.s32.totalorder %v3134, 1
  %vm3177 = vcmp.eq.s32.totalorder %v3137, 1
  %vm3178 = vcmp.eq.s32.totalorder %v3140, 1
  %vm3179 = vcmp.eq.s32.totalorder %v3143, 1
  %vm3180 = vcmp.eq.s32.totalorder %v3146, 1
  %vm3181 = vcmp.eq.s32.totalorder %v3149, 1
  %vm3182 = vcmp.eq.s32.totalorder %v3152, 1
  %vm3183 = vcmp.eq.s32.totalorder %v3155, 1
  %vm3184 = vcmp.eq.s32.totalorder %v3158, 1
  %vm3185 = vcmp.eq.s32.totalorder %v3161, 1
  %vm3186 = vcmp.eq.s32.totalorder %v3164, 1
  %vm3187 = vcmp.eq.s32.totalorder %v3167, 1
  %vm3188 = vcmp.eq.s32.totalorder %v3170, 1
  %vm3189 = vcmp.eq.s32.totalorder %v3173, 1
  %v3190 = vsel %vm3174, %v3062, 0.0
  %v3191 = vsel %vm3175, %v3063, 0.0
  %v3192 = vsel %vm3176, %v3064, 0.0
  %v3193 = vsel %vm3177, %v3065, 0.0
  %v3194 = vsel %vm3178, %v3066, 0.0
  %v3195 = vsel %vm3179, %v3067, 0.0
  %v3196 = vsel %vm3180, %v3068, 0.0
  %v3197 = vsel %vm3181, %v3069, 0.0
  %v3198 = vsel %vm3182, %v3070, 0.0
  %v3199 = vsel %vm3183, %v3071, 0.0
  %v3200 = vsel %vm3184, %v3072, 0.0
  %v3201 = vsel %vm3185, %v3073, 0.0
  %v3202 = vsel %vm3186, %v3074, 0.0
  %v3203 = vsel %vm3187, %v3075, 0.0
  %v3204 = vsel %vm3188, %v3076, 0.0
  %v3205 = vsel %vm3189, %v3077, 0.0
  %v3206 = vsel %vm1576, %v3190, 0.0
  %v3207 = vsel %vm1576, %v3191, 0.0
  %v3208 = vadd.f32 %v3206, %v3207
  %v3209 = vsel %vm1576, %v3192, 0.0
  %v3210 = vadd.f32 %v3208, %v3209
  %v3211 = vsel %vm1576, %v3193, 0.0
  %v3212 = vadd.f32 %v3210, %v3211
  %v3213 = vsel %vm1576, %v3194, 0.0
  %v3214 = vadd.f32 %v3212, %v3213
  %v3215 = vsel %vm1576, %v3195, 0.0
  %v3216 = vadd.f32 %v3214, %v3215
  %v3217 = vsel %vm1576, %v3196, 0.0
  %v3218 = vadd.f32 %v3216, %v3217
  %v3219 = vsel %vm1576, %v3197, 0.0
  %v3220 = vadd.f32 %v3218, %v3219
  %v3221 = vsel %vm1576, %v3198, 0.0
  %v3222 = vadd.f32 %v3220, %v3221
  %v3223 = vsel %vm1576, %v3199, 0.0
  %v3224 = vadd.f32 %v3222, %v3223
  %v3225 = vsel %vm1576, %v3200, 0.0
  %v3226 = vadd.f32 %v3224, %v3225
  %v3227 = vsel %vm1576, %v3201, 0.0
  %v3228 = vadd.f32 %v3226, %v3227
  %v3229 = vsel %vm1576, %v3202, 0.0
  %v3230 = vadd.f32 %v3228, %v3229
  %v3231 = vsel %vm1576, %v3203, 0.0
  %v3232 = vadd.f32 %v3230, %v3231
  %v3233 = vsel %vm1576, %v3204, 0.0
  %v3234 = vadd.f32 %v3232, %v3233
  %v3235 = vsel %vm1576, %v3205, 0.0
  %v3236 = vadd.f32 %v3234, %v3235
  %v3237 = vrot.slane %v3236, 4
  %v3238 = vadd.f32 %v3236, %v3237
  %v3239 = vrot.slane %v3238, 2
  %v3240 = vadd.f32 %v3238, %v3239
  %v3241 = vrot.slane %v3240, 1
  %v3242 = vadd.f32 %v3240, %v3241
  %v3243 = vadd.f32 %v1614, %v3242
  %v3244 = vmul.f32 %v3190, %v3190
  %v3245 = vmul.f32 %v3191, %v3191
  %v3246 = vmul.f32 %v3192, %v3192
  %v3247 = vmul.f32 %v3193, %v3193
  %v3248 = vmul.f32 %v3194, %v3194
  %v3249 = vmul.f32 %v3195, %v3195
  %v3250 = vmul.f32 %v3196, %v3196
  %v3251 = vmul.f32 %v3197, %v3197
  %v3252 = vmul.f32 %v3198, %v3198
  %v3253 = vmul.f32 %v3199, %v3199
  %v3254 = vmul.f32 %v3200, %v3200
  %v3255 = vmul.f32 %v3201, %v3201
  %v3256 = vmul.f32 %v3202, %v3202
  %v3257 = vmul.f32 %v3203, %v3203
  %v3258 = vmul.f32 %v3204, %v3204
  %v3259 = vmul.f32 %v3205, %v3205
  %v3260 = vsel %vm1576, %v3244, 0.0
  %v3261 = vsel %vm1576, %v3245, 0.0
  %v3262 = vadd.f32 %v3260, %v3261
  %v3263 = vsel %vm1576, %v3246, 0.0
  %v3264 = vadd.f32 %v3262, %v3263
  %v3265 = vsel %vm1576, %v3247, 0.0
  %v3266 = vadd.f32 %v3264, %v3265
  %v3267 = vsel %vm1576, %v3248, 0.0
  %v3268 = vadd.f32 %v3266, %v3267
  %v3269 = vsel %vm1576, %v3249, 0.0
  %v3270 = vadd.f32 %v3268, %v3269
  %v3271 = vsel %vm1576, %v3250, 0.0
  %v3272 = vadd.f32 %v3270, %v3271
  %v3273 = vsel %vm1576, %v3251, 0.0
  %v3274 = vadd.f32 %v3272, %v3273
  %v3275 = vsel %vm1576, %v3252, 0.0
  %v3276 = vadd.f32 %v3274, %v3275
  %v3277 = vsel %vm1576, %v3253, 0.0
  %v3278 = vadd.f32 %v3276, %v3277
  %v3279 = vsel %vm1576, %v3254, 0.0
  %v3280 = vadd.f32 %v3278, %v3279
  %v3281 = vsel %vm1576, %v3255, 0.0
  %v3282 = vadd.f32 %v3280, %v3281
  %v3283 = vsel %vm1576, %v3256, 0.0
  %v3284 = vadd.f32 %v3282, %v3283
  %v3285 = vsel %vm1576, %v3257, 0.0
  %v3286 = vadd.f32 %v3284, %v3285
  %v3287 = vsel %vm1576, %v3258, 0.0
  %v3288 = vadd.f32 %v3286, %v3287
  %v3289 = vsel %vm1576, %v3259, 0.0
  %v3290 = vadd.f32 %v3288, %v3289
  %v3291 = vrot.slane %v3290, 4
  %v3292 = vadd.f32 %v3290, %v3291
  %v3293 = vrot.slane %v3292, 2
  %v3294 = vadd.f32 %v3292, %v3293
  %v3295 = vrot.slane %v3294, 1
  %v3296 = vadd.f32 %v3294, %v3295
  %v3297 = vadd.f32 %v1668, %v3296
  %3298 = vst.msk [vmem:[#allocation2 + $0x80] sm:$0xff] %vm1576, %v3062
  %3299 = vst.msk [vmem:[#allocation2 + $0x88] sm:$0xff] %vm1576, %v3063
  %3300 = vst.msk [vmem:[#allocation2 + $0x90] sm:$0xff] %vm1576, %v3064
  %3301 = vst.msk [vmem:[#allocation2 + $0x98] sm:$0xff] %vm1576, %v3065
  %3302 = vst.msk [vmem:[#allocation2 + $0xa0] sm:$0xff] %vm1576, %v3066
  %3303 = vst.msk [vmem:[#allocation2 + $0xa8] sm:$0xff] %vm1576, %v3067
  %3304 = vst.msk [vmem:[#allocation2 + $0xb0] sm:$0xff] %vm1576, %v3068
  %3305 = vst.msk [vmem:[#allocation2 + $0xb8] sm:$0xff] %vm1576, %v3069
  %3306 = vst.msk [vmem:[#allocation2 + $0xc0] sm:$0xff] %vm1576, %v3070
  %3307 = vst.msk [vmem:[#allocation2 + $0xc8] sm:$0xff] %vm1576, %v3071
  %3308 = vst.msk [vmem:[#allocation2 + $0xd0] sm:$0xff] %vm1576, %v3072
  %3309 = vst.msk [vmem:[#allocation2 + $0xd8] sm:$0xff] %vm1576, %v3073
  %3310 = vst.msk [vmem:[#allocation2 + $0xe0] sm:$0xff] %vm1576, %v3074
  %3311 = vst.msk [vmem:[#allocation2 + $0xe8] sm:$0xff] %vm1576, %v3075
  %3312 = vst.msk [vmem:[#allocation2 + $0xf0] sm:$0xff] %vm1576, %v3076
  %3313 = vst.msk [vmem:[#allocation2 + $0xf8] sm:$0xff] %vm1576, %v3077
  %v3314 = vld [vmem:[%s0 + $0x180] sm:$0xff]
  %v3315 = vld [vmem:[%s0 + $0x188] sm:$0xf]
  %v3316 = vld [vmem:[%s0 + $0x18c] sm:$0xff]
  %v3317 = vld [vmem:[%s0 + $0x194] sm:$0xf]
  %v3318 = vld [vmem:[%s0 + $0x198] sm:$0xff]
  %v3319 = vld [vmem:[%s0 + $0x1a0] sm:$0xf]
  %v3320 = vld [vmem:[%s0 + $0x1a4] sm:$0xff]
  %v3321 = vld [vmem:[%s0 + $0x1ac] sm:$0xf]
  %v3322 = vld [vmem:[%s0 + $0x1b0] sm:$0xff]
  %v3323 = vld [vmem:[%s0 + $0x1b8] sm:$0xf]
  %v3324 = vld [vmem:[%s0 + $0x1bc] sm:$0xff]
  %v3325 = vld [vmem:[%s0 + $0x1c4] sm:$0xf]
  %v3326 = vld [vmem:[%s0 + $0x1c8] sm:$0xff]
  %v3327 = vld [vmem:[%s0 + $0x1d0] sm:$0xf]
  %v3328 = vld [vmem:[%s0 + $0x1d4] sm:$0xff]
  %v3329 = vld [vmem:[%s0 + $0x1dc] sm:$0xf]
  %v3330 = vld [vmem:[%s0 + $0x1e0] sm:$0xff]
  %v3331 = vld [vmem:[%s0 + $0x1e8] sm:$0xf]
  %v3332 = vld [vmem:[%s0 + $0x1ec] sm:$0xff]
  %v3333 = vld [vmem:[%s0 + $0x1f4] sm:$0xf]
  %v3334 = vld [vmem:[%s0 + $0x1f8] sm:$0xff]
  %v3335 = vld [vmem:[%s0 + $0x200] sm:$0xf]
  %v3336 = vld [vmem:[%s0 + $0x204] sm:$0xff]
  %v3337 = vld [vmem:[%s0 + $0x20c] sm:$0xf]
  %v3338 = vld [vmem:[%s0 + $0x210] sm:$0xff]
  %v3339 = vld [vmem:[%s0 + $0x218] sm:$0xf]
  %v3340 = vld [vmem:[%s0 + $0x21c] sm:$0xff]
  %v3341 = vld [vmem:[%s0 + $0x224] sm:$0xf]
  %v3342 = vld [vmem:[%s0 + $0x228] sm:$0xff]
  %v3343 = vld [vmem:[%s0 + $0x230] sm:$0xf]
  %v3344 = vld [vmem:[%s0 + $0x234] sm:$0xff]
  %v3345 = vld [vmem:[%s0 + $0x23c] sm:$0xf]
  %v3346 = vld [vmem:[%s3] sm:$0xf]
  %v3347 = vld [vmem:[%s3 + $0x4] sm:$0xf]
  %v3348 = vld [vmem:[%s3 + $0x8] sm:$0xf]
  %v3349 = vld [vmem:[%s3 + $0xc] sm:$0xf]
  %v3350 = vld [vmem:[%s3 + $0x10] sm:$0xf]
  %v3351 = vld [vmem:[%s3 + $0x14] sm:$0xf]
  %v3352 = vld [vmem:[%s3 + $0x18] sm:$0xf]
  %v3353 = vld [vmem:[%s3 + $0x1c] sm:$0xf]
  %v3354 = vld [vmem:[%s3 + $0x20] sm:$0xf]
  %v3355 = vld [vmem:[%s3 + $0x24] sm:$0xf]
  %v3356 = vld [vmem:[%s3 + $0x28] sm:$0xf]
  %v3357 = vld [vmem:[%s3 + $0x2c] sm:$0xf]
  %v3358 = vld [vmem:[%s3 + $0x30] sm:$0xf]
  %v3359 = vld [vmem:[%s3 + $0x34] sm:$0xf]
  %v3360 = vld [vmem:[%s3 + $0x38] sm:$0xf]
  %v3361 = vld [vmem:[%s3 + $0x3c] sm:$0xf]
  %v3362 = vld [vmem:[%s3 + $0x40] sm:$0xf]
  %v3363 = vld [vmem:[%s3 + $0x44] sm:$0xf]
  %v3364 = vld [vmem:[%s3 + $0x48] sm:$0xf]
  %v3365 = vld [vmem:[%s3 + $0x4c] sm:$0xf]
  %v3366 = vld [vmem:[%s3 + $0x50] sm:$0xf]
  %v3367 = vld [vmem:[%s3 + $0x54] sm:$0xf]
  %v3368 = vld [vmem:[%s3 + $0x58] sm:$0xf]
  %v3369 = vld [vmem:[%s3 + $0x5c] sm:$0xf]
  %v3370 = vld [vmem:[%s3 + $0x60] sm:$0xf]
  %v3371 = vld [vmem:[%s3 + $0x64] sm:$0xf]
  %v3372 = vld [vmem:[%s3 + $0x68] sm:$0xf]
  %v3373 = vld [vmem:[%s3 + $0x6c] sm:$0xf]
  %v3374 = vld [vmem:[%s3 + $0x70] sm:$0xf]
  %v3375 = vld [vmem:[%s3 + $0x74] sm:$0xf]
  %v3376 = vld [vmem:[%s3 + $0x78] sm:$0xf]
  %v3377 = vld [vmem:[%s3 + $0x7c] sm:$0xf]
  %v3378 = vld [vmem:[%s3 + $0x80] sm:$0xf]
  %v3379 = vld [vmem:[%s3 + $0x84] sm:$0xf]
  %v3380 = vld [vmem:[%s3 + $0x88] sm:$0xf]
  %v3381 = vld [vmem:[%s3 + $0x8c] sm:$0xf]
  %v3382 = vld [vmem:[%s3 + $0x90] sm:$0xf]
  %v3383 = vld [vmem:[%s3 + $0x94] sm:$0xf]
  %v3384 = vld [vmem:[%s3 + $0x98] sm:$0xf]
  %v3385 = vld [vmem:[%s3 + $0x9c] sm:$0xf]
  %v3386 = vld [vmem:[%s3 + $0xa0] sm:$0xf]
  %v3387 = vld [vmem:[%s3 + $0xa4] sm:$0xf]
  %v3388 = vld [vmem:[%s3 + $0xa8] sm:$0xf]
  %v3389 = vld [vmem:[%s3 + $0xac] sm:$0xf]
  %v3390 = vld [vmem:[%s3 + $0xb0] sm:$0xf]
  %v3391 = vld [vmem:[%s3 + $0xb4] sm:$0xf]
  %v3392 = vld [vmem:[%s3 + $0xb8] sm:$0xf]
  %v3393 = vld [vmem:[%s3 + $0xbc] sm:$0xf]
  %v3394 = vld [vmem:[%s0 + $0x240] sm:$0xff]
  %v3395 = vld [vmem:[%s0 + $0x248] sm:$0xf]
  %v3396 = vld [vmem:[%s0 + $0x24c] sm:$0xff]
  %v3397 = vld [vmem:[%s0 + $0x254] sm:$0xf]
  %v3398 = vld [vmem:[%s137] sm:$0xf]
  %v3399 = vld [vmem:[%s137 + $0x4] sm:$0xf]
  %v3400 = vld [vmem:[%s137 + $0x8] sm:$0xf]
  %v3401 = vld [vmem:[%s137 + $0xc] sm:$0xf]
  %v3402 = vld [vmem:[%s137 + $0x10] sm:$0xf]
  %v3403 = vld [vmem:[%s137 + $0x14] sm:$0xf]
  %v3404 = vld [vmem:[%s137 + $0x18] sm:$0xf]
  %v3405 = vld [vmem:[%s137 + $0x1c] sm:$0xf]
  %v3406 = vld [vmem:[%s137 + $0x20] sm:$0xf]
  %v3407 = vld [vmem:[%s137 + $0x24] sm:$0xf]
  %v3408 = vld [vmem:[%s137 + $0x28] sm:$0xf]
  %v3409 = vld [vmem:[%s137 + $0x2c] sm:$0xf]
  %v3410 = vld [vmem:[%s137 + $0x30] sm:$0xf]
  %v3411 = vld [vmem:[%s137 + $0x34] sm:$0xf]
  %v3412 = vld [vmem:[%s137 + $0x38] sm:$0xf]
  %v3413 = vld [vmem:[%s137 + $0x3c] sm:$0xf]
  %v3414 = vld [vmem:[%s137 + $0x40] sm:$0xf]
  %v3415 = vld [vmem:[%s137 + $0x44] sm:$0xf]
  %v3416 = vld [vmem:[%s137 + $0x48] sm:$0xf]
  %v3417 = vld [vmem:[%s137 + $0x4c] sm:$0xf]
  %v3418 = vld [vmem:[%s137 + $0x50] sm:$0xf]
  %v3419 = vld [vmem:[%s137 + $0x54] sm:$0xf]
  %v3420 = vld [vmem:[%s137 + $0x58] sm:$0xf]
  %v3421 = vld [vmem:[%s137 + $0x5c] sm:$0xf]
  %v3422 = vld [vmem:[%s137 + $0x60] sm:$0xf]
  %v3423 = vld [vmem:[%s137 + $0x64] sm:$0xf]
  %v3424 = vld [vmem:[%s137 + $0x68] sm:$0xf]
  %v3425 = vld [vmem:[%s137 + $0x6c] sm:$0xf]
  %v3426 = vld [vmem:[%s137 + $0x70] sm:$0xf]
  %v3427 = vld [vmem:[%s137 + $0x74] sm:$0xf]
  %v3428 = vld [vmem:[%s137 + $0x78] sm:$0xf]
  %v3429 = vld [vmem:[%s137 + $0x7c] sm:$0xf]
  %v3430 = vld [vmem:[%s137 + $0x80] sm:$0xf]
  %v3431 = vld [vmem:[%s137 + $0x84] sm:$0xf]
  %v3432 = vld [vmem:[%s137 + $0x88] sm:$0xf]
  %v3433 = vld [vmem:[%s137 + $0x8c] sm:$0xf]
  %v3434 = vld [vmem:[%s137 + $0x90] sm:$0xf]
  %v3435 = vld [vmem:[%s137 + $0x94] sm:$0xf]
  %v3436 = vld [vmem:[%s137 + $0x98] sm:$0xf]
  %v3437 = vld [vmem:[%s137 + $0x9c] sm:$0xf]
  %v3438 = vld [vmem:[%s137 + $0xa0] sm:$0xf]
  %v3439 = vld [vmem:[%s137 + $0xa4] sm:$0xf]
  %v3440 = vld [vmem:[%s137 + $0xa8] sm:$0xf]
  %v3441 = vld [vmem:[%s137 + $0xac] sm:$0xf]
  %v3442 = vld [vmem:[%s137 + $0xb0] sm:$0xf]
  %v3443 = vld [vmem:[%s137 + $0xb4] sm:$0xf]
  %v3444 = vld [vmem:[%s137 + $0xb8] sm:$0xf]
  %v3445 = vld [vmem:[%s137 + $0xbc] sm:$0xf]
  %v3478 = vunpack.c.l.b16 %v3318
  %v3479 = vunpack.c.h.b16 %v3318
  %v3480 = vunpack.c.l.b16 %v3319
  %v3481 = vunpack.c.l.b16 %v3320
  %v3482 = vunpack.c.h.b16 %v3320
  %v3483 = vunpack.c.l.b16 %v3321
  %v3484 = vunpack.c.l.b16 %v3322
  %v3485 = vunpack.c.h.b16 %v3322
  %v3486 = vunpack.c.l.b16 %v3323
  %v3487 = vunpack.c.l.b16 %v3324
  %v3488 = vunpack.c.h.b16 %v3324
  %v3489 = vunpack.c.l.b16 %v3325
  %v3490 = vunpack.c.l.b16 %v3326
  %v3491 = vunpack.c.h.b16 %v3326
  %v3492 = vunpack.c.l.b16 %v3327
  %v3493 = vunpack.c.l.b16 %v3328
  %v3494 = vunpack.c.h.b16 %v3328
  %v3495 = vunpack.c.l.b16 %v3329
  %v3496 = vunpack.c.l.b16 %v3330
  %v3497 = vunpack.c.h.b16 %v3330
  %v3498 = vunpack.c.l.b16 %v3331
  %v3499 = vunpack.c.l.b16 %v3332
  %v3500 = vunpack.c.h.b16 %v3332
  %v3501 = vunpack.c.l.b16 %v3333
  %v3502 = vunpack.c.l.b16 %v3334
  %v3503 = vunpack.c.h.b16 %v3334
  %v3504 = vunpack.c.l.b16 %v3335
  %v3505 = vunpack.c.l.b16 %v3336
  %v3506 = vunpack.c.h.b16 %v3336
  %v3507 = vunpack.c.l.b16 %v3337
  %v3508 = vunpack.c.l.b16 %v3338
  %v3509 = vunpack.c.h.b16 %v3338
  %v3510 = vunpack.c.l.b16 %v3339
  %v3511 = vunpack.c.l.b16 %v3340
  %v3512 = vunpack.c.h.b16 %v3340
  %v3513 = vunpack.c.l.b16 %v3341
  %v3514 = vunpack.c.l.b16 %v3342
  %v3515 = vunpack.c.h.b16 %v3342
  %v3516 = vunpack.c.l.b16 %v3343
  %v3517 = vunpack.c.l.b16 %v3344
  %v3518 = vunpack.c.h.b16 %v3344
  %v3519 = vunpack.c.l.b16 %v3345
  %v3520 = vunpack.c.l.b16 %v3394
  %v3521 = vunpack.c.h.b16 %v3394
  %v3522 = vunpack.c.l.b16 %v3395
  %v3523 = vunpack.c.l.b16 %v3396
  %v3524 = vunpack.c.h.b16 %v3396
  %v3525 = vunpack.c.l.b16 %v3397
  %v3526 = vpack.c.b16 %v3481, %v3478
  %v3527 = vpack.c.b16 %v3482, %v3479
  %v3528 = vpack.c.b16 %v3483, %v3480
  %v3529 = vpack.c.b16 %v3487, %v3484
  %v3530 = vpack.c.b16 %v3488, %v3485
  %v3531 = vpack.c.b16 %v3489, %v3486
  %v3532 = vpack.c.b16 %v3493, %v3490
  %v3533 = vpack.c.b16 %v3494, %v3491
  %v3534 = vpack.c.b16 %v3495, %v3492
  %v3535 = vpack.c.b16 %v3499, %v3496
  %v3536 = vpack.c.b16 %v3500, %v3497
  %v3537 = vpack.c.b16 %v3501, %v3498
  %v3538 = vpack.c.b16 %v3505, %v3502
  %v3539 = vpack.c.b16 %v3506, %v3503
  %v3540 = vpack.c.b16 %v3507, %v3504
  %v3541 = vpack.c.b16 %v3511, %v3508
  %v3542 = vpack.c.b16 %v3512, %v3509
  %v3543 = vpack.c.b16 %v3513, %v3510
  %v3544 = vpack.c.b16 %v3517, %v3514
  %v3545 = vpack.c.b16 %v3518, %v3515
  %v3546 = vpack.c.b16 %v3519, %v3516
  %v3547 = vpack.c.b16 %v3523, %v3520
  %v3548 = vpack.c.b16 %v3524, %v3521
  %v3549 = vpack.c.b16 %v3525, %v3522
  %v3622 = vunpack.c.l.b16 %v3398
  %v3623 = vunpack.c.l.b16 %v3399
  %v3624 = vunpack.c.l.b16 %v3400
  %v3625 = vunpack.c.l.b16 %v3401
  %v3626 = vunpack.c.l.b16 %v3402
  %v3627 = vunpack.c.l.b16 %v3403
  %v3628 = vunpack.c.l.b16 %v3404
  %v3629 = vunpack.c.l.b16 %v3405
  %v3630 = vunpack.c.l.b16 %v3406
  %v3631 = vunpack.c.l.b16 %v3407
  %v3632 = vunpack.c.l.b16 %v3408
  %v3633 = vunpack.c.l.b16 %v3409
  %v3634 = vunpack.c.l.b16 %v3410
  %v3635 = vunpack.c.l.b16 %v3411
  %v3636 = vunpack.c.l.b16 %v3412
  %v3637 = vunpack.c.l.b16 %v3413
  %v3638 = vunpack.c.l.b16 %v3414
  %v3639 = vunpack.c.l.b16 %v3415
  %v3640 = vunpack.c.l.b16 %v3416
  %v3641 = vunpack.c.l.b16 %v3417
  %v3642 = vunpack.c.l.b16 %v3418
  %v3643 = vunpack.c.l.b16 %v3419
  %v3644 = vunpack.c.l.b16 %v3420
  %v3645 = vunpack.c.l.b16 %v3421
  %v3646 = vunpack.c.l.b16 %v3422
  %v3647 = vunpack.c.l.b16 %v3423
  %v3648 = vunpack.c.l.b16 %v3424
  %v3649 = vunpack.c.l.b16 %v3425
  %v3650 = vunpack.c.l.b16 %v3426
  %v3651 = vunpack.c.l.b16 %v3427
  %v3652 = vunpack.c.l.b16 %v3428
  %v3653 = vunpack.c.l.b16 %v3429
  %v3654 = vunpack.c.l.b16 %v3430
  %v3655 = vunpack.c.l.b16 %v3431
  %v3656 = vunpack.c.l.b16 %v3432
  %v3657 = vunpack.c.l.b16 %v3433
  %v3658 = vunpack.c.l.b16 %v3434
  %v3659 = vunpack.c.l.b16 %v3435
  %v3660 = vunpack.c.l.b16 %v3436
  %v3661 = vunpack.c.l.b16 %v3437
  %v3662 = vunpack.c.l.b16 %v3438
  %v3663 = vunpack.c.l.b16 %v3439
  %v3664 = vunpack.c.l.b16 %v3440
  %v3665 = vunpack.c.l.b16 %v3441
  %v3666 = vunpack.c.l.b16 %v3442
  %v3667 = vunpack.c.l.b16 %v3443
  %v3668 = vunpack.c.l.b16 %v3444
  %v3669 = vunpack.c.l.b16 %v3445
  %v3670 = vpack.c.b16 %v3623, %v3622
  %v3671 = vpack.c.b16 %v3625, %v3624
  %v3672 = vpack.c.b16 %v3627, %v3626
  %v3673 = vpack.c.b16 %v3629, %v3628
  %v3674 = vpack.c.b16 %v3631, %v3630
  %v3675 = vpack.c.b16 %v3633, %v3632
  %v3676 = vpack.c.b16 %v3635, %v3634
  %v3677 = vpack.c.b16 %v3637, %v3636
  %v3678 = vpack.c.b16 %v3639, %v3638
  %v3679 = vpack.c.b16 %v3641, %v3640
  %v3680 = vpack.c.b16 %v3643, %v3642
  %v3681 = vpack.c.b16 %v3645, %v3644
  %v3682 = vpack.c.b16 %v3647, %v3646
  %v3683 = vpack.c.b16 %v3649, %v3648
  %v3684 = vpack.c.b16 %v3651, %v3650
  %v3685 = vpack.c.b16 %v3653, %v3652
  %v3686 = vpack.c.b16 %v3655, %v3654
  %v3687 = vpack.c.b16 %v3657, %v3656
  %v3688 = vpack.c.b16 %v3659, %v3658
  %v3689 = vpack.c.b16 %v3661, %v3660
  %v3690 = vpack.c.b16 %v3663, %v3662
  %v3691 = vpack.c.b16 %v3665, %v3664
  %v3692 = vpack.c.b16 %v3667, %v3666
  %v3693 = vpack.c.b16 %v3669, %v3668
  %3718 = vmatpush.bf16.msra.mxu0 %v3677
  %3719 = vmatpush.bf16.msra.mxu0 %v3676
  %3720 = vmatpush.bf16.msra.mxu0 %v3675
  %3721 = vmatpush.bf16.msra.mxu0 %v3674
  %3722 = vmatpush.bf16.msra.mxu0 %v3673
  %3723 = vmatpush.bf16.msra.mxu0 %v3672
  %3724 = vmatpush.bf16.msra.mxu0 %v3671
  %3725 = vmatpush.bf16.msra.mxu0 %v3670
  %3726 = vmatmul.bf16.gmra.mxu0 %v3526
  %v3727 = vpop.f32.mrf.mxu0
  %v3728 = vadd.f32 0.0, %v3727
  %v3729 = vpop.f32.mrf.mxu0
  %v3730 = vadd.f32 0.0, %v3729
  %3731 = vmatmul.bf16.gmra.mxu0 %v3529
  %v3732 = vpop.f32.mrf.mxu0
  %v3733 = vadd.f32 0.0, %v3732
  %v3734 = vpop.f32.mrf.mxu0
  %v3735 = vadd.f32 0.0, %v3734
  %3736 = vmatmul.bf16.gmra.mxu0 %v3532
  %v3737 = vpop.f32.mrf.mxu0
  %v3738 = vadd.f32 0.0, %v3737
  %v3739 = vpop.f32.mrf.mxu0
  %v3740 = vadd.f32 0.0, %v3739
  %3741 = vmatmul.bf16.gmra.mxu0 %v3535
  %v3742 = vpop.f32.mrf.mxu0
  %v3743 = vadd.f32 0.0, %v3742
  %v3744 = vpop.f32.mrf.mxu0
  %v3745 = vadd.f32 0.0, %v3744
  %3746 = vmatmul.bf16.gmra.mxu0 %v3538
  %v3747 = vpop.f32.mrf.mxu0
  %v3748 = vadd.f32 0.0, %v3747
  %v3749 = vpop.f32.mrf.mxu0
  %v3750 = vadd.f32 0.0, %v3749
  %3751 = vmatmul.bf16.gmra.mxu0 %v3541
  %v3752 = vpop.f32.mrf.mxu0
  %v3753 = vadd.f32 0.0, %v3752
  %v3754 = vpop.f32.mrf.mxu0
  %v3755 = vadd.f32 0.0, %v3754
  %3756 = vmatmul.bf16.gmra.mxu0 %v3544
  %v3757 = vpop.f32.mrf.mxu0
  %v3758 = vadd.f32 0.0, %v3757
  %v3759 = vpop.f32.mrf.mxu0
  %v3760 = vadd.f32 0.0, %v3759
  %3761 = vmatmul.bf16.gmra.mxu0 %v3547
  %v3762 = vpop.f32.mrf.mxu0
  %v3763 = vadd.f32 0.0, %v3762
  %v3764 = vpop.f32.mrf.mxu0
  %v3765 = vadd.f32 0.0, %v3764
  %3766 = vdwg.mxu0
  %3767 = vmatpush.bf16.msra.mxu0 %v3685
  %3768 = vmatpush.bf16.msra.mxu0 %v3684
  %3769 = vmatpush.bf16.msra.mxu0 %v3683
  %3770 = vmatpush.bf16.msra.mxu0 %v3682
  %3771 = vmatpush.bf16.msra.mxu0 %v3681
  %3772 = vmatpush.bf16.msra.mxu0 %v3680
  %3773 = vmatpush.bf16.msra.mxu0 %v3679
  %3774 = vmatpush.bf16.msra.mxu0 %v3678
  %3775 = vmatmul.bf16.gmra.mxu0 %v3527
  %v3776 = vpop.f32.mrf.mxu0
  %v3777 = vadd.f32 %v3728, %v3776
  %v3778 = vpop.f32.mrf.mxu0
  %v3779 = vadd.f32 %v3730, %v3778
  %3780 = vmatmul.bf16.gmra.mxu0 %v3530
  %v3781 = vpop.f32.mrf.mxu0
  %v3782 = vadd.f32 %v3733, %v3781
  %v3783 = vpop.f32.mrf.mxu0
  %v3784 = vadd.f32 %v3735, %v3783
  %3785 = vmatmul.bf16.gmra.mxu0 %v3533
  %v3786 = vpop.f32.mrf.mxu0
  %v3787 = vadd.f32 %v3738, %v3786
  %v3788 = vpop.f32.mrf.mxu0
  %v3789 = vadd.f32 %v3740, %v3788
  %3790 = vmatmul.bf16.gmra.mxu0 %v3536
  %v3791 = vpop.f32.mrf.mxu0
  %v3792 = vadd.f32 %v3743, %v3791
  %v3793 = vpop.f32.mrf.mxu0
  %v3794 = vadd.f32 %v3745, %v3793
  %3795 = vmatmul.bf16.gmra.mxu0 %v3539
  %v3796 = vpop.f32.mrf.mxu0
  %v3797 = vadd.f32 %v3748, %v3796
  %v3798 = vpop.f32.mrf.mxu0
  %v3799 = vadd.f32 %v3750, %v3798
  %3800 = vmatmul.bf16.gmra.mxu0 %v3542
  %v3801 = vpop.f32.mrf.mxu0
  %v3802 = vadd.f32 %v3753, %v3801
  %v3803 = vpop.f32.mrf.mxu0
  %v3804 = vadd.f32 %v3755, %v3803
  %3805 = vmatmul.bf16.gmra.mxu0 %v3545
  %v3806 = vpop.f32.mrf.mxu0
  %v3807 = vadd.f32 %v3758, %v3806
  %v3808 = vpop.f32.mrf.mxu0
  %v3809 = vadd.f32 %v3760, %v3808
  %3810 = vmatmul.bf16.gmra.mxu0 %v3548
  %v3811 = vpop.f32.mrf.mxu0
  %v3812 = vadd.f32 %v3763, %v3811
  %v3813 = vpop.f32.mrf.mxu0
  %v3814 = vadd.f32 %v3765, %v3813
  %3815 = vdwg.mxu0
  %3816 = vmatpush.bf16.msra.mxu0 %v3693
  %3817 = vmatpush.bf16.msra.mxu0 %v3692
  %3818 = vmatpush.bf16.msra.mxu0 %v3691
  %3819 = vmatpush.bf16.msra.mxu0 %v3690
  %3820 = vmatpush.bf16.msra.mxu0 %v3689
  %3821 = vmatpush.bf16.msra.mxu0 %v3688
  %3822 = vmatpush.bf16.msra.mxu0 %v3687
  %3823 = vmatpush.bf16.msra.mxu0 %v3686
  %3824 = vmatmul.bf16.gmra.mxu0 %v3528
  %v3825 = vpop.f32.mrf.mxu0
  %v3826 = vadd.f32 %v3777, %v3825
  %v3827 = vpop.f32.mrf.mxu0
  %v3828 = vadd.f32 %v3779, %v3827
  %3829 = vmatmul.bf16.gmra.mxu0 %v3531
  %v3830 = vpop.f32.mrf.mxu0
  %v3831 = vadd.f32 %v3782, %v3830
  %v3832 = vpop.f32.mrf.mxu0
  %v3833 = vadd.f32 %v3784, %v3832
  %3834 = vmatmul.bf16.gmra.mxu0 %v3534
  %v3835 = vpop.f32.mrf.mxu0
  %v3836 = vadd.f32 %v3787, %v3835
  %v3837 = vpop.f32.mrf.mxu0
  %v3838 = vadd.f32 %v3789, %v3837
  %3839 = vmatmul.bf16.gmra.mxu0 %v3537
  %v3840 = vpop.f32.mrf.mxu0
  %v3841 = vadd.f32 %v3792, %v3840
  %v3842 = vpop.f32.mrf.mxu0
  %v3843 = vadd.f32 %v3794, %v3842
  %3844 = vmatmul.bf16.gmra.mxu0 %v3540
  %v3845 = vpop.f32.mrf.mxu0
  %v3846 = vadd.f32 %v3797, %v3845
  %v3847 = vpop.f32.mrf.mxu0
  %v3848 = vadd.f32 %v3799, %v3847
  %3849 = vmatmul.bf16.gmra.mxu0 %v3543
  %v3850 = vpop.f32.mrf.mxu0
  %v3851 = vadd.f32 %v3802, %v3850
  %v3852 = vpop.f32.mrf.mxu0
  %v3853 = vadd.f32 %v3804, %v3852
  %3854 = vmatmul.bf16.gmra.mxu0 %v3546
  %v3855 = vpop.f32.mrf.mxu0
  %v3856 = vadd.f32 %v3807, %v3855
  %v3857 = vpop.f32.mrf.mxu0
  %v3858 = vadd.f32 %v3809, %v3857
  %3859 = vmatmul.bf16.gmra.mxu0 %v3549
  %v3860 = vpop.f32.mrf.mxu0
  %v3861 = vadd.f32 %v3812, %v3860
  %v3862 = vpop.f32.mrf.mxu0
  %v3863 = vadd.f32 %v3814, %v3862
  %3864 = vdwg.mxu0
  %v3869 = vunpack.c.l.b16 %v3314
  %v3870 = vunpack.c.h.b16 %v3314
  %v3871 = vunpack.c.l.b16 %v3315
  %v3872 = vunpack.c.l.b16 %v3316
  %v3873 = vunpack.c.h.b16 %v3316
  %v3874 = vunpack.c.l.b16 %v3317
  %v3875 = vpack.c.b16 %v3872, %v3869
  %v3876 = vpack.c.b16 %v3873, %v3870
  %v3877 = vpack.c.b16 %v3874, %v3871
  %v3929 = vunpack.c.l.b16 %v3346
  %v3930 = vunpack.c.l.b16 %v3347
  %v3931 = vunpack.c.l.b16 %v3348
  %v3932 = vunpack.c.l.b16 %v3349
  %v3933 = vunpack.c.l.b16 %v3350
  %v3934 = vunpack.c.l.b16 %v3351
  %v3935 = vunpack.c.l.b16 %v3352
  %v3936 = vunpack.c.l.b16 %v3353
  %v3937 = vunpack.c.l.b16 %v3354
  %v3938 = vunpack.c.l.b16 %v3355
  %v3939 = vunpack.c.l.b16 %v3356
  %v3940 = vunpack.c.l.b16 %v3357
  %v3941 = vunpack.c.l.b16 %v3358
  %v3942 = vunpack.c.l.b16 %v3359
  %v3943 = vunpack.c.l.b16 %v3360
  %v3944 = vunpack.c.l.b16 %v3361
  %v3945 = vunpack.c.l.b16 %v3362
  %v3946 = vunpack.c.l.b16 %v3363
  %v3947 = vunpack.c.l.b16 %v3364
  %v3948 = vunpack.c.l.b16 %v3365
  %v3949 = vunpack.c.l.b16 %v3366
  %v3950 = vunpack.c.l.b16 %v3367
  %v3951 = vunpack.c.l.b16 %v3368
  %v3952 = vunpack.c.l.b16 %v3369
  %v3953 = vunpack.c.l.b16 %v3370
  %v3954 = vunpack.c.l.b16 %v3371
  %v3955 = vunpack.c.l.b16 %v3372
  %v3956 = vunpack.c.l.b16 %v3373
  %v3957 = vunpack.c.l.b16 %v3374
  %v3958 = vunpack.c.l.b16 %v3375
  %v3959 = vunpack.c.l.b16 %v3376
  %v3960 = vunpack.c.l.b16 %v3377
  %v3961 = vunpack.c.l.b16 %v3378
  %v3962 = vunpack.c.l.b16 %v3379
  %v3963 = vunpack.c.l.b16 %v3380
  %v3964 = vunpack.c.l.b16 %v3381
  %v3965 = vunpack.c.l.b16 %v3382
  %v3966 = vunpack.c.l.b16 %v3383
  %v3967 = vunpack.c.l.b16 %v3384
  %v3968 = vunpack.c.l.b16 %v3385
  %v3969 = vunpack.c.l.b16 %v3386
  %v3970 = vunpack.c.l.b16 %v3387
  %v3971 = vunpack.c.l.b16 %v3388
  %v3972 = vunpack.c.l.b16 %v3389
  %v3973 = vunpack.c.l.b16 %v3390
  %v3974 = vunpack.c.l.b16 %v3391
  %v3975 = vunpack.c.l.b16 %v3392
  %v3976 = vunpack.c.l.b16 %v3393
  %v3977 = vpack.c.b16 %v3930, %v3929
  %v3978 = vpack.c.b16 %v3932, %v3931
  %v3979 = vpack.c.b16 %v3934, %v3933
  %v3980 = vpack.c.b16 %v3936, %v3935
  %v3981 = vpack.c.b16 %v3938, %v3937
  %v3982 = vpack.c.b16 %v3940, %v3939
  %v3983 = vpack.c.b16 %v3942, %v3941
  %v3984 = vpack.c.b16 %v3944, %v3943
  %v3985 = vpack.c.b16 %v3946, %v3945
  %v3986 = vpack.c.b16 %v3948, %v3947
  %v3987 = vpack.c.b16 %v3950, %v3949
  %v3988 = vpack.c.b16 %v3952, %v3951
  %v3989 = vpack.c.b16 %v3954, %v3953
  %v3990 = vpack.c.b16 %v3956, %v3955
  %v3991 = vpack.c.b16 %v3958, %v3957
  %v3992 = vpack.c.b16 %v3960, %v3959
  %v3993 = vpack.c.b16 %v3962, %v3961
  %v3994 = vpack.c.b16 %v3964, %v3963
  %v3995 = vpack.c.b16 %v3966, %v3965
  %v3996 = vpack.c.b16 %v3968, %v3967
  %v3997 = vpack.c.b16 %v3970, %v3969
  %v3998 = vpack.c.b16 %v3972, %v3971
  %v3999 = vpack.c.b16 %v3974, %v3973
  %v4000 = vpack.c.b16 %v3976, %v3975
  %4025 = vmatpush.bf16.msra.mxu0 %v3984
  %4026 = vmatpush.bf16.msra.mxu0 %v3983
  %4027 = vmatpush.bf16.msra.mxu0 %v3982
  %4028 = vmatpush.bf16.msra.mxu0 %v3981
  %4029 = vmatpush.bf16.msra.mxu0 %v3980
  %4030 = vmatpush.bf16.msra.mxu0 %v3979
  %4031 = vmatpush.bf16.msra.mxu0 %v3978
  %4032 = vmatpush.bf16.msra.mxu0 %v3977
  %4033 = vmatmul.bf16.gmra.mxu0 %v3875
  %v4034 = vpop.f32.mrf.mxu0
  %v4035 = vadd.f32 %v3826, %v4034
  %v4036 = vpop.f32.mrf.mxu0
  %v4037 = vadd.f32 %v3828, %v4036
  %4038 = vmatmul.bf16.gmra.mxu0 %v3526
  %v4039 = vpop.f32.mrf.mxu0
  %v4040 = vadd.f32 %v3831, %v4039
  %v4041 = vpop.f32.mrf.mxu0
  %v4042 = vadd.f32 %v3833, %v4041
  %4043 = vmatmul.bf16.gmra.mxu0 %v3529
  %v4044 = vpop.f32.mrf.mxu0
  %v4045 = vadd.f32 %v3836, %v4044
  %v4046 = vpop.f32.mrf.mxu0
  %v4047 = vadd.f32 %v3838, %v4046
  %4048 = vmatmul.bf16.gmra.mxu0 %v3532
  %v4049 = vpop.f32.mrf.mxu0
  %v4050 = vadd.f32 %v3841, %v4049
  %v4051 = vpop.f32.mrf.mxu0
  %v4052 = vadd.f32 %v3843, %v4051
  %4053 = vmatmul.bf16.gmra.mxu0 %v3535
  %v4054 = vpop.f32.mrf.mxu0
  %v4055 = vadd.f32 %v3846, %v4054
  %v4056 = vpop.f32.mrf.mxu0
  %v4057 = vadd.f32 %v3848, %v4056
  %4058 = vmatmul.bf16.gmra.mxu0 %v3538
  %v4059 = vpop.f32.mrf.mxu0
  %v4060 = vadd.f32 %v3851, %v4059
  %v4061 = vpop.f32.mrf.mxu0
  %v4062 = vadd.f32 %v3853, %v4061
  %4063 = vmatmul.bf16.gmra.mxu0 %v3541
  %v4064 = vpop.f32.mrf.mxu0
  %v4065 = vadd.f32 %v3856, %v4064
  %v4066 = vpop.f32.mrf.mxu0
  %v4067 = vadd.f32 %v3858, %v4066
  %4068 = vmatmul.bf16.gmra.mxu0 %v3544
  %v4069 = vpop.f32.mrf.mxu0
  %v4070 = vadd.f32 %v3861, %v4069
  %v4071 = vpop.f32.mrf.mxu0
  %v4072 = vadd.f32 %v3863, %v4071
  %4073 = vdwg.mxu0
  %4074 = vmatpush.bf16.msra.mxu0 %v3992
  %4075 = vmatpush.bf16.msra.mxu0 %v3991
  %4076 = vmatpush.bf16.msra.mxu0 %v3990
  %4077 = vmatpush.bf16.msra.mxu0 %v3989
  %4078 = vmatpush.bf16.msra.mxu0 %v3988
  %4079 = vmatpush.bf16.msra.mxu0 %v3987
  %4080 = vmatpush.bf16.msra.mxu0 %v3986
  %4081 = vmatpush.bf16.msra.mxu0 %v3985
  %4082 = vmatmul.bf16.gmra.mxu0 %v3876
  %v4083 = vpop.f32.mrf.mxu0
  %v4084 = vadd.f32 %v4035, %v4083
  %v4085 = vpop.f32.mrf.mxu0
  %v4086 = vadd.f32 %v4037, %v4085
  %4087 = vmatmul.bf16.gmra.mxu0 %v3527
  %v4088 = vpop.f32.mrf.mxu0
  %v4089 = vadd.f32 %v4040, %v4088
  %v4090 = vpop.f32.mrf.mxu0
  %v4091 = vadd.f32 %v4042, %v4090
  %4092 = vmatmul.bf16.gmra.mxu0 %v3530
  %v4093 = vpop.f32.mrf.mxu0
  %v4094 = vadd.f32 %v4045, %v4093
  %v4095 = vpop.f32.mrf.mxu0
  %v4096 = vadd.f32 %v4047, %v4095
  %4097 = vmatmul.bf16.gmra.mxu0 %v3533
  %v4098 = vpop.f32.mrf.mxu0
  %v4099 = vadd.f32 %v4050, %v4098
  %v4100 = vpop.f32.mrf.mxu0
  %v4101 = vadd.f32 %v4052, %v4100
  %4102 = vmatmul.bf16.gmra.mxu0 %v3536
  %v4103 = vpop.f32.mrf.mxu0
  %v4104 = vadd.f32 %v4055, %v4103
  %v4105 = vpop.f32.mrf.mxu0
  %v4106 = vadd.f32 %v4057, %v4105
  %4107 = vmatmul.bf16.gmra.mxu0 %v3539
  %v4108 = vpop.f32.mrf.mxu0
  %v4109 = vadd.f32 %v4060, %v4108
  %v4110 = vpop.f32.mrf.mxu0
  %v4111 = vadd.f32 %v4062, %v4110
  %4112 = vmatmul.bf16.gmra.mxu0 %v3542
  %v4113 = vpop.f32.mrf.mxu0
  %v4114 = vadd.f32 %v4065, %v4113
  %v4115 = vpop.f32.mrf.mxu0
  %v4116 = vadd.f32 %v4067, %v4115
  %4117 = vmatmul.bf16.gmra.mxu0 %v3545
  %v4118 = vpop.f32.mrf.mxu0
  %v4119 = vadd.f32 %v4070, %v4118
  %v4120 = vpop.f32.mrf.mxu0
  %v4121 = vadd.f32 %v4072, %v4120
  %4122 = vdwg.mxu0
  %4123 = vmatpush.bf16.msra.mxu0 %v4000
  %4124 = vmatpush.bf16.msra.mxu0 %v3999
  %4125 = vmatpush.bf16.msra.mxu0 %v3998
  %4126 = vmatpush.bf16.msra.mxu0 %v3997
  %4127 = vmatpush.bf16.msra.mxu0 %v3996
  %4128 = vmatpush.bf16.msra.mxu0 %v3995
  %4129 = vmatpush.bf16.msra.mxu0 %v3994
  %4130 = vmatpush.bf16.msra.mxu0 %v3993
  %4131 = vmatmul.bf16.gmra.mxu0 %v3877
  %v4132 = vpop.f32.mrf.mxu0
  %v4133 = vadd.f32 %v4084, %v4132
  %v4134 = vpop.f32.mrf.mxu0
  %v4135 = vadd.f32 %v4086, %v4134
  %4136 = vmatmul.bf16.gmra.mxu0 %v3528
  %v4137 = vpop.f32.mrf.mxu0
  %v4138 = vadd.f32 %v4089, %v4137
  %v4139 = vpop.f32.mrf.mxu0
  %v4140 = vadd.f32 %v4091, %v4139
  %4141 = vmatmul.bf16.gmra.mxu0 %v3531
  %v4142 = vpop.f32.mrf.mxu0
  %v4143 = vadd.f32 %v4094, %v4142
  %v4144 = vpop.f32.mrf.mxu0
  %v4145 = vadd.f32 %v4096, %v4144
  %4146 = vmatmul.bf16.gmra.mxu0 %v3534
  %v4147 = vpop.f32.mrf.mxu0
  %v4148 = vadd.f32 %v4099, %v4147
  %v4149 = vpop.f32.mrf.mxu0
  %v4150 = vadd.f32 %v4101, %v4149
  %4151 = vmatmul.bf16.gmra.mxu0 %v3537
  %v4152 = vpop.f32.mrf.mxu0
  %v4153 = vadd.f32 %v4104, %v4152
  %v4154 = vpop.f32.mrf.mxu0
  %v4155 = vadd.f32 %v4106, %v4154
  %4156 = vmatmul.bf16.gmra.mxu0 %v3540
  %v4157 = vpop.f32.mrf.mxu0
  %v4158 = vadd.f32 %v4109, %v4157
  %v4159 = vpop.f32.mrf.mxu0
  %v4160 = vadd.f32 %v4111, %v4159
  %4161 = vmatmul.bf16.gmra.mxu0 %v3543
  %v4162 = vpop.f32.mrf.mxu0
  %v4163 = vadd.f32 %v4114, %v4162
  %v4164 = vpop.f32.mrf.mxu0
  %v4165 = vadd.f32 %v4116, %v4164
  %4166 = vmatmul.bf16.gmra.mxu0 %v3546
  %v4167 = vpop.f32.mrf.mxu0
  %v4168 = vadd.f32 %v4119, %v4167
  %v4169 = vpop.f32.mrf.mxu0
  %v4170 = vadd.f32 %v4121, %v4169
  %4171 = vdwg.mxu0
  %v4172 = vld [vmem:[%s0 + $0x1b0] sm:$0xff]
  %v4173 = vld [vmem:[%s0 + $0x1b8] sm:$0xf]
  %v4174 = vld [vmem:[%s0 + $0x1bc] sm:$0xff]
  %v4175 = vld [vmem:[%s0 + $0x1c4] sm:$0xf]
  %v4176 = vld [vmem:[%s0 + $0x1c8] sm:$0xff]
  %v4177 = vld [vmem:[%s0 + $0x1d0] sm:$0xf]
  %v4178 = vld [vmem:[%s0 + $0x1d4] sm:$0xff]
  %v4179 = vld [vmem:[%s0 + $0x1dc] sm:$0xf]
  %v4180 = vld [vmem:[%s0 + $0x1e0] sm:$0xff]
  %v4181 = vld [vmem:[%s0 + $0x1e8] sm:$0xf]
  %v4182 = vld [vmem:[%s0 + $0x1ec] sm:$0xff]
  %v4183 = vld [vmem:[%s0 + $0x1f4] sm:$0xf]
  %v4184 = vld [vmem:[%s0 + $0x1f8] sm:$0xff]
  %v4185 = vld [vmem:[%s0 + $0x200] sm:$0xf]
  %v4186 = vld [vmem:[%s0 + $0x204] sm:$0xff]
  %v4187 = vld [vmem:[%s0 + $0x20c] sm:$0xf]
  %v4188 = vld [vmem:[%s0 + $0x210] sm:$0xff]
  %v4189 = vld [vmem:[%s0 + $0x218] sm:$0xf]
  %v4190 = vld [vmem:[%s0 + $0x21c] sm:$0xff]
  %v4191 = vld [vmem:[%s0 + $0x224] sm:$0xf]
  %v4192 = vld [vmem:[%s0 + $0x228] sm:$0xff]
  %v4193 = vld [vmem:[%s0 + $0x230] sm:$0xf]
  %v4194 = vld [vmem:[%s0 + $0x234] sm:$0xff]
  %v4195 = vld [vmem:[%s0 + $0x23c] sm:$0xf]
  %v4196 = vld [vmem:[%s0 + $0x240] sm:$0xff]
  %v4197 = vld [vmem:[%s0 + $0x248] sm:$0xf]
  %v4198 = vld [vmem:[%s0 + $0x24c] sm:$0xff]
  %v4199 = vld [vmem:[%s0 + $0x254] sm:$0xf]
  %v4200 = vld [vmem:[%s0 + $0x258] sm:$0xff]
  %v4201 = vld [vmem:[%s0 + $0x260] sm:$0xf]
  %v4202 = vld [vmem:[%s0 + $0x264] sm:$0xff]
  %v4203 = vld [vmem:[%s0 + $0x26c] sm:$0xf]
  %v4204 = vld [vmem:[%s944] sm:$0xf]
  %v4205 = vld [vmem:[%s944 + $0x4] sm:$0xf]
  %v4206 = vld [vmem:[%s944 + $0x8] sm:$0xf]
  %v4207 = vld [vmem:[%s944 + $0xc] sm:$0xf]
  %v4208 = vld [vmem:[%s944 + $0x10] sm:$0xf]
  %v4209 = vld [vmem:[%s944 + $0x14] sm:$0xf]
  %v4210 = vld [vmem:[%s944 + $0x18] sm:$0xf]
  %v4211 = vld [vmem:[%s944 + $0x1c] sm:$0xf]
  %v4212 = vld [vmem:[%s944 + $0x20] sm:$0xf]
  %v4213 = vld [vmem:[%s944 + $0x24] sm:$0xf]
  %v4214 = vld [vmem:[%s944 + $0x28] sm:$0xf]
  %v4215 = vld [vmem:[%s944 + $0x2c] sm:$0xf]
  %v4216 = vld [vmem:[%s944 + $0x30] sm:$0xf]
  %v4217 = vld [vmem:[%s944 + $0x34] sm:$0xf]
  %v4218 = vld [vmem:[%s944 + $0x38] sm:$0xf]
  %v4219 = vld [vmem:[%s944 + $0x3c] sm:$0xf]
  %v4220 = vld [vmem:[%s944 + $0x40] sm:$0xf]
  %v4221 = vld [vmem:[%s944 + $0x44] sm:$0xf]
  %v4222 = vld [vmem:[%s944 + $0x48] sm:$0xf]
  %v4223 = vld [vmem:[%s944 + $0x4c] sm:$0xf]
  %v4224 = vld [vmem:[%s944 + $0x50] sm:$0xf]
  %v4225 = vld [vmem:[%s944 + $0x54] sm:$0xf]
  %v4226 = vld [vmem:[%s944 + $0x58] sm:$0xf]
  %v4227 = vld [vmem:[%s944 + $0x5c] sm:$0xf]
  %v4228 = vld [vmem:[%s944 + $0x60] sm:$0xf]
  %v4229 = vld [vmem:[%s944 + $0x64] sm:$0xf]
  %v4230 = vld [vmem:[%s944 + $0x68] sm:$0xf]
  %v4231 = vld [vmem:[%s944 + $0x6c] sm:$0xf]
  %v4232 = vld [vmem:[%s944 + $0x70] sm:$0xf]
  %v4233 = vld [vmem:[%s944 + $0x74] sm:$0xf]
  %v4234 = vld [vmem:[%s944 + $0x78] sm:$0xf]
  %v4235 = vld [vmem:[%s944 + $0x7c] sm:$0xf]
  %v4236 = vld [vmem:[%s944 + $0x80] sm:$0xf]
  %v4237 = vld [vmem:[%s944 + $0x84] sm:$0xf]
  %v4238 = vld [vmem:[%s944 + $0x88] sm:$0xf]
  %v4239 = vld [vmem:[%s944 + $0x8c] sm:$0xf]
  %v4240 = vld [vmem:[%s944 + $0x90] sm:$0xf]
  %v4241 = vld [vmem:[%s944 + $0x94] sm:$0xf]
  %v4242 = vld [vmem:[%s944 + $0x98] sm:$0xf]
  %v4243 = vld [vmem:[%s944 + $0x9c] sm:$0xf]
  %v4244 = vld [vmem:[%s944 + $0xa0] sm:$0xf]
  %v4245 = vld [vmem:[%s944 + $0xa4] sm:$0xf]
  %v4246 = vld [vmem:[%s944 + $0xa8] sm:$0xf]
  %v4247 = vld [vmem:[%s944 + $0xac] sm:$0xf]
  %v4248 = vld [vmem:[%s944 + $0xb0] sm:$0xf]
  %v4249 = vld [vmem:[%s944 + $0xb4] sm:$0xf]
  %v4250 = vld [vmem:[%s944 + $0xb8] sm:$0xf]
  %v4251 = vld [vmem:[%s944 + $0xbc] sm:$0xf]
  %v4284 = vunpack.c.l.b16 %v4172
  %v4285 = vunpack.c.h.b16 %v4172
  %v4286 = vunpack.c.l.b16 %v4173
  %v4287 = vunpack.c.l.b16 %v4174
  %v4288 = vunpack.c.h.b16 %v4174
  %v4289 = vunpack.c.l.b16 %v4175
  %v4290 = vunpack.c.l.b16 %v4176
  %v4291 = vunpack.c.h.b16 %v4176
  %v4292 = vunpack.c.l.b16 %v4177
  %v4293 = vunpack.c.l.b16 %v4178
  %v4294 = vunpack.c.h.b16 %v4178
  %v4295 = vunpack.c.l.b16 %v4179
  %v4296 = vunpack.c.l.b16 %v4180
  %v4297 = vunpack.c.h.b16 %v4180
  %v4298 = vunpack.c.l.b16 %v4181
  %v4299 = vunpack.c.l.b16 %v4182
  %v4300 = vunpack.c.h.b16 %v4182
  %v4301 = vunpack.c.l.b16 %v4183
  %v4302 = vunpack.c.l.b16 %v4184
  %v4303 = vunpack.c.h.b16 %v4184
  %v4304 = vunpack.c.l.b16 %v4185
  %v4305 = vunpack.c.l.b16 %v4186
  %v4306 = vunpack.c.h.b16 %v4186
  %v4307 = vunpack.c.l.b16 %v4187
  %v4308 = vunpack.c.l.b16 %v4188
  %v4309 = vunpack.c.h.b16 %v4188
  %v4310 = vunpack.c.l.b16 %v4189
  %v4311 = vunpack.c.l.b16 %v4190
  %v4312 = vunpack.c.h.b16 %v4190
  %v4313 = vunpack.c.l.b16 %v4191
  %v4314 = vunpack.c.l.b16 %v4192
  %v4315 = vunpack.c.h.b16 %v4192
  %v4316 = vunpack.c.l.b16 %v4193
  %v4317 = vunpack.c.l.b16 %v4194
  %v4318 = vunpack.c.h.b16 %v4194
  %v4319 = vunpack.c.l.b16 %v4195
  %v4320 = vunpack.c.l.b16 %v4196
  %v4321 = vunpack.c.h.b16 %v4196
  %v4322 = vunpack.c.l.b16 %v4197
  %v4323 = vunpack.c.l.b16 %v4198
  %v4324 = vunpack.c.h.b16 %v4198
  %v4325 = vunpack.c.l.b16 %v4199
  %v4326 = vunpack.c.l.b16 %v4200
  %v4327 = vunpack.c.h.b16 %v4200
  %v4328 = vunpack.c.l.b16 %v4201
  %v4329 = vunpack.c.l.b16 %v4202
  %v4330 = vunpack.c.h.b16 %v4202
  %v4331 = vunpack.c.l.b16 %v4203
  %v4332 = vpack.c.b16 %v4287, %v4284
  %v4333 = vpack.c.b16 %v4288, %v4285
  %v4334 = vpack.c.b16 %v4289, %v4286
  %v4335 = vpack.c.b16 %v4293, %v4290
  %v4336 = vpack.c.b16 %v4294, %v4291
  %v4337 = vpack.c.b16 %v4295, %v4292
  %v4338 = vpack.c.b16 %v4299, %v4296
  %v4339 = vpack.c.b16 %v4300, %v4297
  %v4340 = vpack.c.b16 %v4301, %v4298
  %v4341 = vpack.c.b16 %v4305, %v4302
  %v4342 = vpack.c.b16 %v4306, %v4303
  %v4343 = vpack.c.b16 %v4307, %v4304
  %v4344 = vpack.c.b16 %v4311, %v4308
  %v4345 = vpack.c.b16 %v4312, %v4309
  %v4346 = vpack.c.b16 %v4313, %v4310
  %v4347 = vpack.c.b16 %v4317, %v4314
  %v4348 = vpack.c.b16 %v4318, %v4315
  %v4349 = vpack.c.b16 %v4319, %v4316
  %v4350 = vpack.c.b16 %v4323, %v4320
  %v4351 = vpack.c.b16 %v4324, %v4321
  %v4352 = vpack.c.b16 %v4325, %v4322
  %v4353 = vpack.c.b16 %v4329, %v4326
  %v4354 = vpack.c.b16 %v4330, %v4327
  %v4355 = vpack.c.b16 %v4331, %v4328
  %v4428 = vunpack.c.l.b16 %v4204
  %v4429 = vunpack.c.l.b16 %v4205
  %v4430 = vunpack.c.l.b16 %v4206
  %v4431 = vunpack.c.l.b16 %v4207
  %v4432 = vunpack.c.l.b16 %v4208
  %v4433 = vunpack.c.l.b16 %v4209
  %v4434 = vunpack.c.l.b16 %v4210
  %v4435 = vunpack.c.l.b16 %v4211
  %v4436 = vunpack.c.l.b16 %v4212
  %v4437 = vunpack.c.l.b16 %v4213
  %v4438 = vunpack.c.l.b16 %v4214
  %v4439 = vunpack.c.l.b16 %v4215
  %v4440 = vunpack.c.l.b16 %v4216
  %v4441 = vunpack.c.l.b16 %v4217
  %v4442 = vunpack.c.l.b16 %v4218
  %v4443 = vunpack.c.l.b16 %v4219
  %v4444 = vunpack.c.l.b16 %v4220
  %v4445 = vunpack.c.l.b16 %v4221
  %v4446 = vunpack.c.l.b16 %v4222
  %v4447 = vunpack.c.l.b16 %v4223
  %v4448 = vunpack.c.l.b16 %v4224
  %v4449 = vunpack.c.l.b16 %v4225
  %v4450 = vunpack.c.l.b16 %v4226
  %v4451 = vunpack.c.l.b16 %v4227
  %v4452 = vunpack.c.l.b16 %v4228
  %v4453 = vunpack.c.l.b16 %v4229
  %v4454 = vunpack.c.l.b16 %v4230
  %v4455 = vunpack.c.l.b16 %v4231
  %v4456 = vunpack.c.l.b16 %v4232
  %v4457 = vunpack.c.l.b16 %v4233
  %v4458 = vunpack.c.l.b16 %v4234
  %v4459 = vunpack.c.l.b16 %v4235
  %v4460 = vunpack.c.l.b16 %v4236
  %v4461 = vunpack.c.l.b16 %v4237
  %v4462 = vunpack.c.l.b16 %v4238
  %v4463 = vunpack.c.l.b16 %v4239
  %v4464 = vunpack.c.l.b16 %v4240
  %v4465 = vunpack.c.l.b16 %v4241
  %v4466 = vunpack.c.l.b16 %v4242
  %v4467 = vunpack.c.l.b16 %v4243
  %v4468 = vunpack.c.l.b16 %v4244
  %v4469 = vunpack.c.l.b16 %v4245
  %v4470 = vunpack.c.l.b16 %v4246
  %v4471 = vunpack.c.l.b16 %v4247
  %v4472 = vunpack.c.l.b16 %v4248
  %v4473 = vunpack.c.l.b16 %v4249
  %v4474 = vunpack.c.l.b16 %v4250
  %v4475 = vunpack.c.l.b16 %v4251
  %v4476 = vpack.c.b16 %v4429, %v4428
  %v4477 = vpack.c.b16 %v4431, %v4430
  %v4478 = vpack.c.b16 %v4433, %v4432
  %v4479 = vpack.c.b16 %v4435, %v4434
  %v4480 = vpack.c.b16 %v4437, %v4436
  %v4481 = vpack.c.b16 %v4439, %v4438
  %v4482 = vpack.c.b16 %v4441, %v4440
  %v4483 = vpack.c.b16 %v4443, %v4442
  %v4484 = vpack.c.b16 %v4445, %v4444
  %v4485 = vpack.c.b16 %v4447, %v4446
  %v4486 = vpack.c.b16 %v4449, %v4448
  %v4487 = vpack.c.b16 %v4451, %v4450
  %v4488 = vpack.c.b16 %v4453, %v4452
  %v4489 = vpack.c.b16 %v4455, %v4454
  %v4490 = vpack.c.b16 %v4457, %v4456
  %v4491 = vpack.c.b16 %v4459, %v4458
  %v4492 = vpack.c.b16 %v4461, %v4460
  %v4493 = vpack.c.b16 %v4463, %v4462
  %v4494 = vpack.c.b16 %v4465, %v4464
  %v4495 = vpack.c.b16 %v4467, %v4466
  %v4496 = vpack.c.b16 %v4469, %v4468
  %v4497 = vpack.c.b16 %v4471, %v4470
  %v4498 = vpack.c.b16 %v4473, %v4472
  %v4499 = vpack.c.b16 %v4475, %v4474
  %4524 = vmatpush.bf16.msra.mxu0 %v4483
  %4525 = vmatpush.bf16.msra.mxu0 %v4482
  %4526 = vmatpush.bf16.msra.mxu0 %v4481
  %4527 = vmatpush.bf16.msra.mxu0 %v4480
  %4528 = vmatpush.bf16.msra.mxu0 %v4479
  %4529 = vmatpush.bf16.msra.mxu0 %v4478
  %4530 = vmatpush.bf16.msra.mxu0 %v4477
  %4531 = vmatpush.bf16.msra.mxu0 %v4476
  %4532 = vmatmul.bf16.gmra.mxu0 %v4332
  %v4533 = vpop.f32.mrf.mxu0
  %v4534 = vadd.f32 0.0, %v4533
  %v4535 = vpop.f32.mrf.mxu0
  %v4536 = vadd.f32 0.0, %v4535
  %4537 = vmatmul.bf16.gmra.mxu0 %v4335
  %v4538 = vpop.f32.mrf.mxu0
  %v4539 = vadd.f32 0.0, %v4538
  %v4540 = vpop.f32.mrf.mxu0
  %v4541 = vadd.f32 0.0, %v4540
  %4542 = vmatmul.bf16.gmra.mxu0 %v4338
  %v4543 = vpop.f32.mrf.mxu0
  %v4544 = vadd.f32 0.0, %v4543
  %v4545 = vpop.f32.mrf.mxu0
  %v4546 = vadd.f32 0.0, %v4545
  %4547 = vmatmul.bf16.gmra.mxu0 %v4341
  %v4548 = vpop.f32.mrf.mxu0
  %v4549 = vadd.f32 0.0, %v4548
  %v4550 = vpop.f32.mrf.mxu0
  %v4551 = vadd.f32 0.0, %v4550
  %4552 = vmatmul.bf16.gmra.mxu0 %v4344
  %v4553 = vpop.f32.mrf.mxu0
  %v4554 = vadd.f32 0.0, %v4553
  %v4555 = vpop.f32.mrf.mxu0
  %v4556 = vadd.f32 0.0, %v4555
  %4557 = vmatmul.bf16.gmra.mxu0 %v4347
  %v4558 = vpop.f32.mrf.mxu0
  %v4559 = vadd.f32 0.0, %v4558
  %v4560 = vpop.f32.mrf.mxu0
  %v4561 = vadd.f32 0.0, %v4560
  %4562 = vmatmul.bf16.gmra.mxu0 %v4350
  %v4563 = vpop.f32.mrf.mxu0
  %v4564 = vadd.f32 0.0, %v4563
  %v4565 = vpop.f32.mrf.mxu0
  %v4566 = vadd.f32 0.0, %v4565
  %4567 = vmatmul.bf16.gmra.mxu0 %v4353
  %v4568 = vpop.f32.mrf.mxu0
  %v4569 = vadd.f32 0.0, %v4568
  %v4570 = vpop.f32.mrf.mxu0
  %v4571 = vadd.f32 0.0, %v4570
  %4572 = vdwg.mxu0
  %4573 = vmatpush.bf16.msra.mxu0 %v4491
  %4574 = vmatpush.bf16.msra.mxu0 %v4490
  %4575 = vmatpush.bf16.msra.mxu0 %v4489
  %4576 = vmatpush.bf16.msra.mxu0 %v4488
  %4577 = vmatpush.bf16.msra.mxu0 %v4487
  %4578 = vmatpush.bf16.msra.mxu0 %v4486
  %4579 = vmatpush.bf16.msra.mxu0 %v4485
  %4580 = vmatpush.bf16.msra.mxu0 %v4484
  %4581 = vmatmul.bf16.gmra.mxu0 %v4333
  %v4582 = vpop.f32.mrf.mxu0
  %v4583 = vadd.f32 %v4534, %v4582
  %v4584 = vpop.f32.mrf.mxu0
  %v4585 = vadd.f32 %v4536, %v4584
  %4586 = vmatmul.bf16.gmra.mxu0 %v4336
  %v4587 = vpop.f32.mrf.mxu0
  %v4588 = vadd.f32 %v4539, %v4587
  %v4589 = vpop.f32.mrf.mxu0
  %v4590 = vadd.f32 %v4541, %v4589
  %4591 = vmatmul.bf16.gmra.mxu0 %v4339
  %v4592 = vpop.f32.mrf.mxu0
  %v4593 = vadd.f32 %v4544, %v4592
  %v4594 = vpop.f32.mrf.mxu0
  %v4595 = vadd.f32 %v4546, %v4594
  %4596 = vmatmul.bf16.gmra.mxu0 %v4342
  %v4597 = vpop.f32.mrf.mxu0
  %v4598 = vadd.f32 %v4549, %v4597
  %v4599 = vpop.f32.mrf.mxu0
  %v4600 = vadd.f32 %v4551, %v4599
  %4601 = vmatmul.bf16.gmra.mxu0 %v4345
  %v4602 = vpop.f32.mrf.mxu0
  %v4603 = vadd.f32 %v4554, %v4602
  %v4604 = vpop.f32.mrf.mxu0
  %v4605 = vadd.f32 %v4556, %v4604
  %4606 = vmatmul.bf16.gmra.mxu0 %v4348
  %v4607 = vpop.f32.mrf.mxu0
  %v4608 = vadd.f32 %v4559, %v4607
  %v4609 = vpop.f32.mrf.mxu0
  %v4610 = vadd.f32 %v4561, %v4609
  %4611 = vmatmul.bf16.gmra.mxu0 %v4351
  %v4612 = vpop.f32.mrf.mxu0
  %v4613 = vadd.f32 %v4564, %v4612
  %v4614 = vpop.f32.mrf.mxu0
  %v4615 = vadd.f32 %v4566, %v4614
  %4616 = vmatmul.bf16.gmra.mxu0 %v4354
  %v4617 = vpop.f32.mrf.mxu0
  %v4618 = vadd.f32 %v4569, %v4617
  %v4619 = vpop.f32.mrf.mxu0
  %v4620 = vadd.f32 %v4571, %v4619
  %4621 = vdwg.mxu0
  %4622 = vmatpush.bf16.msra.mxu0 %v4499
  %4623 = vmatpush.bf16.msra.mxu0 %v4498
  %4624 = vmatpush.bf16.msra.mxu0 %v4497
  %4625 = vmatpush.bf16.msra.mxu0 %v4496
  %4626 = vmatpush.bf16.msra.mxu0 %v4495
  %4627 = vmatpush.bf16.msra.mxu0 %v4494
  %4628 = vmatpush.bf16.msra.mxu0 %v4493
  %4629 = vmatpush.bf16.msra.mxu0 %v4492
  %4630 = vmatmul.bf16.gmra.mxu0 %v4334
  %v4631 = vpop.f32.mrf.mxu0
  %v4632 = vadd.f32 %v4583, %v4631
  %v4633 = vpop.f32.mrf.mxu0
  %v4634 = vadd.f32 %v4585, %v4633
  %4635 = vmatmul.bf16.gmra.mxu0 %v4337
  %v4636 = vpop.f32.mrf.mxu0
  %v4637 = vadd.f32 %v4588, %v4636
  %v4638 = vpop.f32.mrf.mxu0
  %v4639 = vadd.f32 %v4590, %v4638
  %4640 = vmatmul.bf16.gmra.mxu0 %v4340
  %v4641 = vpop.f32.mrf.mxu0
  %v4642 = vadd.f32 %v4593, %v4641
  %v4643 = vpop.f32.mrf.mxu0
  %v4644 = vadd.f32 %v4595, %v4643
  %4645 = vmatmul.bf16.gmra.mxu0 %v4343
  %v4646 = vpop.f32.mrf.mxu0
  %v4647 = vadd.f32 %v4598, %v4646
  %v4648 = vpop.f32.mrf.mxu0
  %v4649 = vadd.f32 %v4600, %v4648
  %4650 = vmatmul.bf16.gmra.mxu0 %v4346
  %v4651 = vpop.f32.mrf.mxu0
  %v4652 = vadd.f32 %v4603, %v4651
  %v4653 = vpop.f32.mrf.mxu0
  %v4654 = vadd.f32 %v4605, %v4653
  %4655 = vmatmul.bf16.gmra.mxu0 %v4349
  %v4656 = vpop.f32.mrf.mxu0
  %v4657 = vadd.f32 %v4608, %v4656
  %v4658 = vpop.f32.mrf.mxu0
  %v4659 = vadd.f32 %v4610, %v4658
  %4660 = vmatmul.bf16.gmra.mxu0 %v4352
  %v4661 = vpop.f32.mrf.mxu0
  %v4662 = vadd.f32 %v4613, %v4661
  %v4663 = vpop.f32.mrf.mxu0
  %v4664 = vadd.f32 %v4615, %v4663
  %4665 = vmatmul.bf16.gmra.mxu0 %v4355
  %v4666 = vpop.f32.mrf.mxu0
  %v4667 = vadd.f32 %v4618, %v4666
  %v4668 = vpop.f32.mrf.mxu0
  %v4669 = vadd.f32 %v4620, %v4668
  %4670 = vdwg.mxu0
  %v4671 = vadd.f32 %v4133, %v4632
  %v4672 = vadd.f32 %v4135, %v4634
  %v4673 = vadd.f32 %v4138, %v4637
  %v4674 = vadd.f32 %v4140, %v4639
  %v4675 = vadd.f32 %v4143, %v4642
  %v4676 = vadd.f32 %v4145, %v4644
  %v4677 = vadd.f32 %v4148, %v4647
  %v4678 = vadd.f32 %v4150, %v4649
  %v4679 = vadd.f32 %v4153, %v4652
  %v4680 = vadd.f32 %v4155, %v4654
  %v4681 = vadd.f32 %v4158, %v4657
  %v4682 = vadd.f32 %v4160, %v4659
  %v4683 = vadd.f32 %v4163, %v4662
  %v4684 = vadd.f32 %v4165, %v4664
  %v4685 = vadd.f32 %v4168, %v4667
  %v4686 = vadd.f32 %v4170, %v4669
  %v4687 = vld [vmem:[%s4] sm:$0x1]
  %v4689 = vperm.slane %v4687, 0
  %v4691 = vadd.f32 %v4671, %v4689
  %v4692 = vadd.f32 %v4672, %v4689
  %v4693 = vadd.f32 %v4673, %v4689
  %v4694 = vadd.f32 %v4674, %v4689
  %v4695 = vadd.f32 %v4675, %v4689
  %v4696 = vadd.f32 %v4676, %v4689
  %v4697 = vadd.f32 %v4677, %v4689
  %v4698 = vadd.f32 %v4678, %v4689
  %v4699 = vadd.f32 %v4679, %v4689
  %v4700 = vadd.f32 %v4680, %v4689
  %v4701 = vadd.f32 %v4681, %v4689
  %v4702 = vadd.f32 %v4682, %v4689
  %v4703 = vadd.f32 %v4683, %v4689
  %v4704 = vadd.f32 %v4684, %v4689
  %v4705 = vadd.f32 %v4685, %v4689
  %v4706 = vadd.f32 %v4686, %v4689
  %v4707 = vld [vmem:[%s1 + $0x100] sm:$0xff]
  %v4708 = vld [vmem:[%s1 + $0x108] sm:$0xff]
  %v4709 = vld [vmem:[%s1 + $0x110] sm:$0xff]
  %v4710 = vld [vmem:[%s1 + $0x118] sm:$0xff]
  %v4711 = vld [vmem:[%s1 + $0x120] sm:$0xff]
  %v4712 = vld [vmem:[%s1 + $0x128] sm:$0xff]
  %v4713 = vld [vmem:[%s1 + $0x130] sm:$0xff]
  %v4714 = vld [vmem:[%s1 + $0x138] sm:$0xff]
  %v4715 = vld [vmem:[%s1 + $0x140] sm:$0xff]
  %v4716 = vld [vmem:[%s1 + $0x148] sm:$0xff]
  %v4717 = vld [vmem:[%s1 + $0x150] sm:$0xff]
  %v4718 = vld [vmem:[%s1 + $0x158] sm:$0xff]
  %v4719 = vld [vmem:[%s1 + $0x160] sm:$0xff]
  %v4720 = vld [vmem:[%s1 + $0x168] sm:$0xff]
  %v4721 = vld [vmem:[%s1 + $0x170] sm:$0xff]
  %v4722 = vld [vmem:[%s1 + $0x178] sm:$0xff]
  %vm4723 = vcmp.gt.f32.partialorder %v4707, 0.0
  %vm4724 = vcmp.gt.f32.partialorder %v4708, 0.0
  %vm4725 = vcmp.gt.f32.partialorder %v4709, 0.0
  %vm4726 = vcmp.gt.f32.partialorder %v4710, 0.0
  %vm4727 = vcmp.gt.f32.partialorder %v4711, 0.0
  %vm4728 = vcmp.gt.f32.partialorder %v4712, 0.0
  %vm4729 = vcmp.gt.f32.partialorder %v4713, 0.0
  %vm4730 = vcmp.gt.f32.partialorder %v4714, 0.0
  %vm4731 = vcmp.gt.f32.partialorder %v4715, 0.0
  %vm4732 = vcmp.gt.f32.partialorder %v4716, 0.0
  %vm4733 = vcmp.gt.f32.partialorder %v4717, 0.0
  %vm4734 = vcmp.gt.f32.partialorder %v4718, 0.0
  %vm4735 = vcmp.gt.f32.partialorder %v4719, 0.0
  %vm4736 = vcmp.gt.f32.partialorder %v4720, 0.0
  %vm4737 = vcmp.gt.f32.partialorder %v4721, 0.0
  %vm4738 = vcmp.gt.f32.partialorder %v4722, 0.0
  %v4739 = vsel %vm4723, 1, 0
  %v4740 = vsel %vm4724, 1, 0
  %v4741 = vsel %vm4725, 1, 0
  %v4742 = vsel %vm4726, 1, 0
  %v4743 = vsel %vm4727, 1, 0
  %v4744 = vsel %vm4728, 1, 0
  %v4745 = vsel %vm4729, 1, 0
  %v4746 = vsel %vm4730, 1, 0
  %v4747 = vsel %vm4731, 1, 0
  %v4748 = vsel %vm4732, 1, 0
  %v4749 = vsel %vm4733, 1, 0
  %v4750 = vsel %vm4734, 1, 0
  %v4751 = vsel %vm4735, 1, 0
  %v4752 = vsel %vm4736, 1, 0
  %v4753 = vsel %vm4737, 1, 0
  %v4754 = vsel %vm4738, 1, 0
  %4755 = vset.pattern.permute.xlu0 0
  %4756 = vperm.xlu0 %4755, %v4739
  %v4757 = vpop.permute.xlu0 %4756
  %4758 = vset.pattern.permute.xlu0 0
  %4759 = vperm.xlu0 %4758, %v4740
  %v4760 = vpop.permute.xlu0 %4759
  %4761 = vset.pattern.permute.xlu0 0
  %4762 = vperm.xlu0 %4761, %v4741
  %v4763 = vpop.permute.xlu0 %4762
  %4764 = vset.pattern.permute.xlu0 0
  %4765 = vperm.xlu0 %4764, %v4742
  %v4766 = vpop.permute.xlu0 %4765
  %4767 = vset.pattern.permute.xlu0 0
  %4768 = vperm.xlu0 %4767, %v4743
  %v4769 = vpop.permute.xlu0 %4768
  %4770 = vset.pattern.permute.xlu0 0
  %4771 = vperm.xlu0 %4770, %v4744
  %v4772 = vpop.permute.xlu0 %4771
  %4773 = vset.pattern.permute.xlu0 0
  %4774 = vperm.xlu0 %4773, %v4745
  %v4775 = vpop.permute.xlu0 %4774
  %4776 = vset.pattern.permute.xlu0 0
  %4777 = vperm.xlu0 %4776, %v4746
  %v4778 = vpop.permute.xlu0 %4777
  %4779 = vset.pattern.permute.xlu0 0
  %4780 = vperm.xlu0 %4779, %v4747
  %v4781 = vpop.permute.xlu0 %4780
  %4782 = vset.pattern.permute.xlu0 0
  %4783 = vperm.xlu0 %4782, %v4748
  %v4784 = vpop.permute.xlu0 %4783
  %4785 = vset.pattern.permute.xlu0 0
  %4786 = vperm.xlu0 %4785, %v4749
  %v4787 = vpop.permute.xlu0 %4786
  %4788 = vset.pattern.permute.xlu0 0
  %4789 = vperm.xlu0 %4788, %v4750
  %v4790 = vpop.permute.xlu0 %4789
  %4791 = vset.pattern.permute.xlu0 0
  %4792 = vperm.xlu0 %4791, %v4751
  %v4793 = vpop.permute.xlu0 %4792
  %4794 = vset.pattern.permute.xlu0 0
  %4795 = vperm.xlu0 %4794, %v4752
  %v4796 = vpop.permute.xlu0 %4795
  %4797 = vset.pattern.permute.xlu0 0
  %4798 = vperm.xlu0 %4797, %v4753
  %v4799 = vpop.permute.xlu0 %4798
  %4800 = vset.pattern.permute.xlu0 0
  %4801 = vperm.xlu0 %4800, %v4754
  %v4802 = vpop.permute.xlu0 %4801
  %vm4803 = vcmp.eq.s32.totalorder %v4757, 1
  %vm4804 = vcmp.eq.s32.totalorder %v4760, 1
  %vm4805 = vcmp.eq.s32.totalorder %v4763, 1
  %vm4806 = vcmp.eq.s32.totalorder %v4766, 1
  %vm4807 = vcmp.eq.s32.totalorder %v4769, 1
  %vm4808 = vcmp.eq.s32.totalorder %v4772, 1
  %vm4809 = vcmp.eq.s32.totalorder %v4775, 1
  %vm4810 = vcmp.eq.s32.totalorder %v4778, 1
  %vm4811 = vcmp.eq.s32.totalorder %v4781, 1
  %vm4812 = vcmp.eq.s32.totalorder %v4784, 1
  %vm4813 = vcmp.eq.s32.totalorder %v4787, 1
  %vm4814 = vcmp.eq.s32.totalorder %v4790, 1
  %vm4815 = vcmp.eq.s32.totalorder %v4793, 1
  %vm4816 = vcmp.eq.s32.totalorder %v4796, 1
  %vm4817 = vcmp.eq.s32.totalorder %v4799, 1
  %vm4818 = vcmp.eq.s32.totalorder %v4802, 1
  %v4819 = vsel %vm4803, %v4691, 0.0
  %v4820 = vsel %vm4804, %v4692, 0.0
  %v4821 = vsel %vm4805, %v4693, 0.0
  %v4822 = vsel %vm4806, %v4694, 0.0
  %v4823 = vsel %vm4807, %v4695, 0.0
  %v4824 = vsel %vm4808, %v4696, 0.0
  %v4825 = vsel %vm4809, %v4697, 0.0
  %v4826 = vsel %vm4810, %v4698, 0.0
  %v4827 = vsel %vm4811, %v4699, 0.0
  %v4828 = vsel %vm4812, %v4700, 0.0
  %v4829 = vsel %vm4813, %v4701, 0.0
  %v4830 = vsel %vm4814, %v4702, 0.0
  %v4831 = vsel %vm4815, %v4703, 0.0
  %v4832 = vsel %vm4816, %v4704, 0.0
  %v4833 = vsel %vm4817, %v4705, 0.0
  %v4834 = vsel %vm4818, %v4706, 0.0
  %v4835 = vsel %vm1576, %v4819, 0.0
  %v4836 = vsel %vm1576, %v4820, 0.0
  %v4837 = vadd.f32 %v4835, %v4836
  %v4838 = vsel %vm1576, %v4821, 0.0
  %v4839 = vadd.f32 %v4837, %v4838
  %v4840 = vsel %vm1576, %v4822, 0.0
  %v4841 = vadd.f32 %v4839, %v4840
  %v4842 = vsel %vm1576, %v4823, 0.0
  %v4843 = vadd.f32 %v4841, %v4842
  %v4844 = vsel %vm1576, %v4824, 0.0
  %v4845 = vadd.f32 %v4843, %v4844
  %v4846 = vsel %vm1576, %v4825, 0.0
  %v4847 = vadd.f32 %v4845, %v4846
  %v4848 = vsel %vm1576, %v4826, 0.0
  %v4849 = vadd.f32 %v4847, %v4848
  %v4850 = vsel %vm1576, %v4827, 0.0
  %v4851 = vadd.f32 %v4849, %v4850
  %v4852 = vsel %vm1576, %v4828, 0.0
  %v4853 = vadd.f32 %v4851, %v4852
  %v4854 = vsel %vm1576, %v4829, 0.0
  %v4855 = vadd.f32 %v4853, %v4854
  %v4856 = vsel %vm1576, %v4830, 0.0
  %v4857 = vadd.f32 %v4855, %v4856
  %v4858 = vsel %vm1576, %v4831, 0.0
  %v4859 = vadd.f32 %v4857, %v4858
  %v4860 = vsel %vm1576, %v4832, 0.0
  %v4861 = vadd.f32 %v4859, %v4860
  %v4862 = vsel %vm1576, %v4833, 0.0
  %v4863 = vadd.f32 %v4861, %v4862
  %v4864 = vsel %vm1576, %v4834, 0.0
  %v4865 = vadd.f32 %v4863, %v4864
  %v4866 = vrot.slane %v4865, 4
  %v4867 = vadd.f32 %v4865, %v4866
  %v4868 = vrot.slane %v4867, 2
  %v4869 = vadd.f32 %v4867, %v4868
  %v4870 = vrot.slane %v4869, 1
  %v4871 = vadd.f32 %v4869, %v4870
  %v4872 = vadd.f32 %v3243, %v4871
  %v4873 = vmul.f32 %v4819, %v4819
  %v4874 = vmul.f32 %v4820, %v4820
  %v4875 = vmul.f32 %v4821, %v4821
  %v4876 = vmul.f32 %v4822, %v4822
  %v4877 = vmul.f32 %v4823, %v4823
  %v4878 = vmul.f32 %v4824, %v4824
  %v4879 = vmul.f32 %v4825, %v4825
  %v4880 = vmul.f32 %v4826, %v4826
  %v4881 = vmul.f32 %v4827, %v4827
  %v4882 = vmul.f32 %v4828, %v4828
  %v4883 = vmul.f32 %v4829, %v4829
  %v4884 = vmul.f32 %v4830, %v4830
  %v4885 = vmul.f32 %v4831, %v4831
  %v4886 = vmul.f32 %v4832, %v4832
  %v4887 = vmul.f32 %v4833, %v4833
  %v4888 = vmul.f32 %v4834, %v4834
  %v4889 = vsel %vm1576, %v4873, 0.0
  %v4890 = vsel %vm1576, %v4874, 0.0
  %v4891 = vadd.f32 %v4889, %v4890
  %v4892 = vsel %vm1576, %v4875, 0.0
  %v4893 = vadd.f32 %v4891, %v4892
  %v4894 = vsel %vm1576, %v4876, 0.0
  %v4895 = vadd.f32 %v4893, %v4894
  %v4896 = vsel %vm1576, %v4877, 0.0
  %v4897 = vadd.f32 %v4895, %v4896
  %v4898 = vsel %vm1576, %v4878, 0.0
  %v4899 = vadd.f32 %v4897, %v4898
  %v4900 = vsel %vm1576, %v4879, 0.0
  %v4901 = vadd.f32 %v4899, %v4900
  %v4902 = vsel %vm1576, %v4880, 0.0
  %v4903 = vadd.f32 %v4901, %v4902
  %v4904 = vsel %vm1576, %v4881, 0.0
  %v4905 = vadd.f32 %v4903, %v4904
  %v4906 = vsel %vm1576, %v4882, 0.0
  %v4907 = vadd.f32 %v4905, %v4906
  %v4908 = vsel %vm1576, %v4883, 0.0
  %v4909 = vadd.f32 %v4907, %v4908
  %v4910 = vsel %vm1576, %v4884, 0.0
  %v4911 = vadd.f32 %v4909, %v4910
  %v4912 = vsel %vm1576, %v4885, 0.0
  %v4913 = vadd.f32 %v4911, %v4912
  %v4914 = vsel %vm1576, %v4886, 0.0
  %v4915 = vadd.f32 %v4913, %v4914
  %v4916 = vsel %vm1576, %v4887, 0.0
  %v4917 = vadd.f32 %v4915, %v4916
  %v4918 = vsel %vm1576, %v4888, 0.0
  %v4919 = vadd.f32 %v4917, %v4918
  %v4920 = vrot.slane %v4919, 4
  %v4921 = vadd.f32 %v4919, %v4920
  %v4922 = vrot.slane %v4921, 2
  %v4923 = vadd.f32 %v4921, %v4922
  %v4924 = vrot.slane %v4923, 1
  %v4925 = vadd.f32 %v4923, %v4924
  %v4926 = vadd.f32 %v3297, %v4925
  %4927 = vst.msk [vmem:[#allocation2 + $0x100] sm:$0xff] %vm1576, %v4691
  %4928 = vst.msk [vmem:[#allocation2 + $0x108] sm:$0xff] %vm1576, %v4692
  %4929 = vst.msk [vmem:[#allocation2 + $0x110] sm:$0xff] %vm1576, %v4693
  %4930 = vst.msk [vmem:[#allocation2 + $0x118] sm:$0xff] %vm1576, %v4694
  %4931 = vst.msk [vmem:[#allocation2 + $0x120] sm:$0xff] %vm1576, %v4695
  %4932 = vst.msk [vmem:[#allocation2 + $0x128] sm:$0xff] %vm1576, %v4696
  %4933 = vst.msk [vmem:[#allocation2 + $0x130] sm:$0xff] %vm1576, %v4697
  %4934 = vst.msk [vmem:[#allocation2 + $0x138] sm:$0xff] %vm1576, %v4698
  %4935 = vst.msk [vmem:[#allocation2 + $0x140] sm:$0xff] %vm1576, %v4699
  %4936 = vst.msk [vmem:[#allocation2 + $0x148] sm:$0xff] %vm1576, %v4700
  %4937 = vst.msk [vmem:[#allocation2 + $0x150] sm:$0xff] %vm1576, %v4701
  %4938 = vst.msk [vmem:[#allocation2 + $0x158] sm:$0xff] %vm1576, %v4702
  %4939 = vst.msk [vmem:[#allocation2 + $0x160] sm:$0xff] %vm1576, %v4703
  %4940 = vst.msk [vmem:[#allocation2 + $0x168] sm:$0xff] %vm1576, %v4704
  %4941 = vst.msk [vmem:[#allocation2 + $0x170] sm:$0xff] %vm1576, %v4705
  %4942 = vst.msk [vmem:[#allocation2 + $0x178] sm:$0xff] %vm1576, %v4706
  %v4943 = vld [vmem:[%s0 + $0x240] sm:$0xff]
  %v4944 = vld [vmem:[%s0 + $0x248] sm:$0xf]
  %v4945 = vld [vmem:[%s0 + $0x24c] sm:$0xff]
  %v4946 = vld [vmem:[%s0 + $0x254] sm:$0xf]
  %v4947 = vld [vmem:[%s0 + $0x258] sm:$0xff]
  %v4948 = vld [vmem:[%s0 + $0x260] sm:$0xf]
  %v4949 = vld [vmem:[%s0 + $0x264] sm:$0xff]
  %v4950 = vld [vmem:[%s0 + $0x26c] sm:$0xf]
  %v4951 = vld [vmem:[%s0 + $0x270] sm:$0xff]
  %v4952 = vld [vmem:[%s0 + $0x278] sm:$0xf]
  %v4953 = vld [vmem:[%s0 + $0x27c] sm:$0xff]
  %v4954 = vld [vmem:[%s0 + $0x284] sm:$0xf]
  %v4955 = vld [vmem:[%s0 + $0x288] sm:$0xff]
  %v4956 = vld [vmem:[%s0 + $0x290] sm:$0xf]
  %v4957 = vld [vmem:[%s0 + $0x294] sm:$0xff]
  %v4958 = vld [vmem:[%s0 + $0x29c] sm:$0xf]
  %v4959 = vld [vmem:[%s0 + $0x2a0] sm:$0xff]
  %v4960 = vld [vmem:[%s0 + $0x2a8] sm:$0xf]
  %v4961 = vld [vmem:[%s0 + $0x2ac] sm:$0xff]
  %v4962 = vld [vmem:[%s0 + $0x2b4] sm:$0xf]
  %v4963 = vld [vmem:[%s0 + $0x2b8] sm:$0xff]
  %v4964 = vld [vmem:[%s0 + $0x2c0] sm:$0xf]
  %v4965 = vld [vmem:[%s0 + $0x2c4] sm:$0xff]
  %v4966 = vld [vmem:[%s0 + $0x2cc] sm:$0xf]
  %v4967 = vld [vmem:[%s0 + $0x2d0] sm:$0xff]
  %v4968 = vld [vmem:[%s0 + $0x2d8] sm:$0xf]
  %v4969 = vld [vmem:[%s0 + $0x2dc] sm:$0xff]
  %v4970 = vld [vmem:[%s0 + $0x2e4] sm:$0xf]
  %v4971 = vld [vmem:[%s0 + $0x2e8] sm:$0xff]
  %v4972 = vld [vmem:[%s0 + $0x2f0] sm:$0xf]
  %v4973 = vld [vmem:[%s0 + $0x2f4] sm:$0xff]
  %v4974 = vld [vmem:[%s0 + $0x2fc] sm:$0xf]
  %v4975 = vld [vmem:[%s3] sm:$0xf]
  %v4976 = vld [vmem:[%s3 + $0x4] sm:$0xf]
  %v4977 = vld [vmem:[%s3 + $0x8] sm:$0xf]
  %v4978 = vld [vmem:[%s3 + $0xc] sm:$0xf]
  %v4979 = vld [vmem:[%s3 + $0x10] sm:$0xf]
  %v4980 = vld [vmem:[%s3 + $0x14] sm:$0xf]
  %v4981 = vld [vmem:[%s3 + $0x18] sm:$0xf]
  %v4982 = vld [vmem:[%s3 + $0x1c] sm:$0xf]
  %v4983 = vld [vmem:[%s3 + $0x20] sm:$0xf]
  %v4984 = vld [vmem:[%s3 + $0x24] sm:$0xf]
  %v4985 = vld [vmem:[%s3 + $0x28] sm:$0xf]
  %v4986 = vld [vmem:[%s3 + $0x2c] sm:$0xf]
  %v4987 = vld [vmem:[%s3 + $0x30] sm:$0xf]
  %v4988 = vld [vmem:[%s3 + $0x34] sm:$0xf]
  %v4989 = vld [vmem:[%s3 + $0x38] sm:$0xf]
  %v4990 = vld [vmem:[%s3 + $0x3c] sm:$0xf]
  %v4991 = vld [vmem:[%s3 + $0x40] sm:$0xf]
  %v4992 = vld [vmem:[%s3 + $0x44] sm:$0xf]
  %v4993 = vld [vmem:[%s3 + $0x48] sm:$0xf]
  %v4994 = vld [vmem:[%s3 + $0x4c] sm:$0xf]
  %v4995 = vld [vmem:[%s3 + $0x50] sm:$0xf]
  %v4996 = vld [vmem:[%s3 + $0x54] sm:$0xf]
  %v4997 = vld [vmem:[%s3 + $0x58] sm:$0xf]
  %v4998 = vld [vmem:[%s3 + $0x5c] sm:$0xf]
  %v4999 = vld [vmem:[%s3 + $0x60] sm:$0xf]
  %v5000 = vld [vmem:[%s3 + $0x64] sm:$0xf]
  %v5001 = vld [vmem:[%s3 + $0x68] sm:$0xf]
  %v5002 = vld [vmem:[%s3 + $0x6c] sm:$0xf]
  %v5003 = vld [vmem:[%s3 + $0x70] sm:$0xf]
  %v5004 = vld [vmem:[%s3 + $0x74] sm:$0xf]
  %v5005 = vld [vmem:[%s3 + $0x78] sm:$0xf]
  %v5006 = vld [vmem:[%s3 + $0x7c] sm:$0xf]
  %v5007 = vld [vmem:[%s3 + $0x80] sm:$0xf]
  %v5008 = vld [vmem:[%s3 + $0x84] sm:$0xf]
  %v5009 = vld [vmem:[%s3 + $0x88] sm:$0xf]
  %v5010 = vld [vmem:[%s3 + $0x8c] sm:$0xf]
  %v5011 = vld [vmem:[%s3 + $0x90] sm:$0xf]
  %v5012 = vld [vmem:[%s3 + $0x94] sm:$0xf]
  %v5013 = vld [vmem:[%s3 + $0x98] sm:$0xf]
  %v5014 = vld [vmem:[%s3 + $0x9c] sm:$0xf]
  %v5015 = vld [vmem:[%s3 + $0xa0] sm:$0xf]
  %v5016 = vld [vmem:[%s3 + $0xa4] sm:$0xf]
  %v5017 = vld [vmem:[%s3 + $0xa8] sm:$0xf]
  %v5018 = vld [vmem:[%s3 + $0xac] sm:$0xf]
  %v5019 = vld [vmem:[%s3 + $0xb0] sm:$0xf]
  %v5020 = vld [vmem:[%s3 + $0xb4] sm:$0xf]
  %v5021 = vld [vmem:[%s3 + $0xb8] sm:$0xf]
  %v5022 = vld [vmem:[%s3 + $0xbc] sm:$0xf]
  %v5023 = vld [vmem:[%s0 + $0x300] sm:$0xff]
  %v5024 = vld [vmem:[%s0 + $0x308] sm:$0xf]
  %v5025 = vld [vmem:[%s0 + $0x30c] sm:$0xff]
  %v5026 = vld [vmem:[%s0 + $0x314] sm:$0xf]
  %v5027 = vld [vmem:[%s137] sm:$0xf]
  %v5028 = vld [vmem:[%s137 + $0x4] sm:$0xf]
  %v5029 = vld [vmem:[%s137 + $0x8] sm:$0xf]
  %v5030 = vld [vmem:[%s137 + $0xc] sm:$0xf]
  %v5031 = vld [vmem:[%s137 + $0x10] sm:$0xf]
  %v5032 = vld [vmem:[%s137 + $0x14] sm:$0xf]
  %v5033 = vld [vmem:[%s137 + $0x18] sm:$0xf]
  %v5034 = vld [vmem:[%s137 + $0x1c] sm:$0xf]
  %v5035 = vld [vmem:[%s137 + $0x20] sm:$0xf]
  %v5036 = vld [vmem:[%s137 + $0x24] sm:$0xf]
  %v5037 = vld [vmem:[%s137 + $0x28] sm:$0xf]
  %v5038 = vld [vmem:[%s137 + $0x2c] sm:$0xf]
  %v5039 = vld [vmem:[%s137 + $0x30] sm:$0xf]
  %v5040 = vld [vmem:[%s137 + $0x34] sm:$0xf]
  %v5041 = vld [vmem:[%s137 + $0x38] sm:$0xf]
  %v5042 = vld [vmem:[%s137 + $0x3c] sm:$0xf]
  %v5043 = vld [vmem:[%s137 + $0x40] sm:$0xf]
  %v5044 = vld [vmem:[%s137 + $0x44] sm:$0xf]
  %v5045 = vld [vmem:[%s137 + $0x48] sm:$0xf]
  %v5046 = vld [vmem:[%s137 + $0x4c] sm:$0xf]
  %v5047 = vld [vmem:[%s137 + $0x50] sm:$0xf]
  %v5048 = vld [vmem:[%s137 + $0x54] sm:$0xf]
  %v5049 = vld [vmem:[%s137 + $0x58] sm:$0xf]
  %v5050 = vld [vmem:[%s137 + $0x5c] sm:$0xf]
  %v5051 = vld [vmem:[%s137 + $0x60] sm:$0xf]
  %v5052 = vld [vmem:[%s137 + $0x64] sm:$0xf]
  %v5053 = vld [vmem:[%s137 + $0x68] sm:$0xf]
  %v5054 = vld [vmem:[%s137 + $0x6c] sm:$0xf]
  %v5055 = vld [vmem:[%s137 + $0x70] sm:$0xf]
  %v5056 = vld [vmem:[%s137 + $0x74] sm:$0xf]
  %v5057 = vld [vmem:[%s137 + $0x78] sm:$0xf]
  %v5058 = vld [vmem:[%s137 + $0x7c] sm:$0xf]
  %v5059 = vld [vmem:[%s137 + $0x80] sm:$0xf]
  %v5060 = vld [vmem:[%s137 + $0x84] sm:$0xf]
  %v5061 = vld [vmem:[%s137 + $0x88] sm:$0xf]
  %v5062 = vld [vmem:[%s137 + $0x8c] sm:$0xf]
  %v5063 = vld [vmem:[%s137 + $0x90] sm:$0xf]
  %v5064 = vld [vmem:[%s137 + $0x94] sm:$0xf]
  %v5065 = vld [vmem:[%s137 + $0x98] sm:$0xf]
  %v5066 = vld [vmem:[%s137 + $0x9c] sm:$0xf]
  %v5067 = vld [vmem:[%s137 + $0xa0] sm:$0xf]
  %v5068 = vld [vmem:[%s137 + $0xa4] sm:$0xf]
  %v5069 = vld [vmem:[%s137 + $0xa8] sm:$0xf]
  %v5070 = vld [vmem:[%s137 + $0xac] sm:$0xf]
  %v5071 = vld [vmem:[%s137 + $0xb0] sm:$0xf]
  %v5072 = vld [vmem:[%s137 + $0xb4] sm:$0xf]
  %v5073 = vld [vmem:[%s137 + $0xb8] sm:$0xf]
  %v5074 = vld [vmem:[%s137 + $0xbc] sm:$0xf]
  %v5107 = vunpack.c.l.b16 %v4947
  %v5108 = vunpack.c.h.b16 %v4947
  %v5109 = vunpack.c.l.b16 %v4948
  %v5110 = vunpack.c.l.b16 %v4949
  %v5111 = vunpack.c.h.b16 %v4949
  %v5112 = vunpack.c.l.b16 %v4950
  %v5113 = vunpack.c.l.b16 %v4951
  %v5114 = vunpack.c.h.b16 %v4951
  %v5115 = vunpack.c.l.b16 %v4952
  %v5116 = vunpack.c.l.b16 %v4953
  %v5117 = vunpack.c.h.b16 %v4953
  %v5118 = vunpack.c.l.b16 %v4954
  %v5119 = vunpack.c.l.b16 %v4955
  %v5120 = vunpack.c.h.b16 %v4955
  %v5121 = vunpack.c.l.b16 %v4956
  %v5122 = vunpack.c.l.b16 %v4957
  %v5123 = vunpack.c.h.b16 %v4957
  %v5124 = vunpack.c.l.b16 %v4958
  %v5125 = vunpack.c.l.b16 %v4959
  %v5126 = vunpack.c.h.b16 %v4959
  %v5127 = vunpack.c.l.b16 %v4960
  %v5128 = vunpack.c.l.b16 %v4961
  %v5129 = vunpack.c.h.b16 %v4961
  %v5130 = vunpack.c.l.b16 %v4962
  %v5131 = vunpack.c.l.b16 %v4963
  %v5132 = vunpack.c.h.b16 %v4963
  %v5133 = vunpack.c.l.b16 %v4964
  %v5134 = vunpack.c.l.b16 %v4965
  %v5135 = vunpack.c.h.b16 %v4965
  %v5136 = vunpack.c.l.b16 %v4966
  %v5137 = vunpack.c.l.b16 %v4967
  %v5138 = vunpack.c.h.b16 %v4967
  %v5139 = vunpack.c.l.b16 %v4968
  %v5140 = vunpack.c.l.b16 %v4969
  %v5141 = vunpack.c.h.b16 %v4969
  %v5142 = vunpack.c.l.b16 %v4970
  %v5143 = vunpack.c.l.b16 %v4971
  %v5144 = vunpack.c.h.b16 %v4971
  %v5145 = vunpack.c.l.b16 %v4972
  %v5146 = vunpack.c.l.b16 %v4973
  %v5147 = vunpack.c.h.b16 %v4973
  %v5148 = vunpack.c.l.b16 %v4974
  %v5149 = vunpack.c.l.b16 %v5023
  %v5150 = vunpack.c.h.b16 %v5023
  %v5151 = vunpack.c.l.b16 %v5024
  %v5152 = vunpack.c.l.b16 %v5025
  %v5153 = vunpack.c.h.b16 %v5025
  %v5154 = vunpack.c.l.b16 %v5026
  %v5155 = vpack.c.b16 %v5110, %v5107
  %v5156 = vpack.c.b16 %v5111, %v5108
  %v5157 = vpack.c.b16 %v5112, %v5109
  %v5158 = vpack.c.b16 %v5116, %v5113
  %v5159 = vpack.c.b16 %v5117, %v5114
  %v5160 = vpack.c.b16 %v5118, %v5115
  %v5161 = vpack.c.b16 %v5122, %v5119
  %v5162 = vpack.c.b16 %v5123, %v5120
  %v5163 = vpack.c.b16 %v5124, %v5121
  %v5164 = vpack.c.b16 %v5128, %v5125
  %v5165 = vpack.c.b16 %v5129, %v5126
  %v5166 = vpack.c.b16 %v5130, %v5127
  %v5167 = vpack.c.b16 %v5134, %v5131
  %v5168 = vpack.c.b16 %v5135, %v5132
  %v5169 = vpack.c.b16 %v5136, %v5133
  %v5170 = vpack.c.b16 %v5140, %v5137
  %v5171 = vpack.c.b16 %v5141, %v5138
  %v5172 = vpack.c.b16 %v5142, %v5139
  %v5173 = vpack.c.b16 %v5146, %v5143
  %v5174 = vpack.c.b16 %v5147, %v5144
  %v5175 = vpack.c.b16 %v5148, %v5145
  %v5176 = vpack.c.b16 %v5152, %v5149
  %v5177 = vpack.c.b16 %v5153, %v5150
  %v5178 = vpack.c.b16 %v5154, %v5151
  %v5251 = vunpack.c.l.b16 %v5027
  %v5252 = vunpack.c.l.b16 %v5028
  %v5253 = vunpack.c.l.b16 %v5029
  %v5254 = vunpack.c.l.b16 %v5030
  %v5255 = vunpack.c.l.b16 %v5031
  %v5256 = vunpack.c.l.b16 %v5032
  %v5257 = vunpack.c.l.b16 %v5033
  %v5258 = vunpack.c.l.b16 %v5034
  %v5259 = vunpack.c.l.b16 %v5035
  %v5260 = vunpack.c.l.b16 %v5036
  %v5261 = vunpack.c.l.b16 %v5037
  %v5262 = vunpack.c.l.b16 %v5038
  %v5263 = vunpack.c.l.b16 %v5039
  %v5264 = vunpack.c.l.b16 %v5040
  %v5265 = vunpack.c.l.b16 %v5041
  %v5266 = vunpack.c.l.b16 %v5042
  %v5267 = vunpack.c.l.b16 %v5043
  %v5268 = vunpack.c.l.b16 %v5044
  %v5269 = vunpack.c.l.b16 %v5045
  %v5270 = vunpack.c.l.b16 %v5046
  %v5271 = vunpack.c.l.b16 %v5047
  %v5272 = vunpack.c.l.b16 %v5048
  %v5273 = vunpack.c.l.b16 %v5049
  %v5274 = vunpack.c.l.b16 %v5050
  %v5275 = vunpack.c.l.b16 %v5051
  %v5276 = vunpack.c.l.b16 %v5052
  %v5277 = vunpack.c.l.b16 %v5053
  %v5278 = vunpack.c.l.b16 %v5054
  %v5279 = vunpack.c.l.b16 %v5055
  %v5280 = vunpack.c.l.b16 %v5056
  %v5281 = vunpack.c.l.b16 %v5057
  %v5282 = vunpack.c.l.b16 %v5058
  %v5283 = vunpack.c.l.b16 %v5059
  %v5284 = vunpack.c.l.b16 %v5060
  %v5285 = vunpack.c.l.b16 %v5061
  %v5286 = vunpack.c.l.b16 %v5062
  %v5287 = vunpack.c.l.b16 %v5063
  %v5288 = vunpack.c.l.b16 %v5064
  %v5289 = vunpack.c.l.b16 %v5065
  %v5290 = vunpack.c.l.b16 %v5066
  %v5291 = vunpack.c.l.b16 %v5067
  %v5292 = vunpack.c.l.b16 %v5068
  %v5293 = vunpack.c.l.b16 %v5069
  %v5294 = vunpack.c.l.b16 %v5070
  %v5295 = vunpack.c.l.b16 %v5071
  %v5296 = vunpack.c.l.b16 %v5072
  %v5297 = vunpack.c.l.b16 %v5073
  %v5298 = vunpack.c.l.b16 %v5074
  %v5299 = vpack.c.b16 %v5252, %v5251
  %v5300 = vpack.c.b16 %v5254, %v5253
  %v5301 = vpack.c.b16 %v5256, %v5255
  %v5302 = vpack.c.b16 %v5258, %v5257
  %v5303 = vpack.c.b16 %v5260, %v5259
  %v5304 = vpack.c.b16 %v5262, %v5261
  %v5305 = vpack.c.b16 %v5264, %v5263
  %v5306 = vpack.c.b16 %v5266, %v5265
  %v5307 = vpack.c.b16 %v5268, %v5267
  %v5308 = vpack.c.b16 %v5270, %v5269
  %v5309 = vpack.c.b16 %v5272, %v5271
  %v5310 = vpack.c.b16 %v5274, %v5273
  %v5311 = vpack.c.b16 %v5276, %v5275
  %v5312 = vpack.c.b16 %v5278, %v5277
  %v5313 = vpack.c.b16 %v5280, %v5279
  %v5314 = vpack.c.b16 %v5282, %v5281
  %v5315 = vpack.c.b16 %v5284, %v5283
  %v5316 = vpack.c.b16 %v5286, %v5285
  %v5317 = vpack.c.b16 %v5288, %v5287
  %v5318 = vpack.c.b16 %v5290, %v5289
  %v5319 = vpack.c.b16 %v5292, %v5291
  %v5320 = vpack.c.b16 %v5294, %v5293
  %v5321 = vpack.c.b16 %v5296, %v5295
  %v5322 = vpack.c.b16 %v5298, %v5297
  %5347 = vmatpush.bf16.msra.mxu0 %v5306
  %5348 = vmatpush.bf16.msra.mxu0 %v5305
  %5349 = vmatpush.bf16.msra.mxu0 %v5304
  %5350 = vmatpush.bf16.msra.mxu0 %v5303
  %5351 = vmatpush.bf16.msra.mxu0 %v5302
  %5352 = vmatpush.bf16.msra.mxu0 %v5301
  %5353 = vmatpush.bf16.msra.mxu0 %v5300
  %5354 = vmatpush.bf16.msra.mxu0 %v5299
  %5355 = vmatmul.bf16.gmra.mxu0 %v5155
  %v5356 = vpop.f32.mrf.mxu0
  %v5357 = vadd.f32 0.0, %v5356
  %v5358 = vpop.f32.mrf.mxu0
  %v5359 = vadd.f32 0.0, %v5358
  %5360 = vmatmul.bf16.gmra.mxu0 %v5158
  %v5361 = vpop.f32.mrf.mxu0
  %v5362 = vadd.f32 0.0, %v5361
  %v5363 = vpop.f32.mrf.mxu0
  %v5364 = vadd.f32 0.0, %v5363
  %5365 = vmatmul.bf16.gmra.mxu0 %v5161
  %v5366 = vpop.f32.mrf.mxu0
  %v5367 = vadd.f32 0.0, %v5366
  %v5368 = vpop.f32.mrf.mxu0
  %v5369 = vadd.f32 0.0, %v5368
  %5370 = vmatmul.bf16.gmra.mxu0 %v5164
  %v5371 = vpop.f32.mrf.mxu0
  %v5372 = vadd.f32 0.0, %v5371
  %v5373 = vpop.f32.mrf.mxu0
  %v5374 = vadd.f32 0.0, %v5373
  %5375 = vmatmul.bf16.gmra.mxu0 %v5167
  %v5376 = vpop.f32.mrf.mxu0
  %v5377 = vadd.f32 0.0, %v5376
  %v5378 = vpop.f32.mrf.mxu0
  %v5379 = vadd.f32 0.0, %v5378
  %5380 = vmatmul.bf16.gmra.mxu0 %v5170
  %v5381 = vpop.f32.mrf.mxu0
  %v5382 = vadd.f32 0.0, %v5381
  %v5383 = vpop.f32.mrf.mxu0
  %v5384 = vadd.f32 0.0, %v5383
  %5385 = vmatmul.bf16.gmra.mxu0 %v5173
  %v5386 = vpop.f32.mrf.mxu0
  %v5387 = vadd.f32 0.0, %v5386
  %v5388 = vpop.f32.mrf.mxu0
  %v5389 = vadd.f32 0.0, %v5388
  %5390 = vmatmul.bf16.gmra.mxu0 %v5176
  %v5391 = vpop.f32.mrf.mxu0
  %v5392 = vadd.f32 0.0, %v5391
  %v5393 = vpop.f32.mrf.mxu0
  %v5394 = vadd.f32 0.0, %v5393
  %5395 = vdwg.mxu0
  %5396 = vmatpush.bf16.msra.mxu0 %v5314
  %5397 = vmatpush.bf16.msra.mxu0 %v5313
  %5398 = vmatpush.bf16.msra.mxu0 %v5312
  %5399 = vmatpush.bf16.msra.mxu0 %v5311
  %5400 = vmatpush.bf16.msra.mxu0 %v5310
  %5401 = vmatpush.bf16.msra.mxu0 %v5309
  %5402 = vmatpush.bf16.msra.mxu0 %v5308
  %5403 = vmatpush.bf16.msra.mxu0 %v5307
  %5404 = vmatmul.bf16.gmra.mxu0 %v5156
  %v5405 = vpop.f32.mrf.mxu0
  %v5406 = vadd.f32 %v5357, %v5405
  %v5407 = vpop.f32.mrf.mxu0
  %v5408 = vadd.f32 %v5359, %v5407
  %5409 = vmatmul.bf16.gmra.mxu0 %v5159
  %v5410 = vpop.f32.mrf.mxu0
  %v5411 = vadd.f32 %v5362, %v5410
  %v5412 = vpop.f32.mrf.mxu0
  %v5413 = vadd.f32 %v5364, %v5412
  %5414 = vmatmul.bf16.gmra.mxu0 %v5162
  %v5415 = vpop.f32.mrf.mxu0
  %v5416 = vadd.f32 %v5367, %v5415
  %v5417 = vpop.f32.mrf.mxu0
  %v5418 = vadd.f32 %v5369, %v5417
  %5419 = vmatmul.bf16.gmra.mxu0 %v5165
  %v5420 = vpop.f32.mrf.mxu0
  %v5421 = vadd.f32 %v5372, %v5420
  %v5422 = vpop.f32.mrf.mxu0
  %v5423 = vadd.f32 %v5374, %v5422
  %5424 = vmatmul.bf16.gmra.mxu0 %v5168
  %v5425 = vpop.f32.mrf.mxu0
  %v5426 = vadd.f32 %v5377, %v5425
  %v5427 = vpop.f32.mrf.mxu0
  %v5428 = vadd.f32 %v5379, %v5427
  %5429 = vmatmul.bf16.gmra.mxu0 %v5171
  %v5430 = vpop.f32.mrf.mxu0
  %v5431 = vadd.f32 %v5382, %v5430
  %v5432 = vpop.f32.mrf.mxu0
  %v5433 = vadd.f32 %v5384, %v5432
  %5434 = vmatmul.bf16.gmra.mxu0 %v5174
  %v5435 = vpop.f32.mrf.mxu0
  %v5436 = vadd.f32 %v5387, %v5435
  %v5437 = vpop.f32.mrf.mxu0
  %v5438 = vadd.f32 %v5389, %v5437
  %5439 = vmatmul.bf16.gmra.mxu0 %v5177
  %v5440 = vpop.f32.mrf.mxu0
  %v5441 = vadd.f32 %v5392, %v5440
  %v5442 = vpop.f32.mrf.mxu0
  %v5443 = vadd.f32 %v5394, %v5442
  %5444 = vdwg.mxu0
  %5445 = vmatpush.bf16.msra.mxu0 %v5322
  %5446 = vmatpush.bf16.msra.mxu0 %v5321
  %5447 = vmatpush.bf16.msra.mxu0 %v5320
  %5448 = vmatpush.bf16.msra.mxu0 %v5319
  %5449 = vmatpush.bf16.msra.mxu0 %v5318
  %5450 = vmatpush.bf16.msra.mxu0 %v5317
  %5451 = vmatpush.bf16.msra.mxu0 %v5316
  %5452 = vmatpush.bf16.msra.mxu0 %v5315
  %5453 = vmatmul.bf16.gmra.mxu0 %v5157
  %v5454 = vpop.f32.mrf.mxu0
  %v5455 = vadd.f32 %v5406, %v5454
  %v5456 = vpop.f32.mrf.mxu0
  %v5457 = vadd.f32 %v5408, %v5456
  %5458 = vmatmul.bf16.gmra.mxu0 %v5160
  %v5459 = vpop.f32.mrf.mxu0
  %v5460 = vadd.f32 %v5411, %v5459
  %v5461 = vpop.f32.mrf.mxu0
  %v5462 = vadd.f32 %v5413, %v5461
  %5463 = vmatmul.bf16.gmra.mxu0 %v5163
  %v5464 = vpop.f32.mrf.mxu0
  %v5465 = vadd.f32 %v5416, %v5464
  %v5466 = vpop.f32.mrf.mxu0
  %v5467 = vadd.f32 %v5418, %v5466
  %5468 = vmatmul.bf16.gmra.mxu0 %v5166
  %v5469 = vpop.f32.mrf.mxu0
  %v5470 = vadd.f32 %v5421, %v5469
  %v5471 = vpop.f32.mrf.mxu0
  %v5472 = vadd.f32 %v5423, %v5471
  %5473 = vmatmul.bf16.gmra.mxu0 %v5169
  %v5474 = vpop.f32.mrf.mxu0
  %v5475 = vadd.f32 %v5426, %v5474
  %v5476 = vpop.f32.mrf.mxu0
  %v5477 = vadd.f32 %v5428, %v5476
  %5478 = vmatmul.bf16.gmra.mxu0 %v5172
  %v5479 = vpop.f32.mrf.mxu0
  %v5480 = vadd.f32 %v5431, %v5479
  %v5481 = vpop.f32.mrf.mxu0
  %v5482 = vadd.f32 %v5433, %v5481
  %5483 = vmatmul.bf16.gmra.mxu0 %v5175
  %v5484 = vpop.f32.mrf.mxu0
  %v5485 = vadd.f32 %v5436, %v5484
  %v5486 = vpop.f32.mrf.mxu0
  %v5487 = vadd.f32 %v5438, %v5486
  %5488 = vmatmul.bf16.gmra.mxu0 %v5178
  %v5489 = vpop.f32.mrf.mxu0
  %v5490 = vadd.f32 %v5441, %v5489
  %v5491 = vpop.f32.mrf.mxu0
  %v5492 = vadd.f32 %v5443, %v5491
  %5493 = vdwg.mxu0
  %v5498 = vunpack.c.l.b16 %v4943
  %v5499 = vunpack.c.h.b16 %v4943
  %v5500 = vunpack.c.l.b16 %v4944
  %v5501 = vunpack.c.l.b16 %v4945
  %v5502 = vunpack.c.h.b16 %v4945
  %v5503 = vunpack.c.l.b16 %v4946
  %v5504 = vpack.c.b16 %v5501, %v5498
  %v5505 = vpack.c.b16 %v5502, %v5499
  %v5506 = vpack.c.b16 %v5503, %v5500
  %v5558 = vunpack.c.l.b16 %v4975
  %v5559 = vunpack.c.l.b16 %v4976
  %v5560 = vunpack.c.l.b16 %v4977
  %v5561 = vunpack.c.l.b16 %v4978
  %v5562 = vunpack.c.l.b16 %v4979
  %v5563 = vunpack.c.l.b16 %v4980
  %v5564 = vunpack.c.l.b16 %v4981
  %v5565 = vunpack.c.l.b16 %v4982
  %v5566 = vunpack.c.l.b16 %v4983
  %v5567 = vunpack.c.l.b16 %v4984
  %v5568 = vunpack.c.l.b16 %v4985
  %v5569 = vunpack.c.l.b16 %v4986
  %v5570 = vunpack.c.l.b16 %v4987
  %v5571 = vunpack.c.l.b16 %v4988
  %v5572 = vunpack.c.l.b16 %v4989
  %v5573 = vunpack.c.l.b16 %v4990
  %v5574 = vunpack.c.l.b16 %v4991
  %v5575 = vunpack.c.l.b16 %v4992
  %v5576 = vunpack.c.l.b16 %v4993
  %v5577 = vunpack.c.l.b16 %v4994
  %v5578 = vunpack.c.l.b16 %v4995
  %v5579 = vunpack.c.l.b16 %v4996
  %v5580 = vunpack.c.l.b16 %v4997
  %v5581 = vunpack.c.l.b16 %v4998
  %v5582 = vunpack.c.l.b16 %v4999
  %v5583 = vunpack.c.l.b16 %v5000
  %v5584 = vunpack.c.l.b16 %v5001
  %v5585 = vunpack.c.l.b16 %v5002
  %v5586 = vunpack.c.l.b16 %v5003
  %v5587 = vunpack.c.l.b16 %v5004
  %v5588 = vunpack.c.l.b16 %v5005
  %v5589 = vunpack.c.l.b16 %v5006
  %v5590 = vunpack.c.l.b16 %v5007
  %v5591 = vunpack.c.l.b16 %v5008
  %v5592 = vunpack.c.l.b16 %v5009
  %v5593 = vunpack.c.l.b16 %v5010
  %v5594 = vunpack.c.l.b16 %v5011
  %v5595 = vunpack.c.l.b16 %v5012
  %v5596 = vunpack.c.l.b16 %v5013
  %v5597 = vunpack.c.l.b16 %v5014
  %v5598 = vunpack.c.l.b16 %v5015
  %v5599 = vunpack.c.l.b16 %v5016
  %v5600 = vunpack.c.l.b16 %v5017
  %v5601 = vunpack.c.l.b16 %v5018
  %v5602 = vunpack.c.l.b16 %v5019
  %v5603 = vunpack.c.l.b16 %v5020
  %v5604 = vunpack.c.l.b16 %v5021
  %v5605 = vunpack.c.l.b16 %v5022
  %v5606 = vpack.c.b16 %v5559, %v5558
  %v5607 = vpack.c.b16 %v5561, %v5560
  %v5608 = vpack.c.b16 %v5563, %v5562
  %v5609 = vpack.c.b16 %v5565, %v5564
  %v5610 = vpack.c.b16 %v5567, %v5566
  %v5611 = vpack.c.b16 %v5569, %v5568
  %v5612 = vpack.c.b16 %v5571, %v5570
  %v5613 = vpack.c.b16 %v5573, %v5572
  %v5614 = vpack.c.b16 %v5575, %v5574
  %v5615 = vpack.c.b16 %v5577, %v5576
  %v5616 = vpack.c.b16 %v5579, %v5578
  %v5617 = vpack.c.b16 %v5581, %v5580
  %v5618 = vpack.c.b16 %v5583, %v5582
  %v5619 = vpack.c.b16 %v5585, %v5584
  %v5620 = vpack.c.b16 %v5587, %v5586
  %v5621 = vpack.c.b16 %v5589, %v5588
  %v5622 = vpack.c.b16 %v5591, %v5590
  %v5623 = vpack.c.b16 %v5593, %v5592
  %v5624 = vpack.c.b16 %v5595, %v5594
  %v5625 = vpack.c.b16 %v5597, %v5596
  %v5626 = vpack.c.b16 %v5599, %v5598
  %v5627 = vpack.c.b16 %v5601, %v5600
  %v5628 = vpack.c.b16 %v5603, %v5602
  %v5629 = vpack.c.b16 %v5605, %v5604
  %5654 = vmatpush.bf16.msra.mxu0 %v5613
  %5655 = vmatpush.bf16.msra.mxu0 %v5612
  %5656 = vmatpush.bf16.msra.mxu0 %v5611
  %5657 = vmatpush.bf16.msra.mxu0 %v5610
  %5658 = vmatpush.bf16.msra.mxu0 %v5609
  %5659 = vmatpush.bf16.msra.mxu0 %v5608
  %5660 = vmatpush.bf16.msra.mxu0 %v5607
  %5661 = vmatpush.bf16.msra.mxu0 %v5606
  %5662 = vmatmul.bf16.gmra.mxu0 %v5504
  %v5663 = vpop.f32.mrf.mxu0
  %v5664 = vadd.f32 %v5455, %v5663
  %v5665 = vpop.f32.mrf.mxu0
  %v5666 = vadd.f32 %v5457, %v5665
  %5667 = vmatmul.bf16.gmra.mxu0 %v5155
  %v5668 = vpop.f32.mrf.mxu0
  %v5669 = vadd.f32 %v5460, %v5668
  %v5670 = vpop.f32.mrf.mxu0
  %v5671 = vadd.f32 %v5462, %v5670
  %5672 = vmatmul.bf16.gmra.mxu0 %v5158
  %v5673 = vpop.f32.mrf.mxu0
  %v5674 = vadd.f32 %v5465, %v5673
  %v5675 = vpop.f32.mrf.mxu0
  %v5676 = vadd.f32 %v5467, %v5675
  %5677 = vmatmul.bf16.gmra.mxu0 %v5161
  %v5678 = vpop.f32.mrf.mxu0
  %v5679 = vadd.f32 %v5470, %v5678
  %v5680 = vpop.f32.mrf.mxu0
  %v5681 = vadd.f32 %v5472, %v5680
  %5682 = vmatmul.bf16.gmra.mxu0 %v5164
  %v5683 = vpop.f32.mrf.mxu0
  %v5684 = vadd.f32 %v5475, %v5683
  %v5685 = vpop.f32.mrf.mxu0
  %v5686 = vadd.f32 %v5477, %v5685
  %5687 = vmatmul.bf16.gmra.mxu0 %v5167
  %v5688 = vpop.f32.mrf.mxu0
  %v5689 = vadd.f32 %v5480, %v5688
  %v5690 = vpop.f32.mrf.mxu0
  %v5691 = vadd.f32 %v5482, %v5690
  %5692 = vmatmul.bf16.gmra.mxu0 %v5170
  %v5693 = vpop.f32.mrf.mxu0
  %v5694 = vadd.f32 %v5485, %v5693
  %v5695 = vpop.f32.mrf.mxu0
  %v5696 = vadd.f32 %v5487, %v5695
  %5697 = vmatmul.bf16.gmra.mxu0 %v5173
  %v5698 = vpop.f32.mrf.mxu0
  %v5699 = vadd.f32 %v5490, %v5698
  %v5700 = vpop.f32.mrf.mxu0
  %v5701 = vadd.f32 %v5492, %v5700
  %5702 = vdwg.mxu0
  %5703 = vmatpush.bf16.msra.mxu0 %v5621
  %5704 = vmatpush.bf16.msra.mxu0 %v5620
  %5705 = vmatpush.bf16.msra.mxu0 %v5619
  %5706 = vmatpush.bf16.msra.mxu0 %v5618
  %5707 = vmatpush.bf16.msra.mxu0 %v5617
  %5708 = vmatpush.bf16.msra.mxu0 %v5616
  %5709 = vmatpush.bf16.msra.mxu0 %v5615
  %5710 = vmatpush.bf16.msra.mxu0 %v5614
  %5711 = vmatmul.bf16.gmra.mxu0 %v5505
  %v5712 = vpop.f32.mrf.mxu0
  %v5713 = vadd.f32 %v5664, %v5712
  %v5714 = vpop.f32.mrf.mxu0
  %v5715 = vadd.f32 %v5666, %v5714
  %5716 = vmatmul.bf16.gmra.mxu0 %v5156
  %v5717 = vpop.f32.mrf.mxu0
  %v5718 = vadd.f32 %v5669, %v5717
  %v5719 = vpop.f32.mrf.mxu0
  %v5720 = vadd.f32 %v5671, %v5719
  %5721 = vmatmul.bf16.gmra.mxu0 %v5159
  %v5722 = vpop.f32.mrf.mxu0
  %v5723 = vadd.f32 %v5674, %v5722
  %v5724 = vpop.f32.mrf.mxu0
  %v5725 = vadd.f32 %v5676, %v5724
  %5726 = vmatmul.bf16.gmra.mxu0 %v5162
  %v5727 = vpop.f32.mrf.mxu0
  %v5728 = vadd.f32 %v5679, %v5727
  %v5729 = vpop.f32.mrf.mxu0
  %v5730 = vadd.f32 %v5681, %v5729
  %5731 = vmatmul.bf16.gmra.mxu0 %v5165
  %v5732 = vpop.f32.mrf.mxu0
  %v5733 = vadd.f32 %v5684, %v5732
  %v5734 = vpop.f32.mrf.mxu0
  %v5735 = vadd.f32 %v5686, %v5734
  %5736 = vmatmul.bf16.gmra.mxu0 %v5168
  %v5737 = vpop.f32.mrf.mxu0
  %v5738 = vadd.f32 %v5689, %v5737
  %v5739 = vpop.f32.mrf.mxu0
  %v5740 = vadd.f32 %v5691, %v5739
  %5741 = vmatmul.bf16.gmra.mxu0 %v5171
  %v5742 = vpop.f32.mrf.mxu0
  %v5743 = vadd.f32 %v5694, %v5742
  %v5744 = vpop.f32.mrf.mxu0
  %v5745 = vadd.f32 %v5696, %v5744
  %5746 = vmatmul.bf16.gmra.mxu0 %v5174
  %v5747 = vpop.f32.mrf.mxu0
  %v5748 = vadd.f32 %v5699, %v5747
  %v5749 = vpop.f32.mrf.mxu0
  %v5750 = vadd.f32 %v5701, %v5749
  %5751 = vdwg.mxu0
  %5752 = vmatpush.bf16.msra.mxu0 %v5629
  %5753 = vmatpush.bf16.msra.mxu0 %v5628
  %5754 = vmatpush.bf16.msra.mxu0 %v5627
  %5755 = vmatpush.bf16.msra.mxu0 %v5626
  %5756 = vmatpush.bf16.msra.mxu0 %v5625
  %5757 = vmatpush.bf16.msra.mxu0 %v5624
  %5758 = vmatpush.bf16.msra.mxu0 %v5623
  %5759 = vmatpush.bf16.msra.mxu0 %v5622
  %5760 = vmatmul.bf16.gmra.mxu0 %v5506
  %v5761 = vpop.f32.mrf.mxu0
  %v5762 = vadd.f32 %v5713, %v5761
  %v5763 = vpop.f32.mrf.mxu0
  %v5764 = vadd.f32 %v5715, %v5763
  %5765 = vmatmul.bf16.gmra.mxu0 %v5157
  %v5766 = vpop.f32.mrf.mxu0
  %v5767 = vadd.f32 %v5718, %v5766
  %v5768 = vpop.f32.mrf.mxu0
  %v5769 = vadd.f32 %v5720, %v5768
  %5770 = vmatmul.bf16.gmra.mxu0 %v5160
  %v5771 = vpop.f32.mrf.mxu0
  %v5772 = vadd.f32 %v5723, %v5771
  %v5773 = vpop.f32.mrf.mxu0
  %v5774 = vadd.f32 %v5725, %v5773
  %5775 = vmatmul.bf16.gmra.mxu0 %v5163
  %v5776 = vpop.f32.mrf.mxu0
  %v5777 = vadd.f32 %v5728, %v5776
  %v5778 = vpop.f32.mrf.mxu0
  %v5779 = vadd.f32 %v5730, %v5778
  %5780 = vmatmul.bf16.gmra.mxu0 %v5166
  %v5781 = vpop.f32.mrf.mxu0
  %v5782 = vadd.f32 %v5733, %v5781
  %v5783 = vpop.f32.mrf.mxu0
  %v5784 = vadd.f32 %v5735, %v5783
  %5785 = vmatmul.bf16.gmra.mxu0 %v5169
  %v5786 = vpop.f32.mrf.mxu0
  %v5787 = vadd.f32 %v5738, %v5786
  %v5788 = vpop.f32.mrf.mxu0
  %v5789 = vadd.f32 %v5740, %v5788
  %5790 = vmatmul.bf16.gmra.mxu0 %v5172
  %v5791 = vpop.f32.mrf.mxu0
  %v5792 = vadd.f32 %v5743, %v5791
  %v5793 = vpop.f32.mrf.mxu0
  %v5794 = vadd.f32 %v5745, %v5793
  %5795 = vmatmul.bf16.gmra.mxu0 %v5175
  %v5796 = vpop.f32.mrf.mxu0
  %v5797 = vadd.f32 %v5748, %v5796
  %v5798 = vpop.f32.mrf.mxu0
  %v5799 = vadd.f32 %v5750, %v5798
  %5800 = vdwg.mxu0
  %v5801 = vld [vmem:[%s0 + $0x270] sm:$0xff]
  %v5802 = vld [vmem:[%s0 + $0x278] sm:$0xf]
  %v5803 = vld [vmem:[%s0 + $0x27c] sm:$0xff]
  %v5804 = vld [vmem:[%s0 + $0x284] sm:$0xf]
  %v5805 = vld [vmem:[%s0 + $0x288] sm:$0xff]
  %v5806 = vld [vmem:[%s0 + $0x290] sm:$0xf]
  %v5807 = vld [vmem:[%s0 + $0x294] sm:$0xff]
  %v5808 = vld [vmem:[%s0 + $0x29c] sm:$0xf]
  %v5809 = vld [vmem:[%s0 + $0x2a0] sm:$0xff]
  %v5810 = vld [vmem:[%s0 + $0x2a8] sm:$0xf]
  %v5811 = vld [vmem:[%s0 + $0x2ac] sm:$0xff]
  %v5812 = vld [vmem:[%s0 + $0x2b4] sm:$0xf]
  %v5813 = vld [vmem:[%s0 + $0x2b8] sm:$0xff]
  %v5814 = vld [vmem:[%s0 + $0x2c0] sm:$0xf]
  %v5815 = vld [vmem:[%s0 + $0x2c4] sm:$0xff]
  %v5816 = vld [vmem:[%s0 + $0x2cc] sm:$0xf]
  %v5817 = vld [vmem:[%s0 + $0x2d0] sm:$0xff]
  %v5818 = vld [vmem:[%s0 + $0x2d8] sm:$0xf]
  %v5819 = vld [vmem:[%s0 + $0x2dc] sm:$0xff]
  %v5820 = vld [vmem:[%s0 + $0x2e4] sm:$0xf]
  %v5821 = vld [vmem:[%s0 + $0x2e8] sm:$0xff]
  %v5822 = vld [vmem:[%s0 + $0x2f0] sm:$0xf]
  %v5823 = vld [vmem:[%s0 + $0x2f4] sm:$0xff]
  %v5824 = vld [vmem:[%s0 + $0x2fc] sm:$0xf]
  %v5825 = vld [vmem:[%s0 + $0x300] sm:$0xff]
  %v5826 = vld [vmem:[%s0 + $0x308] sm:$0xf]
  %v5827 = vld [vmem:[%s0 + $0x30c] sm:$0xff]
  %v5828 = vld [vmem:[%s0 + $0x314] sm:$0xf]
  %v5829 = vld [vmem:[%s0 + $0x318] sm:$0xff]
  %v5830 = vld [vmem:[%s0 + $0x320] sm:$0xf]
  %v5831 = vld [vmem:[%s0 + $0x324] sm:$0xff]
  %v5832 = vld [vmem:[%s0 + $0x32c] sm:$0xf]
  %v5833 = vld [vmem:[%s944] sm:$0xf]
  %v5834 = vld [vmem:[%s944 + $0x4] sm:$0xf]
  %v5835 = vld [vmem:[%s944 + $0x8] sm:$0xf]
  %v5836 = vld [vmem:[%s944 + $0xc] sm:$0xf]
  %v5837 = vld [vmem:[%s944 + $0x10] sm:$0xf]
  %v5838 = vld [vmem:[%s944 + $0x14] sm:$0xf]
  %v5839 = vld [vmem:[%s944 + $0x18] sm:$0xf]
  %v5840 = vld [vmem:[%s944 + $0x1c] sm:$0xf]
  %v5841 = vld [vmem:[%s944 + $0x20] sm:$0xf]
  %v5842 = vld [vmem:[%s944 + $0x24] sm:$0xf]
  %v5843 = vld [vmem:[%s944 + $0x28] sm:$0xf]
  %v5844 = vld [vmem:[%s944 + $0x2c] sm:$0xf]
  %v5845 = vld [vmem:[%s944 + $0x30] sm:$0xf]
  %v5846 = vld [vmem:[%s944 + $0x34] sm:$0xf]
  %v5847 = vld [vmem:[%s944 + $0x38] sm:$0xf]
  %v5848 = vld [vmem:[%s944 + $0x3c] sm:$0xf]
  %v5849 = vld [vmem:[%s944 + $0x40] sm:$0xf]
  %v5850 = vld [vmem:[%s944 + $0x44] sm:$0xf]
  %v5851 = vld [vmem:[%s944 + $0x48] sm:$0xf]
  %v5852 = vld [vmem:[%s944 + $0x4c] sm:$0xf]
  %v5853 = vld [vmem:[%s944 + $0x50] sm:$0xf]
  %v5854 = vld [vmem:[%s944 + $0x54] sm:$0xf]
  %v5855 = vld [vmem:[%s944 + $0x58] sm:$0xf]
  %v5856 = vld [vmem:[%s944 + $0x5c] sm:$0xf]
  %v5857 = vld [vmem:[%s944 + $0x60] sm:$0xf]
  %v5858 = vld [vmem:[%s944 + $0x64] sm:$0xf]
  %v5859 = vld [vmem:[%s944 + $0x68] sm:$0xf]
  %v5860 = vld [vmem:[%s944 + $0x6c] sm:$0xf]
  %v5861 = vld [vmem:[%s944 + $0x70] sm:$0xf]
  %v5862 = vld [vmem:[%s944 + $0x74] sm:$0xf]
  %v5863 = vld [vmem:[%s944 + $0x78] sm:$0xf]
  %v5864 = vld [vmem:[%s944 + $0x7c] sm:$0xf]
  %v5865 = vld [vmem:[%s944 + $0x80] sm:$0xf]
  %v5866 = vld [vmem:[%s944 + $0x84] sm:$0xf]
  %v5867 = vld [vmem:[%s944 + $0x88] sm:$0xf]
  %v5868 = vld [vmem:[%s944 + $0x8c] sm:$0xf]
  %v5869 = vld [vmem:[%s944 + $0x90] sm:$0xf]
  %v5870 = vld [vmem:[%s944 + $0x94] sm:$0xf]
  %v5871 = vld [vmem:[%s944 + $0x98] sm:$0xf]
  %v5872 = vld [vmem:[%s944 + $0x9c] sm:$0xf]
  %v5873 = vld [vmem:[%s944 + $0xa0] sm:$0xf]
  %v5874 = vld [vmem:[%s944 + $0xa4] sm:$0xf]
  %v5875 = vld [vmem:[%s944 + $0xa8] sm:$0xf]
  %v5876 = vld [vmem:[%s944 + $0xac] sm:$0xf]
  %v5877 = vld [vmem:[%s944 + $0xb0] sm:$0xf]
  %v5878 = vld [vmem:[%s944 + $0xb4] sm:$0xf]
  %v5879 = vld [vmem:[%s944 + $0xb8] sm:$0xf]
  %v5880 = vld [vmem:[%s944 + $0xbc] sm:$0xf]
  %v5913 = vunpack.c.l.b16 %v5801
  %v5914 = vunpack.c.h.b16 %v5801
  %v5915 = vunpack.c.l.b16 %v5802
  %v5916 = vunpack.c.l.b16 %v5803
  %v5917 = vunpack.c.h.b16 %v5803
  %v5918 = vunpack.c.l.b16 %v5804
  %v5919 = vunpack.c.l.b16 %v5805
  %v5920 = vunpack.c.h.b16 %v5805
  %v5921 = vunpack.c.l.b16 %v5806
  %v5922 = vunpack.c.l.b16 %v5807
  %v5923 = vunpack.c.h.b16 %v5807
  %v5924 = vunpack.c.l.b16 %v5808
  %v5925 = vunpack.c.l.b16 %v5809
  %v5926 = vunpack.c.h.b16 %v5809
  %v5927 = vunpack.c.l.b16 %v5810
  %v5928 = vunpack.c.l.b16 %v5811
  %v5929 = vunpack.c.h.b16 %v5811
  %v5930 = vunpack.c.l.b16 %v5812
  %v5931 = vunpack.c.l.b16 %v5813
  %v5932 = vunpack.c.h.b16 %v5813
  %v5933 = vunpack.c.l.b16 %v5814
  %v5934 = vunpack.c.l.b16 %v5815
  %v5935 = vunpack.c.h.b16 %v5815
  %v5936 = vunpack.c.l.b16 %v5816
  %v5937 = vunpack.c.l.b16 %v5817
  %v5938 = vunpack.c.h.b16 %v5817
  %v5939 = vunpack.c.l.b16 %v5818
  %v5940 = vunpack.c.l.b16 %v5819
  %v5941 = vunpack.c.h.b16 %v5819
  %v5942 = vunpack.c.l.b16 %v5820
  %v5943 = vunpack.c.l.b16 %v5821
  %v5944 = vunpack.c.h.b16 %v5821
  %v5945 = vunpack.c.l.b16 %v5822
  %v5946 = vunpack.c.l.b16 %v5823
  %v5947 = vunpack.c.h.b16 %v5823
  %v5948 = vunpack.c.l.b16 %v5824
  %v5949 = vunpack.c.l.b16 %v5825
  %v5950 = vunpack.c.h.b16 %v5825
  %v5951 = vunpack.c.l.b16 %v5826
  %v5952 = vunpack.c.l.b16 %v5827
  %v5953 = vunpack.c.h.b16 %v5827
  %v5954 = vunpack.c.l.b16 %v5828
  %v5955 = vunpack.c.l.b16 %v5829
  %v5956 = vunpack.c.h.b16 %v5829
  %v5957 = vunpack.c.l.b16 %v5830
  %v5958 = vunpack.c.l.b16 %v5831
  %v5959 = vunpack.c.h.b16 %v5831
  %v5960 = vunpack.c.l.b16 %v5832
  %v5961 = vpack.c.b16 %v5916, %v5913
  %v5962 = vpack.c.b16 %v5917, %v5914
  %v5963 = vpack.c.b16 %v5918, %v5915
  %v5964 = vpack.c.b16 %v5922, %v5919
  %v5965 = vpack.c.b16 %v5923, %v5920
  %v5966 = vpack.c.b16 %v5924, %v5921
  %v5967 = vpack.c.b16 %v5928, %v5925
  %v5968 = vpack.c.b16 %v5929, %v5926
  %v5969 = vpack.c.b16 %v5930, %v5927
  %v5970 = vpack.c.b16 %v5934, %v5931
  %v5971 = vpack.c.b16 %v5935, %v5932
  %v5972 = vpack.c.b16 %v5936, %v5933
  %v5973 = vpack.c.b16 %v5940, %v5937
  %v5974 = vpack.c.b16 %v5941, %v5938
  %v5975 = vpack.c.b16 %v5942, %v5939
  %v5976 = vpack.c.b16 %v5946, %v5943
  %v5977 = vpack.c.b16 %v5947, %v5944
  %v5978 = vpack.c.b16 %v5948, %v5945
  %v5979 = vpack.c.b16 %v5952, %v5949
  %v5980 = vpack.c.b16 %v5953, %v5950
  %v5981 = vpack.c.b16 %v5954, %v5951
  %v5982 = vpack.c.b16 %v5958, %v5955
  %v5983 = vpack.c.b16 %v5959, %v5956
  %v5984 = vpack.c.b16 %v5960, %v5957
  %v6057 = vunpack.c.l.b16 %v5833
  %v6058 = vunpack.c.l.b16 %v5834
  %v6059 = vunpack.c.l.b16 %v5835
  %v6060 = vunpack.c.l.b16 %v5836
  %v6061 = vunpack.c.l.b16 %v5837
  %v6062 = vunpack.c.l.b16 %v5838
  %v6063 = vunpack.c.l.b16 %v5839
  %v6064 = vunpack.c.l.b16 %v5840
  %v6065 = vunpack.c.l.b16 %v5841
  %v6066 = vunpack.c.l.b16 %v5842
  %v6067 = vunpack.c.l.b16 %v5843
  %v6068 = vunpack.c.l.b16 %v5844
  %v6069 = vunpack.c.l.b16 %v5845
  %v6070 = vunpack.c.l.b16 %v5846
  %v6071 = vunpack.c.l.b16 %v5847
  %v6072 = vunpack.c.l.b16 %v5848
  %v6073 = vunpack.c.l.b16 %v5849
  %v6074 = vunpack.c.l.b16 %v5850
  %v6075 = vunpack.c.l.b16 %v5851
  %v6076 = vunpack.c.l.b16 %v5852
  %v6077 = vunpack.c.l.b16 %v5853
  %v6078 = vunpack.c.l.b16 %v5854
  %v6079 = vunpack.c.l.b16 %v5855
  %v6080 = vunpack.c.l.b16 %v5856
  %v6081 = vunpack.c.l.b16 %v5857
  %v6082 = vunpack.c.l.b16 %v5858
  %v6083 = vunpack.c.l.b16 %v5859
  %v6084 = vunpack.c.l.b16 %v5860
  %v6085 = vunpack.c.l.b16 %v5861
  %v6086 = vunpack.c.l.b16 %v5862
  %v6087 = vunpack.c.l.b16 %v5863
  %v6088 = vunpack.c.l.b16 %v5864
  %v6089 = vunpack.c.l.b16 %v5865
  %v6090 = vunpack.c.l.b16 %v5866
  %v6091 = vunpack.c.l.b16 %v5867
  %v6092 = vunpack.c.l.b16 %v5868
  %v6093 = vunpack.c.l.b16 %v5869
  %v6094 = vunpack.c.l.b16 %v5870
  %v6095 = vunpack.c.l.b16 %v5871
  %v6096 = vunpack.c.l.b16 %v5872
  %v6097 = vunpack.c.l.b16 %v5873
  %v6098 = vunpack.c.l.b16 %v5874
  %v6099 = vunpack.c.l.b16 %v5875
  %v6100 = vunpack.c.l.b16 %v5876
  %v6101 = vunpack.c.l.b16 %v5877
  %v6102 = vunpack.c.l.b16 %v5878
  %v6103 = vunpack.c.l.b16 %v5879
  %v6104 = vunpack.c.l.b16 %v5880
  %v6105 = vpack.c.b16 %v6058, %v6057
  %v6106 = vpack.c.b16 %v6060, %v6059
  %v6107 = vpack.c.b16 %v6062, %v6061
  %v6108 = vpack.c.b16 %v6064, %v6063
  %v6109 = vpack.c.b16 %v6066, %v6065
  %v6110 = vpack.c.b16 %v6068, %v6067
  %v6111 = vpack.c.b16 %v6070, %v6069
  %v6112 = vpack.c.b16 %v6072, %v6071
  %v6113 = vpack.c.b16 %v6074, %v6073
  %v6114 = vpack.c.b16 %v6076, %v6075
  %v6115 = vpack.c.b16 %v6078, %v6077
  %v6116 = vpack.c.b16 %v6080, %v6079
  %v6117 = vpack.c.b16 %v6082, %v6081
  %v6118 = vpack.c.b16 %v6084, %v6083
  %v6119 = vpack.c.b16 %v6086, %v6085
  %v6120 = vpack.c.b16 %v6088, %v6087
  %v6121 = vpack.c.b16 %v6090, %v6089
  %v6122 = vpack.c.b16 %v6092, %v6091
  %v6123 = vpack.c.b16 %v6094, %v6093
  %v6124 = vpack.c.b16 %v6096, %v6095
  %v6125 = vpack.c.b16 %v6098, %v6097
  %v6126 = vpack.c.b16 %v6100, %v6099
  %v6127 = vpack.c.b16 %v6102, %v6101
  %v6128 = vpack.c.b16 %v6104, %v6103
  %6153 = vmatpush.bf16.msra.mxu0 %v6112
  %6154 = vmatpush.bf16.msra.mxu0 %v6111
  %6155 = vmatpush.bf16.msra.mxu0 %v6110
  %6156 = vmatpush.bf16.msra.mxu0 %v6109
  %6157 = vmatpush.bf16.msra.mxu0 %v6108
  %6158 = vmatpush.bf16.msra.mxu0 %v6107
  %6159 = vmatpush.bf16.msra.mxu0 %v6106
  %6160 = vmatpush.bf16.msra.mxu0 %v6105
  %6161 = vmatmul.bf16.gmra.mxu0 %v5961
  %v6162 = vpop.f32.mrf.mxu0
  %v6163 = vadd.f32 0.0, %v6162
  %v6164 = vpop.f32.mrf.mxu0
  %v6165 = vadd.f32 0.0, %v6164
  %6166 = vmatmul.bf16.gmra.mxu0 %v5964
  %v6167 = vpop.f32.mrf.mxu0
  %v6168 = vadd.f32 0.0, %v6167
  %v6169 = vpop.f32.mrf.mxu0
  %v6170 = vadd.f32 0.0, %v6169
  %6171 = vmatmul.bf16.gmra.mxu0 %v5967
  %v6172 = vpop.f32.mrf.mxu0
  %v6173 = vadd.f32 0.0, %v6172
  %v6174 = vpop.f32.mrf.mxu0
  %v6175 = vadd.f32 0.0, %v6174
  %6176 = vmatmul.bf16.gmra.mxu0 %v5970
  %v6177 = vpop.f32.mrf.mxu0
  %v6178 = vadd.f32 0.0, %v6177
  %v6179 = vpop.f32.mrf.mxu0
  %v6180 = vadd.f32 0.0, %v6179
  %6181 = vmatmul.bf16.gmra.mxu0 %v5973
  %v6182 = vpop.f32.mrf.mxu0
  %v6183 = vadd.f32 0.0, %v6182
  %v6184 = vpop.f32.mrf.mxu0
  %v6185 = vadd.f32 0.0, %v6184
  %6186 = vmatmul.bf16.gmra.mxu0 %v5976
  %v6187 = vpop.f32.mrf.mxu0
  %v6188 = vadd.f32 0.0, %v6187
  %v6189 = vpop.f32.mrf.mxu0
  %v6190 = vadd.f32 0.0, %v6189
  %6191 = vmatmul.bf16.gmra.mxu0 %v5979
  %v6192 = vpop.f32.mrf.mxu0
  %v6193 = vadd.f32 0.0, %v6192
  %v6194 = vpop.f32.mrf.mxu0
  %v6195 = vadd.f32 0.0, %v6194
  %6196 = vmatmul.bf16.gmra.mxu0 %v5982
  %v6197 = vpop.f32.mrf.mxu0
  %v6198 = vadd.f32 0.0, %v6197
  %v6199 = vpop.f32.mrf.mxu0
  %v6200 = vadd.f32 0.0, %v6199
  %6201 = vdwg.mxu0
  %6202 = vmatpush.bf16.msra.mxu0 %v6120
  %6203 = vmatpush.bf16.msra.mxu0 %v6119
  %6204 = vmatpush.bf16.msra.mxu0 %v6118
  %6205 = vmatpush.bf16.msra.mxu0 %v6117
  %6206 = vmatpush.bf16.msra.mxu0 %v6116
  %6207 = vmatpush.bf16.msra.mxu0 %v6115
  %6208 = vmatpush.bf16.msra.mxu0 %v6114
  %6209 = vmatpush.bf16.msra.mxu0 %v6113
  %6210 = vmatmul.bf16.gmra.mxu0 %v5962
  %v6211 = vpop.f32.mrf.mxu0
  %v6212 = vadd.f32 %v6163, %v6211
  %v6213 = vpop.f32.mrf.mxu0
  %v6214 = vadd.f32 %v6165, %v6213
  %6215 = vmatmul.bf16.gmra.mxu0 %v5965
  %v6216 = vpop.f32.mrf.mxu0
  %v6217 = vadd.f32 %v6168, %v6216
  %v6218 = vpop.f32.mrf.mxu0
  %v6219 = vadd.f32 %v6170, %v6218
  %6220 = vmatmul.bf16.gmra.mxu0 %v5968
  %v6221 = vpop.f32.mrf.mxu0
  %v6222 = vadd.f32 %v6173, %v6221
  %v6223 = vpop.f32.mrf.mxu0
  %v6224 = vadd.f32 %v6175, %v6223
  %6225 = vmatmul.bf16.gmra.mxu0 %v5971
  %v6226 = vpop.f32.mrf.mxu0
  %v6227 = vadd.f32 %v6178, %v6226
  %v6228 = vpop.f32.mrf.mxu0
  %v6229 = vadd.f32 %v6180, %v6228
  %6230 = vmatmul.bf16.gmra.mxu0 %v5974
  %v6231 = vpop.f32.mrf.mxu0
  %v6232 = vadd.f32 %v6183, %v6231
  %v6233 = vpop.f32.mrf.mxu0
  %v6234 = vadd.f32 %v6185, %v6233
  %6235 = vmatmul.bf16.gmra.mxu0 %v5977
  %v6236 = vpop.f32.mrf.mxu0
  %v6237 = vadd.f32 %v6188, %v6236
  %v6238 = vpop.f32.mrf.mxu0
  %v6239 = vadd.f32 %v6190, %v6238
  %6240 = vmatmul.bf16.gmra.mxu0 %v5980
  %v6241 = vpop.f32.mrf.mxu0
  %v6242 = vadd.f32 %v6193, %v6241
  %v6243 = vpop.f32.mrf.mxu0
  %v6244 = vadd.f32 %v6195, %v6243
  %6245 = vmatmul.bf16.gmra.mxu0 %v5983
  %v6246 = vpop.f32.mrf.mxu0
  %v6247 = vadd.f32 %v6198, %v6246
  %v6248 = vpop.f32.mrf.mxu0
  %v6249 = vadd.f32 %v6200, %v6248
  %6250 = vdwg.mxu0
  %6251 = vmatpush.bf16.msra.mxu0 %v6128
  %6252 = vmatpush.bf16.msra.mxu0 %v6127
  %6253 = vmatpush.bf16.msra.mxu0 %v6126
  %6254 = vmatpush.bf16.msra.mxu0 %v6125
  %6255 = vmatpush.bf16.msra.mxu0 %v6124
  %6256 = vmatpush.bf16.msra.mxu0 %v6123
  %6257 = vmatpush.bf16.msra.mxu0 %v6122
  %6258 = vmatpush.bf16.msra.mxu0 %v6121
  %6259 = vmatmul.bf16.gmra.mxu0 %v5963
  %v6260 = vpop.f32.mrf.mxu0
  %v6261 = vadd.f32 %v6212, %v6260
  %v6262 = vpop.f32.mrf.mxu0
  %v6263 = vadd.f32 %v6214, %v6262
  %6264 = vmatmul.bf16.gmra.mxu0 %v5966
  %v6265 = vpop.f32.mrf.mxu0
  %v6266 = vadd.f32 %v6217, %v6265
  %v6267 = vpop.f32.mrf.mxu0
  %v6268 = vadd.f32 %v6219, %v6267
  %6269 = vmatmul.bf16.gmra.mxu0 %v5969
  %v6270 = vpop.f32.mrf.mxu0
  %v6271 = vadd.f32 %v6222, %v6270
  %v6272 = vpop.f32.mrf.mxu0
  %v6273 = vadd.f32 %v6224, %v6272
  %6274 = vmatmul.bf16.gmra.mxu0 %v5972
  %v6275 = vpop.f32.mrf.mxu0
  %v6276 = vadd.f32 %v6227, %v6275
  %v6277 = vpop.f32.mrf.mxu0
  %v6278 = vadd.f32 %v6229, %v6277
  %6279 = vmatmul.bf16.gmra.mxu0 %v5975
  %v6280 = vpop.f32.mrf.mxu0
  %v6281 = vadd.f32 %v6232, %v6280
  %v6282 = vpop.f32.mrf.mxu0
  %v6283 = vadd.f32 %v6234, %v6282
  %6284 = vmatmul.bf16.gmra.mxu0 %v5978
  %v6285 = vpop.f32.mrf.mxu0
  %v6286 = vadd.f32 %v6237, %v6285
  %v6287 = vpop.f32.mrf.mxu0
  %v6288 = vadd.f32 %v6239, %v6287
  %6289 = vmatmul.bf16.gmra.mxu0 %v5981
  %v6290 = vpop.f32.mrf.mxu0
  %v6291 = vadd.f32 %v6242, %v6290
  %v6292 = vpop.f32.mrf.mxu0
  %v6293 = vadd.f32 %v6244, %v6292
  %6294 = vmatmul.bf16.gmra.mxu0 %v5984
  %v6295 = vpop.f32.mrf.mxu0
  %v6296 = vadd.f32 %v6247, %v6295
  %v6297 = vpop.f32.mrf.mxu0
  %v6298 = vadd.f32 %v6249, %v6297
  %6299 = vdwg.mxu0
  %v6300 = vadd.f32 %v5762, %v6261
  %v6301 = vadd.f32 %v5764, %v6263
  %v6302 = vadd.f32 %v5767, %v6266
  %v6303 = vadd.f32 %v5769, %v6268
  %v6304 = vadd.f32 %v5772, %v6271
  %v6305 = vadd.f32 %v5774, %v6273
  %v6306 = vadd.f32 %v5777, %v6276
  %v6307 = vadd.f32 %v5779, %v6278
  %v6308 = vadd.f32 %v5782, %v6281
  %v6309 = vadd.f32 %v5784, %v6283
  %v6310 = vadd.f32 %v5787, %v6286
  %v6311 = vadd.f32 %v5789, %v6288
  %v6312 = vadd.f32 %v5792, %v6291
  %v6313 = vadd.f32 %v5794, %v6293
  %v6314 = vadd.f32 %v5797, %v6296
  %v6315 = vadd.f32 %v5799, %v6298
  %v6316 = vld [vmem:[%s4] sm:$0x1]
  %v6318 = vperm.slane %v6316, 0
  %v6320 = vadd.f32 %v6300, %v6318
  %v6321 = vadd.f32 %v6301, %v6318
  %v6322 = vadd.f32 %v6302, %v6318
  %v6323 = vadd.f32 %v6303, %v6318
  %v6324 = vadd.f32 %v6304, %v6318
  %v6325 = vadd.f32 %v6305, %v6318
  %v6326 = vadd.f32 %v6306, %v6318
  %v6327 = vadd.f32 %v6307, %v6318
  %v6328 = vadd.f32 %v6308, %v6318
  %v6329 = vadd.f32 %v6309, %v6318
  %v6330 = vadd.f32 %v6310, %v6318
  %v6331 = vadd.f32 %v6311, %v6318
  %v6332 = vadd.f32 %v6312, %v6318
  %v6333 = vadd.f32 %v6313, %v6318
  %v6334 = vadd.f32 %v6314, %v6318
  %v6335 = vadd.f32 %v6315, %v6318
  %v6336 = vld [vmem:[%s1 + $0x180] sm:$0xff]
  %v6337 = vld [vmem:[%s1 + $0x188] sm:$0xff]
  %v6338 = vld [vmem:[%s1 + $0x190] sm:$0xff]
  %v6339 = vld [vmem:[%s1 + $0x198] sm:$0xff]
  %v6340 = vld [vmem:[%s1 + $0x1a0] sm:$0xff]
  %v6341 = vld [vmem:[%s1 + $0x1a8] sm:$0xff]
  %v6342 = vld [vmem:[%s1 + $0x1b0] sm:$0xff]
  %v6343 = vld [vmem:[%s1 + $0x1b8] sm:$0xff]
  %v6344 = vld [vmem:[%s1 + $0x1c0] sm:$0xff]
  %v6345 = vld [vmem:[%s1 + $0x1c8] sm:$0xff]
  %v6346 = vld [vmem:[%s1 + $0x1d0] sm:$0xff]
  %v6347 = vld [vmem:[%s1 + $0x1d8] sm:$0xff]
  %v6348 = vld [vmem:[%s1 + $0x1e0] sm:$0xff]
  %v6349 = vld [vmem:[%s1 + $0x1e8] sm:$0xff]
  %v6350 = vld [vmem:[%s1 + $0x1f0] sm:$0xff]
  %v6351 = vld [vmem:[%s1 + $0x1f8] sm:$0xff]
  %vm6352 = vcmp.gt.f32.partialorder %v6336, 0.0
  %vm6353 = vcmp.gt.f32.partialorder %v6337, 0.0
  %vm6354 = vcmp.gt.f32.partialorder %v6338, 0.0
  %vm6355 = vcmp.gt.f32.partialorder %v6339, 0.0
  %vm6356 = vcmp.gt.f32.partialorder %v6340, 0.0
  %vm6357 = vcmp.gt.f32.partialorder %v6341, 0.0
  %vm6358 = vcmp.gt.f32.partialorder %v6342, 0.0
  %vm6359 = vcmp.gt.f32.partialorder %v6343, 0.0
  %vm6360 = vcmp.gt.f32.partialorder %v6344, 0.0
  %vm6361 = vcmp.gt.f32.partialorder %v6345, 0.0
  %vm6362 = vcmp.gt.f32.partialorder %v6346, 0.0
  %vm6363 = vcmp.gt.f32.partialorder %v6347, 0.0
  %vm6364 = vcmp.gt.f32.partialorder %v6348, 0.0
  %vm6365 = vcmp.gt.f32.partialorder %v6349, 0.0
  %vm6366 = vcmp.gt.f32.partialorder %v6350, 0.0
  %vm6367 = vcmp.gt.f32.partialorder %v6351, 0.0
  %v6368 = vsel %vm6352, 1, 0
  %v6369 = vsel %vm6353, 1, 0
  %v6370 = vsel %vm6354, 1, 0
  %v6371 = vsel %vm6355, 1, 0
  %v6372 = vsel %vm6356, 1, 0
  %v6373 = vsel %vm6357, 1, 0
  %v6374 = vsel %vm6358, 1, 0
  %v6375 = vsel %vm6359, 1, 0
  %v6376 = vsel %vm6360, 1, 0
  %v6377 = vsel %vm6361, 1, 0
  %v6378 = vsel %vm6362, 1, 0
  %v6379 = vsel %vm6363, 1, 0
  %v6380 = vsel %vm6364, 1, 0
  %v6381 = vsel %vm6365, 1, 0
  %v6382 = vsel %vm6366, 1, 0
  %v6383 = vsel %vm6367, 1, 0
  %6384 = vset.pattern.permute.xlu0 0
  %6385 = vperm.xlu0 %6384, %v6368
  %v6386 = vpop.permute.xlu0 %6385
  %6387 = vset.pattern.permute.xlu0 0
  %6388 = vperm.xlu0 %6387, %v6369
  %v6389 = vpop.permute.xlu0 %6388
  %6390 = vset.pattern.permute.xlu0 0
  %6391 = vperm.xlu0 %6390, %v6370
  %v6392 = vpop.permute.xlu0 %6391
  %6393 = vset.pattern.permute.xlu0 0
  %6394 = vperm.xlu0 %6393, %v6371
  %v6395 = vpop.permute.xlu0 %6394
  %6396 = vset.pattern.permute.xlu0 0
  %6397 = vperm.xlu0 %6396, %v6372
  %v6398 = vpop.permute.xlu0 %6397
  %6399 = vset.pattern.permute.xlu0 0
  %6400 = vperm.xlu0 %6399, %v6373
  %v6401 = vpop.permute.xlu0 %6400
  %6402 = vset.pattern.permute.xlu0 0
  %6403 = vperm.xlu0 %6402, %v6374
  %v6404 = vpop.permute.xlu0 %6403
  %6405 = vset.pattern.permute.xlu0 0
  %6406 = vperm.xlu0 %6405, %v6375
  %v6407 = vpop.permute.xlu0 %6406
  %6408 = vset.pattern.permute.xlu0 0
  %6409 = vperm.xlu0 %6408, %v6376
  %v6410 = vpop.permute.xlu0 %6409
  %6411 = vset.pattern.permute.xlu0 0
  %6412 = vperm.xlu0 %6411, %v6377
  %v6413 = vpop.permute.xlu0 %6412
  %6414 = vset.pattern.permute.xlu0 0
  %6415 = vperm.xlu0 %6414, %v6378
  %v6416 = vpop.permute.xlu0 %6415
  %6417 = vset.pattern.permute.xlu0 0
  %6418 = vperm.xlu0 %6417, %v6379
  %v6419 = vpop.permute.xlu0 %6418
  %6420 = vset.pattern.permute.xlu0 0
  %6421 = vperm.xlu0 %6420, %v6380
  %v6422 = vpop.permute.xlu0 %6421
  %6423 = vset.pattern.permute.xlu0 0
  %6424 = vperm.xlu0 %6423, %v6381
  %v6425 = vpop.permute.xlu0 %6424
  %6426 = vset.pattern.permute.xlu0 0
  %6427 = vperm.xlu0 %6426, %v6382
  %v6428 = vpop.permute.xlu0 %6427
  %6429 = vset.pattern.permute.xlu0 0
  %6430 = vperm.xlu0 %6429, %v6383
  %v6431 = vpop.permute.xlu0 %6430
  %vm6432 = vcmp.eq.s32.totalorder %v6386, 1
  %vm6433 = vcmp.eq.s32.totalorder %v6389, 1
  %vm6434 = vcmp.eq.s32.totalorder %v6392, 1
  %vm6435 = vcmp.eq.s32.totalorder %v6395, 1
  %vm6436 = vcmp.eq.s32.totalorder %v6398, 1
  %vm6437 = vcmp.eq.s32.totalorder %v6401, 1
  %vm6438 = vcmp.eq.s32.totalorder %v6404, 1
  %vm6439 = vcmp.eq.s32.totalorder %v6407, 1
  %vm6440 = vcmp.eq.s32.totalorder %v6410, 1
  %vm6441 = vcmp.eq.s32.totalorder %v6413, 1
  %vm6442 = vcmp.eq.s32.totalorder %v6416, 1
  %vm6443 = vcmp.eq.s32.totalorder %v6419, 1
  %vm6444 = vcmp.eq.s32.totalorder %v6422, 1
  %vm6445 = vcmp.eq.s32.totalorder %v6425, 1
  %vm6446 = vcmp.eq.s32.totalorder %v6428, 1
  %vm6447 = vcmp.eq.s32.totalorder %v6431, 1
  %v6448 = vsel %vm6432, %v6320, 0.0
  %v6449 = vsel %vm6433, %v6321, 0.0
  %v6450 = vsel %vm6434, %v6322, 0.0
  %v6451 = vsel %vm6435, %v6323, 0.0
  %v6452 = vsel %vm6436, %v6324, 0.0
  %v6453 = vsel %vm6437, %v6325, 0.0
  %v6454 = vsel %vm6438, %v6326, 0.0
  %v6455 = vsel %vm6439, %v6327, 0.0
  %v6456 = vsel %vm6440, %v6328, 0.0
  %v6457 = vsel %vm6441, %v6329, 0.0
  %v6458 = vsel %vm6442, %v6330, 0.0
  %v6459 = vsel %vm6443, %v6331, 0.0
  %v6460 = vsel %vm6444, %v6332, 0.0
  %v6461 = vsel %vm6445, %v6333, 0.0
  %v6462 = vsel %vm6446, %v6334, 0.0
  %v6463 = vsel %vm6447, %v6335, 0.0
  %v6464 = vsel %vm1576, %v6448, 0.0
  %v6465 = vsel %vm1576, %v6449, 0.0
  %v6466 = vadd.f32 %v6464, %v6465
  %v6467 = vsel %vm1576, %v6450, 0.0
  %v6468 = vadd.f32 %v6466, %v6467
  %v6469 = vsel %vm1576, %v6451, 0.0
  %v6470 = vadd.f32 %v6468, %v6469
  %v6471 = vsel %vm1576, %v6452, 0.0
  %v6472 = vadd.f32 %v6470, %v6471
  %v6473 = vsel %vm1576, %v6453, 0.0
  %v6474 = vadd.f32 %v6472, %v6473
  %v6475 = vsel %vm1576, %v6454, 0.0
  %v6476 = vadd.f32 %v6474, %v6475
  %v6477 = vsel %vm1576, %v6455, 0.0
  %v6478 = vadd.f32 %v6476, %v6477
  %v6479 = vsel %vm1576, %v6456, 0.0
  %v6480 = vadd.f32 %v6478, %v6479
  %v6481 = vsel %vm1576, %v6457, 0.0
  %v6482 = vadd.f32 %v6480, %v6481
  %v6483 = vsel %vm1576, %v6458, 0.0
  %v6484 = vadd.f32 %v6482, %v6483
  %v6485 = vsel %vm1576, %v6459, 0.0
  %v6486 = vadd.f32 %v6484, %v6485
  %v6487 = vsel %vm1576, %v6460, 0.0
  %v6488 = vadd.f32 %v6486, %v6487
  %v6489 = vsel %vm1576, %v6461, 0.0
  %v6490 = vadd.f32 %v6488, %v6489
  %v6491 = vsel %vm1576, %v6462, 0.0
  %v6492 = vadd.f32 %v6490, %v6491
  %v6493 = vsel %vm1576, %v6463, 0.0
  %v6494 = vadd.f32 %v6492, %v6493
  %v6495 = vrot.slane %v6494, 4
  %v6496 = vadd.f32 %v6494, %v6495
  %v6497 = vrot.slane %v6496, 2
  %v6498 = vadd.f32 %v6496, %v6497
  %v6499 = vrot.slane %v6498, 1
  %v6500 = vadd.f32 %v6498, %v6499
  %v6501 = vadd.f32 %v4872, %v6500
  %v6502 = vmul.f32 %v6448, %v6448
  %v6503 = vmul.f32 %v6449, %v6449
  %v6504 = vmul.f32 %v6450, %v6450
  %v6505 = vmul.f32 %v6451, %v6451
  %v6506 = vmul.f32 %v6452, %v6452
  %v6507 = vmul.f32 %v6453, %v6453
  %v6508 = vmul.f32 %v6454, %v6454
  %v6509 = vmul.f32 %v6455, %v6455
  %v6510 = vmul.f32 %v6456, %v6456
  %v6511 = vmul.f32 %v6457, %v6457
  %v6512 = vmul.f32 %v6458, %v6458
  %v6513 = vmul.f32 %v6459, %v6459
  %v6514 = vmul.f32 %v6460, %v6460
  %v6515 = vmul.f32 %v6461, %v6461
  %v6516 = vmul.f32 %v6462, %v6462
  %v6517 = vmul.f32 %v6463, %v6463
  %v6518 = vsel %vm1576, %v6502, 0.0
  %v6519 = vsel %vm1576, %v6503, 0.0
  %v6520 = vadd.f32 %v6518, %v6519
  %v6521 = vsel %vm1576, %v6504, 0.0
  %v6522 = vadd.f32 %v6520, %v6521
  %v6523 = vsel %vm1576, %v6505, 0.0
  %v6524 = vadd.f32 %v6522, %v6523
  %v6525 = vsel %vm1576, %v6506, 0.0
  %v6526 = vadd.f32 %v6524, %v6525
  %v6527 = vsel %vm1576, %v6507, 0.0
  %v6528 = vadd.f32 %v6526, %v6527
  %v6529 = vsel %vm1576, %v6508, 0.0
  %v6530 = vadd.f32 %v6528, %v6529
  %v6531 = vsel %vm1576, %v6509, 0.0
  %v6532 = vadd.f32 %v6530, %v6531
  %v6533 = vsel %vm1576, %v6510, 0.0
  %v6534 = vadd.f32 %v6532, %v6533
  %v6535 = vsel %vm1576, %v6511, 0.0
  %v6536 = vadd.f32 %v6534, %v6535
  %v6537 = vsel %vm1576, %v6512, 0.0
  %v6538 = vadd.f32 %v6536, %v6537
  %v6539 = vsel %vm1576, %v6513, 0.0
  %v6540 = vadd.f32 %v6538, %v6539
  %v6541 = vsel %vm1576, %v6514, 0.0
  %v6542 = vadd.f32 %v6540, %v6541
  %v6543 = vsel %vm1576, %v6515, 0.0
  %v6544 = vadd.f32 %v6542, %v6543
  %v6545 = vsel %vm1576, %v6516, 0.0
  %v6546 = vadd.f32 %v6544, %v6545
  %v6547 = vsel %vm1576, %v6517, 0.0
  %v6548 = vadd.f32 %v6546, %v6547
  %v6549 = vrot.slane %v6548, 4
  %v6550 = vadd.f32 %v6548, %v6549
  %v6551 = vrot.slane %v6550, 2
  %v6552 = vadd.f32 %v6550, %v6551
  %v6553 = vrot.slane %v6552, 1
  %v6554 = vadd.f32 %v6552, %v6553
  %v6555 = vadd.f32 %v4926, %v6554
  %6556 = vst.msk [vmem:[#allocation2 + $0x180] sm:$0xff] %vm1576, %v6320
  %6557 = vst.msk [vmem:[#allocation2 + $0x188] sm:$0xff] %vm1576, %v6321
  %6558 = vst.msk [vmem:[#allocation2 + $0x190] sm:$0xff] %vm1576, %v6322
  %6559 = vst.msk [vmem:[#allocation2 + $0x198] sm:$0xff] %vm1576, %v6323
  %6560 = vst.msk [vmem:[#allocation2 + $0x1a0] sm:$0xff] %vm1576, %v6324
  %6561 = vst.msk [vmem:[#allocation2 + $0x1a8] sm:$0xff] %vm1576, %v6325
  %6562 = vst.msk [vmem:[#allocation2 + $0x1b0] sm:$0xff] %vm1576, %v6326
  %6563 = vst.msk [vmem:[#allocation2 + $0x1b8] sm:$0xff] %vm1576, %v6327
  %6564 = vst.msk [vmem:[#allocation2 + $0x1c0] sm:$0xff] %vm1576, %v6328
  %6565 = vst.msk [vmem:[#allocation2 + $0x1c8] sm:$0xff] %vm1576, %v6329
  %6566 = vst.msk [vmem:[#allocation2 + $0x1d0] sm:$0xff] %vm1576, %v6330
  %6567 = vst.msk [vmem:[#allocation2 + $0x1d8] sm:$0xff] %vm1576, %v6331
  %6568 = vst.msk [vmem:[#allocation2 + $0x1e0] sm:$0xff] %vm1576, %v6332
  %6569 = vst.msk [vmem:[#allocation2 + $0x1e8] sm:$0xff] %vm1576, %v6333
  %6570 = vst.msk [vmem:[#allocation2 + $0x1f0] sm:$0xff] %vm1576, %v6334
  %6571 = vst.msk [vmem:[#allocation2 + $0x1f8] sm:$0xff] %vm1576, %v6335
  %v6572 = vmul.f32 %v6501, 0.0034722222
  %v6573 = vmul.f32 %v6555, 0.0034722222
  %v6574 = vmul.f32 %v6572, %v6572
  %v6575 = vsub.f32 %v6573, %v6574
  %v6576 = vld [vmem:[%s5] sm:$0x1]
  %v6577 = vadd.f32 %v6575, 1e-05
  %v6578 = vrsqrt.pop %v6577
  %v6579 = vmul.f32 %v6578, %v6577
  %v6580 = vmul.f32 %v6579, %v6578
  %v6581 = vmul.f32 0.5, %v6580
  %v6582 = vsub.f32 1.5, %v6581
  %v6583 = vmul.f32 %v6578, %v6582
  %vm6584 = vweird.f32 %v6577
  %vm6585 = vweird.f32 %v6578
  %vm6586 = vmor %vm6584, %vm6585
  %v6587 = vsel %vm6586, %v6578, %v6583
  %v6588 = vmul.f32 %v6576, %v6587
  %v6589 = vld [vmem:[%s6] sm:$0x1]
  %v6590 = vmul.f32 %v6572, %v6588
  %v6591 = vsub.f32 %v6589, %v6590
  %v6592 = vld [vmem:[#allocation2] sm:$0xff]
  %v6593 = vld [vmem:[#allocation2 + $0x8] sm:$0xff]
  %v6594 = vld [vmem:[#allocation2 + $0x10] sm:$0xff]
  %v6595 = vld [vmem:[#allocation2 + $0x18] sm:$0xff]
  %v6596 = vld [vmem:[#allocation2 + $0x20] sm:$0xff]
  %v6597 = vld [vmem:[#allocation2 + $0x28] sm:$0xff]
  %v6598 = vld [vmem:[#allocation2 + $0x30] sm:$0xff]
  %v6599 = vld [vmem:[#allocation2 + $0x38] sm:$0xff]
  %v6600 = vld [vmem:[#allocation2 + $0x40] sm:$0xff]
  %v6601 = vld [vmem:[#allocation2 + $0x48] sm:$0xff]
  %v6602 = vld [vmem:[#allocation2 + $0x50] sm:$0xff]
  %v6603 = vld [vmem:[#allocation2 + $0x58] sm:$0xff]
  %v6604 = vld [vmem:[#allocation2 + $0x60] sm:$0xff]
  %v6605 = vld [vmem:[#allocation2 + $0x68] sm:$0xff]
  %v6606 = vld [vmem:[#allocation2 + $0x70] sm:$0xff]
  %v6607 = vld [vmem:[#allocation2 + $0x78] sm:$0xff]
  %v6608 = vld [vmem:[#allocation2 + $0x80] sm:$0xff]
  %v6609 = vld [vmem:[#allocation2 + $0x88] sm:$0xff]
  %v6610 = vld [vmem:[#allocation2 + $0x90] sm:$0xff]
  %v6611 = vld [vmem:[#allocation2 + $0x98] sm:$0xff]
  %v6612 = vld [vmem:[#allocation2 + $0xa0] sm:$0xff]
  %v6613 = vld [vmem:[#allocation2 + $0xa8] sm:$0xff]
  %v6614 = vld [vmem:[#allocation2 + $0xb0] sm:$0xff]
  %v6615 = vld [vmem:[#allocation2 + $0xb8] sm:$0xff]
  %v6616 = vld [vmem:[#allocation2 + $0xc0] sm:$0xff]
  %v6617 = vld [vmem:[#allocation2 + $0xc8] sm:$0xff]
  %v6618 = vld [vmem:[#allocation2 + $0xd0] sm:$0xff]
  %v6619 = vld [vmem:[#allocation2 + $0xd8] sm:$0xff]
  %v6620 = vld [vmem:[#allocation2 + $0xe0] sm:$0xff]
  %v6621 = vld [vmem:[#allocation2 + $0xe8] sm:$0xff]
  %v6622 = vld [vmem:[#allocation2 + $0xf0] sm:$0xff]
  %v6623 = vld [vmem:[#allocation2 + $0xf8] sm:$0xff]
  %v6624 = vld [vmem:[#allocation2 + $0x100] sm:$0xff]
  %v6625 = vld [vmem:[#allocation2 + $0x108] sm:$0xff]
  %v6626 = vld [vmem:[#allocation2 + $0x110] sm:$0xff]
  %v6627 = vld [vmem:[#allocation2 + $0x118] sm:$0xff]
  %v6628 = vld [vmem:[#allocation2 + $0x120] sm:$0xff]
  %v6629 = vld [vmem:[#allocation2 + $0x128] sm:$0xff]
  %v6630 = vld [vmem:[#allocation2 + $0x130] sm:$0xff]
  %v6631 = vld [vmem:[#allocation2 + $0x138] sm:$0xff]
  %v6632 = vld [vmem:[#allocation2 + $0x140] sm:$0xff]
  %v6633 = vld [vmem:[#allocation2 + $0x148] sm:$0xff]
  %v6634 = vld [vmem:[#allocation2 + $0x150] sm:$0xff]
  %v6635 = vld [vmem:[#allocation2 + $0x158] sm:$0xff]
  %v6636 = vld [vmem:[#allocation2 + $0x160] sm:$0xff]
  %v6637 = vld [vmem:[#allocation2 + $0x168] sm:$0xff]
  %v6638 = vld [vmem:[#allocation2 + $0x170] sm:$0xff]
  %v6639 = vld [vmem:[#allocation2 + $0x178] sm:$0xff]
  %v6640 = vld [vmem:[#allocation2 + $0x180] sm:$0xff]
  %v6641 = vld [vmem:[#allocation2 + $0x188] sm:$0xff]
  %v6642 = vld [vmem:[#allocation2 + $0x190] sm:$0xff]
  %v6643 = vld [vmem:[#allocation2 + $0x198] sm:$0xff]
  %v6644 = vld [vmem:[#allocation2 + $0x1a0] sm:$0xff]
  %v6645 = vld [vmem:[#allocation2 + $0x1a8] sm:$0xff]
  %v6646 = vld [vmem:[#allocation2 + $0x1b0] sm:$0xff]
  %v6647 = vld [vmem:[#allocation2 + $0x1b8] sm:$0xff]
  %v6648 = vld [vmem:[#allocation2 + $0x1c0] sm:$0xff]
  %v6649 = vld [vmem:[#allocation2 + $0x1c8] sm:$0xff]
  %v6650 = vld [vmem:[#allocation2 + $0x1d0] sm:$0xff]
  %v6651 = vld [vmem:[#allocation2 + $0x1d8] sm:$0xff]
  %v6652 = vld [vmem:[#allocation2 + $0x1e0] sm:$0xff]
  %v6653 = vld [vmem:[#allocation2 + $0x1e8] sm:$0xff]
  %v6654 = vld [vmem:[#allocation2 + $0x1f0] sm:$0xff]
  %v6655 = vld [vmem:[#allocation2 + $0x1f8] sm:$0xff]
  %v6657 = vperm.slane %v6588, 0
  %v6659 = vmul.f32 %v6592, %v6657
  %v6660 = vmul.f32 %v6593, %v6657
  %v6661 = vmul.f32 %v6594, %v6657
  %v6662 = vmul.f32 %v6595, %v6657
  %v6663 = vmul.f32 %v6596, %v6657
  %v6664 = vmul.f32 %v6597, %v6657
  %v6665 = vmul.f32 %v6598, %v6657
  %v6666 = vmul.f32 %v6599, %v6657
  %v6667 = vmul.f32 %v6600, %v6657
  %v6668 = vmul.f32 %v6601, %v6657
  %v6669 = vmul.f32 %v6602, %v6657
  %v6670 = vmul.f32 %v6603, %v6657
  %v6671 = vmul.f32 %v6604, %v6657
  %v6672 = vmul.f32 %v6605, %v6657
  %v6673 = vmul.f32 %v6606, %v6657
  %v6674 = vmul.f32 %v6607, %v6657
  %v6675 = vmul.f32 %v6608, %v6657
  %v6676 = vmul.f32 %v6609, %v6657
  %v6677 = vmul.f32 %v6610, %v6657
  %v6678 = vmul.f32 %v6611, %v6657
  %v6679 = vmul.f32 %v6612, %v6657
  %v6680 = vmul.f32 %v6613, %v6657
  %v6681 = vmul.f32 %v6614, %v6657
  %v6682 = vmul.f32 %v6615, %v6657
  %v6683 = vmul.f32 %v6616, %v6657
  %v6684 = vmul.f32 %v6617, %v6657
  %v6685 = vmul.f32 %v6618, %v6657
  %v6686 = vmul.f32 %v6619, %v6657
  %v6687 = vmul.f32 %v6620, %v6657
  %v6688 = vmul.f32 %v6621, %v6657
  %v6689 = vmul.f32 %v6622, %v6657
  %v6690 = vmul.f32 %v6623, %v6657
  %v6691 = vmul.f32 %v6624, %v6657
  %v6692 = vmul.f32 %v6625, %v6657
  %v6693 = vmul.f32 %v6626, %v6657
  %v6694 = vmul.f32 %v6627, %v6657
  %v6695 = vmul.f32 %v6628, %v6657
  %v6696 = vmul.f32 %v6629, %v6657
  %v6697 = vmul.f32 %v6630, %v6657
  %v6698 = vmul.f32 %v6631, %v6657
  %v6699 = vmul.f32 %v6632, %v6657
  %v6700 = vmul.f32 %v6633, %v6657
  %v6701 = vmul.f32 %v6634, %v6657
  %v6702 = vmul.f32 %v6635, %v6657
  %v6703 = vmul.f32 %v6636, %v6657
  %v6704 = vmul.f32 %v6637, %v6657
  %v6705 = vmul.f32 %v6638, %v6657
  %v6706 = vmul.f32 %v6639, %v6657
  %v6707 = vmul.f32 %v6640, %v6657
  %v6708 = vmul.f32 %v6641, %v6657
  %v6709 = vmul.f32 %v6642, %v6657
  %v6710 = vmul.f32 %v6643, %v6657
  %v6711 = vmul.f32 %v6644, %v6657
  %v6712 = vmul.f32 %v6645, %v6657
  %v6713 = vmul.f32 %v6646, %v6657
  %v6714 = vmul.f32 %v6647, %v6657
  %v6715 = vmul.f32 %v6648, %v6657
  %v6716 = vmul.f32 %v6649, %v6657
  %v6717 = vmul.f32 %v6650, %v6657
  %v6718 = vmul.f32 %v6651, %v6657
  %v6719 = vmul.f32 %v6652, %v6657
  %v6720 = vmul.f32 %v6653, %v6657
  %v6721 = vmul.f32 %v6654, %v6657
  %v6722 = vmul.f32 %v6655, %v6657
  %v6724 = vperm.slane %v6591, 0
  %v6726 = vadd.f32 %v6659, %v6724
  %v6727 = vadd.f32 %v6660, %v6724
  %v6728 = vadd.f32 %v6661, %v6724
  %v6729 = vadd.f32 %v6662, %v6724
  %v6730 = vadd.f32 %v6663, %v6724
  %v6731 = vadd.f32 %v6664, %v6724
  %v6732 = vadd.f32 %v6665, %v6724
  %v6733 = vadd.f32 %v6666, %v6724
  %v6734 = vadd.f32 %v6667, %v6724
  %v6735 = vadd.f32 %v6668, %v6724
  %v6736 = vadd.f32 %v6669, %v6724
  %v6737 = vadd.f32 %v6670, %v6724
  %v6738 = vadd.f32 %v6671, %v6724
  %v6739 = vadd.f32 %v6672, %v6724
  %v6740 = vadd.f32 %v6673, %v6724
  %v6741 = vadd.f32 %v6674, %v6724
  %v6742 = vadd.f32 %v6675, %v6724
  %v6743 = vadd.f32 %v6676, %v6724
  %v6744 = vadd.f32 %v6677, %v6724
  %v6745 = vadd.f32 %v6678, %v6724
  %v6746 = vadd.f32 %v6679, %v6724
  %v6747 = vadd.f32 %v6680, %v6724
  %v6748 = vadd.f32 %v6681, %v6724
  %v6749 = vadd.f32 %v6682, %v6724
  %v6750 = vadd.f32 %v6683, %v6724
  %v6751 = vadd.f32 %v6684, %v6724
  %v6752 = vadd.f32 %v6685, %v6724
  %v6753 = vadd.f32 %v6686, %v6724
  %v6754 = vadd.f32 %v6687, %v6724
  %v6755 = vadd.f32 %v6688, %v6724
  %v6756 = vadd.f32 %v6689, %v6724
  %v6757 = vadd.f32 %v6690, %v6724
  %v6758 = vadd.f32 %v6691, %v6724
  %v6759 = vadd.f32 %v6692, %v6724
  %v6760 = vadd.f32 %v6693, %v6724
  %v6761 = vadd.f32 %v6694, %v6724
  %v6762 = vadd.f32 %v6695, %v6724
  %v6763 = vadd.f32 %v6696, %v6724
  %v6764 = vadd.f32 %v6697, %v6724
  %v6765 = vadd.f32 %v6698, %v6724
  %v6766 = vadd.f32 %v6699, %v6724
  %v6767 = vadd.f32 %v6700, %v6724
  %v6768 = vadd.f32 %v6701, %v6724
  %v6769 = vadd.f32 %v6702, %v6724
  %v6770 = vadd.f32 %v6703, %v6724
  %v6771 = vadd.f32 %v6704, %v6724
  %v6772 = vadd.f32 %v6705, %v6724
  %v6773 = vadd.f32 %v6706, %v6724
  %v6774 = vadd.f32 %v6707, %v6724
  %v6775 = vadd.f32 %v6708, %v6724
  %v6776 = vadd.f32 %v6709, %v6724
  %v6777 = vadd.f32 %v6710, %v6724
  %v6778 = vadd.f32 %v6711, %v6724
  %v6779 = vadd.f32 %v6712, %v6724
  %v6780 = vadd.f32 %v6713, %v6724
  %v6781 = vadd.f32 %v6714, %v6724
  %v6782 = vadd.f32 %v6715, %v6724
  %v6783 = vadd.f32 %v6716, %v6724
  %v6784 = vadd.f32 %v6717, %v6724
  %v6785 = vadd.f32 %v6718, %v6724
  %v6786 = vadd.f32 %v6719, %v6724
  %v6787 = vadd.f32 %v6720, %v6724
  %v6788 = vadd.f32 %v6721, %v6724
  %v6789 = vadd.f32 %v6722, %v6724
  %v6790 = vmax.f32 %v6726, 0.0
  %v6791 = vmax.f32 %v6727, 0.0
  %v6792 = vmax.f32 %v6728, 0.0
  %v6793 = vmax.f32 %v6729, 0.0
  %v6794 = vmax.f32 %v6730, 0.0
  %v6795 = vmax.f32 %v6731, 0.0
  %v6796 = vmax.f32 %v6732, 0.0
  %v6797 = vmax.f32 %v6733, 0.0
  %v6798 = vmax.f32 %v6734, 0.0
  %v6799 = vmax.f32 %v6735, 0.0
  %v6800 = vmax.f32 %v6736, 0.0
  %v6801 = vmax.f32 %v6737, 0.0
  %v6802 = vmax.f32 %v6738, 0.0
  %v6803 = vmax.f32 %v6739, 0.0
  %v6804 = vmax.f32 %v6740, 0.0
  %v6805 = vmax.f32 %v6741, 0.0
  %v6806 = vmax.f32 %v6742, 0.0
  %v6807 = vmax.f32 %v6743, 0.0
  %v6808 = vmax.f32 %v6744, 0.0
  %v6809 = vmax.f32 %v6745, 0.0
  %v6810 = vmax.f32 %v6746, 0.0
  %v6811 = vmax.f32 %v6747, 0.0
  %v6812 = vmax.f32 %v6748, 0.0
  %v6813 = vmax.f32 %v6749, 0.0
  %v6814 = vmax.f32 %v6750, 0.0
  %v6815 = vmax.f32 %v6751, 0.0
  %v6816 = vmax.f32 %v6752, 0.0
  %v6817 = vmax.f32 %v6753, 0.0
  %v6818 = vmax.f32 %v6754, 0.0
  %v6819 = vmax.f32 %v6755, 0.0
  %v6820 = vmax.f32 %v6756, 0.0
  %v6821 = vmax.f32 %v6757, 0.0
  %v6822 = vmax.f32 %v6758, 0.0
  %v6823 = vmax.f32 %v6759, 0.0
  %v6824 = vmax.f32 %v6760, 0.0
  %v6825 = vmax.f32 %v6761, 0.0
  %v6826 = vmax.f32 %v6762, 0.0
  %v6827 = vmax.f32 %v6763, 0.0
  %v6828 = vmax.f32 %v6764, 0.0
  %v6829 = vmax.f32 %v6765, 0.0
  %v6830 = vmax.f32 %v6766, 0.0
  %v6831 = vmax.f32 %v6767, 0.0
  %v6832 = vmax.f32 %v6768, 0.0
  %v6833 = vmax.f32 %v6769, 0.0
  %v6834 = vmax.f32 %v6770, 0.0
  %v6835 = vmax.f32 %v6771, 0.0
  %v6836 = vmax.f32 %v6772, 0.0
  %v6837 = vmax.f32 %v6773, 0.0
  %v6838 = vmax.f32 %v6774, 0.0
  %v6839 = vmax.f32 %v6775, 0.0
  %v6840 = vmax.f32 %v6776, 0.0
  %v6841 = vmax.f32 %v6777, 0.0
  %v6842 = vmax.f32 %v6778, 0.0
  %v6843 = vmax.f32 %v6779, 0.0
  %v6844 = vmax.f32 %v6780, 0.0
  %v6845 = vmax.f32 %v6781, 0.0
  %v6846 = vmax.f32 %v6782, 0.0
  %v6847 = vmax.f32 %v6783, 0.0
  %v6848 = vmax.f32 %v6784, 0.0
  %v6849 = vmax.f32 %v6785, 0.0
  %v6850 = vmax.f32 %v6786, 0.0
  %v6851 = vmax.f32 %v6787, 0.0
  %v6852 = vmax.f32 %v6788, 0.0
  %v6853 = vmax.f32 %v6789, 0.0
  %6854 = vst.msk [vmem:[#allocation2] sm:$0xff] %vm1576, %v6790
  %6855 = vst.msk [vmem:[#allocation2 + $0x8] sm:$0xff] %vm1576, %v6791
  %6856 = vst.msk [vmem:[#allocation2 + $0x10] sm:$0xff] %vm1576, %v6792
  %6857 = vst.msk [vmem:[#allocation2 + $0x18] sm:$0xff] %vm1576, %v6793
  %6858 = vst.msk [vmem:[#allocation2 + $0x20] sm:$0xff] %vm1576, %v6794
  %6859 = vst.msk [vmem:[#allocation2 + $0x28] sm:$0xff] %vm1576, %v6795
  %6860 = vst.msk [vmem:[#allocation2 + $0x30] sm:$0xff] %vm1576, %v6796
  %6861 = vst.msk [vmem:[#allocation2 + $0x38] sm:$0xff] %vm1576, %v6797
  %6862 = vst.msk [vmem:[#allocation2 + $0x40] sm:$0xff] %vm1576, %v6798
  %6863 = vst.msk [vmem:[#allocation2 + $0x48] sm:$0xff] %vm1576, %v6799
  %6864 = vst.msk [vmem:[#allocation2 + $0x50] sm:$0xff] %vm1576, %v6800
  %6865 = vst.msk [vmem:[#allocation2 + $0x58] sm:$0xff] %vm1576, %v6801
  %6866 = vst.msk [vmem:[#allocation2 + $0x60] sm:$0xff] %vm1576, %v6802
  %6867 = vst.msk [vmem:[#allocation2 + $0x68] sm:$0xff] %vm1576, %v6803
  %6868 = vst.msk [vmem:[#allocation2 + $0x70] sm:$0xff] %vm1576, %v6804
  %6869 = vst.msk [vmem:[#allocation2 + $0x78] sm:$0xff] %vm1576, %v6805
  %6870 = vst.msk [vmem:[#allocation2 + $0x80] sm:$0xff] %vm1576, %v6806
  %6871 = vst.msk [vmem:[#allocation2 + $0x88] sm:$0xff] %vm1576, %v6807
  %6872 = vst.msk [vmem:[#allocation2 + $0x90] sm:$0xff] %vm1576, %v6808
  %6873 = vst.msk [vmem:[#allocation2 + $0x98] sm:$0xff] %vm1576, %v6809
  %6874 = vst.msk [vmem:[#allocation2 + $0xa0] sm:$0xff] %vm1576, %v6810
  %6875 = vst.msk [vmem:[#allocation2 + $0xa8] sm:$0xff] %vm1576, %v6811
  %6876 = vst.msk [vmem:[#allocation2 + $0xb0] sm:$0xff] %vm1576, %v6812
  %6877 = vst.msk [vmem:[#allocation2 + $0xb8] sm:$0xff] %vm1576, %v6813
  %6878 = vst.msk [vmem:[#allocation2 + $0xc0] sm:$0xff] %vm1576, %v6814
  %6879 = vst.msk [vmem:[#allocation2 + $0xc8] sm:$0xff] %vm1576, %v6815
  %6880 = vst.msk [vmem:[#allocation2 + $0xd0] sm:$0xff] %vm1576, %v6816
  %6881 = vst.msk [vmem:[#allocation2 + $0xd8] sm:$0xff] %vm1576, %v6817
  %6882 = vst.msk [vmem:[#allocation2 + $0xe0] sm:$0xff] %vm1576, %v6818
  %6883 = vst.msk [vmem:[#allocation2 + $0xe8] sm:$0xff] %vm1576, %v6819
  %6884 = vst.msk [vmem:[#allocation2 + $0xf0] sm:$0xff] %vm1576, %v6820
  %6885 = vst.msk [vmem:[#allocation2 + $0xf8] sm:$0xff] %vm1576, %v6821
  %6886 = vst.msk [vmem:[#allocation2 + $0x100] sm:$0xff] %vm1576, %v6822
  %6887 = vst.msk [vmem:[#allocation2 + $0x108] sm:$0xff] %vm1576, %v6823
  %6888 = vst.msk [vmem:[#allocation2 + $0x110] sm:$0xff] %vm1576, %v6824
  %6889 = vst.msk [vmem:[#allocation2 + $0x118] sm:$0xff] %vm1576, %v6825
  %6890 = vst.msk [vmem:[#allocation2 + $0x120] sm:$0xff] %vm1576, %v6826
  %6891 = vst.msk [vmem:[#allocation2 + $0x128] sm:$0xff] %vm1576, %v6827
  %6892 = vst.msk [vmem:[#allocation2 + $0x130] sm:$0xff] %vm1576, %v6828
  %6893 = vst.msk [vmem:[#allocation2 + $0x138] sm:$0xff] %vm1576, %v6829
  %6894 = vst.msk [vmem:[#allocation2 + $0x140] sm:$0xff] %vm1576, %v6830
  %6895 = vst.msk [vmem:[#allocation2 + $0x148] sm:$0xff] %vm1576, %v6831
  %6896 = vst.msk [vmem:[#allocation2 + $0x150] sm:$0xff] %vm1576, %v6832
  %6897 = vst.msk [vmem:[#allocation2 + $0x158] sm:$0xff] %vm1576, %v6833
  %6898 = vst.msk [vmem:[#allocation2 + $0x160] sm:$0xff] %vm1576, %v6834
  %6899 = vst.msk [vmem:[#allocation2 + $0x168] sm:$0xff] %vm1576, %v6835
  %6900 = vst.msk [vmem:[#allocation2 + $0x170] sm:$0xff] %vm1576, %v6836
  %6901 = vst.msk [vmem:[#allocation2 + $0x178] sm:$0xff] %vm1576, %v6837
  %6902 = vst.msk [vmem:[#allocation2 + $0x180] sm:$0xff] %vm1576, %v6838
  %6903 = vst.msk [vmem:[#allocation2 + $0x188] sm:$0xff] %vm1576, %v6839
  %6904 = vst.msk [vmem:[#allocation2 + $0x190] sm:$0xff] %vm1576, %v6840
  %6905 = vst.msk [vmem:[#allocation2 + $0x198] sm:$0xff] %vm1576, %v6841
  %6906 = vst.msk [vmem:[#allocation2 + $0x1a0] sm:$0xff] %vm1576, %v6842
  %6907 = vst.msk [vmem:[#allocation2 + $0x1a8] sm:$0xff] %vm1576, %v6843
  %6908 = vst.msk [vmem:[#allocation2 + $0x1b0] sm:$0xff] %vm1576, %v6844
  %6909 = vst.msk [vmem:[#allocation2 + $0x1b8] sm:$0xff] %vm1576, %v6845
  %6910 = vst.msk [vmem:[#allocation2 + $0x1c0] sm:$0xff] %vm1576, %v6846
  %6911 = vst.msk [vmem:[#allocation2 + $0x1c8] sm:$0xff] %vm1576, %v6847
  %6912 = vst.msk [vmem:[#allocation2 + $0x1d0] sm:$0xff] %vm1576, %v6848
  %6913 = vst.msk [vmem:[#allocation2 + $0x1d8] sm:$0xff] %vm1576, %v6849
  %6914 = vst.msk [vmem:[#allocation2 + $0x1e0] sm:$0xff] %vm1576, %v6850
  %6915 = vst.msk [vmem:[#allocation2 + $0x1e8] sm:$0xff] %vm1576, %v6851
  %6916 = vst.msk [vmem:[#allocation2 + $0x1f0] sm:$0xff] %vm1576, %v6852
  %6917 = vst.msk [vmem:[#allocation2 + $0x1f8] sm:$0xff] %vm1576, %v6853
  %v6918 = vld [vmem:[#allocation2] sm:$0xff]
  %v6919 = vld [vmem:[#allocation2 + $0x8] sm:$0xff]
  %v6920 = vld [vmem:[#allocation2 + $0x10] sm:$0xff]
  %v6921 = vld [vmem:[#allocation2 + $0x18] sm:$0xff]
  %v6922 = vld [vmem:[#allocation2 + $0x20] sm:$0xff]
  %v6923 = vld [vmem:[#allocation2 + $0x28] sm:$0xff]
  %v6924 = vld [vmem:[#allocation2 + $0x30] sm:$0xff]
  %v6925 = vld [vmem:[#allocation2 + $0x38] sm:$0xff]
  %v6926 = vld [vmem:[#allocation2 + $0x40] sm:$0xff]
  %v6927 = vld [vmem:[#allocation2 + $0x48] sm:$0xff]
  %v6928 = vld [vmem:[#allocation2 + $0x50] sm:$0xff]
  %v6929 = vld [vmem:[#allocation2 + $0x58] sm:$0xff]
  %v6930 = vld [vmem:[#allocation2 + $0x60] sm:$0xff]
  %v6931 = vld [vmem:[#allocation2 + $0x68] sm:$0xff]
  %v6932 = vld [vmem:[#allocation2 + $0x70] sm:$0xff]
  %v6933 = vld [vmem:[#allocation2 + $0x78] sm:$0xff]
  %v6934 = vld [vmem:[#allocation2 + $0x80] sm:$0xff]
  %v6935 = vld [vmem:[#allocation2 + $0x88] sm:$0xff]
  %v6936 = vld [vmem:[#allocation2 + $0x90] sm:$0xff]
  %v6937 = vld [vmem:[#allocation2 + $0x98] sm:$0xff]
  %v6938 = vld [vmem:[#allocation2 + $0xa0] sm:$0xff]
  %v6939 = vld [vmem:[#allocation2 + $0xa8] sm:$0xff]
  %v6940 = vld [vmem:[#allocation2 + $0xb0] sm:$0xff]
  %v6941 = vld [vmem:[#allocation2 + $0xb8] sm:$0xff]
  %v6942 = vld [vmem:[#allocation2 + $0xc0] sm:$0xff]
  %v6943 = vld [vmem:[#allocation2 + $0xc8] sm:$0xff]
  %v6944 = vld [vmem:[#allocation2 + $0xd0] sm:$0xff]
  %v6945 = vld [vmem:[#allocation2 + $0xd8] sm:$0xff]
  %v6946 = vld [vmem:[#allocation2 + $0xe0] sm:$0xff]
  %v6947 = vld [vmem:[#allocation2 + $0xe8] sm:$0xff]
  %v6948 = vld [vmem:[#allocation2 + $0xf0] sm:$0xff]
  %v6949 = vld [vmem:[#allocation2 + $0xf8] sm:$0xff]
  %v6950 = vld [vmem:[#allocation2 + $0x100] sm:$0xff]
  %v6951 = vld [vmem:[#allocation2 + $0x108] sm:$0xff]
  %v6952 = vld [vmem:[#allocation2 + $0x110] sm:$0xff]
  %v6953 = vld [vmem:[#allocation2 + $0x118] sm:$0xff]
  %v6954 = vld [vmem:[#allocation2 + $0x120] sm:$0xff]
  %v6955 = vld [vmem:[#allocation2 + $0x128] sm:$0xff]
  %v6956 = vld [vmem:[#allocation2 + $0x130] sm:$0xff]
  %v6957 = vld [vmem:[#allocation2 + $0x138] sm:$0xff]
  %v6958 = vld [vmem:[#allocation2 + $0x140] sm:$0xff]
  %v6959 = vld [vmem:[#allocation2 + $0x148] sm:$0xff]
  %v6960 = vld [vmem:[#allocation2 + $0x150] sm:$0xff]
  %v6961 = vld [vmem:[#allocation2 + $0x158] sm:$0xff]
  %v6962 = vld [vmem:[#allocation2 + $0x160] sm:$0xff]
  %v6963 = vld [vmem:[#allocation2 + $0x168] sm:$0xff]
  %v6964 = vld [vmem:[#allocation2 + $0x170] sm:$0xff]
  %v6965 = vld [vmem:[#allocation2 + $0x178] sm:$0xff]
  %v6966 = vld [vmem:[#allocation2 + $0x180] sm:$0xff]
  %v6967 = vld [vmem:[#allocation2 + $0x188] sm:$0xff]
  %v6968 = vld [vmem:[#allocation2 + $0x190] sm:$0xff]
  %v6969 = vld [vmem:[#allocation2 + $0x198] sm:$0xff]
  %v6970 = vld [vmem:[#allocation2 + $0x1] sm:$0xff]
  %v6971 = vld [vmem:[#allocation2 + $0x9] sm:$0xff]
  %v6972 = vld [vmem:[#allocation2 + $0x11] sm:$0xff]
  %v6973 = vld [vmem:[#allocation2 + $0x19] sm:$0xff]
  %v6974 = vld [vmem:[#allocation2 + $0x21] sm:$0xff]
  %v6975 = vld [vmem:[#allocation2 + $0x29] sm:$0xff]
  %v6976 = vld [vmem:[#allocation2 + $0x31] sm:$0xff]
  %v6977 = vld [vmem:[#allocation2 + $0x39] sm:$0xff]
  %v6978 = vld [vmem:[#allocation2 + $0x41] sm:$0xff]
  %v6979 = vld [vmem:[#allocation2 + $0x49] sm:$0xff]
  %v6980 = vld [vmem:[#allocation2 + $0x51] sm:$0xff]
  %v6981 = vld [vmem:[#allocation2 + $0x59] sm:$0xff]
  %v6982 = vld [vmem:[#allocation2 + $0x61] sm:$0xff]
  %v6983 = vld [vmem:[#allocation2 + $0x69] sm:$0xff]
  %v6984 = vld [vmem:[#allocation2 + $0x71] sm:$0xff]
  %v6985 = vld [vmem:[#allocation2 + $0x79] sm:$0xff]
  %v6986 = vld [vmem:[#allocation2 + $0x81] sm:$0xff]
  %v6987 = vld [vmem:[#allocation2 + $0x89] sm:$0xff]
  %v6988 = vld [vmem:[#allocation2 + $0x91] sm:$0xff]
  %v6989 = vld [vmem:[#allocation2 + $0x99] sm:$0xff]
  %v6990 = vld [vmem:[#allocation2 + $0xa1] sm:$0xff]
  %v6991 = vld [vmem:[#allocation2 + $0xa9] sm:$0xff]
  %v6992 = vld [vmem:[#allocation2 + $0xb1] sm:$0xff]
  %v6993 = vld [vmem:[#allocation2 + $0xb9] sm:$0xff]
  %v6994 = vld [vmem:[#allocation2 + $0xc1] sm:$0xff]
  %v6995 = vld [vmem:[#allocation2 + $0xc9] sm:$0xff]
  %v6996 = vld [vmem:[#allocation2 + $0xd1] sm:$0xff]
  %v6997 = vld [vmem:[#allocation2 + $0xd9] sm:$0xff]
  %v6998 = vld [vmem:[#allocation2 + $0xe1] sm:$0xff]
  %v6999 = vld [vmem:[#allocation2 + $0xe9] sm:$0xff]
  %v7000 = vld [vmem:[#allocation2 + $0xf1] sm:$0xff]
  %v7001 = vld [vmem:[#allocation2 + $0xf9] sm:$0xff]
  %v7002 = vld [vmem:[#allocation2 + $0x101] sm:$0xff]
  %v7003 = vld [vmem:[#allocation2 + $0x109] sm:$0xff]
  %v7004 = vld [vmem:[#allocation2 + $0x111] sm:$0xff]
  %v7005 = vld [vmem:[#allocation2 + $0x119] sm:$0xff]
  %v7006 = vld [vmem:[#allocation2 + $0x121] sm:$0xff]
  %v7007 = vld [vmem:[#allocation2 + $0x129] sm:$0xff]
  %v7008 = vld [vmem:[#allocation2 + $0x131] sm:$0xff]
  %v7009 = vld [vmem:[#allocation2 + $0x139] sm:$0xff]
  %v7010 = vld [vmem:[#allocation2 + $0x141] sm:$0xff]
  %v7011 = vld [vmem:[#allocation2 + $0x149] sm:$0xff]
  %v7012 = vld [vmem:[#allocation2 + $0x151] sm:$0xff]
  %v7013 = vld [vmem:[#allocation2 + $0x159] sm:$0xff]
  %v7014 = vld [vmem:[#allocation2 + $0x161] sm:$0xff]
  %v7015 = vld [vmem:[#allocation2 + $0x169] sm:$0xff]
  %v7016 = vld [vmem:[#allocation2 + $0x171] sm:$0xff]
  %v7017 = vld [vmem:[#allocation2 + $0x179] sm:$0xff]
  %v7018 = vld [vmem:[#allocation2 + $0x181] sm:$0xff]
  %v7019 = vld [vmem:[#allocation2 + $0x189] sm:$0xff]
  %v7020 = vld [vmem:[#allocation2 + $0x191] sm:$0xff]
  %v7021 = vld [vmem:[#allocation2 + $0x199] sm:$0xff]
  %v7022 = vmax.f32 %v6918, %v6970
  %v7023 = vmax.f32 %v6919, %v6971
  %v7024 = vmax.f32 %v6920, %v6972
  %v7025 = vmax.f32 %v6921, %v6973
  %v7026 = vmax.f32 %v6922, %v6974
  %v7027 = vmax.f32 %v6923, %v6975
  %v7028 = vmax.f32 %v6924, %v6976
  %v7029 = vmax.f32 %v6925, %v6977
  %v7030 = vmax.f32 %v6926, %v6978
  %v7031 = vmax.f32 %v6927, %v6979
  %v7032 = vmax.f32 %v6928, %v6980
  %v7033 = vmax.f32 %v6929, %v6981
  %v7034 = vmax.f32 %v6930, %v6982
  %v7035 = vmax.f32 %v6931, %v6983
  %v7036 = vmax.f32 %v6932, %v6984
  %v7037 = vmax.f32 %v6933, %v6985
  %v7038 = vmax.f32 %v6934, %v6986
  %v7039 = vmax.f32 %v6935, %v6987
  %v7040 = vmax.f32 %v6936, %v6988
  %v7041 = vmax.f32 %v6937, %v6989
  %v7042 = vmax.f32 %v6938, %v6990
  %v7043 = vmax.f32 %v6939, %v6991
  %v7044 = vmax.f32 %v6940, %v6992
  %v7045 = vmax.f32 %v6941, %v6993
  %v7046 = vmax.f32 %v6942, %v6994
  %v7047 = vmax.f32 %v6943, %v6995
  %v7048 = vmax.f32 %v6944, %v6996
  %v7049 = vmax.f32 %v6945, %v6997
  %v7050 = vmax.f32 %v6946, %v6998
  %v7051 = vmax.f32 %v6947, %v6999
  %v7052 = vmax.f32 %v6948, %v7000
  %v7053 = vmax.f32 %v6949, %v7001
  %v7054 = vmax.f32 %v6950, %v7002
  %v7055 = vmax.f32 %v6951, %v7003
  %v7056 = vmax.f32 %v6952, %v7004
  %v7057 = vmax.f32 %v6953, %v7005
  %v7058 = vmax.f32 %v6954, %v7006
  %v7059 = vmax.f32 %v6955, %v7007
  %v7060 = vmax.f32 %v6956, %v7008
  %v7061 = vmax.f32 %v6957, %v7009
  %v7062 = vmax.f32 %v6958, %v7010
  %v7063 = vmax.f32 %v6959, %v7011
  %v7064 = vmax.f32 %v6960, %v7012
  %v7065 = vmax.f32 %v6961, %v7013
  %v7066 = vmax.f32 %v6962, %v7014
  %v7067 = vmax.f32 %v6963, %v7015
  %v7068 = vmax.f32 %v6964, %v7016
  %v7069 = vmax.f32 %v6965, %v7017
  %v7070 = vmax.f32 %v6966, %v7018
  %v7071 = vmax.f32 %v6967, %v7019
  %v7072 = vmax.f32 %v6968, %v7020
  %v7073 = vmax.f32 %v6969, %v7021
  %7074 = vst.msk [vmem:[#allocation3] sm:$0xff] %vm1576, %v7022
  %7075 = vst.msk [vmem:[#allocation3 + $0x8] sm:$0xff] %vm1576, %v7023
  %7076 = vst.msk [vmem:[#allocation3 + $0x10] sm:$0xff] %vm1576, %v7024
  %7077 = vst.msk [vmem:[#allocation3 + $0x18] sm:$0xff] %vm1576, %v7025
  %7078 = vst.msk [vmem:[#allocation3 + $0x20] sm:$0xff] %vm1576, %v7026
  %7079 = vst.msk [vmem:[#allocation3 + $0x28] sm:$0xff] %vm1576, %v7027
  %7080 = vst.msk [vmem:[#allocation3 + $0x30] sm:$0xff] %vm1576, %v7028
  %7081 = vst.msk [vmem:[#allocation3 + $0x38] sm:$0xff] %vm1576, %v7029
  %7082 = vst.msk [vmem:[#allocation3 + $0x40] sm:$0xff] %vm1576, %v7030
  %7083 = vst.msk [vmem:[#allocation3 + $0x48] sm:$0xff] %vm1576, %v7031
  %7084 = vst.msk [vmem:[#allocation3 + $0x50] sm:$0xff] %vm1576, %v7032
  %7085 = vst.msk [vmem:[#allocation3 + $0x58] sm:$0xff] %vm1576, %v7033
  %7086 = vst.msk [vmem:[#allocation3 + $0x60] sm:$0xff] %vm1576, %v7034
  %7087 = vst.msk [vmem:[#allocation3 + $0x68] sm:$0xff] %vm1576, %v7035
  %7088 = vst.msk [vmem:[#allocation3 + $0x70] sm:$0xff] %vm1576, %v7036
  %7089 = vst.msk [vmem:[#allocation3 + $0x78] sm:$0xff] %vm1576, %v7037
  %7090 = vst.msk [vmem:[#allocation3 + $0x80] sm:$0xff] %vm1576, %v7038
  %7091 = vst.msk [vmem:[#allocation3 + $0x88] sm:$0xff] %vm1576, %v7039
  %7092 = vst.msk [vmem:[#allocation3 + $0x90] sm:$0xff] %vm1576, %v7040
  %7093 = vst.msk [vmem:[#allocation3 + $0x98] sm:$0xff] %vm1576, %v7041
  %7094 = vst.msk [vmem:[#allocation3 + $0xa0] sm:$0xff] %vm1576, %v7042
  %7095 = vst.msk [vmem:[#allocation3 + $0xa8] sm:$0xff] %vm1576, %v7043
  %7096 = vst.msk [vmem:[#allocation3 + $0xb0] sm:$0xff] %vm1576, %v7044
  %7097 = vst.msk [vmem:[#allocation3 + $0xb8] sm:$0xff] %vm1576, %v7045
  %7098 = vst.msk [vmem:[#allocation3 + $0xc0] sm:$0xff] %vm1576, %v7046
  %7099 = vst.msk [vmem:[#allocation3 + $0xc8] sm:$0xff] %vm1576, %v7047
  %7100 = vst.msk [vmem:[#allocation3 + $0xd0] sm:$0xff] %vm1576, %v7048
  %7101 = vst.msk [vmem:[#allocation3 + $0xd8] sm:$0xff] %vm1576, %v7049
  %7102 = vst.msk [vmem:[#allocation3 + $0xe0] sm:$0xff] %vm1576, %v7050
  %7103 = vst.msk [vmem:[#allocation3 + $0xe8] sm:$0xff] %vm1576, %v7051
  %7104 = vst.msk [vmem:[#allocation3 + $0xf0] sm:$0xff] %vm1576, %v7052
  %7105 = vst.msk [vmem:[#allocation3 + $0xf8] sm:$0xff] %vm1576, %v7053
  %7106 = vst.msk [vmem:[#allocation3 + $0x100] sm:$0xff] %vm1576, %v7054
  %7107 = vst.msk [vmem:[#allocation3 + $0x108] sm:$0xff] %vm1576, %v7055
  %7108 = vst.msk [vmem:[#allocation3 + $0x110] sm:$0xff] %vm1576, %v7056
  %7109 = vst.msk [vmem:[#allocation3 + $0x118] sm:$0xff] %vm1576, %v7057
  %7110 = vst.msk [vmem:[#allocation3 + $0x120] sm:$0xff] %vm1576, %v7058
  %7111 = vst.msk [vmem:[#allocation3 + $0x128] sm:$0xff] %vm1576, %v7059
  %7112 = vst.msk [vmem:[#allocation3 + $0x130] sm:$0xff] %vm1576, %v7060
  %7113 = vst.msk [vmem:[#allocation3 + $0x138] sm:$0xff] %vm1576, %v7061
  %7114 = vst.msk [vmem:[#allocation3 + $0x140] sm:$0xff] %vm1576, %v7062
  %7115 = vst.msk [vmem:[#allocation3 + $0x148] sm:$0xff] %vm1576, %v7063
  %7116 = vst.msk [vmem:[#allocation3 + $0x150] sm:$0xff] %vm1576, %v7064
  %7117 = vst.msk [vmem:[#allocation3 + $0x158] sm:$0xff] %vm1576, %v7065
  %7118 = vst.msk [vmem:[#allocation3 + $0x160] sm:$0xff] %vm1576, %v7066
  %7119 = vst.msk [vmem:[#allocation3 + $0x168] sm:$0xff] %vm1576, %v7067
  %7120 = vst.msk [vmem:[#allocation3 + $0x170] sm:$0xff] %vm1576, %v7068
  %7121 = vst.msk [vmem:[#allocation3 + $0x178] sm:$0xff] %vm1576, %v7069
  %7122 = vst.msk [vmem:[#allocation3 + $0x180] sm:$0xff] %vm1576, %v7070
  %7123 = vst.msk [vmem:[#allocation3 + $0x188] sm:$0xff] %vm1576, %v7071
  %7124 = vst.msk [vmem:[#allocation3 + $0x190] sm:$0xff] %vm1576, %v7072
  %7125 = vst.msk [vmem:[#allocation3 + $0x198] sm:$0xff] %vm1576, %v7073
  %v7126 = vld [vmem:[#allocation3] ss:$2 sm:$0x3f]
  %s7127 = scalar_lea.vmem [#allocation3], 16
  %v7128 = vld [vmem:[%s7127] ss:$2 sm:$0x3f]
  %v7129 = vmax.f32 %v7126, %v7128
  %vm7130 = vcmask 521216
  %7131 = vst.msk [vmem:[#allocation5] sm:$0x3f] %vm7130, %v7129
  %s7132 = scalar_lea.vmem [#allocation3], 32
  %v7133 = vld [vmem:[%s7132] ss:$2 sm:$0x3f]
  %s7134 = scalar_lea.vmem [#allocation3], 48
  %v7135 = vld [vmem:[%s7134] ss:$2 sm:$0x3f]
  %v7136 = vmax.f32 %v7133, %v7135
  %7137 = vst.msk [vmem:[#allocation5 + $0x8] sm:$0x3f] %vm7130, %v7136
  %s7138 = scalar_lea.vmem [#allocation3], 64
  %v7139 = vld [vmem:[%s7138] ss:$2 sm:$0x3f]
  %s7140 = scalar_lea.vmem [#allocation3], 80
  %v7141 = vld [vmem:[%s7140] ss:$2 sm:$0x3f]
  %v7142 = vmax.f32 %v7139, %v7141
  %7143 = vst.msk [vmem:[#allocation5 + $0x10] sm:$0x3f] %vm7130, %v7142
  %s7144 = scalar_lea.vmem [#allocation3], 96
  %v7145 = vld [vmem:[%s7144] ss:$2 sm:$0x3f]
  %s7146 = scalar_lea.vmem [#allocation3], 112
  %v7147 = vld [vmem:[%s7146] ss:$2 sm:$0x3f]
  %v7148 = vmax.f32 %v7145, %v7147
  %7149 = vst.msk [vmem:[#allocation5 + $0x18] sm:$0x3f] %vm7130, %v7148
  %s7150 = scalar_lea.vmem [#allocation3], 128
  %v7151 = vld [vmem:[%s7150] ss:$2 sm:$0x3f]
  %s7152 = scalar_lea.vmem [#allocation3], 144
  %v7153 = vld [vmem:[%s7152] ss:$2 sm:$0x3f]
  %v7154 = vmax.f32 %v7151, %v7153
  %7155 = vst.msk [vmem:[#allocation5 + $0x20] sm:$0x3f] %vm7130, %v7154
  %s7156 = scalar_lea.vmem [#allocation3], 160
  %v7157 = vld [vmem:[%s7156] ss:$2 sm:$0x3f]
  %s7158 = scalar_lea.vmem [#allocation3], 176
  %v7159 = vld [vmem:[%s7158] ss:$2 sm:$0x3f]
  %v7160 = vmax.f32 %v7157, %v7159
  %7161 = vst.msk [vmem:[#allocation5 + $0x28] sm:$0x3f] %vm7130, %v7160
  %s7162 = scalar_lea.vmem [#allocation3], 224
  %v7163 = vld [vmem:[%s7162] ss:$2 sm:$0x3f]
  %s7164 = scalar_lea.vmem [#allocation3], 240
  %v7165 = vld [vmem:[%s7164] ss:$2 sm:$0x3f]
  %v7166 = vmax.f32 %v7163, %v7165
  %7167 = vst.msk [vmem:[#allocation5 + $0x30] sm:$0x3f] %vm7130, %v7166
  %s7168 = scalar_lea.vmem [#allocation3], 256
  %v7169 = vld [vmem:[%s7168] ss:$2 sm:$0x3f]
  %s7170 = scalar_lea.vmem [#allocation3], 272
  %v7171 = vld [vmem:[%s7170] ss:$2 sm:$0x3f]
  %v7172 = vmax.f32 %v7169, %v7171
  %7173 = vst.msk [vmem:[#allocation5 + $0x38] sm:$0x3f] %vm7130, %v7172
  %s7174 = scalar_lea.vmem [#allocation3], 288
  %v7175 = vld [vmem:[%s7174] ss:$2 sm:$0x3f]
  %s7176 = scalar_lea.vmem [#allocation3], 304
  %v7177 = vld [vmem:[%s7176] ss:$2 sm:$0x3f]
  %v7178 = vmax.f32 %v7175, %v7177
  %7179 = vst.msk [vmem:[#allocation5 + $0x40] sm:$0x3f] %vm7130, %v7178
  %s7180 = scalar_lea.vmem [#allocation3], 320
  %v7181 = vld [vmem:[%s7180] ss:$2 sm:$0x3f]
  %s7182 = scalar_lea.vmem [#allocation3], 336
  %v7183 = vld [vmem:[%s7182] ss:$2 sm:$0x3f]
  %v7184 = vmax.f32 %v7181, %v7183
  %7185 = vst.msk [vmem:[#allocation5 + $0x48] sm:$0x3f] %vm7130, %v7184
  %s7186 = scalar_lea.vmem [#allocation3], 352
  %v7187 = vld [vmem:[%s7186] ss:$2 sm:$0x3f]
  %s7188 = scalar_lea.vmem [#allocation3], 368
  %v7189 = vld [vmem:[%s7188] ss:$2 sm:$0x3f]
  %v7190 = vmax.f32 %v7187, %v7189
  %7191 = vst.msk [vmem:[#allocation5 + $0x50] sm:$0x3f] %vm7130, %v7190
  %s7192 = scalar_lea.vmem [#allocation3], 384
  %v7193 = vld [vmem:[%s7192] ss:$2 sm:$0x3f]
  %s7194 = scalar_lea.vmem [#allocation3], 400
  %v7195 = vld [vmem:[%s7194] ss:$2 sm:$0x3f]
  %v7196 = vmax.f32 %v7193, %v7195
  %7197 = vst.msk [vmem:[#allocation5 + $0x58] sm:$0x3f] %vm7130, %v7196
  %v7198 = vld [vmem:[#allocation5] sm:$0xff]
  %v7199 = vld [vmem:[#allocation5 + $0x8] sm:$0xff]
  %v7200 = vld [vmem:[#allocation5 + $0x10] sm:$0xff]
  %v7201 = vld [vmem:[#allocation5 + $0x18] sm:$0xff]
  %v7202 = vld [vmem:[#allocation5 + $0x20] sm:$0xff]
  %v7203 = vld [vmem:[#allocation5 + $0x28] sm:$0xff]
  %v7204 = vld [vmem:[#allocation5 + $0x30] sm:$0xff]
  %v7205 = vld [vmem:[#allocation5 + $0x38] sm:$0xff]
  %v7206 = vld [vmem:[#allocation5 + $0x40] sm:$0xff]
  %v7207 = vld [vmem:[#allocation5 + $0x48] sm:$0xff]
  %v7208 = vpack.c.bf16 %v7199, %v7198
  %v7209 = vpack.c.bf16 %v7201, %v7200
  %v7210 = vpack.c.bf16 %v7203, %v7202
  %v7211 = vpack.c.bf16 %v7205, %v7204
  %v7212 = vpack.c.bf16 %v7207, %v7206
  %v7213 = vld [vmem:[%s7] sm:$0xf]
  %v7214 = vld [vmem:[%s7 + $0x4] sm:$0xf]
  %v7215 = vld [vmem:[%s7 + $0x8] sm:$0xf]
  %v7216 = vld [vmem:[%s7 + $0xc] sm:$0xf]
  %v7217 = vld [vmem:[%s7 + $0x10] sm:$0xf]
  %v7218 = vld [vmem:[%s7 + $0x14] sm:$0xf]
  %v7219 = vld [vmem:[%s7 + $0x18] sm:$0xf]
  %v7220 = vld [vmem:[%s7 + $0x1c] sm:$0xf]
  %v7221 = vld [vmem:[#allocation5 + $0x1] sm:$0xff]
  %v7222 = vld [vmem:[#allocation5 + $0x9] sm:$0xff]
  %v7223 = vld [vmem:[#allocation5 + $0x11] sm:$0xff]
  %v7224 = vld [vmem:[#allocation5 + $0x19] sm:$0xff]
  %v7225 = vld [vmem:[#allocation5 + $0x21] sm:$0xff]
  %v7226 = vld [vmem:[#allocation5 + $0x29] sm:$0xff]
  %v7227 = vld [vmem:[#allocation5 + $0x31] sm:$0xff]
  %v7228 = vld [vmem:[#allocation5 + $0x39] sm:$0xff]
  %v7229 = vld [vmem:[#allocation5 + $0x41] sm:$0xff]
  %v7230 = vld [vmem:[#allocation5 + $0x49] sm:$0xff]
  %v7231 = vpack.c.bf16 %v7222, %v7221
  %v7232 = vpack.c.bf16 %v7224, %v7223
  %v7233 = vpack.c.bf16 %v7226, %v7225
  %v7234 = vpack.c.bf16 %v7228, %v7227
  %v7235 = vpack.c.bf16 %v7230, %v7229
  %s7236 = scalar_lea.vmem %s7, 32
  %v7237 = vld [vmem:[%s7236] sm:$0xf]
  %v7238 = vld [vmem:[%s7236 + $0x4] sm:$0xf]
  %v7239 = vld [vmem:[%s7236 + $0x8] sm:$0xf]
  %v7240 = vld [vmem:[%s7236 + $0xc] sm:$0xf]
  %v7241 = vld [vmem:[%s7236 + $0x10] sm:$0xf]
  %v7242 = vld [vmem:[%s7236 + $0x14] sm:$0xf]
  %v7243 = vld [vmem:[%s7236 + $0x18] sm:$0xf]
  %v7244 = vld [vmem:[%s7236 + $0x1c] sm:$0xf]
  %v7253 = vunpack.c.l.b16 %v7237
  %v7254 = vunpack.c.l.b16 %v7238
  %v7255 = vunpack.c.l.b16 %v7239
  %v7256 = vunpack.c.l.b16 %v7240
  %v7257 = vunpack.c.l.b16 %v7241
  %v7258 = vunpack.c.l.b16 %v7242
  %v7259 = vunpack.c.l.b16 %v7243
  %v7260 = vunpack.c.l.b16 %v7244
  %v7261 = vpack.c.b16 %v7254, %v7253
  %v7262 = vpack.c.b16 %v7256, %v7255
  %v7263 = vpack.c.b16 %v7258, %v7257
  %v7264 = vpack.c.b16 %v7260, %v7259
  %v7270 = vsel %vm1576, %v7231, 0
  %v7273 = vsel %vm1576, %v7232, 0
  %v7276 = vsel %vm1576, %v7233, 0
  %v7279 = vsel %vm1576, %v7234, 0
  %v7282 = vsel %vm1576, %v7235, 0
  %7284 = vmatpush.bf16.msra.mxu0 0
  %7285 = vmatpush.bf16.msra.mxu0 0
  %7286 = vmatpush.bf16.msra.mxu0 0
  %7287 = vmatpush.bf16.msra.mxu0 0
  %7288 = vmatpush.bf16.msra.mxu0 %v7264
  %7289 = vmatpush.bf16.msra.mxu0 %v7263
  %7290 = vmatpush.bf16.msra.mxu0 %v7262
  %7291 = vmatpush.bf16.msra.mxu0 %v7261
  %7292 = vmatmul.bf16.gmra.mxu0 %v7270
  %v7293 = vpop.f32.mrf.mxu0
  %v7294 = vadd.f32 0.0, %v7293
  %v7295 = vpop.f32.mrf.mxu0
  %v7296 = vadd.f32 0.0, %v7295
  %7297 = vmatmul.bf16.gmra.mxu0 %v7273
  %v7298 = vpop.f32.mrf.mxu0
  %v7299 = vadd.f32 0.0, %v7298
  %v7300 = vpop.f32.mrf.mxu0
  %v7301 = vadd.f32 0.0, %v7300
  %7302 = vmatmul.bf16.gmra.mxu0 %v7276
  %v7303 = vpop.f32.mrf.mxu0
  %v7304 = vadd.f32 0.0, %v7303
  %v7305 = vpop.f32.mrf.mxu0
  %v7306 = vadd.f32 0.0, %v7305
  %7307 = vmatmul.bf16.gmra.mxu0 %v7279
  %v7308 = vpop.f32.mrf.mxu0
  %v7309 = vadd.f32 0.0, %v7308
  %v7310 = vpop.f32.mrf.mxu0
  %v7311 = vadd.f32 0.0, %v7310
  %7312 = vmatmul.bf16.gmra.mxu0 %v7282
  %v7313 = vpop.f32.mrf.mxu0
  %v7314 = vadd.f32 0.0, %v7313
  %v7315 = vpop.f32.mrf.mxu0
  %v7316 = vadd.f32 0.0, %v7315
  %7317 = vdwg.mxu0
  %v7326 = vunpack.c.l.b16 %v7213
  %v7327 = vunpack.c.l.b16 %v7214
  %v7328 = vunpack.c.l.b16 %v7215
  %v7329 = vunpack.c.l.b16 %v7216
  %v7330 = vunpack.c.l.b16 %v7217
  %v7331 = vunpack.c.l.b16 %v7218
  %v7332 = vunpack.c.l.b16 %v7219
  %v7333 = vunpack.c.l.b16 %v7220
  %v7334 = vpack.c.b16 %v7327, %v7326
  %v7335 = vpack.c.b16 %v7329, %v7328
  %v7336 = vpack.c.b16 %v7331, %v7330
  %v7337 = vpack.c.b16 %v7333, %v7332
  %v7343 = vsel %vm1576, %v7208, 0
  %v7346 = vsel %vm1576, %v7209, 0
  %v7349 = vsel %vm1576, %v7210, 0
  %v7352 = vsel %vm1576, %v7211, 0
  %v7355 = vsel %vm1576, %v7212, 0
  %7357 = vmatpush.bf16.msra.mxu0 0
  %7358 = vmatpush.bf16.msra.mxu0 0
  %7359 = vmatpush.bf16.msra.mxu0 0
  %7360 = vmatpush.bf16.msra.mxu0 0
  %7361 = vmatpush.bf16.msra.mxu0 %v7337
  %7362 = vmatpush.bf16.msra.mxu0 %v7336
  %7363 = vmatpush.bf16.msra.mxu0 %v7335
  %7364 = vmatpush.bf16.msra.mxu0 %v7334
  %7365 = vmatmul.bf16.gmra.mxu0 %v7343
  %v7366 = vpop.f32.mrf.mxu0
  %v7367 = vadd.f32 %v7294, %v7366
  %v7368 = vpop.f32.mrf.mxu0
  %v7369 = vadd.f32 %v7296, %v7368
  %7370 = vmatmul.bf16.gmra.mxu0 %v7346
  %v7371 = vpop.f32.mrf.mxu0
  %v7372 = vadd.f32 %v7299, %v7371
  %v7373 = vpop.f32.mrf.mxu0
  %v7374 = vadd.f32 %v7301, %v7373
  %7375 = vmatmul.bf16.gmra.mxu0 %v7349
  %v7376 = vpop.f32.mrf.mxu0
  %v7377 = vadd.f32 %v7304, %v7376
  %v7378 = vpop.f32.mrf.mxu0
  %v7379 = vadd.f32 %v7306, %v7378
  %7380 = vmatmul.bf16.gmra.mxu0 %v7352
  %v7381 = vpop.f32.mrf.mxu0
  %v7382 = vadd.f32 %v7309, %v7381
  %v7383 = vpop.f32.mrf.mxu0
  %v7384 = vadd.f32 %v7311, %v7383
  %7385 = vmatmul.bf16.gmra.mxu0 %v7355
  %v7386 = vpop.f32.mrf.mxu0
  %v7387 = vadd.f32 %v7314, %v7386
  %v7388 = vpop.f32.mrf.mxu0
  %v7389 = vadd.f32 %v7316, %v7388
  %7390 = vdwg.mxu0
  %v7391 = vld [vmem:[#allocation5 + $0x2] sm:$0xff]
  %v7392 = vld [vmem:[#allocation5 + $0xa] sm:$0xff]
  %v7393 = vld [vmem:[#allocation5 + $0x12] sm:$0xff]
  %v7394 = vld [vmem:[#allocation5 + $0x1a] sm:$0xff]
  %v7395 = vld [vmem:[#allocation5 + $0x22] sm:$0xff]
  %v7396 = vld [vmem:[#allocation5 + $0x2a] sm:$0xff]
  %v7397 = vld [vmem:[#allocation5 + $0x32] sm:$0xff]
  %v7398 = vld [vmem:[#allocation5 + $0x3a] sm:$0xff]
  %v7399 = vld [vmem:[#allocation5 + $0x42] sm:$0xff]
  %v7400 = vld [vmem:[#allocation5 + $0x4a] sm:$0xff]
  %v7401 = vpack.c.bf16 %v7392, %v7391
  %v7402 = vpack.c.bf16 %v7394, %v7393
  %v7403 = vpack.c.bf16 %v7396, %v7395
  %v7404 = vpack.c.bf16 %v7398, %v7397
  %v7405 = vpack.c.bf16 %v7400, %v7399
  %s7406 = scalar_lea.vmem %s7, 64
  %v7407 = vld [vmem:[%s7406] sm:$0xf]
  %v7408 = vld [vmem:[%s7406 + $0x4] sm:$0xf]
  %v7409 = vld [vmem:[%s7406 + $0x8] sm:$0xf]
  %v7410 = vld [vmem:[%s7406 + $0xc] sm:$0xf]
  %v7411 = vld [vmem:[%s7406 + $0x10] sm:$0xf]
  %v7412 = vld [vmem:[%s7406 + $0x14] sm:$0xf]
  %v7413 = vld [vmem:[%s7406 + $0x18] sm:$0xf]
  %v7414 = vld [vmem:[%s7406 + $0x1c] sm:$0xf]
  %v7423 = vunpack.c.l.b16 %v7407
  %v7424 = vunpack.c.l.b16 %v7408
  %v7425 = vunpack.c.l.b16 %v7409
  %v7426 = vunpack.c.l.b16 %v7410
  %v7427 = vunpack.c.l.b16 %v7411
  %v7428 = vunpack.c.l.b16 %v7412
  %v7429 = vunpack.c.l.b16 %v7413
  %v7430 = vunpack.c.l.b16 %v7414
  %v7431 = vpack.c.b16 %v7424, %v7423
  %v7432 = vpack.c.b16 %v7426, %v7425
  %v7433 = vpack.c.b16 %v7428, %v7427
  %v7434 = vpack.c.b16 %v7430, %v7429
  %v7440 = vsel %vm1576, %v7401, 0
  %v7443 = vsel %vm1576, %v7402, 0
  %v7446 = vsel %vm1576, %v7403, 0
  %v7449 = vsel %vm1576, %v7404, 0
  %v7452 = vsel %vm1576, %v7405, 0
  %7454 = vmatpush.bf16.msra.mxu0 0
  %7455 = vmatpush.bf16.msra.mxu0 0
  %7456 = vmatpush.bf16.msra.mxu0 0
  %7457 = vmatpush.bf16.msra.mxu0 0
  %7458 = vmatpush.bf16.msra.mxu0 %v7434
  %7459 = vmatpush.bf16.msra.mxu0 %v7433
  %7460 = vmatpush.bf16.msra.mxu0 %v7432
  %7461 = vmatpush.bf16.msra.mxu0 %v7431
  %7462 = vmatmul.bf16.gmra.mxu0 %v7440
  %v7463 = vpop.f32.mrf.mxu0
  %v7464 = vadd.f32 0.0, %v7463
  %v7465 = vpop.f32.mrf.mxu0
  %v7466 = vadd.f32 0.0, %v7465
  %7467 = vmatmul.bf16.gmra.mxu0 %v7443
  %v7468 = vpop.f32.mrf.mxu0
  %v7469 = vadd.f32 0.0, %v7468
  %v7470 = vpop.f32.mrf.mxu0
  %v7471 = vadd.f32 0.0, %v7470
  %7472 = vmatmul.bf16.gmra.mxu0 %v7446
  %v7473 = vpop.f32.mrf.mxu0
  %v7474 = vadd.f32 0.0, %v7473
  %v7475 = vpop.f32.mrf.mxu0
  %v7476 = vadd.f32 0.0, %v7475
  %7477 = vmatmul.bf16.gmra.mxu0 %v7449
  %v7478 = vpop.f32.mrf.mxu0
  %v7479 = vadd.f32 0.0, %v7478
  %v7480 = vpop.f32.mrf.mxu0
  %v7481 = vadd.f32 0.0, %v7480
  %7482 = vmatmul.bf16.gmra.mxu0 %v7452
  %v7483 = vpop.f32.mrf.mxu0
  %v7484 = vadd.f32 0.0, %v7483
  %v7485 = vpop.f32.mrf.mxu0
  %v7486 = vadd.f32 0.0, %v7485
  %7487 = vdwg.mxu0
  %v7488 = vadd.f32 %v7367, %v7464
  %v7489 = vadd.f32 %v7369, %v7466
  %v7490 = vadd.f32 %v7372, %v7469
  %v7491 = vadd.f32 %v7374, %v7471
  %v7492 = vadd.f32 %v7377, %v7474
  %v7493 = vadd.f32 %v7379, %v7476
  %v7494 = vadd.f32 %v7382, %v7479
  %v7495 = vadd.f32 %v7384, %v7481
  %v7496 = vadd.f32 %v7387, %v7484
  %v7497 = vadd.f32 %v7389, %v7486
  %v7498 = vld [vmem:[#allocation5 + $0x8] sm:$0xff]
  %v7499 = vld [vmem:[#allocation5 + $0x10] sm:$0xff]
  %v7500 = vld [vmem:[#allocation5 + $0x18] sm:$0xff]
  %v7501 = vld [vmem:[#allocation5 + $0x20] sm:$0xff]
  %v7502 = vld [vmem:[#allocation5 + $0x28] sm:$0xff]
  %v7503 = vld [vmem:[#allocation5 + $0x30] sm:$0xff]
  %v7504 = vld [vmem:[#allocation5 + $0x38] sm:$0xff]
  %v7505 = vld [vmem:[#allocation5 + $0x40] sm:$0xff]
  %v7506 = vld [vmem:[#allocation5 + $0x48] sm:$0xff]
  %v7507 = vld [vmem:[#allocation5 + $0x50] sm:$0xff]
  %v7508 = vpack.c.bf16 %v7499, %v7498
  %v7509 = vpack.c.bf16 %v7501, %v7500
  %v7510 = vpack.c.bf16 %v7503, %v7502
  %v7511 = vpack.c.bf16 %v7505, %v7504
  %v7512 = vpack.c.bf16 %v7507, %v7506
  %s7513 = scalar_lea.vmem %s7, 96
  %v7514 = vld [vmem:[%s7513] sm:$0xf]
  %v7515 = vld [vmem:[%s7513 + $0x4] sm:$0xf]
  %v7516 = vld [vmem:[%s7513 + $0x8] sm:$0xf]
  %v7517 = vld [vmem:[%s7513 + $0xc] sm:$0xf]
  %v7518 = vld [vmem:[%s7513 + $0x10] sm:$0xf]
  %v7519 = vld [vmem:[%s7513 + $0x14] sm:$0xf]
  %v7520 = vld [vmem:[%s7513 + $0x18] sm:$0xf]
  %v7521 = vld [vmem:[%s7513 + $0x1c] sm:$0xf]
  %v7530 = vunpack.c.l.b16 %v7514
  %v7531 = vunpack.c.l.b16 %v7515
  %v7532 = vunpack.c.l.b16 %v7516
  %v7533 = vunpack.c.l.b16 %v7517
  %v7534 = vunpack.c.l.b16 %v7518
  %v7535 = vunpack.c.l.b16 %v7519
  %v7536 = vunpack.c.l.b16 %v7520
  %v7537 = vunpack.c.l.b16 %v7521
  %v7538 = vpack.c.b16 %v7531, %v7530
  %v7539 = vpack.c.b16 %v7533, %v7532
  %v7540 = vpack.c.b16 %v7535, %v7534
  %v7541 = vpack.c.b16 %v7537, %v7536
  %v7547 = vsel %vm1576, %v7508, 0
  %v7550 = vsel %vm1576, %v7509, 0
  %v7553 = vsel %vm1576, %v7510, 0
  %v7556 = vsel %vm1576, %v7511, 0
  %v7559 = vsel %vm1576, %v7512, 0
  %7561 = vmatpush.bf16.msra.mxu0 0
  %7562 = vmatpush.bf16.msra.mxu0 0
  %7563 = vmatpush.bf16.msra.mxu0 0
  %7564 = vmatpush.bf16.msra.mxu0 0
  %7565 = vmatpush.bf16.msra.mxu0 %v7541
  %7566 = vmatpush.bf16.msra.mxu0 %v7540
  %7567 = vmatpush.bf16.msra.mxu0 %v7539
  %7568 = vmatpush.bf16.msra.mxu0 %v7538
  %7569 = vmatmul.bf16.gmra.mxu0 %v7547
  %v7570 = vpop.f32.mrf.mxu0
  %v7571 = vadd.f32 0.0, %v7570
  %v7572 = vpop.f32.mrf.mxu0
  %v7573 = vadd.f32 0.0, %v7572
  %7574 = vmatmul.bf16.gmra.mxu0 %v7550
  %v7575 = vpop.f32.mrf.mxu0
  %v7576 = vadd.f32 0.0, %v7575
  %v7577 = vpop.f32.mrf.mxu0
  %v7578 = vadd.f32 0.0, %v7577
  %7579 = vmatmul.bf16.gmra.mxu0 %v7553
  %v7580 = vpop.f32.mrf.mxu0
  %v7581 = vadd.f32 0.0, %v7580
  %v7582 = vpop.f32.mrf.mxu0
  %v7583 = vadd.f32 0.0, %v7582
  %7584 = vmatmul.bf16.gmra.mxu0 %v7556
  %v7585 = vpop.f32.mrf.mxu0
  %v7586 = vadd.f32 0.0, %v7585
  %v7587 = vpop.f32.mrf.mxu0
  %v7588 = vadd.f32 0.0, %v7587
  %7589 = vmatmul.bf16.gmra.mxu0 %v7559
  %v7590 = vpop.f32.mrf.mxu0
  %v7591 = vadd.f32 0.0, %v7590
  %v7592 = vpop.f32.mrf.mxu0
  %v7593 = vadd.f32 0.0, %v7592
  %7594 = vdwg.mxu0
  %v7595 = vadd.f32 %v7488, %v7571
  %v7596 = vadd.f32 %v7489, %v7573
  %v7597 = vadd.f32 %v7490, %v7576
  %v7598 = vadd.f32 %v7491, %v7578
  %v7599 = vadd.f32 %v7492, %v7581
  %v7600 = vadd.f32 %v7493, %v7583
  %v7601 = vadd.f32 %v7494, %v7586
  %v7602 = vadd.f32 %v7495, %v7588
  %v7603 = vadd.f32 %v7496, %v7591
  %v7604 = vadd.f32 %v7497, %v7593
  %v7605 = vld [vmem:[#allocation5 + $0x9] sm:$0xff]
  %v7606 = vld [vmem:[#allocation5 + $0x11] sm:$0xff]
  %v7607 = vld [vmem:[#allocation5 + $0x19] sm:$0xff]
  %v7608 = vld [vmem:[#allocation5 + $0x21] sm:$0xff]
  %v7609 = vld [vmem:[#allocation5 + $0x29] sm:$0xff]
  %v7610 = vld [vmem:[#allocation5 + $0x31] sm:$0xff]
  %v7611 = vld [vmem:[#allocation5 + $0x39] sm:$0xff]
  %v7612 = vld [vmem:[#allocation5 + $0x41] sm:$0xff]
  %v7613 = vld [vmem:[#allocation5 + $0x49] sm:$0xff]
  %v7614 = vld [vmem:[#allocation5 + $0x51] sm:$0xff]
  %v7615 = vpack.c.bf16 %v7606, %v7605
  %v7616 = vpack.c.bf16 %v7608, %v7607
  %v7617 = vpack.c.bf16 %v7610, %v7609
  %v7618 = vpack.c.bf16 %v7612, %v7611
  %v7619 = vpack.c.bf16 %v7614, %v7613
  %s7620 = scalar_lea.vmem %s7, 128
  %v7621 = vld [vmem:[%s7620] sm:$0xf]
  %v7622 = vld [vmem:[%s7620 + $0x4] sm:$0xf]
  %v7623 = vld [vmem:[%s7620 + $0x8] sm:$0xf]
  %v7624 = vld [vmem:[%s7620 + $0xc] sm:$0xf]
  %v7625 = vld [vmem:[%s7620 + $0x10] sm:$0xf]
  %v7626 = vld [vmem:[%s7620 + $0x14] sm:$0xf]
  %v7627 = vld [vmem:[%s7620 + $0x18] sm:$0xf]
  %v7628 = vld [vmem:[%s7620 + $0x1c] sm:$0xf]
  %v7637 = vunpack.c.l.b16 %v7621
  %v7638 = vunpack.c.l.b16 %v7622
  %v7639 = vunpack.c.l.b16 %v7623
  %v7640 = vunpack.c.l.b16 %v7624
  %v7641 = vunpack.c.l.b16 %v7625
  %v7642 = vunpack.c.l.b16 %v7626
  %v7643 = vunpack.c.l.b16 %v7627
  %v7644 = vunpack.c.l.b16 %v7628
  %v7645 = vpack.c.b16 %v7638, %v7637
  %v7646 = vpack.c.b16 %v7640, %v7639
  %v7647 = vpack.c.b16 %v7642, %v7641
  %v7648 = vpack.c.b16 %v7644, %v7643
  %v7654 = vsel %vm1576, %v7615, 0
  %v7657 = vsel %vm1576, %v7616, 0
  %v7660 = vsel %vm1576, %v7617, 0
  %v7663 = vsel %vm1576, %v7618, 0
  %v7666 = vsel %vm1576, %v7619, 0
  %7668 = vmatpush.bf16.msra.mxu0 0
  %7669 = vmatpush.bf16.msra.mxu0 0
  %7670 = vmatpush.bf16.msra.mxu0 0
  %7671 = vmatpush.bf16.msra.mxu0 0
  %7672 = vmatpush.bf16.msra.mxu0 %v7648
  %7673 = vmatpush.bf16.msra.mxu0 %v7647
  %7674 = vmatpush.bf16.msra.mxu0 %v7646
  %7675 = vmatpush.bf16.msra.mxu0 %v7645
  %7676 = vmatmul.bf16.gmra.mxu0 %v7654
  %v7677 = vpop.f32.mrf.mxu0
  %v7678 = vadd.f32 0.0, %v7677
  %v7679 = vpop.f32.mrf.mxu0
  %v7680 = vadd.f32 0.0, %v7679
  %7681 = vmatmul.bf16.gmra.mxu0 %v7657
  %v7682 = vpop.f32.mrf.mxu0
  %v7683 = vadd.f32 0.0, %v7682
  %v7684 = vpop.f32.mrf.mxu0
  %v7685 = vadd.f32 0.0, %v7684
  %7686 = vmatmul.bf16.gmra.mxu0 %v7660
  %v7687 = vpop.f32.mrf.mxu0
  %v7688 = vadd.f32 0.0, %v7687
  %v7689 = vpop.f32.mrf.mxu0
  %v7690 = vadd.f32 0.0, %v7689
  %7691 = vmatmul.bf16.gmra.mxu0 %v7663
  %v7692 = vpop.f32.mrf.mxu0
  %v7693 = vadd.f32 0.0, %v7692
  %v7694 = vpop.f32.mrf.mxu0
  %v7695 = vadd.f32 0.0, %v7694
  %7696 = vmatmul.bf16.gmra.mxu0 %v7666
  %v7697 = vpop.f32.mrf.mxu0
  %v7698 = vadd.f32 0.0, %v7697
  %v7699 = vpop.f32.mrf.mxu0
  %v7700 = vadd.f32 0.0, %v7699
  %7701 = vdwg.mxu0
  %v7702 = vadd.f32 %v7595, %v7678
  %v7703 = vadd.f32 %v7596, %v7680
  %v7704 = vadd.f32 %v7597, %v7683
  %v7705 = vadd.f32 %v7598, %v7685
  %v7706 = vadd.f32 %v7599, %v7688
  %v7707 = vadd.f32 %v7600, %v7690
  %v7708 = vadd.f32 %v7601, %v7693
  %v7709 = vadd.f32 %v7602, %v7695
  %v7710 = vadd.f32 %v7603, %v7698
  %v7711 = vadd.f32 %v7604, %v7700
  %v7712 = vld [vmem:[#allocation5 + $0xa] sm:$0xff]
  %v7713 = vld [vmem:[#allocation5 + $0x12] sm:$0xff]
  %v7714 = vld [vmem:[#allocation5 + $0x1a] sm:$0xff]
  %v7715 = vld [vmem:[#allocation5 + $0x22] sm:$0xff]
  %v7716 = vld [vmem:[#allocation5 + $0x2a] sm:$0xff]
  %v7717 = vld [vmem:[#allocation5 + $0x32] sm:$0xff]
  %v7718 = vld [vmem:[#allocation5 + $0x3a] sm:$0xff]
  %v7719 = vld [vmem:[#allocation5 + $0x42] sm:$0xff]
  %v7720 = vld [vmem:[#allocation5 + $0x4a] sm:$0xff]
  %v7721 = vld [vmem:[#allocation5 + $0x52] sm:$0xff]
  %v7722 = vpack.c.bf16 %v7713, %v7712
  %v7723 = vpack.c.bf16 %v7715, %v7714
  %v7724 = vpack.c.bf16 %v7717, %v7716
  %v7725 = vpack.c.bf16 %v7719, %v7718
  %v7726 = vpack.c.bf16 %v7721, %v7720
  %s7727 = scalar_lea.vmem %s7, 160
  %v7728 = vld [vmem:[%s7727] sm:$0xf]
  %v7729 = vld [vmem:[%s7727 + $0x4] sm:$0xf]
  %v7730 = vld [vmem:[%s7727 + $0x8] sm:$0xf]
  %v7731 = vld [vmem:[%s7727 + $0xc] sm:$0xf]
  %v7732 = vld [vmem:[%s7727 + $0x10] sm:$0xf]
  %v7733 = vld [vmem:[%s7727 + $0x14] sm:$0xf]
  %v7734 = vld [vmem:[%s7727 + $0x18] sm:$0xf]
  %v7735 = vld [vmem:[%s7727 + $0x1c] sm:$0xf]
  %v7744 = vunpack.c.l.b16 %v7728
  %v7745 = vunpack.c.l.b16 %v7729
  %v7746 = vunpack.c.l.b16 %v7730
  %v7747 = vunpack.c.l.b16 %v7731
  %v7748 = vunpack.c.l.b16 %v7732
  %v7749 = vunpack.c.l.b16 %v7733
  %v7750 = vunpack.c.l.b16 %v7734
  %v7751 = vunpack.c.l.b16 %v7735
  %v7752 = vpack.c.b16 %v7745, %v7744
  %v7753 = vpack.c.b16 %v7747, %v7746
  %v7754 = vpack.c.b16 %v7749, %v7748
  %v7755 = vpack.c.b16 %v7751, %v7750
  %v7761 = vsel %vm1576, %v7722, 0
  %v7764 = vsel %vm1576, %v7723, 0
  %v7767 = vsel %vm1576, %v7724, 0
  %v7770 = vsel %vm1576, %v7725, 0
  %v7773 = vsel %vm1576, %v7726, 0
  %7775 = vmatpush.bf16.msra.mxu0 0
  %7776 = vmatpush.bf16.msra.mxu0 0
  %7777 = vmatpush.bf16.msra.mxu0 0
  %7778 = vmatpush.bf16.msra.mxu0 0
  %7779 = vmatpush.bf16.msra.mxu0 %v7755
  %7780 = vmatpush.bf16.msra.mxu0 %v7754
  %7781 = vmatpush.bf16.msra.mxu0 %v7753
  %7782 = vmatpush.bf16.msra.mxu0 %v7752
  %7783 = vmatmul.bf16.gmra.mxu0 %v7761
  %v7784 = vpop.f32.mrf.mxu0
  %v7785 = vadd.f32 0.0, %v7784
  %v7786 = vpop.f32.mrf.mxu0
  %v7787 = vadd.f32 0.0, %v7786
  %7788 = vmatmul.bf16.gmra.mxu0 %v7764
  %v7789 = vpop.f32.mrf.mxu0
  %v7790 = vadd.f32 0.0, %v7789
  %v7791 = vpop.f32.mrf.mxu0
  %v7792 = vadd.f32 0.0, %v7791
  %7793 = vmatmul.bf16.gmra.mxu0 %v7767
  %v7794 = vpop.f32.mrf.mxu0
  %v7795 = vadd.f32 0.0, %v7794
  %v7796 = vpop.f32.mrf.mxu0
  %v7797 = vadd.f32 0.0, %v7796
  %7798 = vmatmul.bf16.gmra.mxu0 %v7770
  %v7799 = vpop.f32.mrf.mxu0
  %v7800 = vadd.f32 0.0, %v7799
  %v7801 = vpop.f32.mrf.mxu0
  %v7802 = vadd.f32 0.0, %v7801
  %7803 = vmatmul.bf16.gmra.mxu0 %v7773
  %v7804 = vpop.f32.mrf.mxu0
  %v7805 = vadd.f32 0.0, %v7804
  %v7806 = vpop.f32.mrf.mxu0
  %v7807 = vadd.f32 0.0, %v7806
  %7808 = vdwg.mxu0
  %v7809 = vadd.f32 %v7702, %v7785
  %v7810 = vadd.f32 %v7703, %v7787
  %v7811 = vadd.f32 %v7704, %v7790
  %v7812 = vadd.f32 %v7705, %v7792
  %v7813 = vadd.f32 %v7706, %v7795
  %v7814 = vadd.f32 %v7707, %v7797
  %v7815 = vadd.f32 %v7708, %v7800
  %v7816 = vadd.f32 %v7709, %v7802
  %v7817 = vadd.f32 %v7710, %v7805
  %v7818 = vadd.f32 %v7711, %v7807
  %v7819 = vld [vmem:[#allocation5 + $0x10] sm:$0xff]
  %v7820 = vld [vmem:[#allocation5 + $0x18] sm:$0xff]
  %v7821 = vld [vmem:[#allocation5 + $0x20] sm:$0xff]
  %v7822 = vld [vmem:[#allocation5 + $0x28] sm:$0xff]
  %v7823 = vld [vmem:[#allocation5 + $0x30] sm:$0xff]
  %v7824 = vld [vmem:[#allocation5 + $0x38] sm:$0xff]
  %v7825 = vld [vmem:[#allocation5 + $0x40] sm:$0xff]
  %v7826 = vld [vmem:[#allocation5 + $0x48] sm:$0xff]
  %v7827 = vld [vmem:[#allocation5 + $0x50] sm:$0xff]
  %v7828 = vld [vmem:[#allocation5 + $0x58] sm:$0xff]
  %v7829 = vpack.c.bf16 %v7820, %v7819
  %v7830 = vpack.c.bf16 %v7822, %v7821
  %v7831 = vpack.c.bf16 %v7824, %v7823
  %v7832 = vpack.c.bf16 %v7826, %v7825
  %v7833 = vpack.c.bf16 %v7828, %v7827
  %s7834 = scalar_lea.vmem %s7, 192
  %v7835 = vld [vmem:[%s7834] sm:$0xf]
  %v7836 = vld [vmem:[%s7834 + $0x4] sm:$0xf]
  %v7837 = vld [vmem:[%s7834 + $0x8] sm:$0xf]
  %v7838 = vld [vmem:[%s7834 + $0xc] sm:$0xf]
  %v7839 = vld [vmem:[%s7834 + $0x10] sm:$0xf]
  %v7840 = vld [vmem:[%s7834 + $0x14] sm:$0xf]
  %v7841 = vld [vmem:[%s7834 + $0x18] sm:$0xf]
  %v7842 = vld [vmem:[%s7834 + $0x1c] sm:$0xf]
  %v7851 = vunpack.c.l.b16 %v7835
  %v7852 = vunpack.c.l.b16 %v7836
  %v7853 = vunpack.c.l.b16 %v7837
  %v7854 = vunpack.c.l.b16 %v7838
  %v7855 = vunpack.c.l.b16 %v7839
  %v7856 = vunpack.c.l.b16 %v7840
  %v7857 = vunpack.c.l.b16 %v7841
  %v7858 = vunpack.c.l.b16 %v7842
  %v7859 = vpack.c.b16 %v7852, %v7851
  %v7860 = vpack.c.b16 %v7854, %v7853
  %v7861 = vpack.c.b16 %v7856, %v7855
  %v7862 = vpack.c.b16 %v7858, %v7857
  %v7868 = vsel %vm1576, %v7829, 0
  %v7871 = vsel %vm1576, %v7830, 0
  %v7874 = vsel %vm1576, %v7831, 0
  %v7877 = vsel %vm1576, %v7832, 0
  %v7880 = vsel %vm1576, %v7833, 0
  %7882 = vmatpush.bf16.msra.mxu0 0
  %7883 = vmatpush.bf16.msra.mxu0 0
  %7884 = vmatpush.bf16.msra.mxu0 0
  %7885 = vmatpush.bf16.msra.mxu0 0
  %7886 = vmatpush.bf16.msra.mxu0 %v7862
  %7887 = vmatpush.bf16.msra.mxu0 %v7861
  %7888 = vmatpush.bf16.msra.mxu0 %v7860
  %7889 = vmatpush.bf16.msra.mxu0 %v7859
  %7890 = vmatmul.bf16.gmra.mxu0 %v7868
  %v7891 = vpop.f32.mrf.mxu0
  %v7892 = vadd.f32 0.0, %v7891
  %v7893 = vpop.f32.mrf.mxu0
  %v7894 = vadd.f32 0.0, %v7893
  %7895 = vmatmul.bf16.gmra.mxu0 %v7871
  %v7896 = vpop.f32.mrf.mxu0
  %v7897 = vadd.f32 0.0, %v7896
  %v7898 = vpop.f32.mrf.mxu0
  %v7899 = vadd.f32 0.0, %v7898
  %7900 = vmatmul.bf16.gmra.mxu0 %v7874
  %v7901 = vpop.f32.mrf.mxu0
  %v7902 = vadd.f32 0.0, %v7901
  %v7903 = vpop.f32.mrf.mxu0
  %v7904 = vadd.f32 0.0, %v7903
  %7905 = vmatmul.bf16.gmra.mxu0 %v7877
  %v7906 = vpop.f32.mrf.mxu0
  %v7907 = vadd.f32 0.0, %v7906
  %v7908 = vpop.f32.mrf.mxu0
  %v7909 = vadd.f32 0.0, %v7908
  %7910 = vmatmul.bf16.gmra.mxu0 %v7880
  %v7911 = vpop.f32.mrf.mxu0
  %v7912 = vadd.f32 0.0, %v7911
  %v7913 = vpop.f32.mrf.mxu0
  %v7914 = vadd.f32 0.0, %v7913
  %7915 = vdwg.mxu0
  %v7916 = vadd.f32 %v7809, %v7892
  %v7917 = vadd.f32 %v7810, %v7894
  %v7918 = vadd.f32 %v7811, %v7897
  %v7919 = vadd.f32 %v7812, %v7899
  %v7920 = vadd.f32 %v7813, %v7902
  %v7921 = vadd.f32 %v7814, %v7904
  %v7922 = vadd.f32 %v7815, %v7907
  %v7923 = vadd.f32 %v7816, %v7909
  %v7924 = vadd.f32 %v7817, %v7912
  %v7925 = vadd.f32 %v7818, %v7914
  %v7926 = vld [vmem:[#allocation5 + $0x11] sm:$0xff]
  %v7927 = vld [vmem:[#allocation5 + $0x19] sm:$0xff]
  %v7928 = vld [vmem:[#allocation5 + $0x21] sm:$0xff]
  %v7929 = vld [vmem:[#allocation5 + $0x29] sm:$0xff]
  %v7930 = vld [vmem:[#allocation5 + $0x31] sm:$0xff]
  %v7931 = vld [vmem:[#allocation5 + $0x39] sm:$0xff]
  %v7932 = vld [vmem:[#allocation5 + $0x41] sm:$0xff]
  %v7933 = vld [vmem:[#allocation5 + $0x49] sm:$0xff]
  %v7934 = vld [vmem:[#allocation5 + $0x51] sm:$0xff]
  %v7935 = vld [vmem:[#allocation5 + $0x59] sm:$0xff]
  %v7936 = vpack.c.bf16 %v7927, %v7926
  %v7937 = vpack.c.bf16 %v7929, %v7928
  %v7938 = vpack.c.bf16 %v7931, %v7930
  %v7939 = vpack.c.bf16 %v7933, %v7932
  %v7940 = vpack.c.bf16 %v7935, %v7934
  %s7941 = scalar_lea.vmem %s7, 224
  %v7942 = vld [vmem:[%s7941] sm:$0xf]
  %v7943 = vld [vmem:[%s7941 + $0x4] sm:$0xf]
  %v7944 = vld [vmem:[%s7941 + $0x8] sm:$0xf]
  %v7945 = vld [vmem:[%s7941 + $0xc] sm:$0xf]
  %v7946 = vld [vmem:[%s7941 + $0x10] sm:$0xf]
  %v7947 = vld [vmem:[%s7941 + $0x14] sm:$0xf]
  %v7948 = vld [vmem:[%s7941 + $0x18] sm:$0xf]
  %v7949 = vld [vmem:[%s7941 + $0x1c] sm:$0xf]
  %v7958 = vunpack.c.l.b16 %v7942
  %v7959 = vunpack.c.l.b16 %v7943
  %v7960 = vunpack.c.l.b16 %v7944
  %v7961 = vunpack.c.l.b16 %v7945
  %v7962 = vunpack.c.l.b16 %v7946
  %v7963 = vunpack.c.l.b16 %v7947
  %v7964 = vunpack.c.l.b16 %v7948
  %v7965 = vunpack.c.l.b16 %v7949
  %v7966 = vpack.c.b16 %v7959, %v7958
  %v7967 = vpack.c.b16 %v7961, %v7960
  %v7968 = vpack.c.b16 %v7963, %v7962
  %v7969 = vpack.c.b16 %v7965, %v7964
  %v7975 = vsel %vm1576, %v7936, 0
  %v7978 = vsel %vm1576, %v7937, 0
  %v7981 = vsel %vm1576, %v7938, 0
  %v7984 = vsel %vm1576, %v7939, 0
  %v7987 = vsel %vm1576, %v7940, 0
  %7989 = vmatpush.bf16.msra.mxu0 0
  %7990 = vmatpush.bf16.msra.mxu0 0
  %7991 = vmatpush.bf16.msra.mxu0 0
  %7992 = vmatpush.bf16.msra.mxu0 0
  %7993 = vmatpush.bf16.msra.mxu0 %v7969
  %7994 = vmatpush.bf16.msra.mxu0 %v7968
  %7995 = vmatpush.bf16.msra.mxu0 %v7967
  %7996 = vmatpush.bf16.msra.mxu0 %v7966
  %7997 = vmatmul.bf16.gmra.mxu0 %v7975
  %v7998 = vpop.f32.mrf.mxu0
  %v7999 = vadd.f32 0.0, %v7998
  %v8000 = vpop.f32.mrf.mxu0
  %v8001 = vadd.f32 0.0, %v8000
  %8002 = vmatmul.bf16.gmra.mxu0 %v7978
  %v8003 = vpop.f32.mrf.mxu0
  %v8004 = vadd.f32 0.0, %v8003
  %v8005 = vpop.f32.mrf.mxu0
  %v8006 = vadd.f32 0.0, %v8005
  %8007 = vmatmul.bf16.gmra.mxu0 %v7981
  %v8008 = vpop.f32.mrf.mxu0
  %v8009 = vadd.f32 0.0, %v8008
  %v8010 = vpop.f32.mrf.mxu0
  %v8011 = vadd.f32 0.0, %v8010
  %8012 = vmatmul.bf16.gmra.mxu0 %v7984
  %v8013 = vpop.f32.mrf.mxu0
  %v8014 = vadd.f32 0.0, %v8013
  %v8015 = vpop.f32.mrf.mxu0
  %v8016 = vadd.f32 0.0, %v8015
  %8017 = vmatmul.bf16.gmra.mxu0 %v7987
  %v8018 = vpop.f32.mrf.mxu0
  %v8019 = vadd.f32 0.0, %v8018
  %v8020 = vpop.f32.mrf.mxu0
  %v8021 = vadd.f32 0.0, %v8020
  %8022 = vdwg.mxu0
  %v8023 = vadd.f32 %v7916, %v7999
  %v8024 = vadd.f32 %v7917, %v8001
  %v8025 = vadd.f32 %v7918, %v8004
  %v8026 = vadd.f32 %v7919, %v8006
  %v8027 = vadd.f32 %v7920, %v8009
  %v8028 = vadd.f32 %v7921, %v8011
  %v8029 = vadd.f32 %v7922, %v8014
  %v8030 = vadd.f32 %v7923, %v8016
  %v8031 = vadd.f32 %v7924, %v8019
  %v8032 = vadd.f32 %v7925, %v8021
  %v8033 = vld [vmem:[#allocation5 + $0x12] sm:$0xff]
  %v8034 = vld [vmem:[#allocation5 + $0x1a] sm:$0xff]
  %v8035 = vld [vmem:[#allocation5 + $0x22] sm:$0xff]
  %v8036 = vld [vmem:[#allocation5 + $0x2a] sm:$0xff]
  %v8037 = vld [vmem:[#allocation5 + $0x32] sm:$0xff]
  %v8038 = vld [vmem:[#allocation5 + $0x3a] sm:$0xff]
  %v8039 = vld [vmem:[#allocation5 + $0x42] sm:$0xff]
  %v8040 = vld [vmem:[#allocation5 + $0x4a] sm:$0xff]
  %v8041 = vld [vmem:[#allocation5 + $0x52] sm:$0xff]
  %v8042 = vld [vmem:[#allocation5 + $0x5a] sm:$0xff]
  %v8043 = vpack.c.bf16 %v8034, %v8033
  %v8044 = vpack.c.bf16 %v8036, %v8035
  %v8045 = vpack.c.bf16 %v8038, %v8037
  %v8046 = vpack.c.bf16 %v8040, %v8039
  %v8047 = vpack.c.bf16 %v8042, %v8041
  %s8048 = scalar_lea.vmem %s7, 256
  %v8049 = vld [vmem:[%s8048] sm:$0xf]
  %v8050 = vld [vmem:[%s8048 + $0x4] sm:$0xf]
  %v8051 = vld [vmem:[%s8048 + $0x8] sm:$0xf]
  %v8052 = vld [vmem:[%s8048 + $0xc] sm:$0xf]
  %v8053 = vld [vmem:[%s8048 + $0x10] sm:$0xf]
  %v8054 = vld [vmem:[%s8048 + $0x14] sm:$0xf]
  %v8055 = vld [vmem:[%s8048 + $0x18] sm:$0xf]
  %v8056 = vld [vmem:[%s8048 + $0x1c] sm:$0xf]
  %v8065 = vunpack.c.l.b16 %v8049
  %v8066 = vunpack.c.l.b16 %v8050
  %v8067 = vunpack.c.l.b16 %v8051
  %v8068 = vunpack.c.l.b16 %v8052
  %v8069 = vunpack.c.l.b16 %v8053
  %v8070 = vunpack.c.l.b16 %v8054
  %v8071 = vunpack.c.l.b16 %v8055
  %v8072 = vunpack.c.l.b16 %v8056
  %v8073 = vpack.c.b16 %v8066, %v8065
  %v8074 = vpack.c.b16 %v8068, %v8067
  %v8075 = vpack.c.b16 %v8070, %v8069
  %v8076 = vpack.c.b16 %v8072, %v8071
  %v8082 = vsel %vm1576, %v8043, 0
  %v8085 = vsel %vm1576, %v8044, 0
  %v8088 = vsel %vm1576, %v8045, 0
  %v8091 = vsel %vm1576, %v8046, 0
  %v8094 = vsel %vm1576, %v8047, 0
  %8096 = vmatpush.bf16.msra.mxu0 0
  %8097 = vmatpush.bf16.msra.mxu0 0
  %8098 = vmatpush.bf16.msra.mxu0 0
  %8099 = vmatpush.bf16.msra.mxu0 0
  %8100 = vmatpush.bf16.msra.mxu0 %v8076
  %8101 = vmatpush.bf16.msra.mxu0 %v8075
  %8102 = vmatpush.bf16.msra.mxu0 %v8074
  %8103 = vmatpush.bf16.msra.mxu0 %v8073
  %8104 = vmatmul.bf16.gmra.mxu0 %v8082
  %v8105 = vpop.f32.mrf.mxu0
  %v8106 = vadd.f32 0.0, %v8105
  %v8107 = vpop.f32.mrf.mxu0
  %v8108 = vadd.f32 0.0, %v8107
  %8109 = vmatmul.bf16.gmra.mxu0 %v8085
  %v8110 = vpop.f32.mrf.mxu0
  %v8111 = vadd.f32 0.0, %v8110
  %v8112 = vpop.f32.mrf.mxu0
  %v8113 = vadd.f32 0.0, %v8112
  %8114 = vmatmul.bf16.gmra.mxu0 %v8088
  %v8115 = vpop.f32.mrf.mxu0
  %v8116 = vadd.f32 0.0, %v8115
  %v8117 = vpop.f32.mrf.mxu0
  %v8118 = vadd.f32 0.0, %v8117
  %8119 = vmatmul.bf16.gmra.mxu0 %v8091
  %v8120 = vpop.f32.mrf.mxu0
  %v8121 = vadd.f32 0.0, %v8120
  %v8122 = vpop.f32.mrf.mxu0
  %v8123 = vadd.f32 0.0, %v8122
  %8124 = vmatmul.bf16.gmra.mxu0 %v8094
  %v8125 = vpop.f32.mrf.mxu0
  %v8126 = vadd.f32 0.0, %v8125
  %v8127 = vpop.f32.mrf.mxu0
  %v8128 = vadd.f32 0.0, %v8127
  %8129 = vdwg.mxu0
  %v8130 = vadd.f32 %v8023, %v8106
  %v8131 = vadd.f32 %v8024, %v8108
  %v8132 = vadd.f32 %v8025, %v8111
  %v8133 = vadd.f32 %v8026, %v8113
  %v8134 = vadd.f32 %v8027, %v8116
  %v8135 = vadd.f32 %v8028, %v8118
  %v8136 = vadd.f32 %v8029, %v8121
  %v8137 = vadd.f32 %v8030, %v8123
  %v8138 = vadd.f32 %v8031, %v8126
  %v8139 = vadd.f32 %v8032, %v8128
  %v8140 = vld [vmem:[%s8] sm:$0x1]
  %v8142 = vperm.slane %v8140, 0
  %v8144 = vadd.f32 %v8130, %v8142
  %v8145 = vadd.f32 %v8131, %v8142
  %v8146 = vadd.f32 %v8132, %v8142
  %v8147 = vadd.f32 %v8133, %v8142
  %v8148 = vadd.f32 %v8134, %v8142
  %v8149 = vadd.f32 %v8135, %v8142
  %v8150 = vadd.f32 %v8136, %v8142
  %v8151 = vadd.f32 %v8137, %v8142
  %v8152 = vadd.f32 %v8138, %v8142
  %v8153 = vadd.f32 %v8139, %v8142
  %v8154 = vld [vmem:[%s2] sm:$0xff]
  %v8155 = vld [vmem:[%s2 + $0x8] sm:$0xff]
  %v8156 = vld [vmem:[%s2 + $0x10] sm:$0xff]
  %v8157 = vld [vmem:[%s2 + $0x18] sm:$0xff]
  %v8158 = vld [vmem:[%s2 + $0x20] sm:$0xff]
  %v8159 = vld [vmem:[%s2 + $0x28] sm:$0xff]
  %v8160 = vld [vmem:[%s2 + $0x30] sm:$0xff]
  %v8161 = vld [vmem:[%s2 + $0x38] sm:$0xff]
  %v8162 = vld [vmem:[%s2 + $0x40] sm:$0xff]
  %v8163 = vld [vmem:[%s2 + $0x48] sm:$0xff]
  %vm8164 = vcmp.gt.f32.partialorder %v8154, 0.0
  %vm8165 = vcmp.gt.f32.partialorder %v8155, 0.0
  %vm8166 = vcmp.gt.f32.partialorder %v8156, 0.0
  %vm8167 = vcmp.gt.f32.partialorder %v8157, 0.0
  %vm8168 = vcmp.gt.f32.partialorder %v8158, 0.0
  %vm8169 = vcmp.gt.f32.partialorder %v8159, 0.0
  %vm8170 = vcmp.gt.f32.partialorder %v8160, 0.0
  %vm8171 = vcmp.gt.f32.partialorder %v8161, 0.0
  %vm8172 = vcmp.gt.f32.partialorder %v8162, 0.0
  %vm8173 = vcmp.gt.f32.partialorder %v8163, 0.0
  %v8174 = vsel %vm8164, 1, 0
  %v8175 = vsel %vm8165, 1, 0
  %v8176 = vsel %vm8166, 1, 0
  %v8177 = vsel %vm8167, 1, 0
  %v8178 = vsel %vm8168, 1, 0
  %v8179 = vsel %vm8169, 1, 0
  %v8180 = vsel %vm8170, 1, 0
  %v8181 = vsel %vm8171, 1, 0
  %v8182 = vsel %vm8172, 1, 0
  %v8183 = vsel %vm8173, 1, 0
  %8184 = vset.pattern.permute.xlu0 0
  %8185 = vperm.xlu0 %8184, %v8174
  %v8186 = vpop.permute.xlu0 %8185
  %8187 = vset.pattern.permute.xlu0 0
  %8188 = vperm.xlu0 %8187, %v8175
  %v8189 = vpop.permute.xlu0 %8188
  %8190 = vset.pattern.permute.xlu0 0
  %8191 = vperm.xlu0 %8190, %v8176
  %v8192 = vpop.permute.xlu0 %8191
  %8193 = vset.pattern.permute.xlu0 0
  %8194 = vperm.xlu0 %8193, %v8177
  %v8195 = vpop.permute.xlu0 %8194
  %8196 = vset.pattern.permute.xlu0 0
  %8197 = vperm.xlu0 %8196, %v8178
  %v8198 = vpop.permute.xlu0 %8197
  %8199 = vset.pattern.permute.xlu0 0
  %8200 = vperm.xlu0 %8199, %v8179
  %v8201 = vpop.permute.xlu0 %8200
  %8202 = vset.pattern.permute.xlu0 0
  %8203 = vperm.xlu0 %8202, %v8180
  %v8204 = vpop.permute.xlu0 %8203
  %8205 = vset.pattern.permute.xlu0 0
  %8206 = vperm.xlu0 %8205, %v8181
  %v8207 = vpop.permute.xlu0 %8206
  %8208 = vset.pattern.permute.xlu0 0
  %8209 = vperm.xlu0 %8208, %v8182
  %v8210 = vpop.permute.xlu0 %8209
  %8211 = vset.pattern.permute.xlu0 0
  %8212 = vperm.xlu0 %8211, %v8183
  %v8213 = vpop.permute.xlu0 %8212
  %vm8214 = vcmp.eq.s32.totalorder %v8186, 1
  %vm8215 = vcmp.eq.s32.totalorder %v8189, 1
  %vm8216 = vcmp.eq.s32.totalorder %v8192, 1
  %vm8217 = vcmp.eq.s32.totalorder %v8195, 1
  %vm8218 = vcmp.eq.s32.totalorder %v8198, 1
  %vm8219 = vcmp.eq.s32.totalorder %v8201, 1
  %vm8220 = vcmp.eq.s32.totalorder %v8204, 1
  %vm8221 = vcmp.eq.s32.totalorder %v8207, 1
  %vm8222 = vcmp.eq.s32.totalorder %v8210, 1
  %vm8223 = vcmp.eq.s32.totalorder %v8213, 1
  %v8224 = vsel %vm8214, %v8144, 0.0
  %v8225 = vsel %vm8215, %v8145, 0.0
  %v8226 = vsel %vm8216, %v8146, 0.0
  %v8227 = vsel %vm8217, %v8147, 0.0
  %v8228 = vsel %vm8218, %v8148, 0.0
  %v8229 = vsel %vm8219, %v8149, 0.0
  %v8230 = vsel %vm8220, %v8150, 0.0
  %v8231 = vsel %vm8221, %v8151, 0.0
  %v8232 = vsel %vm8222, %v8152, 0.0
  %v8233 = vsel %vm8223, %v8153, 0.0
  %v8234 = vsel %vm1576, %v8224, 0.0
  %v8235 = vsel %vm1576, %v8225, 0.0
  %v8236 = vadd.f32 %v8234, %v8235
  %v8237 = vsel %vm1576, %v8226, 0.0
  %v8238 = vadd.f32 %v8236, %v8237
  %v8239 = vsel %vm1576, %v8227, 0.0
  %v8240 = vadd.f32 %v8238, %v8239
  %v8241 = vsel %vm1576, %v8228, 0.0
  %v8242 = vadd.f32 %v8240, %v8241
  %v8243 = vsel %vm1576, %v8229, 0.0
  %v8244 = vadd.f32 %v8242, %v8243
  %v8245 = vsel %vm1576, %v8230, 0.0
  %v8246 = vadd.f32 %v8244, %v8245
  %v8247 = vsel %vm1576, %v8231, 0.0
  %v8248 = vadd.f32 %v8246, %v8247
  %v8249 = vsel %vm1576, %v8232, 0.0
  %v8250 = vadd.f32 %v8248, %v8249
  %v8251 = vsel %vm1576, %v8233, 0.0
  %v8252 = vadd.f32 %v8250, %v8251
  %v8253 = vrot.slane %v8252, 4
  %v8254 = vadd.f32 %v8252, %v8253
  %v8255 = vrot.slane %v8254, 2
  %v8256 = vadd.f32 %v8254, %v8255
  %v8257 = vrot.slane %v8256, 1
  %v8258 = vadd.f32 %v8256, %v8257
  %v8259 = vmul.f32 %v8258, 0.03125
  %v8260 = vmul.f32 %v8224, %v8224
  %v8261 = vmul.f32 %v8225, %v8225
  %v8262 = vmul.f32 %v8226, %v8226
  %v8263 = vmul.f32 %v8227, %v8227
  %v8264 = vmul.f32 %v8228, %v8228
  %v8265 = vmul.f32 %v8229, %v8229
  %v8266 = vmul.f32 %v8230, %v8230
  %v8267 = vmul.f32 %v8231, %v8231
  %v8268 = vmul.f32 %v8232, %v8232
  %v8269 = vmul.f32 %v8233, %v8233
  %v8270 = vsel %vm1576, %v8260, 0.0
  %v8271 = vsel %vm1576, %v8261, 0.0
  %v8272 = vadd.f32 %v8270, %v8271
  %v8273 = vsel %vm1576, %v8262, 0.0
  %v8274 = vadd.f32 %v8272, %v8273
  %v8275 = vsel %vm1576, %v8263, 0.0
  %v8276 = vadd.f32 %v8274, %v8275
  %v8277 = vsel %vm1576, %v8264, 0.0
  %v8278 = vadd.f32 %v8276, %v8277
  %v8279 = vsel %vm1576, %v8265, 0.0
  %v8280 = vadd.f32 %v8278, %v8279
  %v8281 = vsel %vm1576, %v8266, 0.0
  %v8282 = vadd.f32 %v8280, %v8281
  %v8283 = vsel %vm1576, %v8267, 0.0
  %v8284 = vadd.f32 %v8282, %v8283
  %v8285 = vsel %vm1576, %v8268, 0.0
  %v8286 = vadd.f32 %v8284, %v8285
  %v8287 = vsel %vm1576, %v8269, 0.0
  %v8288 = vadd.f32 %v8286, %v8287
  %v8289 = vrot.slane %v8288, 4
  %v8290 = vadd.f32 %v8288, %v8289
  %v8291 = vrot.slane %v8290, 2
  %v8292 = vadd.f32 %v8290, %v8291
  %v8293 = vrot.slane %v8292, 1
  %v8294 = vadd.f32 %v8292, %v8293
  %v8295 = vmul.f32 %v8294, 0.03125
  %v8296 = vmul.f32 %v8259, %v8259
  %v8297 = vsub.f32 %v8295, %v8296
  %v8298 = vld [vmem:[%s9] sm:$0x1]
  %v8299 = vadd.f32 %v8297, 1e-05
  %v8300 = vrsqrt.pop %v8299
  %v8301 = vmul.f32 %v8300, %v8299
  %v8302 = vmul.f32 %v8301, %v8300
  %v8303 = vmul.f32 0.5, %v8302
  %v8304 = vsub.f32 1.5, %v8303
  %v8305 = vmul.f32 %v8300, %v8304
  %vm8306 = vweird.f32 %v8299
  %vm8307 = vweird.f32 %v8300
  %vm8308 = vmor %vm8306, %vm8307
  %v8309 = vsel %vm8308, %v8300, %v8305
  %v8310 = vmul.f32 %v8298, %v8309
  %v8311 = vld [vmem:[%s10] sm:$0x1]
  %v8312 = vmul.f32 %v8259, %v8310
  %v8313 = vsub.f32 %v8311, %v8312
  %v8315 = vperm.slane %v8310, 0
  %v8317 = vmul.f32 %v8144, %v8315
  %v8318 = vmul.f32 %v8145, %v8315
  %v8319 = vmul.f32 %v8146, %v8315
  %v8320 = vmul.f32 %v8147, %v8315
  %v8321 = vmul.f32 %v8148, %v8315
  %v8322 = vmul.f32 %v8149, %v8315
  %v8323 = vmul.f32 %v8150, %v8315
  %v8324 = vmul.f32 %v8151, %v8315
  %v8325 = vmul.f32 %v8152, %v8315
  %v8326 = vmul.f32 %v8153, %v8315
  %v8328 = vperm.slane %v8313, 0
  %v8330 = vadd.f32 %v8317, %v8328
  %v8331 = vadd.f32 %v8318, %v8328
  %v8332 = vadd.f32 %v8319, %v8328
  %v8333 = vadd.f32 %v8320, %v8328
  %v8334 = vadd.f32 %v8321, %v8328
  %v8335 = vadd.f32 %v8322, %v8328
  %v8336 = vadd.f32 %v8323, %v8328
  %v8337 = vadd.f32 %v8324, %v8328
  %v8338 = vadd.f32 %v8325, %v8328
  %v8339 = vadd.f32 %v8326, %v8328
  %v8340 = vmax.f32 %v8330, 0.0
  %v8341 = vmax.f32 %v8331, 0.0
  %v8342 = vmax.f32 %v8332, 0.0
  %v8343 = vmax.f32 %v8333, 0.0
  %v8344 = vmax.f32 %v8334, 0.0
  %v8345 = vmax.f32 %v8335, 0.0
  %v8346 = vmax.f32 %v8336, 0.0
  %v8347 = vmax.f32 %v8337, 0.0
  %v8348 = vmax.f32 %v8338, 0.0
  %v8349 = vmax.f32 %v8339, 0.0
  %8350 = vst.msk [vmem:[#allocation4] sm:$0xff] %vm1576, %v8340
  %8351 = vst.msk [vmem:[#allocation4 + $0x8] sm:$0xff] %vm1576, %v8341
  %8352 = vst.msk [vmem:[#allocation4 + $0x10] sm:$0xff] %vm1576, %v8342
  %8353 = vst.msk [vmem:[#allocation4 + $0x18] sm:$0xff] %vm1576, %v8343
  %8354 = vst.msk [vmem:[#allocation4 + $0x20] sm:$0xff] %vm1576, %v8344
  %8355 = vst.msk [vmem:[#allocation4 + $0x28] sm:$0xff] %vm1576, %v8345
  %8356 = vst.msk [vmem:[#allocation4 + $0x30] sm:$0xff] %vm1576, %v8346
  %8357 = vst.msk [vmem:[#allocation4 + $0x38] sm:$0xff] %vm1576, %v8347
  %8358 = vst.msk [vmem:[#allocation4 + $0x40] sm:$0xff] %vm1576, %v8348
  %8359 = vst.msk [vmem:[#allocation4 + $0x48] sm:$0xff] %vm1576, %v8349
  %v8360 = vld [vmem:[#allocation4] sm:$0xff]
  %v8361 = vld [vmem:[#allocation4 + $0x8] sm:$0xff]
  %v8362 = vld [vmem:[#allocation4 + $0x10] sm:$0xff]
  %v8363 = vld [vmem:[#allocation4 + $0x18] sm:$0xff]
  %v8364 = vld [vmem:[#allocation4 + $0x20] sm:$0xff]
  %v8365 = vld [vmem:[#allocation4 + $0x28] sm:$0xff]
  %v8366 = vld [vmem:[#allocation4 + $0x30] sm:$0xff]
  %v8367 = vld [vmem:[#allocation4 + $0x38] sm:$0xff]
  %v8368 = vld [vmem:[#allocation4 + $0x40] sm:$0xff]
  %v8369 = vld [vmem:[#allocation4 + $0x48] sm:$0xff]
  %v8370 = vld [vmem:[#allocation4 + $0x1] sm:$0xff]
  %v8371 = vld [vmem:[#allocation4 + $0x9] sm:$0xff]
  %v8372 = vld [vmem:[#allocation4 + $0x11] sm:$0xff]
  %v8373 = vld [vmem:[#allocation4 + $0x19] sm:$0xff]
  %v8374 = vld [vmem:[#allocation4 + $0x21] sm:$0xff]
  %v8375 = vld [vmem:[#allocation4 + $0x29] sm:$0xff]
  %v8376 = vld [vmem:[#allocation4 + $0x31] sm:$0xff]
  %v8377 = vld [vmem:[#allocation4 + $0x39] sm:$0xff]
  %v8378 = vld [vmem:[#allocation4 + $0x41] sm:$0xff]
  %v8379 = vld [vmem:[#allocation4 + $0x49] sm:$0xff]
  %v8380 = vmax.f32 %v8360, %v8370
  %v8381 = vmax.f32 %v8361, %v8371
  %v8382 = vmax.f32 %v8362, %v8372
  %v8383 = vmax.f32 %v8363, %v8373
  %v8384 = vmax.f32 %v8364, %v8374
  %v8385 = vmax.f32 %v8365, %v8375
  %v8386 = vmax.f32 %v8366, %v8376
  %v8387 = vmax.f32 %v8367, %v8377
  %v8388 = vmax.f32 %v8368, %v8378
  %v8389 = vmax.f32 %v8369, %v8379
  %8390 = vst.msk [vmem:[#allocation3] sm:$0xff] %vm1576, %v8380
  %8391 = vst.msk [vmem:[#allocation3 + $0x8] sm:$0xff] %vm1576, %v8381
  %8392 = vst.msk [vmem:[#allocation3 + $0x10] sm:$0xff] %vm1576, %v8382
  %8393 = vst.msk [vmem:[#allocation3 + $0x18] sm:$0xff] %vm1576, %v8383
  %8394 = vst.msk [vmem:[#allocation3 + $0x20] sm:$0xff] %vm1576, %v8384
  %8395 = vst.msk [vmem:[#allocation3 + $0x28] sm:$0xff] %vm1576, %v8385
  %8396 = vst.msk [vmem:[#allocation3 + $0x30] sm:$0xff] %vm1576, %v8386
  %8397 = vst.msk [vmem:[#allocation3 + $0x38] sm:$0xff] %vm1576, %v8387
  %8398 = vst.msk [vmem:[#allocation3 + $0x40] sm:$0xff] %vm1576, %v8388
  %8399 = vst.msk [vmem:[#allocation3 + $0x48] sm:$0xff] %vm1576, %v8389
  %v8400 = vld [vmem:[#allocation3] ss:$48 sm:$0x3]
  %s8401 = scalar_lea.vmem [#allocation3], 8
  %v8402 = vld [vmem:[%s8401] ss:$48 sm:$0x3]
  %v8403 = vmax.f32 %v8400, %v8402
  %s8404 = scalar_lea.vmem [#allocation3], 2
  %v8405 = vld [vmem:[%s8404] ss:$48 sm:$0x3]
  %s8406 = scalar_lea.vmem [#allocation3], 10
  %v8407 = vld [vmem:[%s8406] ss:$48 sm:$0x3]
  %v8408 = vmax.f32 %v8405, %v8407
  %v8409 = vld [vmem:[%s7127] ss:$48 sm:$0x3]
  %s8410 = scalar_lea.vmem [#allocation3], 24
  %v8411 = vld [vmem:[%s8410] ss:$48 sm:$0x3]
  %v8412 = vmax.f32 %v8409, %v8411
  %s8413 = scalar_lea.vmem [#allocation3], 18
  %v8414 = vld [vmem:[%s8413] ss:$48 sm:$0x3]
  %s8415 = scalar_lea.vmem [#allocation3], 26
  %v8416 = vld [vmem:[%s8415] ss:$48 sm:$0x3]
  %v8417 = vmax.f32 %v8414, %v8416
  %8419 = vrot.lane.b32.xlu0 %v8408, 64
  %v8420 = vpop.permute.xlu0 %8419
  %8423 = vrot.lane.b32.xlu0 %v8417, 64
  %v8424 = vpop.permute.xlu0 %8423
  %v8426 = vsel %vm1576, %v8403, %v8420
  %v8427 = vsel %vm1576, %v8412, %v8424
  %v8428 = vld [vmem:[%s11] sm:$0xff]
  %v8429 = vld [vmem:[%s11 + $0x8] sm:$0xff]
  %v8430 = vld [vmem:[%s11 + $0x10] sm:$0xff]
  %v8431 = vld [vmem:[%s11 + $0x18] sm:$0xff]
  %v8432 = vld [vmem:[%s11 + $0x20] sm:$0xff]
  %v8433 = vld [vmem:[%s11 + $0x28] sm:$0xff]
  %v8434 = vld [vmem:[%s11 + $0x30] sm:$0xff]
  %v8435 = vld [vmem:[%s11 + $0x38] sm:$0xff]
  %v8436 = vld [vmem:[%s11 + $0x40] sm:$0xff]
  %v8437 = vld [vmem:[%s11 + $0x48] sm:$0xff]
  %v8438 = vld [vmem:[%s11 + $0x50] sm:$0xff]
  %v8439 = vld [vmem:[%s11 + $0x58] sm:$0xff]
  %v8440 = vld [vmem:[%s11 + $0x60] sm:$0xff]
  %v8441 = vld [vmem:[%s11 + $0x68] sm:$0xff]
  %v8442 = vld [vmem:[%s11 + $0x70] sm:$0xff]
  %v8443 = vld [vmem:[%s11 + $0x78] sm:$0xff]
  %v8444 = vld [vmem:[%s11 + $0x80] sm:$0xff]
  %v8445 = vld [vmem:[%s11 + $0x88] sm:$0xff]
  %v8446 = vld [vmem:[%s11 + $0x90] sm:$0xff]
  %v8447 = vld [vmem:[%s11 + $0x98] sm:$0xff]
  %v8448 = vld [vmem:[%s11 + $0xa0] sm:$0xff]
  %v8449 = vld [vmem:[%s11 + $0xa8] sm:$0xff]
  %v8450 = vld [vmem:[%s11 + $0xb0] sm:$0xff]
  %v8451 = vld [vmem:[%s11 + $0xb8] sm:$0xff]
  %v8452 = vld [vmem:[%s11 + $0xc0] sm:$0xff]
  %v8453 = vld [vmem:[%s11 + $0xc8] sm:$0xff]
  %v8454 = vld [vmem:[%s11 + $0xd0] sm:$0xff]
  %v8455 = vld [vmem:[%s11 + $0xd8] sm:$0xff]
  %v8456 = vld [vmem:[%s11 + $0xe0] sm:$0xff]
  %v8457 = vld [vmem:[%s11 + $0xe8] sm:$0xff]
  %v8458 = vld [vmem:[%s11 + $0xf0] sm:$0xff]
  %v8459 = vld [vmem:[%s11 + $0xf8] sm:$0xff]
  %v8460 = vld [vmem:[%s12] sm:$0x1]
  %v8462 = vperm.slane %v8460, 0
  %8464 = vmatpush.msra.mxu0 %v8443
  %8465 = vmatpush.msra.mxu0 %v8442
  %8466 = vmatpush.msra.mxu0 %v8441
  %8467 = vmatpush.msra.mxu0 %v8440
  %8468 = vmatpush.msra.mxu0 %v8439
  %8469 = vmatpush.msra.mxu0 %v8438
  %8470 = vmatpush.msra.mxu0 %v8437
  %8471 = vmatpush.msra.mxu0 %v8436
  %8472 = vmatpush.msra.mxu0 %v8435
  %8473 = vmatpush.msra.mxu0 %v8434
  %8474 = vmatpush.msra.mxu0 %v8433
  %8475 = vmatpush.msra.mxu0 %v8432
  %8476 = vmatpush.msra.mxu0 %v8431
  %8477 = vmatpush.msra.mxu0 %v8430
  %8478 = vmatpush.msra.mxu0 %v8429
  %8479 = vmatpush.msra.mxu0 %v8428
  %8480 = vmatmul.f32.gmra.mxu0 %v8426
  %v8481 = vpop.f32.mrf.mxu0
  %v8482 = vadd.f32 %v8462, %v8481
  %8483 = vdwg.mxu0
  %8484 = vmatpush.msra.mxu0 %v8459
  %8485 = vmatpush.msra.mxu0 %v8458
  %8486 = vmatpush.msra.mxu0 %v8457
  %8487 = vmatpush.msra.mxu0 %v8456
  %8488 = vmatpush.msra.mxu0 %v8455
  %8489 = vmatpush.msra.mxu0 %v8454
  %8490 = vmatpush.msra.mxu0 %v8453
  %8491 = vmatpush.msra.mxu0 %v8452
  %8492 = vmatpush.msra.mxu0 %v8451
  %8493 = vmatpush.msra.mxu0 %v8450
  %8494 = vmatpush.msra.mxu0 %v8449
  %8495 = vmatpush.msra.mxu0 %v8448
  %8496 = vmatpush.msra.mxu0 %v8447
  %8497 = vmatpush.msra.mxu0 %v8446
  %8498 = vmatpush.msra.mxu0 %v8445
  %8499 = vmatpush.msra.mxu0 %v8444
  %8500 = vmatmul.f32.gmra.mxu0 %v8427
  %v8501 = vpop.f32.mrf.mxu0
  %v8502 = vadd.f32 %v8482, %v8501
  %8503 = vdwg.mxu0
  %v8504 = vmax.f32 %v8502, 0.0
  %v8505 = vld [vmem:[%s13] sm:$0xff]
  %v8506 = vld [vmem:[#allocation6] sm:$0x1]
  %v8508 = vperm.slane %v8506, 0
  %vm8510 = vcmask 64512
  %v8512 = vsel %vm8510, %v8504, 0
  %8514 = vmatpush.msra.mxu0 0.0
  %8515 = vmatpush.msra.mxu0 0.0
  %8516 = vmatpush.msra.mxu0 0.0
  %8517 = vmatpush.msra.mxu0 0.0
  %8518 = vmatpush.msra.mxu0 0.0
  %8519 = vmatpush.msra.mxu0 0.0
  %8520 = vmatpush.msra.mxu0 0.0
  %8521 = vmatpush.msra.mxu0 0.0
  %8522 = vmatpush.msra.mxu0 0.0
  %8523 = vmatpush.msra.mxu0 0.0
  %8524 = vmatpush.msra.mxu0 0.0
  %8525 = vmatpush.msra.mxu0 0.0
  %8526 = vmatpush.msra.mxu0 0.0
  %8527 = vmatpush.msra.mxu0 0.0
  %8528 = vmatpush.msra.mxu0 0.0
  %8529 = vmatpush.msra.mxu0 %v8505
  %8530 = vmatmul.f32.gmra.mxu0 %v8512
  %v8531 = vpop.f32.mrf.mxu0
  %v8532 = vadd.f32 %v8508, %v8531
  %8533 = vdwg.mxu0
  %v8534 = vsub.f32 0.0, %v8532
  %v8535 = vmul.f32 %v8534, 1.442695
  %v8536 = vpow.pop %v8535
  %v8537 = vadd.f32 %v8536, 1.0
  %v8538 = vrcp.pop %v8537
  %v8539 = vmul.f32 %v8537, %v8538
  %v8540 = vsub.f32 1.0, %v8539
  %v8541 = vmul.f32 %v8538, %v8540
  %v8542 = vadd.f32 %v8538, %v8541
  %vm8543 = vweird.f32 %v8537
  %vm8544 = vweird.f32 %v8538
  %vm8545 = vmor %vm8543, %vm8544
  %v8546 = vsel %vm8545, %v8538, %v8542
  %v8547 = vand.u32 2147483647, %v8537
  %vm8548 = vcmp.eq.f32.partialorder %v8547, 8.507059e+37
  %v8549 = vand.u32 %v8537, 2147483648
  %v8550 = vor.u32 1.1754944e-38, %v8549
  %v8551 = vsel %vm8548, %v8550, %v8546
  %v8552 = vmul.f32 1.0, %v8551
  %vm8553 = vcmask 1024
  %8554 = vst.msk [vmem:[%s15] sm:$0x3] %vm8553, %v8552
  // Predicated region
  $region62: #{tpu_custom_call.1} parent=0 // pred_check
    _
  $region63: #{tpu_custom_call.1} parent=0 // pred_check_branch
    %8556 = sbr.rel (0) target = $region65
  $region64: #{tpu_custom_call.1} parent=0 // pred_region
    _
  $region65: #{tpu_custom_call.1} parent=0 // pred_fallthru
    _
  // Predicated region
  $region66: #{tpu_custom_call.1} parent=0 // pred_check
    _
  $region67: #{tpu_custom_call.1} parent=0 // pred_check_branch
    %8558 = sbr.rel (0) target = $region69
  $region68: #{tpu_custom_call.1} parent=0 // pred_region
    _
  $region69: #{tpu_custom_call.1} parent=0 // pred_fallthru
    _

</llo_original>
